<compile_context>
chip_gen: v7x
topology: tpu7x:2x2x1
jax: 0.10.0
libtpu: 0.0.40
codegen_flags: <defaults>
</compile_context>

<pallas_src>
import jax
import jax.numpy as jnp
from jax.experimental import pallas as pl
from jax.experimental.pallas import tpu as pltpu

# ---- fixed LeNet geometry (forced by fc1 fan-in = 16*5*5 -> 3x32x32 input) ----
H0, W0 = 32, 32
KH, KW = 5, 5
OH1, OW1 = 28, 28            # conv1 output spatial
PH1, PW1 = 14, 14            # after 2x2/2 pool
OH2, OW2 = 10, 10            # conv2 output spatial
PH2, PW2 = 5, 5              # after 2x2/2 pool
CIN = 3
C1, C1_PAD = 6, 8            # conv1 out channels (padded to 8 lanes)
C2 = 16                      # conv2 out channels
K1, K1_PAD = KH * KW * CIN, 128        # conv1 im2col K: 75 -> 128
K2, K2_PAD = KH * KW * C1_PAD, 256     # conv2 im2col K: 200 -> 256
L2 = (OH2 - 1) * PW1 + OW2             # 136: shifted-slice slab rows for conv2
XP1_ROWS = OH1 * (OW1 // 2)            # 392: x-pooled conv1 rows
XP2_W = PW1 // 2                       # 7: x-pooled conv2 row pitch
NFEAT = PH2 * PW2 * C2                 # 400
FC_PAD = 128


# ---------------------------------------------------------------------------
# Kernel 1 (grid over batch): conv1 + pool + conv2 + pool, all in VMEM
# ---------------------------------------------------------------------------
def _conv_trunk_kernel(xcol_ref, w1_ref, b1_ref, w2_ref, b2_ref, feat_ref,
                       acc1, xpool1, pooled1, col2, acc2, xpool2):
    # ---- conv1: one K-packed bf16 MXU matmul (784, 128) @ (128, 8) -> f32 ----
    acc1[...] = jnp.dot(xcol_ref[0], w1_ref[...],
                        preferred_element_type=jnp.float32)

    # ---- pool1 / x: two whole-slab stride-2 slices (rows are consecutive in x) ----
    xpool1[...] = jnp.maximum(acc1[pl.ds(0, XP1_ROWS, stride=2), :],
                              acc1[pl.ds(1, XP1_ROWS, stride=2), :])

    # ---- pool1 / y + bias + ReLU (both commute with max); rows = y*14 + x ----
    bias1 = b1_ref[...]                                   # (1, 8), hoisted
    for yp in range(PH1):
        a = xpool1[pl.ds(2 * yp * PW1, PW1), :]           # even conv row
        b = xpool1[pl.ds((2 * yp + 1) * PW1, PW1), :]     # odd conv row
        pooled1[pl.ds(yp * PW1, PW1), :] = jnp.maximum(
            jnp.maximum(a, b) + bias1, 0.0)

    # ---- conv2 im2col in VMEM: 25 static lane-offset column copies (K packing) ----
    col2[:, K2:] = jnp.zeros((L2, K2_PAD - K2), col2.dtype)   # keep pad K lanes clean
    for i in range(KH):
        for j in range(KW):
            t = i * KW + j
            col2[:, t * C1_PAD:(t + 1) * C1_PAD] = (
                pooled1[pl.ds(i * PW1 + j, L2), :].astype(col2.dtype))

    # ---- conv2: one K-packed bf16 matmul (136, 256) @ (256, 16) -> f32 ----
    acc2[...] = jnp.dot(col2[...], w2_ref[...],
                        preferred_element_type=jnp.float32)

    # ---- pool2 / x: whole-slab stride-2 slices ----
    xpool2[...] = jnp.maximum(acc2[pl.ds(0, L2 // 2, stride=2), :],
                              acc2[pl.ds(1, L2 // 2, stride=2), :])

    # ---- pool2 / y + bias + ReLU -> (25, 16) pooled features, rows = yp*5 + xp ----
    bias2 = b2_ref[...]                                   # (1, 16), hoisted
    for yp in range(PH2):
        a = xpool2[pl.ds(2 * yp * XP2_W, PW2), :]
        b = xpool2[pl.ds((2 * yp + 1) * XP2_W, PW2), :]
        feat_ref[0, pl.ds(yp * PW2, PW2), :] = jnp.maximum(
            jnp.maximum(a, b) + bias2, 0.0)


def conv_trunk(xcol, w1, b1, w2, b2):
    n = xcol.shape[0]
    return pl.pallas_call(
        _conv_trunk_kernel,
        out_shape=jax.ShapeDtypeStruct((n, PH2 * PW2, C2), jnp.float32),
        grid=(n,),
        in_specs=[
            pl.BlockSpec((1, OH1 * OW1, K1_PAD), lambda b: (b, 0, 0)),  # per-image im2col
            pl.BlockSpec((K1_PAD, C1_PAD), lambda b: (0, 0)),           # weights stay
            pl.BlockSpec((1, C1_PAD), lambda b: (0, 0)),                # VMEM-resident
            pl.BlockSpec((K2_PAD, C2), lambda b: (0, 0)),               # (constant index
            pl.BlockSpec((1, C2), lambda b: (0, 0)),                    #  maps)
        ],
        out_specs=pl.BlockSpec((1, PH2 * PW2, C2), lambda b: (b, 0, 0)),
        scratch_shapes=[
            pltpu.VMEM((OH1 * OW1, C1_PAD), jnp.float32),   # acc1   (784, 8)
            pltpu.VMEM((XP1_ROWS, C1_PAD), jnp.float32),    # xpool1 (392, 8)
            pltpu.VMEM((PH1 * PW1, C1_PAD), jnp.float32),   # pooled1(196, 8)
            pltpu.VMEM((L2, K2_PAD), jnp.bfloat16),         # col2   (136, 256)
            pltpu.VMEM((L2, C2), jnp.float32),              # acc2   (136, 16)
            pltpu.VMEM((L2 // 2, C2), jnp.float32),         # xpool2 (68, 16)
        ],
        compiler_params=pltpu.CompilerParams(
            dimension_semantics=("parallel",)),             # megacore on v7x
    )(xcol, w1, b1, w2, b2)


# ---------------------------------------------------------------------------
# Kernel 2: fused fc1 + ReLU + fc2 + ReLU + fc3, whole batch (M padded to 8)
# ---------------------------------------------------------------------------
def _fc_stack_kernel(a_ref, w1_ref, b1_ref, w2_ref, b2_ref, w3_ref, b3_ref, o_ref):
    z = jnp.dot(a_ref[...], w1_ref[...],
                preferred_element_type=jnp.float32) + b1_ref[...]
    z = jnp.maximum(z, 0.0).astype(jnp.bfloat16)
    z = jnp.dot(z, w2_ref[...],
                preferred_element_type=jnp.float32) + b2_ref[...]
    z = jnp.maximum(z, 0.0).astype(jnp.bfloat16)
    o_ref[...] = jnp.dot(z, w3_ref[...],
                         preferred_element_type=jnp.float32) + b3_ref[...]


def fc_stack(a, w1, b1, w2, b2, w3, b3):
    m = a.shape[0]
    return pl.pallas_call(
        _fc_stack_kernel,
        out_shape=jax.ShapeDtypeStruct((m, FC_PAD), jnp.float32),
        in_specs=[pl.BlockSpec(memory_space=pltpu.MemorySpace.VMEM)] * 7,
        out_specs=pl.BlockSpec(memory_space=pltpu.MemorySpace.VMEM),
    )(a, w1, b1, w2, b2, w3, b3)


# ---------------------------------------------------------------------------
# Parameters: PyTorch-layout init + one-time packing (all layout work off hot path)
# ---------------------------------------------------------------------------
def init_torch_params(key):
    """Deterministic synthetic params, PyTorch layouts & uniform(-1/sqrt(fan_in), ...)."""
    def uniform(k, shape, fan_in):
        bound = 1.0 / float(fan_in) ** 0.5
        return jax.random.uniform(k, shape, jnp.float32, -bound, bound)
    ks = jax.random.split(key, 10)
    return {
        "conv1_w": uniform(ks[0], (6, 3, 5, 5), 3 * 5 * 5),
        "conv1_b": uniform(ks[1], (6,), 3 * 5 * 5),
        "conv2_w": uniform(ks[2], (16, 6, 5, 5), 6 * 5 * 5),
        "conv2_b": uniform(ks[3], (16,), 6 * 5 * 5),
        "fc1_w": uniform(ks[4], (120, 16 * 5 * 5), 16 * 5 * 5),
        "fc1_b": uniform(ks[5], (120,), 16 * 5 * 5),
        "fc2_w": uniform(ks[6], (84, 120), 120),
        "fc2_b": uniform(ks[7], (84,), 120),
        "fc3_w": uniform(ks[8], (10, 84), 84),
        "fc3_b": uniform(ks[9], (10,), 84),
    }


def pack_params(p):
    """Fold OIHW->(tap,cin,cout) transposes, the torch NCHW-flatten permutation,
    lane padding and bf16 casts into the weights once."""
    # conv1: rows k = (i*5 + j)*3 + c, pad K 75->128, out channels 6->8
    w1 = jnp.transpose(p["conv1_w"], (2, 3, 1, 0)).reshape(K1, C1)
    w1 = jnp.pad(w1, ((0, K1_PAD - K1), (0, C1_PAD - C1))).astype(jnp.bfloat16)
    b1 = jnp.pad(p["conv1_b"], (0, C1_PAD - C1)).reshape(1, C1_PAD).astype(jnp.float32)

    # conv2: rows k = (i*5 + j)*8 + c (c padded 6->8 to match pooled1 lanes), pad K to 256
    w2 = jnp.transpose(p["conv2_w"], (2, 3, 1, 0))                  # (5,5,6,16)
    w2 = jnp.pad(w2, ((0, 0), (0, 0), (0, C1_PAD - C1), (0, 0))).reshape(K2, C2)
    w2 = jnp.pad(w2, ((0, K2_PAD - K2), (0, 0))).astype(jnp.bfloat16)
    b2 = p["conv2_b"].reshape(1, C2).astype(jnp.float32)

    # fc1: torch flatten index f = c*25 + p; our features are f = p*16 + c.
    f1 = p["fc1_w"].reshape(120, C2, PH2 * PW2)          # (o, c, p)
    f1 = jnp.transpose(f1, (2, 1, 0)).reshape(NFEAT, 120)  # rows = p*16 + c
    fc1_w = jnp.pad(f1, ((0, 0), (0, FC_PAD - 120))).astype(jnp.bfloat16)
    fc1_b = jnp.pad(p["fc1_b"], (0, FC_PAD - 120)).reshape(1, FC_PAD).astype(jnp.float32)
    fc2_w = jnp.pad(p["fc2_w"].T, ((0, FC_PAD - 120), (0, FC_PAD - 84))).astype(jnp.bfloat16)
    fc2_b = jnp.pad(p["fc2_b"], (0, FC_PAD - 84)).reshape(1, FC_PAD).astype(jnp.float32)
    fc3_w = jnp.pad(p["fc3_w"].T, ((0, FC_PAD - 84), (0, FC_PAD - 10))).astype(jnp.bfloat16)
    fc3_b = jnp.pad(p["fc3_b"], (0, FC_PAD - 10)).reshape(1, FC_PAD).astype(jnp.float32)
    return {"conv1_w": w1, "conv1_b": b1, "conv2_w": w2, "conv2_b": b2,
            "fc1_w": fc1_w, "fc1_b": fc1_b, "fc2_w": fc2_w, "fc2_b": fc2_b,
            "fc3_w": fc3_w, "fc3_b": fc3_b}


# ---------------------------------------------------------------------------
# Forward pass
# ---------------------------------------------------------------------------
def _conv1_im2col(x_nchw):
    """(N,3,32,32) -> (N, 784, 128) bf16 im2col slab, K = (tap_i, tap_j, c) padded."""
    n = x_nchw.shape[0]
    x = jnp.transpose(x_nchw, (0, 2, 3, 1))                       # NHWC
    taps = [x[:, i:i + OH1, j:j + OW1, :] for i in range(KH) for j in range(KW)]
    cols = jnp.stack(taps, axis=3)                                # (N,28,28,25,3)
    cols = cols.reshape(n, OH1 * OW1, K1)
    cols = jnp.pad(cols, ((0, 0), (0, 0), (0, K1_PAD - K1)))
    return cols.astype(jnp.bfloat16)


def net_forward(pk, x_nchw):
    n = x_nchw.shape[0]
    xcol = _conv1_im2col(x_nchw)
    feat = conv_trunk(xcol, pk["conv1_w"], pk["conv1_b"], pk["conv2_w"], pk["conv2_b"])
    # flatten: free reshape; the torch (C,H,W)-flatten permutation lives in fc1_w.
    a = feat.reshape(n, NFEAT).astype(jnp.bfloat16)
    m_pad = max(8, -(-n // 8) * 8)                 # fc batch padded to 8 sublanes
    a = jnp.pad(a, ((0, m_pad - n), (0, 0)))
    out = fc_stack(a, pk["fc1_w"], pk["fc1_b"], pk["fc2_w"], pk["fc2_b"],
                   pk["fc3_w"], pk["fc3_b"])
    return out[:n, :10]                            # slice lane padding at the very end


if __name__ == "__main__":
    key = jax.random.PRNGKey(0)
    pkey, xkey = jax.random.split(key)
    packed = pack_params(init_torch_params(pkey))
    # Module geometry forces 3x32x32 input: 32 -conv5-> 28 -pool-> 14 -conv5-> 10
    # -pool-> 5, flatten 16*5*5 = 400 = fc1 fan-in.  Batch = 2.
    x = jax.random.normal(xkey, (2, 3, 32, 32), jnp.float32)
    out = jax.jit(net_forward)(packed, x)
    jax.block_until_ready(out)
    assert out.shape == (2, 10) and out.dtype == jnp.float32
    assert bool(jnp.all(jnp.isfinite(out)))
    print("KERNEL_OK")
</pallas_src>

<mosaic_0001>
module attributes {stable_mosaic.version = 11 : i64} {
  func.func @_fc_stack_kernel(%arg0: memref<8x400xbf16, #tpu.memory_space<vmem>>, %arg1: memref<400x128xbf16, #tpu.memory_space<vmem>>, %arg2: memref<1x128xf32, #tpu.memory_space<vmem>>, %arg3: memref<128x128xbf16, #tpu.memory_space<vmem>>, %arg4: memref<1x128xf32, #tpu.memory_space<vmem>>, %arg5: memref<128x128xbf16, #tpu.memory_space<vmem>>, %arg6: memref<1x128xf32, #tpu.memory_space<vmem>>, %arg7: memref<8x128xf32, #tpu.memory_space<vmem>>) attributes {dimension_semantics = [], scalar_prefetch = 0 : i64, scratch_operands = 0 : i64, tpu.core_type = #tpu.core_type<tc>} {
    %c0 = arith.constant 0 : index
    %c0_0 = arith.constant 0 : index
    %0 = vector.load %arg0[%c0, %c0_0] : memref<8x400xbf16, #tpu.memory_space<vmem>>, vector<8x400xbf16>
    %c0_1 = arith.constant 0 : index
    %c0_2 = arith.constant 0 : index
    %1 = vector.load %arg1[%c0_1, %c0_2] : memref<400x128xbf16, #tpu.memory_space<vmem>>, vector<400x128xbf16>
    %cst = arith.constant dense<0.000000e+00> : vector<8x128xf32>
    %2 = tpu.matmul %0, %1, %cst {dimension_numbers = #tpu.dot_dimension_numbers<[1], [0], [0], [1], [0, 0, 1, 1], [], []>} : vector<8x400xbf16>, vector<400x128xbf16>, vector<8x128xf32> -> vector<8x128xf32>
    %c0_3 = arith.constant 0 : index
    %c0_4 = arith.constant 0 : index
    %3 = vector.load %arg2[%c0_3, %c0_4] : memref<1x128xf32, #tpu.memory_space<vmem>>, vector<1x128xf32>
    %4 = vector.broadcast %3 : vector<1x128xf32> to vector<8x128xf32>
    %5 = arith.addf %2, %4 : vector<8x128xf32>
    %cst_5 = arith.constant 0.000000e+00 : f32
    %6 = vector.broadcast %cst_5 : f32 to vector<8x128xf32>
    %7 = arith.maximumf %5, %6 : vector<8x128xf32>
    %8 = arith.truncf %7 : vector<8x128xf32> to vector<8x128xbf16>
    %c0_6 = arith.constant 0 : index
    %c0_7 = arith.constant 0 : index
    %9 = vector.load %arg3[%c0_6, %c0_7] : memref<128x128xbf16, #tpu.memory_space<vmem>>, vector<128x128xbf16>
    %cst_8 = arith.constant dense<0.000000e+00> : vector<8x128xf32>
    %10 = tpu.matmul %8, %9, %cst_8 {dimension_numbers = #tpu.dot_dimension_numbers<[1], [0], [0], [1], [0, 0, 1, 1], [], []>} : vector<8x128xbf16>, vector<128x128xbf16>, vector<8x128xf32> -> vector<8x128xf32>
    %c0_9 = arith.constant 0 : index
    %c0_10 = arith.constant 0 : index
    %11 = vector.load %arg4[%c0_9, %c0_10] : memref<1x128xf32, #tpu.memory_space<vmem>>, vector<1x128xf32>
    %12 = vector.broadcast %11 : vector<1x128xf32> to vector<8x128xf32>
    %13 = arith.addf %10, %12 : vector<8x128xf32>
    %cst_11 = arith.constant 0.000000e+00 : f32
    %14 = vector.broadcast %cst_11 : f32 to vector<8x128xf32>
    %15 = arith.maximumf %13, %14 : vector<8x128xf32>
    %16 = arith.truncf %15 : vector<8x128xf32> to vector<8x128xbf16>
    %c0_12 = arith.constant 0 : index
    %c0_13 = arith.constant 0 : index
    %17 = vector.load %arg5[%c0_12, %c0_13] : memref<128x128xbf16, #tpu.memory_space<vmem>>, vector<128x128xbf16>
    %cst_14 = arith.constant dense<0.000000e+00> : vector<8x128xf32>
    %18 = tpu.matmul %16, %17, %cst_14 {dimension_numbers = #tpu.dot_dimension_numbers<[1], [0], [0], [1], [0, 0, 1, 1], [], []>} : vector<8x128xbf16>, vector<128x128xbf16>, vector<8x128xf32> -> vector<8x128xf32>
    %c0_15 = arith.constant 0 : index
    %c0_16 = arith.constant 0 : index
    %19 = vector.load %arg6[%c0_15, %c0_16] : memref<1x128xf32, #tpu.memory_space<vmem>>, vector<1x128xf32>
    %20 = vector.broadcast %19 : vector<1x128xf32> to vector<8x128xf32>
    %21 = arith.addf %18, %20 : vector<8x128xf32>
    %c0_17 = arith.constant 0 : index
    %c0_18 = arith.constant 0 : index
    %22 = vector.load %arg7[%c0_17, %c0_18] : memref<8x128xf32, #tpu.memory_space<vmem>>, vector<8x128xf32>
    tpu.vector_store %arg7[%c0_17, %c0_18], %21 {strides = array<i32>} : memref<8x128xf32, #tpu.memory_space<vmem>>, vector<8x128xf32>,
    return
  }
}

module attributes {stable_mosaic.version = 11 : i64} {
  func.func @_conv_trunk_kernel(%arg0: i32, %arg1: memref<1x784x128xbf16, #tpu.memory_space<vmem>>, %arg2: memref<128x8xbf16, #tpu.memory_space<vmem>>, %arg3: memref<1x8xf32, #tpu.memory_space<vmem>>, %arg4: memref<256x16xbf16, #tpu.memory_space<vmem>>, %arg5: memref<1x16xf32, #tpu.memory_space<vmem>>, %arg6: memref<1x25x16xf32, #tpu.memory_space<vmem>>, %arg7: memref<784x8xf32, #tpu.memory_space<vmem>>, %arg8: memref<392x8xf32, #tpu.memory_space<vmem>>, %arg9: memref<196x8xf32, #tpu.memory_space<vmem>>, %arg10: memref<136x256xbf16, #tpu.memory_space<vmem>>, %arg11: memref<136x16xf32, #tpu.memory_space<vmem>>, %arg12: memref<68x16xf32, #tpu.memory_space<vmem>>) attributes {dimension_semantics = [#tpu.dimension_semantics<parallel>], iteration_bounds = array<i64: 2>, scalar_prefetch = 0 : i64, scratch_operands = 6 : i64, tpu.core_type = #tpu.core_type<tc>, window_params = [{transform_indices = @transform_0, window_bounds = array<i64: 1, 784, 128>}, {pipeline_mode = #tpu.pipeline_mode<synchronous>, transform_indices = @transform_1, window_bounds = array<i64: 128, 8>}, {pipeline_mode = #tpu.pipeline_mode<synchronous>, transform_indices = @transform_2, window_bounds = array<i64: 1, 8>}, {pipeline_mode = #tpu.pipeline_mode<synchronous>, transform_indices = @transform_3, window_bounds = array<i64: 256, 16>}, {pipeline_mode = #tpu.pipeline_mode<synchronous>, transform_indices = @transform_4, window_bounds = array<i64: 1, 16>}, {transform_indices = @transform_5, window_bounds = array<i64: 1, 25, 16>}]} {
    %c0 = arith.constant 0 : index
    %c0_0 = arith.constant 0 : index
    %c0_1 = arith.constant 0 : index
    %0 = vector.load %arg1[%c0, %c0_0, %c0_1] : memref<1x784x128xbf16, #tpu.memory_space<vmem>>, vector<1x784x128xbf16>
    %1 = vector.shape_cast %0 : vector<1x784x128xbf16> to vector<784x128xbf16>
    %c0_2 = arith.constant 0 : index
    %c0_3 = arith.constant 0 : index
    %2 = vector.load %arg2[%c0_2, %c0_3] : memref<128x8xbf16, #tpu.memory_space<vmem>>, vector<128x8xbf16>
    %cst = arith.constant dense<0.000000e+00> : vector<784x8xf32>
    %3 = tpu.matmul %1, %2, %cst {dimension_numbers = #tpu.dot_dimension_numbers<[1], [0], [0], [1], [0, 0, 1, 1], [], []>} : vector<784x128xbf16>, vector<128x8xbf16>, vector<784x8xf32> -> vector<784x8xf32>
    %c0_4 = arith.constant 0 : index
    %c0_5 = arith.constant 0 : index
    %4 = vector.load %arg7[%c0_4, %c0_5] : memref<784x8xf32, #tpu.memory_space<vmem>>, vector<784x8xf32>
    tpu.vector_store %arg7[%c0_4, %c0_5], %3 {strides = array<i32>} : memref<784x8xf32, #tpu.memory_space<vmem>>, vector<784x8xf32>,
    %c0_6 = arith.constant 0 : index
    %c0_7 = arith.constant 0 : index
    %5 = tpu.strided_load %arg7[%c0_6, %c0_7] {strides = array<i32: 2, 1>} : memref<784x8xf32, #tpu.memory_space<vmem>>, vector<392x8xf32>
    %c1 = arith.constant 1 : index
    %c0_8 = arith.constant 0 : index
    %6 = tpu.strided_load %arg7[%c1, %c0_8] {strides = array<i32: 2, 1>} : memref<784x8xf32, #tpu.memory_space<vmem>>, vector<392x8xf32>
    %7 = arith.maximumf %5, %6 : vector<392x8xf32>
    %c0_9 = arith.constant 0 : index
    %c0_10 = arith.constant 0 : index
    %8 = vector.load %arg8[%c0_9, %c0_10] : memref<392x8xf32, #tpu.memory_space<vmem>>, vector<392x8xf32>
    tpu.vector_store %arg8[%c0_9, %c0_10], %7 {strides = array<i32>} : memref<392x8xf32, #tpu.memory_space<vmem>>, vector<392x8xf32>,
    %c0_11 = arith.constant 0 : index
    %c0_12 = arith.constant 0 : index
    %9 = vector.load %arg3[%c0_11, %c0_12] : memref<1x8xf32, #tpu.memory_space<vmem>>, vector<1x8xf32>
    %c0_13 = arith.constant 0 : index
    %c0_14 = arith.constant 0 : index
    %10 = vector.load %arg8[%c0_13, %c0_14] : memref<392x8xf32, #tpu.memory_space<vmem>>, vector<14x8xf32>
    %c14 = arith.constant 14 : index
    %c0_15 = arith.constant 0 : index
    %11 = vector.load %arg8[%c14, %c0_15] : memref<392x8xf32, #tpu.memory_space<vmem>>, vector<14x8xf32>
    %12 = arith.maximumf %10, %11 : vector<14x8xf32>
    %13 = vector.broadcast %9 : vector<1x8xf32> to vector<14x8xf32>
    %14 = arith.addf %12, %13 : vector<14x8xf32>
    %cst_16 = arith.constant 0.000000e+00 : f32
    %15 = vector.broadcast %cst_16 : f32 to vector<14x8xf32>
    %16 = arith.maximumf %14, %15 : vector<14x8xf32>
    %c0_17 = arith.constant 0 : index
    %c0_18 = arith.constant 0 : index
    %17 = vector.load %arg9[%c0_17, %c0_18] : memref<196x8xf32, #tpu.memory_space<vmem>>, vector<14x8xf32>
    tpu.vector_store %arg9[%c0_17, %c0_18], %16 {strides = array<i32>} : memref<196x8xf32, #tpu.memory_space<vmem>>, vector<14x8xf32>,
    %c28 = arith.constant 28 : index
    %c0_19 = arith.constant 0 : index
    %18 = vector.load %arg8[%c28, %c0_19] : memref<392x8xf32, #tpu.memory_space<vmem>>, vector<14x8xf32>
    %c42 = arith.constant 42 : index
    %c0_20 = arith.constant 0 : index
    %19 = vector.load %arg8[%c42, %c0_20] : memref<392x8xf32, #tpu.memory_space<vmem>>, vector<14x8xf32>
    %20 = arith.maximumf %18, %19 : vector<14x8xf32>
    %21 = vector.broadcast %9 : vector<1x8xf32> to vector<14x8xf32>
    %22 = arith.addf %20, %21 : vector<14x8xf32>
    %cst_21 = arith.constant 0.000000e+00 : f32
    %23 = vector.broadcast %cst_21 : f32 to vector<14x8xf32>
    %24 = arith.maximumf %22, %23 : vector<14x8xf32>
    %c14_22 = arith.constant 14 : index
    %c0_23 = arith.constant 0 : index
    %25 = vector.load %arg9[%c14_22, %c0_23] : memref<196x8xf32, #tpu.memory_space<vmem>>, vector<14x8xf32>
    tpu.vector_store %arg9[%c14_22, %c0_23], %24 {strides = array<i32>} : memref<196x8xf32, #tpu.memory_space<vmem>>, vector<14x8xf32>,
    %c56 = arith.constant 56 : index
    %c0_24 = arith.constant 0 : index
    %26 = vector.load %arg8[%c56, %c0_24] : memref<392x8xf32, #tpu.memory_space<vmem>>, vector<14x8xf32>
    %c70 = arith.constant 70 : index
    %c0_25 = arith.constant 0 : index
    %27 = vector.load %arg8[%c70, %c0_25] : memref<392x8xf32, #tpu.memory_space<vmem>>, vector<14x8xf32>
    %28 = arith.maximumf %26, %27 : vector<14x8xf32>
    %29 = vector.broadcast %9 : vector<1x8xf32> to vector<14x8xf32>
    %30 = arith.addf %28, %29 : vector<14x8xf32>
    %cst_26 = arith.constant 0.000000e+00 : f32
    %31 = vector.broadcast %cst_26 : f32 to vector<14x8xf32>
    %32 = arith.maximumf %30, %31 : vector<14x8xf32>
    %c28_27 = arith.constant 28 : index
    %c0_28 = arith.constant 0 : index
    %33 = vector.load %arg9[%c28_27, %c0_28] : memref<196x8xf32, #tpu.memory_space<vmem>>, vector<14x8xf32>
    tpu.vector_store %arg9[%c28_27, %c0_28], %32 {strides = array<i32>} : memref<196x8xf32, #tpu.memory_space<vmem>>, vector<14x8xf32>,
    %c84 = arith.constant 84 : index
    %c0_29 = arith.constant 0 : index
    %34 = vector.load %arg8[%c84, %c0_29] : memref<392x8xf32, #tpu.memory_space<vmem>>, vector<14x8xf32>
    %c98 = arith.constant 98 : index
    %c0_30 = arith.constant 0 : index
    %35 = vector.load %arg8[%c98, %c0_30] : memref<392x8xf32, #tpu.memory_space<vmem>>, vector<14x8xf32>
    %36 = arith.maximumf %34, %35 : vector<14x8xf32>
    %37 = vector.broadcast %9 : vector<1x8xf32> to vector<14x8xf32>
    %38 = arith.addf %36, %37 : vector<14x8xf32>
    %cst_31 = arith.constant 0.000000e+00 : f32
    %39 = vector.broadcast %cst_31 : f32 to vector<14x8xf32>
    %40 = arith.maximumf %38, %39 : vector<14x8xf32>
    %c42_32 = arith.constant 42 : index
    %c0_33 = arith.constant 0 : index
    %41 = vector.load %arg9[%c42_32, %c0_33] : memref<196x8xf32, #tpu.memory_space<vmem>>, vector<14x8xf32>
    tpu.vector_store %arg9[%c42_32, %c0_33], %40 {strides = array<i32>} : memref<196x8xf32, #tpu.memory_space<vmem>>, vector<14x8xf32>,
    %c112 = arith.constant 112 : index
    %c0_34 = arith.constant 0 : index
    %42 = vector.load %arg8[%c112, %c0_34] : memref<392x8xf32, #tpu.memory_space<vmem>>, vector<14x8xf32>
    %c126 = arith.constant 126 : index
    %c0_35 = arith.constant 0 : index
    %43 = vector.load %arg8[%c126, %c0_35] : memref<392x8xf32, #tpu.memory_space<vmem>>, vector<14x8xf32>
    %44 = arith.maximumf %42, %43 : vector<14x8xf32>
    %45 = vector.broadcast %9 : vector<1x8xf32> to vector<14x8xf32>
    %46 = arith.addf %44, %45 : vector<14x8xf32>
    %cst_36 = arith.constant 0.000000e+00 : f32
    %47 = vector.broadcast %cst_36 : f32 to vector<14x8xf32>
    %48 = arith.maximumf %46, %47 : vector<14x8xf32>
    %c56_37 = arith.constant 56 : index
    %c0_38 = arith.constant 0 : index
    %49 = vector.load %arg9[%c56_37, %c0_38] : memref<196x8xf32, #tpu.memory_space<vmem>>, vector<14x8xf32>
    tpu.vector_store %arg9[%c56_37, %c0_38], %48 {strides = array<i32>} : memref<196x8xf32, #tpu.memory_space<vmem>>, vector<14x8xf32>,
    %c140 = arith.constant 140 : index
    %c0_39 = arith.constant 0 : index
    %50 = vector.load %arg8[%c140, %c0_39] : memref<392x8xf32, #tpu.memory_space<vmem>>, vector<14x8xf32>
    %c154 = arith.constant 154 : index
    %c0_40 = arith.constant 0 : index
    %51 = vector.load %arg8[%c154, %c0_40] : memref<392x8xf32, #tpu.memory_space<vmem>>, vector<14x8xf32>
    %52 = arith.maximumf %50, %51 : vector<14x8xf32>
    %53 = vector.broadcast %9 : vector<1x8xf32> to vector<14x8xf32>
    %54 = arith.addf %52, %53 : vector<14x8xf32>
    %cst_41 = arith.constant 0.000000e+00 : f32
    %55 = vector.broadcast %cst_41 : f32 to vector<14x8xf32>
    %56 = arith.maximumf %54, %55 : vector<14x8xf32>
    %c70_42 = arith.constant 70 : index
    %c0_43 = arith.constant 0 : index
    %57 = vector.load %arg9[%c70_42, %c0_43] : memref<196x8xf32, #tpu.memory_space<vmem>>, vector<14x8xf32>
    tpu.vector_store %arg9[%c70_42, %c0_43], %56 {strides = array<i32>} : memref<196x8xf32, #tpu.memory_space<vmem>>, vector<14x8xf32>,
    %c168 = arith.constant 168 : index
    %c0_44 = arith.constant 0 : index
    %58 = vector.load %arg8[%c168, %c0_44] : memref<392x8xf32, #tpu.memory_space<vmem>>, vector<14x8xf32>
    %c182 = arith.constant 182 : index
    %c0_45 = arith.constant 0 : index
    %59 = vector.load %arg8[%c182, %c0_45] : memref<392x8xf32, #tpu.memory_space<vmem>>, vector<14x8xf32>
    %60 = arith.maximumf %58, %59 : vector<14x8xf32>
    %61 = vector.broadcast %9 : vector<1x8xf32> to vector<14x8xf32>
    %62 = arith.addf %60, %61 : vector<14x8xf32>
    %cst_46 = arith.constant 0.000000e+00 : f32
    %63 = vector.broadcast %cst_46 : f32 to vector<14x8xf32>
    %64 = arith.maximumf %62, %63 : vector<14x8xf32>
    %c84_47 = arith.constant 84 : index
    %c0_48 = arith.constant 0 : index
    %65 = vector.load %arg9[%c84_47, %c0_48] : memref<196x8xf32, #tpu.memory_space<vmem>>, vector<14x8xf32>
    tpu.vector_store %arg9[%c84_47, %c0_48], %64 {strides = array<i32>} : memref<196x8xf32, #tpu.memory_space<vmem>>, vector<14x8xf32>,
    %c196 = arith.constant 196 : index
    %c0_49 = arith.constant 0 : index
    %66 = vector.load %arg8[%c196, %c0_49] : memref<392x8xf32, #tpu.memory_space<vmem>>, vector<14x8xf32>
    %c210 = arith.constant 210 : index
    %c0_50 = arith.constant 0 : index
    %67 = vector.load %arg8[%c210, %c0_50] : memref<392x8xf32, #tpu.memory_space<vmem>>, vector<14x8xf32>
    %68 = arith.maximumf %66, %67 : vector<14x8xf32>
    %69 = vector.broadcast %9 : vector<1x8xf32> to vector<14x8xf32>
    %70 = arith.addf %68, %69 : vector<14x8xf32>
    %cst_51 = arith.constant 0.000000e+00 : f32
    %71 = vector.broadcast %cst_51 : f32 to vector<14x8xf32>
    %72 = arith.maximumf %70, %71 : vector<14x8xf32>
    %c98_52 = arith.constant 98 : index
    %c0_53 = arith.constant 0 : index
    %73 = vector.load %arg9[%c98_52, %c0_53] : memref<196x8xf32, #tpu.memory_space<vmem>>, vector<14x8xf32>
    tpu.vector_store %arg9[%c98_52, %c0_53], %72 {strides = array<i32>} : memref<196x8xf32, #tpu.memory_space<vmem>>, vector<14x8xf32>,
    %c224 = arith.constant 224 : index
    %c0_54 = arith.constant 0 : index
    %74 = vector.load %arg8[%c224, %c0_54] : memref<392x8xf32, #tpu.memory_space<vmem>>, vector<14x8xf32>
    %c238 = arith.constant 238 : index
    %c0_55 = arith.constant 0 : index
    %75 = vector.load %arg8[%c238, %c0_55] : memref<392x8xf32, #tpu.memory_space<vmem>>, vector<14x8xf32>
    %76 = arith.maximumf %74, %75 : vector<14x8xf32>
    %77 = vector.broadcast %9 : vector<1x8xf32> to vector<14x8xf32>
    %78 = arith.addf %76, %77 : vector<14x8xf32>
    %cst_56 = arith.constant 0.000000e+00 : f32
    %79 = vector.broadcast %cst_56 : f32 to vector<14x8xf32>
    %80 = arith.maximumf %78, %79 : vector<14x8xf32>
    %c112_57 = arith.constant 112 : index
    %c0_58 = arith.constant 0 : index
    %81 = vector.load %arg9[%c112_57, %c0_58] : memref<196x8xf32, #tpu.memory_space<vmem>>, vector<14x8xf32>
    tpu.vector_store %arg9[%c112_57, %c0_58], %80 {strides = array<i32>} : memref<196x8xf32, #tpu.memory_space<vmem>>, vector<14x8xf32>,
    %c252 = arith.constant 252 : index
    %c0_59 = arith.constant 0 : index
    %82 = vector.load %arg8[%c252, %c0_59] : memref<392x8xf32, #tpu.memory_space<vmem>>, vector<14x8xf32>
    %c266 = arith.constant 266 : index
    %c0_60 = arith.constant 0 : index
    %83 = vector.load %arg8[%c266, %c0_60] : memref<392x8xf32, #tpu.memory_space<vmem>>, vector<14x8xf32>
    %84 = arith.maximumf %82, %83 : vector<14x8xf32>
    %85 = vector.broadcast %9 : vector<1x8xf32> to vector<14x8xf32>
    %86 = arith.addf %84, %85 : vector<14x8xf32>
    %cst_61 = arith.constant 0.000000e+00 : f32
    %87 = vector.broadcast %cst_61 : f32 to vector<14x8xf32>
    %88 = arith.maximumf %86, %87 : vector<14x8xf32>
    %c126_62 = arith.constant 126 : index
    %c0_63 = arith.constant 0 : index
    %89 = vector.load %arg9[%c126_62, %c0_63] : memref<196x8xf32, #tpu.memory_space<vmem>>, vector<14x8xf32>
    tpu.vector_store %arg9[%c126_62, %c0_63], %88 {strides = array<i32>} : memref<196x8xf32, #tpu.memory_space<vmem>>, vector<14x8xf32>,
    %c280 = arith.constant 280 : index
    %c0_64 = arith.constant 0 : index
    %90 = vector.load %arg8[%c280, %c0_64] : memref<392x8xf32, #tpu.memory_space<vmem>>, vector<14x8xf32>
    %c294 = arith.constant 294 : index
    %c0_65 = arith.constant 0 : index
    %91 = vector.load %arg8[%c294, %c0_65] : memref<392x8xf32, #tpu.memory_space<vmem>>, vector<14x8xf32>
    %92 = arith.maximumf %90, %91 : vector<14x8xf32>
    %93 = vector.broadcast %9 : vector<1x8xf32> to vector<14x8xf32>
    %94 = arith.addf %92, %93 : vector<14x8xf32>
    %cst_66 = arith.constant 0.000000e+00 : f32
    %95 = vector.broadcast %cst_66 : f32 to vector<14x8xf32>
    %96 = arith.maximumf %94, %95 : vector<14x8xf32>
    %c140_67 = arith.constant 140 : index
    %c0_68 = arith.constant 0 : index
    %97 = vector.load %arg9[%c140_67, %c0_68] : memref<196x8xf32, #tpu.memory_space<vmem>>, vector<14x8xf32>
    tpu.vector_store %arg9[%c140_67, %c0_68], %96 {strides = array<i32>} : memref<196x8xf32, #tpu.memory_space<vmem>>, vector<14x8xf32>,
    %c308 = arith.constant 308 : index
    %c0_69 = arith.constant 0 : index
    %98 = vector.load %arg8[%c308, %c0_69] : memref<392x8xf32, #tpu.memory_space<vmem>>, vector<14x8xf32>
    %c322 = arith.constant 322 : index
    %c0_70 = arith.constant 0 : index
    %99 = vector.load %arg8[%c322, %c0_70] : memref<392x8xf32, #tpu.memory_space<vmem>>, vector<14x8xf32>
    %100 = arith.maximumf %98, %99 : vector<14x8xf32>
    %101 = vector.broadcast %9 : vector<1x8xf32> to vector<14x8xf32>
    %102 = arith.addf %100, %101 : vector<14x8xf32>
    %cst_71 = arith.constant 0.000000e+00 : f32
    %103 = vector.broadcast %cst_71 : f32 to vector<14x8xf32>
    %104 = arith.maximumf %102, %103 : vector<14x8xf32>
    %c154_72 = arith.constant 154 : index
    %c0_73 = arith.constant 0 : index
    %105 = vector.load %arg9[%c154_72, %c0_73] : memref<196x8xf32, #tpu.memory_space<vmem>>, vector<14x8xf32>
    tpu.vector_store %arg9[%c154_72, %c0_73], %104 {strides = array<i32>} : memref<196x8xf32, #tpu.memory_space<vmem>>, vector<14x8xf32>,
    %c336 = arith.constant 336 : index
    %c0_74 = arith.constant 0 : index
    %106 = vector.load %arg8[%c336, %c0_74] : memref<392x8xf32, #tpu.memory_space<vmem>>, vector<14x8xf32>
    %c350 = arith.constant 350 : index
    %c0_75 = arith.constant 0 : index
    %107 = vector.load %arg8[%c350, %c0_75] : memref<392x8xf32, #tpu.memory_space<vmem>>, vector<14x8xf32>
    %108 = arith.maximumf %106, %107 : vector<14x8xf32>
    %109 = vector.broadcast %9 : vector<1x8xf32> to vector<14x8xf32>
    %110 = arith.addf %108, %109 : vector<14x8xf32>
    %cst_76 = arith.constant 0.000000e+00 : f32
    %111 = vector.broadcast %cst_76 : f32 to vector<14x8xf32>
    %112 = arith.maximumf %110, %111 : vector<14x8xf32>
    %c168_77 = arith.constant 168 : index
    %c0_78 = arith.constant 0 : index
    %113 = vector.load %arg9[%c168_77, %c0_78] : memref<196x8xf32, #tpu.memory_space<vmem>>, vector<14x8xf32>
    tpu.vector_store %arg9[%c168_77, %c0_78], %112 {strides = array<i32>} : memref<196x8xf32, #tpu.memory_space<vmem>>, vector<14x8xf32>,
    %c364 = arith.constant 364 : index
    %c0_79 = arith.constant 0 : index
    %114 = vector.load %arg8[%c364, %c0_79] : memref<392x8xf32, #tpu.memory_space<vmem>>, vector<14x8xf32>
    %c378 = arith.constant 378 : index
    %c0_80 = arith.constant 0 : index
    %115 = vector.load %arg8[%c378, %c0_80] : memref<392x8xf32, #tpu.memory_space<vmem>>, vector<14x8xf32>
    %116 = arith.maximumf %114, %115 : vector<14x8xf32>
    %117 = vector.broadcast %9 : vector<1x8xf32> to vector<14x8xf32>
    %118 = arith.addf %116, %117 : vector<14x8xf32>
    %cst_81 = arith.constant 0.000000e+00 : f32
    %119 = vector.broadcast %cst_81 : f32 to vector<14x8xf32>
    %120 = arith.maximumf %118, %119 : vector<14x8xf32>
    %c182_82 = arith.constant 182 : index
    %c0_83 = arith.constant 0 : index
    %121 = vector.load %arg9[%c182_82, %c0_83] : memref<196x8xf32, #tpu.memory_space<vmem>>, vector<14x8xf32>
    tpu.vector_store %arg9[%c182_82, %c0_83], %120 {strides = array<i32>} : memref<196x8xf32, #tpu.memory_space<vmem>>, vector<14x8xf32>,
    %cst_84 = arith.constant 0.000000e+00 : bf16
    %122 = vector.broadcast %cst_84 : bf16 to vector<136x56xbf16>
    %c0_85 = arith.constant 0 : index
    %c200 = arith.constant 200 : index
    %123 = vector.load %arg10[%c0_85, %c200] : memref<136x256xbf16, #tpu.memory_space<vmem>>, vector<136x56xbf16>
    tpu.vector_store %arg10[%c0_85, %c200], %122 {strides = array<i32>} : memref<136x256xbf16, #tpu.memory_space<vmem>>, vector<136x56xbf16>,
    %c0_86 = arith.constant 0 : index
    %c0_87 = arith.constant 0 : index
    %124 = vector.load %arg9[%c0_86, %c0_87] : memref<196x8xf32, #tpu.memory_space<vmem>>, vector<136x8xf32>
    %125 = arith.truncf %124 : vector<136x8xf32> to vector<136x8xbf16>
    %c0_88 = arith.constant 0 : index
    %c0_89 = arith.constant 0 : index
    %126 = vector.load %arg10[%c0_88, %c0_89] : memref<136x256xbf16, #tpu.memory_space<vmem>>, vector<136x8xbf16>
    tpu.vector_store %arg10[%c0_88, %c0_89], %125 {strides = array<i32>} : memref<136x256xbf16, #tpu.memory_space<vmem>>, vector<136x8xbf16>,
    %c1_90 = arith.constant 1 : index
    %c0_91 = arith.constant 0 : index
    %127 = vector.load %arg9[%c1_90, %c0_91] : memref<196x8xf32, #tpu.memory_space<vmem>>, vector<136x8xf32>
    %128 = arith.truncf %127 : vector<136x8xf32> to vector<136x8xbf16>
    %c0_92 = arith.constant 0 : index
    %c8 = arith.constant 8 : index
    %129 = vector.load %arg10[%c0_92, %c8] : memref<136x256xbf16, #tpu.memory_space<vmem>>, vector<136x8xbf16>
    tpu.vector_store %arg10[%c0_92, %c8], %128 {strides = array<i32>} : memref<136x256xbf16, #tpu.memory_space<vmem>>, vector<136x8xbf16>,
    %c2 = arith.constant 2 : index
    %c0_93 = arith.constant 0 : index
    %130 = vector.load %arg9[%c2, %c0_93] : memref<196x8xf32, #tpu.memory_space<vmem>>, vector<136x8xf32>
    %131 = arith.truncf %130 : vector<136x8xf32> to vector<136x8xbf16>
    %c0_94 = arith.constant 0 : index
    %c16 = arith.constant 16 : index
    %132 = vector.load %arg10[%c0_94, %c16] : memref<136x256xbf16, #tpu.memory_space<vmem>>, vector<136x8xbf16>
    tpu.vector_store %arg10[%c0_94, %c16], %131 {strides = array<i32>} : memref<136x256xbf16, #tpu.memory_space<vmem>>, vector<136x8xbf16>,
    %c3 = arith.constant 3 : index
    %c0_95 = arith.constant 0 : index
    %133 = vector.load %arg9[%c3, %c0_95] : memref<196x8xf32, #tpu.memory_space<vmem>>, vector<136x8xf32>
    %134 = arith.truncf %133 : vector<136x8xf32> to vector<136x8xbf16>
    %c0_96 = arith.constant 0 : index
    %c24 = arith.constant 24 : index
    %135 = vector.load %arg10[%c0_96, %c24] : memref<136x256xbf16, #tpu.memory_space<vmem>>, vector<136x8xbf16>
    tpu.vector_store %arg10[%c0_96, %c24], %134 {strides = array<i32>} : memref<136x256xbf16, #tpu.memory_space<vmem>>, vector<136x8xbf16>,
    %c4 = arith.constant 4 : index
    %c0_97 = arith.constant 0 : index
    %136 = vector.load %arg9[%c4, %c0_97] : memref<196x8xf32, #tpu.memory_space<vmem>>, vector<136x8xf32>
    %137 = arith.truncf %136 : vector<136x8xf32> to vector<136x8xbf16>
    %c0_98 = arith.constant 0 : index
    %c32 = arith.constant 32 : index
    %138 = vector.load %arg10[%c0_98, %c32] : memref<136x256xbf16, #tpu.memory_space<vmem>>, vector<136x8xbf16>
    tpu.vector_store %arg10[%c0_98, %c32], %137 {strides = array<i32>} : memref<136x256xbf16, #tpu.memory_space<vmem>>, vector<136x8xbf16>,
    %c14_99 = arith.constant 14 : index
    %c0_100 = arith.constant 0 : index
    %139 = vector.load %arg9[%c14_99, %c0_100] : memref<196x8xf32, #tpu.memory_space<vmem>>, vector<136x8xf32>
    %140 = arith.truncf %139 : vector<136x8xf32> to vector<136x8xbf16>
    %c0_101 = arith.constant 0 : index
    %c40 = arith.constant 40 : index
    %141 = vector.load %arg10[%c0_101, %c40] : memref<136x256xbf16, #tpu.memory_space<vmem>>, vector<136x8xbf16>
    tpu.vector_store %arg10[%c0_101, %c40], %140 {strides = array<i32>} : memref<136x256xbf16, #tpu.memory_space<vmem>>, vector<136x8xbf16>,
    %c15 = arith.constant 15 : index
    %c0_102 = arith.constant 0 : index
    %142 = vector.load %arg9[%c15, %c0_102] : memref<196x8xf32, #tpu.memory_space<vmem>>, vector<136x8xf32>
    %143 = arith.truncf %142 : vector<136x8xf32> to vector<136x8xbf16>
    %c0_103 = arith.constant 0 : index
    %c48 = arith.constant 48 : index
    %144 = vector.load %arg10[%c0_103, %c48] : memref<136x256xbf16, #tpu.memory_space<vmem>>, vector<136x8xbf16>
    tpu.vector_store %arg10[%c0_103, %c48], %143 {strides = array<i32>} : memref<136x256xbf16, #tpu.memory_space<vmem>>, vector<136x8xbf16>,
    %c16_104 = arith.constant 16 : index
    %c0_105 = arith.constant 0 : index
    %145 = vector.load %arg9[%c16_104, %c0_105] : memref<196x8xf32, #tpu.memory_space<vmem>>, vector<136x8xf32>
    %146 = arith.truncf %145 : vector<136x8xf32> to vector<136x8xbf16>
    %c0_106 = arith.constant 0 : index
    %c56_107 = arith.constant 56 : index
    %147 = vector.load %arg10[%c0_106, %c56_107] : memref<136x256xbf16, #tpu.memory_space<vmem>>, vector<136x8xbf16>
    tpu.vector_store %arg10[%c0_106, %c56_107], %146 {strides = array<i32>} : memref<136x256xbf16, #tpu.memory_space<vmem>>, vector<136x8xbf16>,
    %c17 = arith.constant 17 : index
    %c0_108 = arith.constant 0 : index
    %148 = vector.load %arg9[%c17, %c0_108] : memref<196x8xf32, #tpu.memory_space<vmem>>, vector<136x8xf32>
    %149 = arith.truncf %148 : vector<136x8xf32> to vector<136x8xbf16>
    %c0_109 = arith.constant 0 : index
    %c64 = arith.constant 64 : index
    %150 = vector.load %arg10[%c0_109, %c64] : memref<136x256xbf16, #tpu.memory_space<vmem>>, vector<136x8xbf16>
    tpu.vector_store %arg10[%c0_109, %c64], %149 {strides = array<i32>} : memref<136x256xbf16, #tpu.memory_space<vmem>>, vector<136x8xbf16>,
    %c18 = arith.constant 18 : index
    %c0_110 = arith.constant 0 : index
    %151 = vector.load %arg9[%c18, %c0_110] : memref<196x8xf32, #tpu.memory_space<vmem>>, vector<136x8xf32>
    %152 = arith.truncf %151 : vector<136x8xf32> to vector<136x8xbf16>
    %c0_111 = arith.constant 0 : index
    %c72 = arith.constant 72 : index
    %153 = vector.load %arg10[%c0_111, %c72] : memref<136x256xbf16, #tpu.memory_space<vmem>>, vector<136x8xbf16>
    tpu.vector_store %arg10[%c0_111, %c72], %152 {strides = array<i32>} : memref<136x256xbf16, #tpu.memory_space<vmem>>, vector<136x8xbf16>,
    %c28_112 = arith.constant 28 : index
    %c0_113 = arith.constant 0 : index
    %154 = vector.load %arg9[%c28_112, %c0_113] : memref<196x8xf32, #tpu.memory_space<vmem>>, vector<136x8xf32>
    %155 = arith.truncf %154 : vector<136x8xf32> to vector<136x8xbf16>
    %c0_114 = arith.constant 0 : index
    %c80 = arith.constant 80 : index
    %156 = vector.load %arg10[%c0_114, %c80] : memref<136x256xbf16, #tpu.memory_space<vmem>>, vector<136x8xbf16>
    tpu.vector_store %arg10[%c0_114, %c80], %155 {strides = array<i32>} : memref<136x256xbf16, #tpu.memory_space<vmem>>, vector<136x8xbf16>,
    %c29 = arith.constant 29 : index
    %c0_115 = arith.constant 0 : index
    %157 = vector.load %arg9[%c29, %c0_115] : memref<196x8xf32, #tpu.memory_space<vmem>>, vector<136x8xf32>
    %158 = arith.truncf %157 : vector<136x8xf32> to vector<136x8xbf16>
    %c0_116 = arith.constant 0 : index
    %c88 = arith.constant 88 : index
    %159 = vector.load %arg10[%c0_116, %c88] : memref<136x256xbf16, #tpu.memory_space<vmem>>, vector<136x8xbf16>
    tpu.vector_store %arg10[%c0_116, %c88], %158 {strides = array<i32>} : memref<136x256xbf16, #tpu.memory_space<vmem>>, vector<136x8xbf16>,
    %c30 = arith.constant 30 : index
    %c0_117 = arith.constant 0 : index
    %160 = vector.load %arg9[%c30, %c0_117] : memref<196x8xf32, #tpu.memory_space<vmem>>, vector<136x8xf32>
    %161 = arith.truncf %160 : vector<136x8xf32> to vector<136x8xbf16>
    %c0_118 = arith.constant 0 : index
    %c96 = arith.constant 96 : index
    %162 = vector.load %arg10[%c0_118, %c96] : memref<136x256xbf16, #tpu.memory_space<vmem>>, vector<136x8xbf16>
    tpu.vector_store %arg10[%c0_118, %c96], %161 {strides = array<i32>} : memref<136x256xbf16, #tpu.memory_space<vmem>>, vector<136x8xbf16>,
    %c31 = arith.constant 31 : index
    %c0_119 = arith.constant 0 : index
    %163 = vector.load %arg9[%c31, %c0_119] : memref<196x8xf32, #tpu.memory_space<vmem>>, vector<136x8xf32>
    %164 = arith.truncf %163 : vector<136x8xf32> to vector<136x8xbf16>
    %c0_120 = arith.constant 0 : index
    %c104 = arith.constant 104 : index
    %165 = vector.load %arg10[%c0_120, %c104] : memref<136x256xbf16, #tpu.memory_space<vmem>>, vector<136x8xbf16>
    tpu.vector_store %arg10[%c0_120, %c104], %164 {strides = array<i32>} : memref<136x256xbf16, #tpu.memory_space<vmem>>, vector<136x8xbf16>,
    %c32_121 = arith.constant 32 : index
    %c0_122 = arith.constant 0 : index
    %166 = vector.load %arg9[%c32_121, %c0_122] : memref<196x8xf32, #tpu.memory_space<vmem>>, vector<136x8xf32>
    %167 = arith.truncf %166 : vector<136x8xf32> to vector<136x8xbf16>
    %c0_123 = arith.constant 0 : index
    %c112_124 = arith.constant 112 : index
    %168 = vector.load %arg10[%c0_123, %c112_124] : memref<136x256xbf16, #tpu.memory_space<vmem>>, vector<136x8xbf16>
    tpu.vector_store %arg10[%c0_123, %c112_124], %167 {strides = array<i32>} : memref<136x256xbf16, #tpu.memory_space<vmem>>, vector<136x8xbf16>,
    %c42_125 = arith.constant 42 : index
    %c0_126 = arith.constant 0 : index
    %169 = vector.load %arg9[%c42_125, %c0_126] : memref<196x8xf32, #tpu.memory_space<vmem>>, vector<136x8xf32>
    %170 = arith.truncf %169 : vector<136x8xf32> to vector<136x8xbf16>
    %c0_127 = arith.constant 0 : index
    %c120 = arith.constant 120 : index
    %171 = vector.load %arg10[%c0_127, %c120] : memref<136x256xbf16, #tpu.memory_space<vmem>>, vector<136x8xbf16>
    tpu.vector_store %arg10[%c0_127, %c120], %170 {strides = array<i32>} : memref<136x256xbf16, #tpu.memory_space<vmem>>, vector<136x8xbf16>,
    %c43 = arith.constant 43 : index
    %c0_128 = arith.constant 0 : index
    %172 = vector.load %arg9[%c43, %c0_128] : memref<196x8xf32, #tpu.memory_space<vmem>>, vector<136x8xf32>
    %173 = arith.truncf %172 : vector<136x8xf32> to vector<136x8xbf16>
    %c0_129 = arith.constant 0 : index
    %c128 = arith.constant 128 : index
    %174 = vector.load %arg10[%c0_129, %c128] : memref<136x256xbf16, #tpu.memory_space<vmem>>, vector<136x8xbf16>
    tpu.vector_store %arg10[%c0_129, %c128], %173 {strides = array<i32>} : memref<136x256xbf16, #tpu.memory_space<vmem>>, vector<136x8xbf16>,
    %c44 = arith.constant 44 : index
    %c0_130 = arith.constant 0 : index
    %175 = vector.load %arg9[%c44, %c0_130] : memref<196x8xf32, #tpu.memory_space<vmem>>, vector<136x8xf32>
    %176 = arith.truncf %175 : vector<136x8xf32> to vector<136x8xbf16>
    %c0_131 = arith.constant 0 : index
    %c136 = arith.constant 136 : index
    %177 = vector.load %arg10[%c0_131, %c136] : memref<136x256xbf16, #tpu.memory_space<vmem>>, vector<136x8xbf16>
    tpu.vector_store %arg10[%c0_131, %c136], %176 {strides = array<i32>} : memref<136x256xbf16, #tpu.memory_space<vmem>>, vector<136x8xbf16>,
    %c45 = arith.constant 45 : index
    %c0_132 = arith.constant 0 : index
    %178 = vector.load %arg9[%c45, %c0_132] : memref<196x8xf32, #tpu.memory_space<vmem>>, vector<136x8xf32>
    %179 = arith.truncf %178 : vector<136x8xf32> to vector<136x8xbf16>
    %c0_133 = arith.constant 0 : index
    %c144 = arith.constant 144 : index
    %180 = vector.load %arg10[%c0_133, %c144] : memref<136x256xbf16, #tpu.memory_space<vmem>>, vector<136x8xbf16>
    tpu.vector_store %arg10[%c0_133, %c144], %179 {strides = array<i32>} : memref<136x256xbf16, #tpu.memory_space<vmem>>, vector<136x8xbf16>,
    %c46 = arith.constant 46 : index
    %c0_134 = arith.constant 0 : index
    %181 = vector.load %arg9[%c46, %c0_134] : memref<196x8xf32, #tpu.memory_space<vmem>>, vector<136x8xf32>
    %182 = arith.truncf %181 : vector<136x8xf32> to vector<136x8xbf16>
    %c0_135 = arith.constant 0 : index
    %c152 = arith.constant 152 : index
    %183 = vector.load %arg10[%c0_135, %c152] : memref<136x256xbf16, #tpu.memory_space<vmem>>, vector<136x8xbf16>
    tpu.vector_store %arg10[%c0_135, %c152], %182 {strides = array<i32>} : memref<136x256xbf16, #tpu.memory_space<vmem>>, vector<136x8xbf16>,
    %c56_136 = arith.constant 56 : index
    %c0_137 = arith.constant 0 : index
    %184 = vector.load %arg9[%c56_136, %c0_137] : memref<196x8xf32, #tpu.memory_space<vmem>>, vector<136x8xf32>
    %185 = arith.truncf %184 : vector<136x8xf32> to vector<136x8xbf16>
    %c0_138 = arith.constant 0 : index
    %c160 = arith.constant 160 : index
    %186 = vector.load %arg10[%c0_138, %c160] : memref<136x256xbf16, #tpu.memory_space<vmem>>, vector<136x8xbf16>
    tpu.vector_store %arg10[%c0_138, %c160], %185 {strides = array<i32>} : memref<136x256xbf16, #tpu.memory_space<vmem>>, vector<136x8xbf16>,
    %c57 = arith.constant 57 : index
    %c0_139 = arith.constant 0 : index
    %187 = vector.load %arg9[%c57, %c0_139] : memref<196x8xf32, #tpu.memory_space<vmem>>, vector<136x8xf32>
    %188 = arith.truncf %187 : vector<136x8xf32> to vector<136x8xbf16>
    %c0_140 = arith.constant 0 : index
    %c168_141 = arith.constant 168 : index
    %189 = vector.load %arg10[%c0_140, %c168_141] : memref<136x256xbf16, #tpu.memory_space<vmem>>, vector<136x8xbf16>
    tpu.vector_store %arg10[%c0_140, %c168_141], %188 {strides = array<i32>} : memref<136x256xbf16, #tpu.memory_space<vmem>>, vector<136x8xbf16>,
    %c58 = arith.constant 58 : index
    %c0_142 = arith.constant 0 : index
    %190 = vector.load %arg9[%c58, %c0_142] : memref<196x8xf32, #tpu.memory_space<vmem>>, vector<136x8xf32>
    %191 = arith.truncf %190 : vector<136x8xf32> to vector<136x8xbf16>
    %c0_143 = arith.constant 0 : index
    %c176 = arith.constant 176 : index
    %192 = vector.load %arg10[%c0_143, %c176] : memref<136x256xbf16, #tpu.memory_space<vmem>>, vector<136x8xbf16>
    tpu.vector_store %arg10[%c0_143, %c176], %191 {strides = array<i32>} : memref<136x256xbf16, #tpu.memory_space<vmem>>, vector<136x8xbf16>,
    %c59 = arith.constant 59 : index
    %c0_144 = arith.constant 0 : index
    %193 = vector.load %arg9[%c59, %c0_144] : memref<196x8xf32, #tpu.memory_space<vmem>>, vector<136x8xf32>
    %194 = arith.truncf %193 : vector<136x8xf32> to vector<136x8xbf16>
    %c0_145 = arith.constant 0 : index
    %c184 = arith.constant 184 : index
    %195 = vector.load %arg10[%c0_145, %c184] : memref<136x256xbf16, #tpu.memory_space<vmem>>, vector<136x8xbf16>
    tpu.vector_store %arg10[%c0_145, %c184], %194 {strides = array<i32>} : memref<136x256xbf16, #tpu.memory_space<vmem>>, vector<136x8xbf16>,
    %c60 = arith.constant 60 : index
    %c0_146 = arith.constant 0 : index
    %196 = vector.load %arg9[%c60, %c0_146] : memref<196x8xf32, #tpu.memory_space<vmem>>, vector<136x8xf32>
    %197 = arith.truncf %196 : vector<136x8xf32> to vector<136x8xbf16>
    %c0_147 = arith.constant 0 : index
    %c192 = arith.constant 192 : index
    %198 = vector.load %arg10[%c0_147, %c192] : memref<136x256xbf16, #tpu.memory_space<vmem>>, vector<136x8xbf16>
    tpu.vector_store %arg10[%c0_147, %c192], %197 {strides = array<i32>} : memref<136x256xbf16, #tpu.memory_space<vmem>>, vector<136x8xbf16>,
    %c0_148 = arith.constant 0 : index
    %c0_149 = arith.constant 0 : index
    %199 = vector.load %arg10[%c0_148, %c0_149] : memref<136x256xbf16, #tpu.memory_space<vmem>>, vector<136x256xbf16>
    %c0_150 = arith.constant 0 : index
    %c0_151 = arith.constant 0 : index
    %200 = vector.load %arg4[%c0_150, %c0_151] : memref<256x16xbf16, #tpu.memory_space<vmem>>, vector<256x16xbf16>
    %cst_152 = arith.constant dense<0.000000e+00> : vector<136x16xf32>
    %201 = tpu.matmul %199, %200, %cst_152 {dimension_numbers = #tpu.dot_dimension_numbers<[1], [0], [0], [1], [0, 0, 1, 1], [], []>} : vector<136x256xbf16>, vector<256x16xbf16>, vector<136x16xf32> -> vector<136x16xf32>
    %c0_153 = arith.constant 0 : index
    %c0_154 = arith.constant 0 : index
    %202 = vector.load %arg11[%c0_153, %c0_154] : memref<136x16xf32, #tpu.memory_space<vmem>>, vector<136x16xf32>
    tpu.vector_store %arg11[%c0_153, %c0_154], %201 {strides = array<i32>} : memref<136x16xf32, #tpu.memory_space<vmem>>, vector<136x16xf32>,
    %c0_155 = arith.constant 0 : index
    %c0_156 = arith.constant 0 : index
    %203 = tpu.strided_load %arg11[%c0_155, %c0_156] {strides = array<i32: 2, 1>} : memref<136x16xf32, #tpu.memory_space<vmem>>, vector<68x16xf32>
    %c1_157 = arith.constant 1 : index
    %c0_158 = arith.constant 0 : index
    %204 = tpu.strided_load %arg11[%c1_157, %c0_158] {strides = array<i32: 2, 1>} : memref<136x16xf32, #tpu.memory_space<vmem>>, vector<68x16xf32>
    %205 = arith.maximumf %203, %204 : vector<68x16xf32>
    %c0_159 = arith.constant 0 : index
    %c0_160 = arith.constant 0 : index
    %206 = vector.load %arg12[%c0_159, %c0_160] : memref<68x16xf32, #tpu.memory_space<vmem>>, vector<68x16xf32>
    tpu.vector_store %arg12[%c0_159, %c0_160], %205 {strides = array<i32>} : memref<68x16xf32, #tpu.memory_space<vmem>>, vector<68x16xf32>,
    %c0_161 = arith.constant 0 : index
    %c0_162 = arith.constant 0 : index
    %207 = vector.load %arg5[%c0_161, %c0_162] : memref<1x16xf32, #tpu.memory_space<vmem>>, vector<1x16xf32>
    %c0_163 = arith.constant 0 : index
    %c0_164 = arith.constant 0 : index
    %208 = vector.load %arg12[%c0_163, %c0_164] : memref<68x16xf32, #tpu.memory_space<vmem>>, vector<5x16xf32>
    %c7 = arith.constant 7 : index
    %c0_165 = arith.constant 0 : index
    %209 = vector.load %arg12[%c7, %c0_165] : memref<68x16xf32, #tpu.memory_space<vmem>>, vector<5x16xf32>
    %210 = arith.maximumf %208, %209 : vector<5x16xf32>
    %211 = vector.broadcast %207 : vector<1x16xf32> to vector<5x16xf32>
    %212 = arith.addf %210, %211 : vector<5x16xf32>
    %cst_166 = arith.constant 0.000000e+00 : f32
    %213 = vector.broadcast %cst_166 : f32 to vector<5x16xf32>
    %214 = arith.maximumf %212, %213 : vector<5x16xf32>
    %c0_167 = arith.constant 0 : index
    %c0_168 = arith.constant 0 : index
    %c0_169 = arith.constant 0 : index
    %215 = vector.load %arg6[%c0_167, %c0_168, %c0_169] : memref<1x25x16xf32, #tpu.memory_space<vmem>>, vector<1x5x16xf32>
    %216 = vector.shape_cast %215 : vector<1x5x16xf32> to vector<5x16xf32>
    %217 = vector.shape_cast %214 : vector<5x16xf32> to vector<1x5x16xf32>
    tpu.vector_store %arg6[%c0_167, %c0_168, %c0_169], %217 {strides = array<i32>} : memref<1x25x16xf32, #tpu.memory_space<vmem>>, vector<1x5x16xf32>,
    %c14_170 = arith.constant 14 : index
    %c0_171 = arith.constant 0 : index
    %218 = vector.load %arg12[%c14_170, %c0_171] : memref<68x16xf32, #tpu.memory_space<vmem>>, vector<5x16xf32>
    %c21 = arith.constant 21 : index
    %c0_172 = arith.constant 0 : index
    %219 = vector.load %arg12[%c21, %c0_172] : memref<68x16xf32, #tpu.memory_space<vmem>>, vector<5x16xf32>
    %220 = arith.maximumf %218, %219 : vector<5x16xf32>
    %221 = vector.broadcast %207 : vector<1x16xf32> to vector<5x16xf32>
    %222 = arith.addf %220, %221 : vector<5x16xf32>
    %cst_173 = arith.constant 0.000000e+00 : f32
    %223 = vector.broadcast %cst_173 : f32 to vector<5x16xf32>
    %224 = arith.maximumf %222, %223 : vector<5x16xf32>
    %c0_174 = arith.constant 0 : index
    %c5 = arith.constant 5 : index
    %c0_175 = arith.constant 0 : index
    %225 = vector.load %arg6[%c0_174, %c5, %c0_175] : memref<1x25x16xf32, #tpu.memory_space<vmem>>, vector<1x5x16xf32>
    %226 = vector.shape_cast %225 : vector<1x5x16xf32> to vector<5x16xf32>
    %227 = vector.shape_cast %224 : vector<5x16xf32> to vector<1x5x16xf32>
    tpu.vector_store %arg6[%c0_174, %c5, %c0_175], %227 {strides = array<i32>} : memref<1x25x16xf32, #tpu.memory_space<vmem>>, vector<1x5x16xf32>,
    %c28_176 = arith.constant 28 : index
    %c0_177 = arith.constant 0 : index
    %228 = vector.load %arg12[%c28_176, %c0_177] : memref<68x16xf32, #tpu.memory_space<vmem>>, vector<5x16xf32>
    %c35 = arith.constant 35 : index
    %c0_178 = arith.constant 0 : index
    %229 = vector.load %arg12[%c35, %c0_178] : memref<68x16xf32, #tpu.memory_space<vmem>>, vector<5x16xf32>
    %230 = arith.maximumf %228, %229 : vector<5x16xf32>
    %231 = vector.broadcast %207 : vector<1x16xf32> to vector<5x16xf32>
    %232 = arith.addf %230, %231 : vector<5x16xf32>
    %cst_179 = arith.constant 0.000000e+00 : f32
    %233 = vector.broadcast %cst_179 : f32 to vector<5x16xf32>
    %234 = arith.maximumf %232, %233 : vector<5x16xf32>
    %c0_180 = arith.constant 0 : index
    %c10 = arith.constant 10 : index
    %c0_181 = arith.constant 0 : index
    %235 = vector.load %arg6[%c0_180, %c10, %c0_181] : memref<1x25x16xf32, #tpu.memory_space<vmem>>, vector<1x5x16xf32>
    %236 = vector.shape_cast %235 : vector<1x5x16xf32> to vector<5x16xf32>
    %237 = vector.shape_cast %234 : vector<5x16xf32> to vector<1x5x16xf32>
    tpu.vector_store %arg6[%c0_180, %c10, %c0_181], %237 {strides = array<i32>} : memref<1x25x16xf32, #tpu.memory_space<vmem>>, vector<1x5x16xf32>,
    %c42_182 = arith.constant 42 : index
    %c0_183 = arith.constant 0 : index
    %238 = vector.load %arg12[%c42_182, %c0_183] : memref<68x16xf32, #tpu.memory_space<vmem>>, vector<5x16xf32>
    %c49 = arith.constant 49 : index
    %c0_184 = arith.constant 0 : index
    %239 = vector.load %arg12[%c49, %c0_184] : memref<68x16xf32, #tpu.memory_space<vmem>>, vector<5x16xf32>
    %240 = arith.maximumf %238, %239 : vector<5x16xf32>
    %241 = vector.broadcast %207 : vector<1x16xf32> to vector<5x16xf32>
    %242 = arith.addf %240, %241 : vector<5x16xf32>
    %cst_185 = arith.constant 0.000000e+00 : f32
    %243 = vector.broadcast %cst_185 : f32 to vector<5x16xf32>
    %244 = arith.maximumf %242, %243 : vector<5x16xf32>
    %c0_186 = arith.constant 0 : index
    %c15_187 = arith.constant 15 : index
    %c0_188 = arith.constant 0 : index
    %245 = vector.load %arg6[%c0_186, %c15_187, %c0_188] : memref<1x25x16xf32, #tpu.memory_space<vmem>>, vector<1x5x16xf32>
    %246 = vector.shape_cast %245 : vector<1x5x16xf32> to vector<5x16xf32>
    %247 = vector.shape_cast %244 : vector<5x16xf32> to vector<1x5x16xf32>
    tpu.vector_store %arg6[%c0_186, %c15_187, %c0_188], %247 {strides = array<i32>} : memref<1x25x16xf32, #tpu.memory_space<vmem>>, vector<1x5x16xf32>,
    %c56_189 = arith.constant 56 : index
    %c0_190 = arith.constant 0 : index
    %248 = vector.load %arg12[%c56_189, %c0_190] : memref<68x16xf32, #tpu.memory_space<vmem>>, vector<5x16xf32>
    %c63 = arith.constant 63 : index
    %c0_191 = arith.constant 0 : index
    %249 = vector.load %arg12[%c63, %c0_191] : memref<68x16xf32, #tpu.memory_space<vmem>>, vector<5x16xf32>
    %250 = arith.maximumf %248, %249 : vector<5x16xf32>
    %251 = vector.broadcast %207 : vector<1x16xf32> to vector<5x16xf32>
    %252 = arith.addf %250, %251 : vector<5x16xf32>
    %cst_192 = arith.constant 0.000000e+00 : f32
    %253 = vector.broadcast %cst_192 : f32 to vector<5x16xf32>
    %254 = arith.maximumf %252, %253 : vector<5x16xf32>
    %c0_193 = arith.constant 0 : index
    %c20 = arith.constant 20 : index
    %c0_194 = arith.constant 0 : index
    %255 = vector.load %arg6[%c0_193, %c20, %c0_194] : memref<1x25x16xf32, #tpu.memory_space<vmem>>, vector<1x5x16xf32>
    %256 = vector.shape_cast %255 : vector<1x5x16xf32> to vector<5x16xf32>
    %257 = vector.shape_cast %254 : vector<5x16xf32> to vector<1x5x16xf32>
    tpu.vector_store %arg6[%c0_193, %c20, %c0_194], %257 {strides = array<i32>} : memref<1x25x16xf32, #tpu.memory_space<vmem>>, vector<1x5x16xf32>,
    return
  }
  func.func @transform_0(%arg0: i32) -> (i32, i32, i32) {
    %c0_i32 = arith.constant 0 : i32
    %c0_i32_0 = arith.constant 0 : i32
    %c0_i32_1 = arith.constant 0 : i32
    return %arg0, %c0_i32, %c0_i32_0 : i32, i32, i32
  }
  func.func @transform_1(%arg0: i32) -> (i32, i32) {
    %c0_i32 = arith.constant 0 : i32
    %c0_i32_0 = arith.constant 0 : i32
    %c0_i32_1 = arith.constant 0 : i32
    return %c0_i32, %c0_i32_0 : i32, i32
  }
  func.func @transform_2(%arg0: i32) -> (i32, i32) {
    %c0_i32 = arith.constant 0 : i32
    %c0_i32_0 = arith.constant 0 : i32
    %c0_i32_1 = arith.constant 0 : i32
    return %c0_i32, %c0_i32_0 : i32, i32
  }
  func.func @transform_3(%arg0: i32) -> (i32, i32) {
    %c0_i32 = arith.constant 0 : i32
    %c0_i32_0 = arith.constant 0 : i32
    %c0_i32_1 = arith.constant 0 : i32
    return %c0_i32, %c0_i32_0 : i32, i32
  }
  func.func @transform_4(%arg0: i32) -> (i32, i32) {
    %c0_i32 = arith.constant 0 : i32
    %c0_i32_0 = arith.constant 0 : i32
    %c0_i32_1 = arith.constant 0 : i32
    return %c0_i32, %c0_i32_0 : i32, i32
  }
  func.func @transform_5(%arg0: i32) -> (i32, i32, i32) {
    %c0_i32 = arith.constant 0 : i32
    %c0_i32_0 = arith.constant 0 : i32
    %c0_i32_1 = arith.constant 0 : i32
    return %arg0, %c0_i32, %c0_i32_0 : i32, i32, i32
  }
}

</mosaic_0001>

<llo_original>
// kernel: net_forward.3
$region0: #{net_forward.3}
  #allocation0 [shape = 'u32[]', space=smem, size = 0x4, offset = 0x4, fixed_abs, tag = 'smem constant byte address 0x4 - core index']
  #allocation1 [shape = 'u32[144,128]{1,0:T(1,128)}', space=vmem, size = 0x12000, scoped, tag = 'internal scratch']
  %s0 = inlined_call_operand.vmem [shape: bf16[8,400], index: 0, kind: input, shape index: {}]
  %s1 = inlined_call_operand.vmem [shape: bf16[400,128], index: 1, kind: input, shape index: {}]
  %s2 = inlined_call_operand.vmem [shape: f32[1,128], index: 2, kind: input, shape index: {}]
  %s3 = inlined_call_operand.vmem [shape: bf16[128,128], index: 3, kind: input, shape index: {}]
  %s4 = inlined_call_operand.vmem [shape: f32[1,128], index: 4, kind: input, shape index: {}]
  %s5 = inlined_call_operand.vmem [shape: bf16[128,128], index: 5, kind: input, shape index: {}]
  %s6 = inlined_call_operand.vmem [shape: f32[1,128], index: 6, kind: input, shape index: {}]
  %s7 = inlined_call_operand.vmem [shape: f32[8,128], index: 7, kind: output, shape index: {}]
  %s8 = sld [smem:[#allocation0]]
  $region38: #{net_forward.3} parent=0
    _
  %s10 = ssub.s32 1, %s8
  %s11 = scalar_select 0, %s10, %s8
  // Predicated region
  $region2: #{net_forward.3} parent=0 // pred_check
    _
  $region3: #{net_forward.3} parent=0 // pred_check_branch
    %13 = sbr.rel (0) target = $region5
  $region4: #{net_forward.3} parent=0 // pred_region
    _
  $region5: #{net_forward.3} parent=0 // pred_fallthru
    _
  // Predicated region
  $region6: #{net_forward.3} parent=0 // pred_check
    _
  $region7: #{net_forward.3} parent=0 // pred_check_branch
    %15 = sbr.rel (0) target = $region9
  $region8: #{net_forward.3} parent=0 // pred_region
    _
  $region9: #{net_forward.3} parent=0 // pred_fallthru
    _
  // Predicated region
  $region10: #{net_forward.3} parent=0 // pred_check
    _
  $region11: #{net_forward.3} parent=0 // pred_check_branch
    %17 = sbr.rel (0) target = $region13
  $region12: #{net_forward.3} parent=0 // pred_region
    _
  $region13: #{net_forward.3} parent=0 // pred_fallthru
    _
  // Predicated region
  $region14: #{net_forward.3} parent=0 // pred_check
    _
  $region15: #{net_forward.3} parent=0 // pred_check_branch
    %19 = sbr.rel (0) target = $region17
  $region16: #{net_forward.3} parent=0 // pred_region
    _
  $region17: #{net_forward.3} parent=0 // pred_fallthru
    _
  // Predicated region
  $region18: #{net_forward.3} parent=0 // pred_check
    _
  $region19: #{net_forward.3} parent=0 // pred_check_branch
    %21 = sbr.rel (0) target = $region21
  $region20: #{net_forward.3} parent=0 // pred_region
    _
  $region21: #{net_forward.3} parent=0 // pred_fallthru
    _
  // Predicated region
  $region22: #{net_forward.3} parent=0 // pred_check
    _
  $region23: #{net_forward.3} parent=0 // pred_check_branch
    %23 = sbr.rel (0) target = $region25
  $region24: #{net_forward.3} parent=0 // pred_region
    _
  $region25: #{net_forward.3} parent=0 // pred_fallthru
    _
  // Predicated region
  $region26: #{net_forward.3} parent=0 // pred_check
    _
  $region27: #{net_forward.3} parent=0 // pred_check_branch
    %25 = sbr.rel (0) target = $region29
  $region28: #{net_forward.3} parent=0 // pred_region
    _
  $region29: #{net_forward.3} parent=0 // pred_fallthru
    _
  %v27 = vld [vmem:[%s0] sm:$0xff]
  %v28 = vld [vmem:[%s0 + $0x8] sm:$0xff]
  %v29 = vld [vmem:[%s1] sm:$0xf]
  %v30 = vld [vmem:[%s1 + $0x4] sm:$0xf]
  %v31 = vld [vmem:[%s1 + $0x8] sm:$0xf]
  %v32 = vld [vmem:[%s1 + $0xc] sm:$0xf]
  %v33 = vld [vmem:[%s1 + $0x10] sm:$0xf]
  %v34 = vld [vmem:[%s1 + $0x14] sm:$0xf]
  %v35 = vld [vmem:[%s1 + $0x18] sm:$0xf]
  %v36 = vld [vmem:[%s1 + $0x1c] sm:$0xf]
  %v37 = vld [vmem:[%s1 + $0x20] sm:$0xf]
  %v38 = vld [vmem:[%s1 + $0x24] sm:$0xf]
  %v39 = vld [vmem:[%s1 + $0x28] sm:$0xf]
  %v40 = vld [vmem:[%s1 + $0x2c] sm:$0xf]
  %v41 = vld [vmem:[%s1 + $0x30] sm:$0xf]
  %v42 = vld [vmem:[%s1 + $0x34] sm:$0xf]
  %v43 = vld [vmem:[%s1 + $0x38] sm:$0xf]
  %v44 = vld [vmem:[%s1 + $0x3c] sm:$0xf]
  %v45 = vld [vmem:[%s1 + $0x40] sm:$0xf]
  %v46 = vld [vmem:[%s1 + $0x44] sm:$0xf]
  %v47 = vld [vmem:[%s1 + $0x48] sm:$0xf]
  %v48 = vld [vmem:[%s1 + $0x4c] sm:$0xf]
  %v49 = vld [vmem:[%s1 + $0x50] sm:$0xf]
  %v50 = vld [vmem:[%s1 + $0x54] sm:$0xf]
  %v51 = vld [vmem:[%s1 + $0x58] sm:$0xf]
  %v52 = vld [vmem:[%s1 + $0x5c] sm:$0xf]
  %v53 = vld [vmem:[%s1 + $0x60] sm:$0xf]
  %v54 = vld [vmem:[%s1 + $0x64] sm:$0xf]
  %v55 = vld [vmem:[%s1 + $0x68] sm:$0xf]
  %v56 = vld [vmem:[%s1 + $0x6c] sm:$0xf]
  %v57 = vld [vmem:[%s1 + $0x70] sm:$0xf]
  %v58 = vld [vmem:[%s1 + $0x74] sm:$0xf]
  %v59 = vld [vmem:[%s1 + $0x78] sm:$0xf]
  %v60 = vld [vmem:[%s1 + $0x7c] sm:$0xf]
  %v61 = vld [vmem:[%s1 + $0x80] sm:$0xf]
  %v62 = vld [vmem:[%s1 + $0x84] sm:$0xf]
  %v63 = vld [vmem:[%s1 + $0x88] sm:$0xf]
  %v64 = vld [vmem:[%s1 + $0x8c] sm:$0xf]
  %v65 = vld [vmem:[%s1 + $0x90] sm:$0xf]
  %v66 = vld [vmem:[%s1 + $0x94] sm:$0xf]
  %v67 = vld [vmem:[%s1 + $0x98] sm:$0xf]
  %v68 = vld [vmem:[%s1 + $0x9c] sm:$0xf]
  %v69 = vld [vmem:[%s1 + $0xa0] sm:$0xf]
  %v70 = vld [vmem:[%s1 + $0xa4] sm:$0xf]
  %v71 = vld [vmem:[%s1 + $0xa8] sm:$0xf]
  %v72 = vld [vmem:[%s1 + $0xac] sm:$0xf]
  %v73 = vld [vmem:[%s1 + $0xb0] sm:$0xf]
  %v74 = vld [vmem:[%s1 + $0xb4] sm:$0xf]
  %v75 = vld [vmem:[%s1 + $0xb8] sm:$0xf]
  %v76 = vld [vmem:[%s1 + $0xbc] sm:$0xf]
  %v77 = vld [vmem:[%s1 + $0xc0] sm:$0xf]
  %v78 = vld [vmem:[%s1 + $0xc4] sm:$0xf]
  %v79 = vld [vmem:[%s2] sm:$0x1]
  %v81 = vlaneseq
  %v82 = vshrl.u32 %v81, 7
  %v83 = vsub.s32 0, %v82
  %v84 = vrot.slane %v79, %v83
  %v88 = vunpack.c.l.b16 %v27
  %v89 = vunpack.c.h.b16 %v27
  %v90 = vunpack.c.l.b16 %v28
  %v91 = vunpack.c.h.b16 %v28
  %v92 = vpack.c.b16 %v88, %v88
  %v93 = vpack.c.b16 %v89, %v89
  %v94 = vpack.c.b16 %v90, %v90
  %v95 = vpack.c.b16 %v91, %v91
  %v149 = vunpack.c.l.b16 %v29
  %v150 = vunpack.c.l.b16 %v30
  %v151 = vunpack.c.l.b16 %v31
  %v152 = vunpack.c.l.b16 %v32
  %v153 = vunpack.c.l.b16 %v33
  %v154 = vunpack.c.l.b16 %v34
  %v155 = vunpack.c.l.b16 %v35
  %v156 = vunpack.c.l.b16 %v36
  %v157 = vunpack.c.l.b16 %v37
  %v158 = vunpack.c.l.b16 %v38
  %v159 = vunpack.c.l.b16 %v39
  %v160 = vunpack.c.l.b16 %v40
  %v161 = vunpack.c.l.b16 %v41
  %v162 = vunpack.c.l.b16 %v42
  %v163 = vunpack.c.l.b16 %v43
  %v164 = vunpack.c.l.b16 %v44
  %v165 = vunpack.c.l.b16 %v45
  %v166 = vunpack.c.l.b16 %v46
  %v167 = vunpack.c.l.b16 %v47
  %v168 = vunpack.c.l.b16 %v48
  %v169 = vunpack.c.l.b16 %v49
  %v170 = vunpack.c.l.b16 %v50
  %v171 = vunpack.c.l.b16 %v51
  %v172 = vunpack.c.l.b16 %v52
  %v173 = vunpack.c.l.b16 %v53
  %v174 = vunpack.c.l.b16 %v54
  %v175 = vunpack.c.l.b16 %v55
  %v176 = vunpack.c.l.b16 %v56
  %v177 = vunpack.c.l.b16 %v57
  %v178 = vunpack.c.l.b16 %v58
  %v179 = vunpack.c.l.b16 %v59
  %v180 = vunpack.c.l.b16 %v60
  %v181 = vunpack.c.l.b16 %v61
  %v182 = vunpack.c.l.b16 %v62
  %v183 = vunpack.c.l.b16 %v63
  %v184 = vunpack.c.l.b16 %v64
  %v185 = vunpack.c.l.b16 %v65
  %v186 = vunpack.c.l.b16 %v66
  %v187 = vunpack.c.l.b16 %v67
  %v188 = vunpack.c.l.b16 %v68
  %v189 = vunpack.c.l.b16 %v69
  %v190 = vunpack.c.l.b16 %v70
  %v191 = vunpack.c.l.b16 %v71
  %v192 = vunpack.c.l.b16 %v72
  %v193 = vunpack.c.l.b16 %v73
  %v194 = vunpack.c.l.b16 %v74
  %v195 = vunpack.c.l.b16 %v75
  %v196 = vunpack.c.l.b16 %v76
  %v197 = vunpack.c.l.b16 %v77
  %v198 = vunpack.c.l.b16 %v78
  %v199 = vpack.c.b16 %v150, %v149
  %v200 = vpack.c.b16 %v152, %v151
  %v201 = vpack.c.b16 %v154, %v153
  %v202 = vpack.c.b16 %v156, %v155
  %v203 = vpack.c.b16 %v158, %v157
  %v204 = vpack.c.b16 %v160, %v159
  %v205 = vpack.c.b16 %v162, %v161
  %v206 = vpack.c.b16 %v164, %v163
  %v207 = vpack.c.b16 %v166, %v165
  %v208 = vpack.c.b16 %v168, %v167
  %v209 = vpack.c.b16 %v170, %v169
  %v210 = vpack.c.b16 %v172, %v171
  %v211 = vpack.c.b16 %v174, %v173
  %v212 = vpack.c.b16 %v176, %v175
  %v213 = vpack.c.b16 %v178, %v177
  %v214 = vpack.c.b16 %v180, %v179
  %v215 = vpack.c.b16 %v182, %v181
  %v216 = vpack.c.b16 %v184, %v183
  %v217 = vpack.c.b16 %v186, %v185
  %v218 = vpack.c.b16 %v188, %v187
  %v219 = vpack.c.b16 %v190, %v189
  %v220 = vpack.c.b16 %v192, %v191
  %v221 = vpack.c.b16 %v194, %v193
  %v222 = vpack.c.b16 %v196, %v195
  %v223 = vpack.c.b16 %v198, %v197
  %vm249 = vcmask 130048
  %v251 = vsel %vm249, %v95, 0
  %253 = vmatprep.subr.bf16.mxu0 0
  %254 = vmatpush1.bf16.msra.mxu0 %v199
  %255 = vmatprep.subr.bf16.mxu0 0
  %256 = vmatpush1.bf16.msra.mxu0 %v200
  %257 = vmatprep.subr.bf16.mxu0 0
  %258 = vmatpush1.bf16.msra.mxu0 %v201
  %259 = vmatprep.subr.bf16.mxu0 0
  %260 = vmatpush1.bf16.msra.mxu0 %v202
  %261 = vmatprep.subr.bf16.mxu0 0
  %262 = vmatpush1.bf16.msra.mxu0 %v203
  %263 = vmatprep.subr.bf16.mxu0 0
  %264 = vmatpush1.bf16.msra.mxu0 %v204
  %265 = vmatprep.subr.bf16.mxu0 0
  %266 = vmatpush1.bf16.msra.mxu0 %v205
  %267 = vmatprep.subr.bf16.mxu0 0
  %268 = vmatpush1.bf16.msra.mxu0 %v206
  %269 = vmatprep.subr.bf16.mxu0 0
  %270 = vmatpush1.bf16.msra.mxu0 %v207
  %271 = vmatprep.subr.bf16.mxu0 0
  %272 = vmatpush1.bf16.msra.mxu0 %v208
  %273 = vmatprep.subr.bf16.mxu0 0
  %274 = vmatpush1.bf16.msra.mxu0 %v209
  %275 = vmatprep.subr.bf16.mxu0 0
  %276 = vmatpush1.bf16.msra.mxu0 %v210
  %277 = vmatprep.subr.bf16.mxu0 0
  %278 = vmatpush1.bf16.msra.mxu0 %v211
  %279 = vmatprep.subr.bf16.mxu0 0
  %280 = vmatpush1.bf16.msra.mxu0 %v212
  %281 = vmatprep.subr.bf16.mxu0 0
  %282 = vmatpush1.bf16.msra.mxu0 %v213
  %283 = vmatprep.subr.bf16.mxu0 0
  %284 = vmatpush1.bf16.msra.mxu0 %v214
  %285 = vmatprep.mubr.bf16.mxu0 %v93
  %286 = vmatmul.mubr.bf16.gmra.mrb[0].mxu0 %v92
  %v287 = vpop.f32.mrb[0].mxu0
  %v288 = vadd.f32 %v84, %v287
  %v289 = vpop.f32.mrb[0].mxu0
  %v290 = vpop.f32.mrb[0].mxu0
  %v291 = vpop.f32.mrb[0].mxu0
  %292 = vdwg.mxu0
  %293 = vmatprep.subr.bf16.mxu0 0
  %294 = vmatpush1.bf16.msra.mxu0 %v215
  %295 = vmatprep.subr.bf16.mxu0 0
  %296 = vmatpush1.bf16.msra.mxu0 %v216
  %297 = vmatprep.subr.bf16.mxu0 0
  %298 = vmatpush1.bf16.msra.mxu0 %v217
  %299 = vmatprep.subr.bf16.mxu0 0
  %300 = vmatpush1.bf16.msra.mxu0 %v218
  %301 = vmatprep.subr.bf16.mxu0 0
  %302 = vmatpush1.bf16.msra.mxu0 %v219
  %303 = vmatprep.subr.bf16.mxu0 0
  %304 = vmatpush1.bf16.msra.mxu0 %v220
  %305 = vmatprep.subr.bf16.mxu0 0
  %306 = vmatpush1.bf16.msra.mxu0 %v221
  %307 = vmatprep.subr.bf16.mxu0 0
  %308 = vmatpush1.bf16.msra.mxu0 %v222
  %309 = vmatprep.subr.bf16.mxu0 0
  %310 = vmatpush1.bf16.msra.mxu0 %v223
  %311 = vmatprep.subr.bf16.mxu0 0
  %312 = vmatpush1.bf16.msra.mxu0 0
  %313 = vmatprep.subr.bf16.mxu0 0
  %314 = vmatpush1.bf16.msra.mxu0 0
  %315 = vmatprep.subr.bf16.mxu0 0
  %316 = vmatpush1.bf16.msra.mxu0 0
  %317 = vmatprep.subr.bf16.mxu0 0
  %318 = vmatpush1.bf16.msra.mxu0 0
  %319 = vmatprep.subr.bf16.mxu0 0
  %320 = vmatpush1.bf16.msra.mxu0 0
  %321 = vmatprep.subr.bf16.mxu0 0
  %322 = vmatpush1.bf16.msra.mxu0 0
  %323 = vmatprep.subr.bf16.mxu0 0
  %324 = vmatpush1.bf16.msra.mxu0 0
  %325 = vmatprep.mubr.bf16.mxu0 %v251
  %326 = vmatmul.mubr.bf16.gmra.mrb[0].mxu0 %v94
  %v327 = vpop.f32.mrb[0].mxu0
  %v328 = vadd.f32 %v288, %v327
  %v329 = vpop.f32.mrb[0].mxu0
  %v330 = vpop.f32.mrb[0].mxu0
  %v331 = vpop.f32.mrb[0].mxu0
  %332 = vdwg.mxu0
  %v333 = vmax.f32 %v328, 0.0
  %v334 = vpack.c.bf16 %v333, %v333
  %v335 = vld [vmem:[%s3] sm:$0xf]
  %v336 = vld [vmem:[%s3 + $0x4] sm:$0xf]
  %v337 = vld [vmem:[%s3 + $0x8] sm:$0xf]
  %v338 = vld [vmem:[%s3 + $0xc] sm:$0xf]
  %v339 = vld [vmem:[%s3 + $0x10] sm:$0xf]
  %v340 = vld [vmem:[%s3 + $0x14] sm:$0xf]
  %v341 = vld [vmem:[%s3 + $0x18] sm:$0xf]
  %v342 = vld [vmem:[%s3 + $0x1c] sm:$0xf]
  %v343 = vld [vmem:[%s3 + $0x20] sm:$0xf]
  %v344 = vld [vmem:[%s3 + $0x24] sm:$0xf]
  %v345 = vld [vmem:[%s3 + $0x28] sm:$0xf]
  %v346 = vld [vmem:[%s3 + $0x2c] sm:$0xf]
  %v347 = vld [vmem:[%s3 + $0x30] sm:$0xf]
  %v348 = vld [vmem:[%s3 + $0x34] sm:$0xf]
  %v349 = vld [vmem:[%s3 + $0x38] sm:$0xf]
  %v350 = vld [vmem:[%s3 + $0x3c] sm:$0xf]
  %v351 = vld [vmem:[%s4] sm:$0x1]
  %v353 = vlaneseq
  %v354 = vshrl.u32 %v353, 7
  %v355 = vsub.s32 0, %v354
  %v356 = vrot.slane %v351, %v355
  %v374 = vunpack.c.l.b16 %v335
  %v375 = vunpack.c.l.b16 %v336
  %v376 = vunpack.c.l.b16 %v337
  %v377 = vunpack.c.l.b16 %v338
  %v378 = vunpack.c.l.b16 %v339
  %v379 = vunpack.c.l.b16 %v340
  %v380 = vunpack.c.l.b16 %v341
  %v381 = vunpack.c.l.b16 %v342
  %v382 = vunpack.c.l.b16 %v343
  %v383 = vunpack.c.l.b16 %v344
  %v384 = vunpack.c.l.b16 %v345
  %v385 = vunpack.c.l.b16 %v346
  %v386 = vunpack.c.l.b16 %v347
  %v387 = vunpack.c.l.b16 %v348
  %v388 = vunpack.c.l.b16 %v349
  %v389 = vunpack.c.l.b16 %v350
  %v390 = vpack.c.b16 %v375, %v374
  %v391 = vpack.c.b16 %v377, %v376
  %v392 = vpack.c.b16 %v379, %v378
  %v393 = vpack.c.b16 %v381, %v380
  %v394 = vpack.c.b16 %v383, %v382
  %v395 = vpack.c.b16 %v385, %v384
  %v396 = vpack.c.b16 %v387, %v386
  %v397 = vpack.c.b16 %v389, %v388
  %406 = vmatprep.subr.bf16.mxu0 0
  %407 = vmatpush1.bf16.msra.mxu0 %v390
  %408 = vmatprep.subr.bf16.mxu0 0
  %409 = vmatpush1.bf16.msra.mxu0 %v391
  %410 = vmatprep.subr.bf16.mxu0 0
  %411 = vmatpush1.bf16.msra.mxu0 %v392
  %412 = vmatprep.subr.bf16.mxu0 0
  %413 = vmatpush1.bf16.msra.mxu0 %v393
  %414 = vmatprep.subr.bf16.mxu0 0
  %415 = vmatpush1.bf16.msra.mxu0 %v394
  %416 = vmatprep.subr.bf16.mxu0 0
  %417 = vmatpush1.bf16.msra.mxu0 %v395
  %418 = vmatprep.subr.bf16.mxu0 0
  %419 = vmatpush1.bf16.msra.mxu0 %v396
  %420 = vmatprep.subr.bf16.mxu0 0
  %421 = vmatpush1.bf16.msra.mxu0 %v397
  %422 = vmatprep.subr.bf16.mxu0 0
  %423 = vmatpush1.bf16.msra.mxu0 0
  %424 = vmatprep.subr.bf16.mxu0 0
  %425 = vmatpush1.bf16.msra.mxu0 0
  %426 = vmatprep.subr.bf16.mxu0 0
  %427 = vmatpush1.bf16.msra.mxu0 0
  %428 = vmatprep.subr.bf16.mxu0 0
  %429 = vmatpush1.bf16.msra.mxu0 0
  %430 = vmatprep.subr.bf16.mxu0 0
  %431 = vmatpush1.bf16.msra.mxu0 0
  %432 = vmatprep.subr.bf16.mxu0 0
  %433 = vmatpush1.bf16.msra.mxu0 0
  %434 = vmatprep.subr.bf16.mxu0 0
  %435 = vmatpush1.bf16.msra.mxu0 0
  %436 = vmatprep.subr.bf16.mxu0 0
  %437 = vmatpush1.bf16.msra.mxu0 0
  %438 = vmatprep.mubr.bf16.mxu0 0
  %439 = vmatmul.mubr.bf16.gmra.mrb[0].mxu0 %v334
  %v440 = vpop.f32.mrb[0].mxu0
  %v441 = vadd.f32 %v356, %v440
  %v442 = vpop.f32.mrb[0].mxu0
  %v443 = vpop.f32.mrb[0].mxu0
  %v444 = vpop.f32.mrb[0].mxu0
  %445 = vdwg.mxu0
  %v446 = vmax.f32 %v441, 0.0
  %v447 = vpack.c.bf16 %v446, %v446
  %v448 = vld [vmem:[%s5] sm:$0xf]
  %v449 = vld [vmem:[%s5 + $0x4] sm:$0xf]
  %v450 = vld [vmem:[%s5 + $0x8] sm:$0xf]
  %v451 = vld [vmem:[%s5 + $0xc] sm:$0xf]
  %v452 = vld [vmem:[%s5 + $0x10] sm:$0xf]
  %v453 = vld [vmem:[%s5 + $0x14] sm:$0xf]
  %v454 = vld [vmem:[%s5 + $0x18] sm:$0xf]
  %v455 = vld [vmem:[%s5 + $0x1c] sm:$0xf]
  %v456 = vld [vmem:[%s5 + $0x20] sm:$0xf]
  %v457 = vld [vmem:[%s5 + $0x24] sm:$0xf]
  %v458 = vld [vmem:[%s5 + $0x28] sm:$0xf]
  %v459 = vld [vmem:[%s5 + $0x2c] sm:$0xf]
  %v460 = vld [vmem:[%s5 + $0x30] sm:$0xf]
  %v461 = vld [vmem:[%s5 + $0x34] sm:$0xf]
  %v462 = vld [vmem:[%s5 + $0x38] sm:$0xf]
  %v463 = vld [vmem:[%s5 + $0x3c] sm:$0xf]
  %v464 = vld [vmem:[%s6] sm:$0x1]
  %v466 = vlaneseq
  %v467 = vshrl.u32 %v466, 7
  %v468 = vsub.s32 0, %v467
  %v469 = vrot.slane %v464, %v468
  %v487 = vunpack.c.l.b16 %v448
  %v488 = vunpack.c.l.b16 %v449
  %v489 = vunpack.c.l.b16 %v450
  %v490 = vunpack.c.l.b16 %v451
  %v491 = vunpack.c.l.b16 %v452
  %v492 = vunpack.c.l.b16 %v453
  %v493 = vunpack.c.l.b16 %v454
  %v494 = vunpack.c.l.b16 %v455
  %v495 = vunpack.c.l.b16 %v456
  %v496 = vunpack.c.l.b16 %v457
  %v497 = vunpack.c.l.b16 %v458
  %v498 = vunpack.c.l.b16 %v459
  %v499 = vunpack.c.l.b16 %v460
  %v500 = vunpack.c.l.b16 %v461
  %v501 = vunpack.c.l.b16 %v462
  %v502 = vunpack.c.l.b16 %v463
  %v503 = vpack.c.b16 %v488, %v487
  %v504 = vpack.c.b16 %v490, %v489
  %v505 = vpack.c.b16 %v492, %v491
  %v506 = vpack.c.b16 %v494, %v493
  %v507 = vpack.c.b16 %v496, %v495
  %v508 = vpack.c.b16 %v498, %v497
  %v509 = vpack.c.b16 %v500, %v499
  %v510 = vpack.c.b16 %v502, %v501
  %519 = vmatprep.subr.bf16.mxu0 0
  %520 = vmatpush1.bf16.msra.mxu0 %v503
  %521 = vmatprep.subr.bf16.mxu0 0
  %522 = vmatpush1.bf16.msra.mxu0 %v504
  %523 = vmatprep.subr.bf16.mxu0 0
  %524 = vmatpush1.bf16.msra.mxu0 %v505
  %525 = vmatprep.subr.bf16.mxu0 0
  %526 = vmatpush1.bf16.msra.mxu0 %v506
  %527 = vmatprep.subr.bf16.mxu0 0
  %528 = vmatpush1.bf16.msra.mxu0 %v507
  %529 = vmatprep.subr.bf16.mxu0 0
  %530 = vmatpush1.bf16.msra.mxu0 %v508
  %531 = vmatprep.subr.bf16.mxu0 0
  %532 = vmatpush1.bf16.msra.mxu0 %v509
  %533 = vmatprep.subr.bf16.mxu0 0
  %534 = vmatpush1.bf16.msra.mxu0 %v510
  %535 = vmatprep.subr.bf16.mxu0 0
  %536 = vmatpush1.bf16.msra.mxu0 0
  %537 = vmatprep.subr.bf16.mxu0 0
  %538 = vmatpush1.bf16.msra.mxu0 0
  %539 = vmatprep.subr.bf16.mxu0 0
  %540 = vmatpush1.bf16.msra.mxu0 0
  %541 = vmatprep.subr.bf16.mxu0 0
  %542 = vmatpush1.bf16.msra.mxu0 0
  %543 = vmatprep.subr.bf16.mxu0 0
  %544 = vmatpush1.bf16.msra.mxu0 0
  %545 = vmatprep.subr.bf16.mxu0 0
  %546 = vmatpush1.bf16.msra.mxu0 0
  %547 = vmatprep.subr.bf16.mxu0 0
  %548 = vmatpush1.bf16.msra.mxu0 0
  %549 = vmatprep.subr.bf16.mxu0 0
  %550 = vmatpush1.bf16.msra.mxu0 0
  %551 = vmatprep.mubr.bf16.mxu0 0
  %552 = vmatmul.mubr.bf16.gmra.mrb[0].mxu0 %v447
  %v553 = vpop.f32.mrb[0].mxu0
  %v554 = vadd.f32 %v469, %v553
  %v555 = vpop.f32.mrb[0].mxu0
  %v556 = vpop.f32.mrb[0].mxu0
  %v557 = vpop.f32.mrb[0].mxu0
  %558 = vdwg.mxu0
  %559 = vst [vmem:[%s7] sm:$0xff] %v554
  // Predicated region
  $region30: #{net_forward.3} parent=0 // pred_check
    _
  $region31: #{net_forward.3} parent=0 // pred_check_branch
    %561 = sbr.rel (0) target = $region33
  $region32: #{net_forward.3} parent=0 // pred_region
    _
  $region33: #{net_forward.3} parent=0 // pred_fallthru
    _
  // Predicated region
  $region34: #{net_forward.3} parent=0 // pred_check
    _
  $region35: #{net_forward.3} parent=0 // pred_check_branch
    %563 = sbr.rel (0) target = $region37
  $region36: #{net_forward.3} parent=0 // pred_region
    _
  $region37: #{net_forward.3} parent=0 // pred_fallthru
    _

// kernel: net_forward.2
$region0: #{net_forward.2}
  #allocation0 [shape = 'u32[]', space=smem, size = 0x4, offset = 0x4, fixed_abs, tag = 'smem constant byte address 0x4 - core index']
  #allocation1 [shape = 'u32[144,128]{1,0:T(1,128)}', space=vmem, size = 0x12000, scoped, tag = 'internal scratch']
  #allocation2 [shape = 'f32[784,8]{1,0:T(8,128)}', space=vmem, size = 0x62000, scoped, tag = 'scratch operand']
  #allocation3 [shape = 'f32[392,8]{1,0:T(8,128)}', space=vmem, size = 0x31000, scoped, tag = 'scratch operand']
  #allocation4 [shape = 'f32[196,8]{1,0:T(8,128)}', space=vmem, size = 0x19000, scoped, tag = 'scratch operand']
  #allocation5 [shape = 'bf16[136,256]{1,0:T(8,128)(2,1)}', space=vmem, size = 0x11000, scoped, tag = 'scratch operand']
  #allocation6 [shape = 'f32[136,16]{1,0:T(8,128)}', space=vmem, size = 0x11000, scoped, tag = 'scratch operand']
  #allocation7 [shape = 'f32[68,16]{1,0:T(8,128)}', space=vmem, size = 0x9000, scoped, tag = 'scratch operand']
  %s0 = inlined_call_operand.vmem [shape: bf16[2,784,128], index: 0, kind: input, shape index: {}]
  %s1 = inlined_call_operand.vmem [shape: bf16[128,8], index: 1, kind: input, shape index: {}]
  %s2 = inlined_call_operand.vmem [shape: f32[1,8], index: 2, kind: input, shape index: {}]
  %s3 = inlined_call_operand.vmem [shape: bf16[256,16], index: 3, kind: input, shape index: {}]
  %s4 = inlined_call_operand.vmem [shape: f32[1,16], index: 4, kind: input, shape index: {}]
  %s5 = inlined_call_operand.vmem [shape: f32[2,25,16], index: 5, kind: output, shape index: {}]
  %s6 = sld [smem:[#allocation0]]
  $region53: #{net_forward.2} parent=0
    _
  %s8 = ssub.s32 1, %s6
  %s9 = scalar_select 0, %s8, %s6
  loop: start=0, step=1, limit=4
  $region2: #{net_forward.2} parent=0 // loop_pre_header
    _
  $region3: #{net_forward.2} parent=0 // loop_header
    %s11 = sphi 0, %s15
    %p12 = scmp.ge.s32.totalorder %s11, 4
    %s21 = sphi 0, %s23
    %s24 = sphi 0, %s21
    %s25 = sphi 0, %s24
    %s41 = sphi 0, %s25
    %s45 = sphi 0, %s45
    %s47 = sphi 0, %s45
    %s48 = sphi 0, %s47
    %s62 = sphi 0, %s48
    %s66 = sphi 0, %s66
    %s68 = sphi 0, %s66
    %s69 = sphi 0, %s68
    %s83 = sphi 0, %s69
    %s87 = sphi 0, %s87
    %s89 = sphi 0, %s87
    %s90 = sphi 0, %s89
    %s104 = sphi 0, %s90
    %s108 = sphi 0, %s108
    %s110 = sphi 0, %s108
    %s111 = sphi 0, %s110
    %s125 = sphi 0, %s111
    %s131 = sphi 0, %s133
    %s134 = sphi 0, %s131
    %s135 = sphi 0, %s134
    %s151 = sphi 0, %s135
  $region4: #{net_forward.2} parent=0 // loop_header_branch
    %14 = sbr.rel (%p12) target = $region8
  $region5: #{net_forward.2} parent=0 // loop_body
    %s16 = ssub.s32 %s11, 1
    %s17 = ssub.s32 %s11, 2
    %s18 = sadd.s32 %s11, 1
    %s19 = ssub.s32 %s11, %s18
    %p20 = scmp.eq.s32.totalorder %s19, 0
    %s22 = sadd.s32 %s21, 1
    %s23 = scalar_select %p20, %s21, %s22
    %p26 = pneg %p20
    %p27 = scmp.eq.s32.totalorder %s11, 1
    %p28 = por %p26, %p27
    %p29 = scmp.ne.s32.totalorder %s21, %s24
    %p30 = scmp.eq.s32.totalorder %s11, 0
    %p31 = por %p29, %p30
    %p32 = scmp.ne.s32.totalorder %s21, %s24
    %p33 = scmp.eq.s32.totalorder %s16, 1
    %p34 = por %p32, %p33
    %p35 = scmp.ne.s32.totalorder %s24, %s25
    %p36 = scmp.eq.s32.totalorder %s16, 0
    %p37 = por %p35, %p36
    %p38 = scmp.ne.s32.totalorder %s24, %s25
    %p39 = scmp.eq.s32.totalorder %s17, 1
    %p40 = por %p38, %p39
    %p42 = scmp.ne.s32.totalorder %s25, %s41
    %p43 = scmp.eq.s32.totalorder %s17, 0
    %p44 = por %p42, %p43
    %s46 = sadd.s32 %s45, 1
    %p49 = scmp.eq.s32.totalorder %s11, 1
    %p50 = scmp.ne.s32.totalorder %s45, %s47
    %p51 = scmp.eq.s32.totalorder %s11, 0
    %p52 = por %p50, %p51
    %p53 = scmp.ne.s32.totalorder %s45, %s47
    %p54 = scmp.eq.s32.totalorder %s16, 1
    %p55 = por %p53, %p54
    %p56 = scmp.ne.s32.totalorder %s47, %s48
    %p57 = scmp.eq.s32.totalorder %s16, 0
    %p58 = por %p56, %p57
    %p59 = scmp.ne.s32.totalorder %s47, %s48
    %p60 = scmp.eq.s32.totalorder %s17, 1
    %p61 = por %p59, %p60
    %p63 = scmp.ne.s32.totalorder %s48, %s62
    %p64 = scmp.eq.s32.totalorder %s17, 0
    %p65 = por %p63, %p64
    %s67 = sadd.s32 %s66, 1
    %p70 = scmp.eq.s32.totalorder %s11, 1
    %p71 = scmp.ne.s32.totalorder %s66, %s68
    %p72 = scmp.eq.s32.totalorder %s11, 0
    %p73 = por %p71, %p72
    %p74 = scmp.ne.s32.totalorder %s66, %s68
    %p75 = scmp.eq.s32.totalorder %s16, 1
    %p76 = por %p74, %p75
    %p77 = scmp.ne.s32.totalorder %s68, %s69
    %p78 = scmp.eq.s32.totalorder %s16, 0
    %p79 = por %p77, %p78
    %p80 = scmp.ne.s32.totalorder %s68, %s69
    %p81 = scmp.eq.s32.totalorder %s17, 1
    %p82 = por %p80, %p81
    %p84 = scmp.ne.s32.totalorder %s69, %s83
    %p85 = scmp.eq.s32.totalorder %s17, 0
    %p86 = por %p84, %p85
    %s88 = sadd.s32 %s87, 1
    %p91 = scmp.eq.s32.totalorder %s11, 1
    %p92 = scmp.ne.s32.totalorder %s87, %s89
    %p93 = scmp.eq.s32.totalorder %s11, 0
    %p94 = por %p92, %p93
    %p95 = scmp.ne.s32.totalorder %s87, %s89
    %p96 = scmp.eq.s32.totalorder %s16, 1
    %p97 = por %p95, %p96
    %p98 = scmp.ne.s32.totalorder %s89, %s90
    %p99 = scmp.eq.s32.totalorder %s16, 0
    %p100 = por %p98, %p99
    %p101 = scmp.ne.s32.totalorder %s89, %s90
    %p102 = scmp.eq.s32.totalorder %s17, 1
    %p103 = por %p101, %p102
    %p105 = scmp.ne.s32.totalorder %s90, %s104
    %p106 = scmp.eq.s32.totalorder %s17, 0
    %p107 = por %p105, %p106
    %s109 = sadd.s32 %s108, 1
    %p112 = scmp.eq.s32.totalorder %s11, 1
    %p113 = scmp.ne.s32.totalorder %s108, %s110
    %p114 = scmp.eq.s32.totalorder %s11, 0
    %p115 = por %p113, %p114
    %p116 = scmp.ne.s32.totalorder %s108, %s110
    %p117 = scmp.eq.s32.totalorder %s16, 1
    %p118 = por %p116, %p117
    %p119 = scmp.ne.s32.totalorder %s110, %s111
    %p120 = scmp.eq.s32.totalorder %s16, 0
    %p121 = por %p119, %p120
    %p122 = scmp.ne.s32.totalorder %s110, %s111
    %p123 = scmp.eq.s32.totalorder %s17, 1
    %p124 = por %p122, %p123
    %p126 = scmp.ne.s32.totalorder %s111, %s125
    %p127 = scmp.eq.s32.totalorder %s17, 0
    %p128 = por %p126, %p127
    %s129 = ssub.s32 %s11, %s18
    %p130 = scmp.eq.s32.totalorder %s129, 0
    %s132 = sadd.s32 %s131, 1
    %s133 = scalar_select %p130, %s131, %s132
    %p136 = pneg %p130
    %p137 = scmp.eq.s32.totalorder %s11, 1
    %p138 = por %p136, %p137
    %p139 = scmp.ne.s32.totalorder %s131, %s134
    %p140 = scmp.eq.s32.totalorder %s11, 0
    %p141 = por %p139, %p140
    %p142 = scmp.ne.s32.totalorder %s131, %s134
    %p143 = scmp.eq.s32.totalorder %s16, 1
    %p144 = por %p142, %p143
    %p145 = scmp.ne.s32.totalorder %s134, %s135
    %p146 = scmp.eq.s32.totalorder %s16, 0
    %p147 = por %p145, %p146
    %p148 = scmp.ne.s32.totalorder %s134, %s135
    %p149 = scmp.eq.s32.totalorder %s17, 1
    %p150 = por %p148, %p149
    %p152 = scmp.ne.s32.totalorder %s135, %s151
    %p153 = scmp.eq.s32.totalorder %s17, 0
    %p154 = por %p152, %p153
    %p155 = scmp.le.s32.totalorder 1, %s11
    %p156 = scmp.lt.s32.totalorder %s11, 3
    %p157 = pnand %p155, %p156
    %p158 = pneg %p157
    // Predicated region
    $region9: #{net_forward.2} parent=5 // pred_check
      _
    $region10: #{net_forward.2} parent=5 // pred_check_branch
      %160 = sbr.rel (%p157) target = $region12
    $region11: #{net_forward.2} parent=5 // pred_region
      %s161 = ssub.s32 %s11, 1
      // Predicated region
      $region13: #{net_forward.2} parent=11 // pred_check
        %p162 = pneg %p58
      $region14: #{net_forward.2} parent=11 // pred_check_branch
        %164 = sbr.rel (%p162) target = $region16
      $region15: #{net_forward.2} parent=11 // pred_region
        _
      $region16: #{net_forward.2} parent=11 // pred_fallthru
        _
      // Predicated region
      $region17: #{net_forward.2} parent=11 // pred_check
        %p165 = pneg %p79
      $region18: #{net_forward.2} parent=11 // pred_check_branch
        %167 = sbr.rel (%p165) target = $region20
      $region19: #{net_forward.2} parent=11 // pred_region
        _
      $region20: #{net_forward.2} parent=11 // pred_fallthru
        _
      // Predicated region
      $region21: #{net_forward.2} parent=11 // pred_check
        %p168 = pneg %p100
      $region22: #{net_forward.2} parent=11 // pred_check_branch
        %170 = sbr.rel (%p168) target = $region24
      $region23: #{net_forward.2} parent=11 // pred_region
        _
      $region24: #{net_forward.2} parent=11 // pred_fallthru
        _
      // Predicated region
      $region25: #{net_forward.2} parent=11 // pred_check
        %p171 = pneg %p121
      $region26: #{net_forward.2} parent=11 // pred_check_branch
        %173 = sbr.rel (%p171) target = $region28
      $region27: #{net_forward.2} parent=11 // pred_region
        _
      $region28: #{net_forward.2} parent=11 // pred_fallthru
        _
    $region12: #{net_forward.2} parent=5 // pred_fallthru
      _
    %p174 = scmp.lt.s32.totalorder %s11, 2
    // Predicated region
    $region29: #{net_forward.2} parent=5 // pred_check
      %p175 = pneg %p174
    $region30: #{net_forward.2} parent=5 // pred_check_branch
      %177 = sbr.rel (%p175) target = $region32
    $region31: #{net_forward.2} parent=5 // pred_region
      // Predicated region
      $region33: #{net_forward.2} parent=31 // pred_check
        %p178 = pneg %p31
      $region34: #{net_forward.2} parent=31 // pred_check_branch
        %180 = sbr.rel (%p178) target = $region36
      $region35: #{net_forward.2} parent=31 // pred_region
        %p181 = scmp.lt.s32.totalorder %s11, 1
        %s182 = scalar_select %p181, %s11, 1
        %s183 = smul.addr %s182, 98
        %s184 = smul.addr %s183, 4
        %s185 = scalar_lea.vmem %s0, %s184
      $region36: #{net_forward.2} parent=31 // pred_fallthru
        _
    $region32: #{net_forward.2} parent=5 // pred_fallthru
      _
    %p186 = scmp.le.s32.totalorder 1, %s11
    %p187 = scmp.lt.s32.totalorder %s11, 3
    %p188 = pnand %p186, %p187
    %p189 = pneg %p188
    // Predicated region
    $region37: #{net_forward.2} parent=5 // pred_check
      _
    $region38: #{net_forward.2} parent=5 // pred_check_branch
      %191 = sbr.rel (%p188) target = $region40
    $region39: #{net_forward.2} parent=5 // pred_region
      %s192 = ssub.s32 %s11, 1
      %p193 = scmp.lt.s32.totalorder %s16, 1
      %s194 = scalar_select %p193, %s16, 1
      %s195 = smul.addr %s194, 98
      %s196 = smul.addr %s195, 4
      %s197 = scalar_lea.vmem %s0, %s196
      %p198 = pneg %p37
      %p199 = pneg %p34
      %p200 = pneg %p58
      %p201 = pneg %p55
      %p202 = pneg %p79
      %p203 = pneg %p76
      %p204 = pneg %p100
      %p205 = pneg %p97
      %p206 = pneg %p121
      %p207 = pneg %p118
      %p208 = pneg %p147
      %p209 = pneg %p144
      %p210 = scmp.lt.s32.totalorder %s16, 1
      %s211 = scalar_select %p210, %s16, 1
      %s212 = smul.addr %s211, 4
      %s213 = smul.addr %s212, 8
      %s214 = scalar_lea.vmem %s5, %s213
      %p215 = scmp.lt.s32.totalorder %s16, 1
      %s216 = scalar_select %p215, %s16, 1
      %s217 = smul.addr %s216, 98
      %s218 = smul.addr %s217, 4
      %s219 = scalar_lea.vmem %s0, %s218
      %p220 = scmp.lt.s32.totalorder %s16, 1
      %s221 = scalar_select %p220, %s16, 1
      %s222 = smul.addr %s221, 4
      %s223 = smul.addr %s222, 8
      %s224 = scalar_lea.vmem %s5, %s223
      %v226 = vld [vmem:[%s219] sm:$0xf]
      %v227 = vld [vmem:[%s219 + $0x4] sm:$0xf]
      %v228 = vld [vmem:[%s219 + $0x8] sm:$0xf]
      %v229 = vld [vmem:[%s219 + $0xc] sm:$0xf]
      %v230 = vld [vmem:[%s219 + $0x10] sm:$0xf]
      %v231 = vld [vmem:[%s219 + $0x14] sm:$0xf]
      %v232 = vld [vmem:[%s219 + $0x18] sm:$0xf]
      %v233 = vld [vmem:[%s219 + $0x1c] sm:$0xf]
      %v234 = vld [vmem:[%s219 + $0x20] sm:$0xf]
      %v235 = vld [vmem:[%s219 + $0x24] sm:$0xf]
      %v236 = vld [vmem:[%s219 + $0x28] sm:$0xf]
      %v237 = vld [vmem:[%s219 + $0x2c] sm:$0xf]
      %v238 = vld [vmem:[%s219 + $0x30] sm:$0xf]
      %v239 = vld [vmem:[%s219 + $0x34] sm:$0xf]
      %v240 = vld [vmem:[%s219 + $0x38] sm:$0xf]
      %v241 = vld [vmem:[%s219 + $0x3c] sm:$0xf]
      %v242 = vld [vmem:[%s219 + $0x40] sm:$0xf]
      %v243 = vld [vmem:[%s219 + $0x44] sm:$0xf]
      %v244 = vld [vmem:[%s219 + $0x48] sm:$0xf]
      %v245 = vld [vmem:[%s219 + $0x4c] sm:$0xf]
      %v246 = vld [vmem:[%s219 + $0x50] sm:$0xf]
      %v247 = vld [vmem:[%s219 + $0x54] sm:$0xf]
      %v248 = vld [vmem:[%s219 + $0x58] sm:$0xf]
      %v249 = vld [vmem:[%s219 + $0x5c] sm:$0xf]
      %v250 = vld [vmem:[%s219 + $0x60] sm:$0xf]
      %v251 = vld [vmem:[%s219 + $0x64] sm:$0xf]
      %v252 = vld [vmem:[%s219 + $0x68] sm:$0xf]
      %v253 = vld [vmem:[%s219 + $0x6c] sm:$0xf]
      %v254 = vld [vmem:[%s219 + $0x70] sm:$0xf]
      %v255 = vld [vmem:[%s219 + $0x74] sm:$0xf]
      %v256 = vld [vmem:[%s219 + $0x78] sm:$0xf]
      %v257 = vld [vmem:[%s219 + $0x7c] sm:$0xf]
      %v258 = vld [vmem:[%s219 + $0x80] sm:$0xf]
      %v259 = vld [vmem:[%s219 + $0x84] sm:$0xf]
      %v260 = vld [vmem:[%s219 + $0x88] sm:$0xf]
      %v261 = vld [vmem:[%s219 + $0x8c] sm:$0xf]
      %v262 = vld [vmem:[%s219 + $0x90] sm:$0xf]
      %v263 = vld [vmem:[%s219 + $0x94] sm:$0xf]
      %v264 = vld [vmem:[%s219 + $0x98] sm:$0xf]
      %v265 = vld [vmem:[%s219 + $0x9c] sm:$0xf]
      %v266 = vld [vmem:[%s219 + $0xa0] sm:$0xf]
      %v267 = vld [vmem:[%s219 + $0xa4] sm:$0xf]
      %v268 = vld [vmem:[%s219 + $0xa8] sm:$0xf]
      %v269 = vld [vmem:[%s219 + $0xac] sm:$0xf]
      %v270 = vld [vmem:[%s219 + $0xb0] sm:$0xf]
      %v271 = vld [vmem:[%s219 + $0xb4] sm:$0xf]
      %v272 = vld [vmem:[%s219 + $0xb8] sm:$0xf]
      %v273 = vld [vmem:[%s219 + $0xbc] sm:$0xf]
      %v274 = vld [vmem:[%s219 + $0xc0] sm:$0xf]
      %v275 = vld [vmem:[%s219 + $0xc4] sm:$0xf]
      %v276 = vld [vmem:[%s219 + $0xc8] sm:$0xf]
      %v277 = vld [vmem:[%s219 + $0xcc] sm:$0xf]
      %v278 = vld [vmem:[%s219 + $0xd0] sm:$0xf]
      %v279 = vld [vmem:[%s219 + $0xd4] sm:$0xf]
      %v280 = vld [vmem:[%s219 + $0xd8] sm:$0xf]
      %v281 = vld [vmem:[%s219 + $0xdc] sm:$0xf]
      %v282 = vld [vmem:[%s219 + $0xe0] sm:$0xf]
      %v283 = vld [vmem:[%s219 + $0xe4] sm:$0xf]
      %v284 = vld [vmem:[%s219 + $0xe8] sm:$0xf]
      %v285 = vld [vmem:[%s219 + $0xec] sm:$0xf]
      %v286 = vld [vmem:[%s219 + $0xf0] sm:$0xf]
      %v287 = vld [vmem:[%s219 + $0xf4] sm:$0xf]
      %v288 = vld [vmem:[%s219 + $0xf8] sm:$0xf]
      %v289 = vld [vmem:[%s219 + $0xfc] sm:$0xf]
      %v290 = vld [vmem:[%s219 + $0x100] sm:$0xf]
      %v291 = vld [vmem:[%s219 + $0x104] sm:$0xf]
      %v292 = vld [vmem:[%s219 + $0x108] sm:$0xf]
      %v293 = vld [vmem:[%s219 + $0x10c] sm:$0xf]
      %v294 = vld [vmem:[%s219 + $0x110] sm:$0xf]
      %v295 = vld [vmem:[%s219 + $0x114] sm:$0xf]
      %v296 = vld [vmem:[%s219 + $0x118] sm:$0xf]
      %v297 = vld [vmem:[%s219 + $0x11c] sm:$0xf]
      %v298 = vld [vmem:[%s219 + $0x120] sm:$0xf]
      %v299 = vld [vmem:[%s219 + $0x124] sm:$0xf]
      %v300 = vld [vmem:[%s219 + $0x128] sm:$0xf]
      %v301 = vld [vmem:[%s219 + $0x12c] sm:$0xf]
      %v302 = vld [vmem:[%s219 + $0x130] sm:$0xf]
      %v303 = vld [vmem:[%s219 + $0x134] sm:$0xf]
      %v304 = vld [vmem:[%s219 + $0x138] sm:$0xf]
      %v305 = vld [vmem:[%s219 + $0x13c] sm:$0xf]
      %v306 = vld [vmem:[%s219 + $0x140] sm:$0xf]
      %v307 = vld [vmem:[%s219 + $0x144] sm:$0xf]
      %v308 = vld [vmem:[%s219 + $0x148] sm:$0xf]
      %v309 = vld [vmem:[%s219 + $0x14c] sm:$0xf]
      %v310 = vld [vmem:[%s219 + $0x150] sm:$0xf]
      %v311 = vld [vmem:[%s219 + $0x154] sm:$0xf]
      %v312 = vld [vmem:[%s219 + $0x158] sm:$0xf]
      %v313 = vld [vmem:[%s219 + $0x15c] sm:$0xf]
      %v314 = vld [vmem:[%s219 + $0x160] sm:$0xf]
      %v315 = vld [vmem:[%s219 + $0x164] sm:$0xf]
      %v316 = vld [vmem:[%s219 + $0x168] sm:$0xf]
      %v317 = vld [vmem:[%s219 + $0x16c] sm:$0xf]
      %v318 = vld [vmem:[%s219 + $0x170] sm:$0xf]
      %v319 = vld [vmem:[%s219 + $0x174] sm:$0xf]
      %v320 = vld [vmem:[%s219 + $0x178] sm:$0xf]
      %v321 = vld [vmem:[%s219 + $0x17c] sm:$0xf]
      %v322 = vld [vmem:[%s219 + $0x180] sm:$0xf]
      %v323 = vld [vmem:[%s219 + $0x184] sm:$0xf]
      %v324 = vld [vmem:[%s1] sm:$0xf]
      %v325 = vld [vmem:[%s1 + $0x4] sm:$0xf]
      %v326 = vld [vmem:[%s1 + $0x8] sm:$0xf]
      %v327 = vld [vmem:[%s1 + $0xc] sm:$0xf]
      %v328 = vld [vmem:[%s1 + $0x10] sm:$0xf]
      %v329 = vld [vmem:[%s1 + $0x14] sm:$0xf]
      %v330 = vld [vmem:[%s1 + $0x18] sm:$0xf]
      %v331 = vld [vmem:[%s1 + $0x1c] sm:$0xf]
      %v332 = vld [vmem:[%s1 + $0x20] sm:$0xf]
      %v333 = vld [vmem:[%s1 + $0x24] sm:$0xf]
      %v334 = vld [vmem:[%s1 + $0x28] sm:$0xf]
      %v335 = vld [vmem:[%s1 + $0x2c] sm:$0xf]
      %v336 = vld [vmem:[%s1 + $0x30] sm:$0xf]
      %v337 = vld [vmem:[%s1 + $0x34] sm:$0xf]
      %v338 = vld [vmem:[%s1 + $0x38] sm:$0xf]
      %v339 = vld [vmem:[%s1 + $0x3c] sm:$0xf]
      %v438 = vunpack.c.l.b16 %v226
      %v439 = vunpack.c.l.b16 %v227
      %v440 = vunpack.c.l.b16 %v228
      %v441 = vunpack.c.l.b16 %v229
      %v442 = vunpack.c.l.b16 %v230
      %v443 = vunpack.c.l.b16 %v231
      %v444 = vunpack.c.l.b16 %v232
      %v445 = vunpack.c.l.b16 %v233
      %v446 = vunpack.c.l.b16 %v234
      %v447 = vunpack.c.l.b16 %v235
      %v448 = vunpack.c.l.b16 %v236
      %v449 = vunpack.c.l.b16 %v237
      %v450 = vunpack.c.l.b16 %v238
      %v451 = vunpack.c.l.b16 %v239
      %v452 = vunpack.c.l.b16 %v240
      %v453 = vunpack.c.l.b16 %v241
      %v454 = vunpack.c.l.b16 %v242
      %v455 = vunpack.c.l.b16 %v243
      %v456 = vunpack.c.l.b16 %v244
      %v457 = vunpack.c.l.b16 %v245
      %v458 = vunpack.c.l.b16 %v246
      %v459 = vunpack.c.l.b16 %v247
      %v460 = vunpack.c.l.b16 %v248
      %v461 = vunpack.c.l.b16 %v249
      %v462 = vunpack.c.l.b16 %v250
      %v463 = vunpack.c.l.b16 %v251
      %v464 = vunpack.c.l.b16 %v252
      %v465 = vunpack.c.l.b16 %v253
      %v466 = vunpack.c.l.b16 %v254
      %v467 = vunpack.c.l.b16 %v255
      %v468 = vunpack.c.l.b16 %v256
      %v469 = vunpack.c.l.b16 %v257
      %v470 = vunpack.c.l.b16 %v258
      %v471 = vunpack.c.l.b16 %v259
      %v472 = vunpack.c.l.b16 %v260
      %v473 = vunpack.c.l.b16 %v261
      %v474 = vunpack.c.l.b16 %v262
      %v475 = vunpack.c.l.b16 %v263
      %v476 = vunpack.c.l.b16 %v264
      %v477 = vunpack.c.l.b16 %v265
      %v478 = vunpack.c.l.b16 %v266
      %v479 = vunpack.c.l.b16 %v267
      %v480 = vunpack.c.l.b16 %v268
      %v481 = vunpack.c.l.b16 %v269
      %v482 = vunpack.c.l.b16 %v270
      %v483 = vunpack.c.l.b16 %v271
      %v484 = vunpack.c.l.b16 %v272
      %v485 = vunpack.c.l.b16 %v273
      %v486 = vunpack.c.l.b16 %v274
      %v487 = vunpack.c.l.b16 %v275
      %v488 = vunpack.c.l.b16 %v276
      %v489 = vunpack.c.l.b16 %v277
      %v490 = vunpack.c.l.b16 %v278
      %v491 = vunpack.c.l.b16 %v279
      %v492 = vunpack.c.l.b16 %v280
      %v493 = vunpack.c.l.b16 %v281
      %v494 = vunpack.c.l.b16 %v282
      %v495 = vunpack.c.l.b16 %v283
      %v496 = vunpack.c.l.b16 %v284
      %v497 = vunpack.c.l.b16 %v285
      %v498 = vunpack.c.l.b16 %v286
      %v499 = vunpack.c.l.b16 %v287
      %v500 = vunpack.c.l.b16 %v288
      %v501 = vunpack.c.l.b16 %v289
      %v502 = vunpack.c.l.b16 %v290
      %v503 = vunpack.c.l.b16 %v291
      %v504 = vunpack.c.l.b16 %v292
      %v505 = vunpack.c.l.b16 %v293
      %v506 = vunpack.c.l.b16 %v294
      %v507 = vunpack.c.l.b16 %v295
      %v508 = vunpack.c.l.b16 %v296
      %v509 = vunpack.c.l.b16 %v297
      %v510 = vunpack.c.l.b16 %v298
      %v511 = vunpack.c.l.b16 %v299
      %v512 = vunpack.c.l.b16 %v300
      %v513 = vunpack.c.l.b16 %v301
      %v514 = vunpack.c.l.b16 %v302
      %v515 = vunpack.c.l.b16 %v303
      %v516 = vunpack.c.l.b16 %v304
      %v517 = vunpack.c.l.b16 %v305
      %v518 = vunpack.c.l.b16 %v306
      %v519 = vunpack.c.l.b16 %v307
      %v520 = vunpack.c.l.b16 %v308
      %v521 = vunpack.c.l.b16 %v309
      %v522 = vunpack.c.l.b16 %v310
      %v523 = vunpack.c.l.b16 %v311
      %v524 = vunpack.c.l.b16 %v312
      %v525 = vunpack.c.l.b16 %v313
      %v526 = vunpack.c.l.b16 %v314
      %v527 = vunpack.c.l.b16 %v315
      %v528 = vunpack.c.l.b16 %v316
      %v529 = vunpack.c.l.b16 %v317
      %v530 = vunpack.c.l.b16 %v318
      %v531 = vunpack.c.l.b16 %v319
      %v532 = vunpack.c.l.b16 %v320
      %v533 = vunpack.c.l.b16 %v321
      %v534 = vunpack.c.l.b16 %v322
      %v535 = vunpack.c.l.b16 %v323
      %v536 = vpack.c.b16 %v439, %v438
      %v537 = vpack.c.b16 %v441, %v440
      %v538 = vpack.c.b16 %v443, %v442
      %v539 = vpack.c.b16 %v445, %v444
      %v540 = vpack.c.b16 %v447, %v446
      %v541 = vpack.c.b16 %v449, %v448
      %v542 = vpack.c.b16 %v451, %v450
      %v543 = vpack.c.b16 %v453, %v452
      %v544 = vpack.c.b16 %v455, %v454
      %v545 = vpack.c.b16 %v457, %v456
      %v546 = vpack.c.b16 %v459, %v458
      %v547 = vpack.c.b16 %v461, %v460
      %v548 = vpack.c.b16 %v463, %v462
      %v549 = vpack.c.b16 %v465, %v464
      %v550 = vpack.c.b16 %v467, %v466
      %v551 = vpack.c.b16 %v469, %v468
      %v552 = vpack.c.b16 %v471, %v470
      %v553 = vpack.c.b16 %v473, %v472
      %v554 = vpack.c.b16 %v475, %v474
      %v555 = vpack.c.b16 %v477, %v476
      %v556 = vpack.c.b16 %v479, %v478
      %v557 = vpack.c.b16 %v481, %v480
      %v558 = vpack.c.b16 %v483, %v482
      %v559 = vpack.c.b16 %v485, %v484
      %v560 = vpack.c.b16 %v487, %v486
      %v561 = vpack.c.b16 %v489, %v488
      %v562 = vpack.c.b16 %v491, %v490
      %v563 = vpack.c.b16 %v493, %v492
      %v564 = vpack.c.b16 %v495, %v494
      %v565 = vpack.c.b16 %v497, %v496
      %v566 = vpack.c.b16 %v499, %v498
      %v567 = vpack.c.b16 %v501, %v500
      %v568 = vpack.c.b16 %v503, %v502
      %v569 = vpack.c.b16 %v505, %v504
      %v570 = vpack.c.b16 %v507, %v506
      %v571 = vpack.c.b16 %v509, %v508
      %v572 = vpack.c.b16 %v511, %v510
      %v573 = vpack.c.b16 %v513, %v512
      %v574 = vpack.c.b16 %v515, %v514
      %v575 = vpack.c.b16 %v517, %v516
      %v576 = vpack.c.b16 %v519, %v518
      %v577 = vpack.c.b16 %v521, %v520
      %v578 = vpack.c.b16 %v523, %v522
      %v579 = vpack.c.b16 %v525, %v524
      %v580 = vpack.c.b16 %v527, %v526
      %v581 = vpack.c.b16 %v529, %v528
      %v582 = vpack.c.b16 %v531, %v530
      %v583 = vpack.c.b16 %v533, %v532
      %v584 = vpack.c.b16 %v535, %v534
      %v650 = vunpack.c.l.b16 %v324
      %v651 = vunpack.c.l.b16 %v325
      %v652 = vunpack.c.l.b16 %v326
      %v653 = vunpack.c.l.b16 %v327
      %v654 = vunpack.c.l.b16 %v328
      %v655 = vunpack.c.l.b16 %v329
      %v656 = vunpack.c.l.b16 %v330
      %v657 = vunpack.c.l.b16 %v331
      %v658 = vunpack.c.l.b16 %v332
      %v659 = vunpack.c.l.b16 %v333
      %v660 = vunpack.c.l.b16 %v334
      %v661 = vunpack.c.l.b16 %v335
      %v662 = vunpack.c.l.b16 %v336
      %v663 = vunpack.c.l.b16 %v337
      %v664 = vunpack.c.l.b16 %v338
      %v665 = vunpack.c.l.b16 %v339
      %v666 = vpack.c.b16 %v651, %v650
      %v667 = vpack.c.b16 %v653, %v652
      %v668 = vpack.c.b16 %v655, %v654
      %v669 = vpack.c.b16 %v657, %v656
      %v670 = vpack.c.b16 %v659, %v658
      %v671 = vpack.c.b16 %v661, %v660
      %v672 = vpack.c.b16 %v663, %v662
      %v673 = vpack.c.b16 %v665, %v664
      %682 = vmatprep.subr.bf16.mxu0 0
      %683 = vmatpush1.bf16.msra.mxu0 %v666
      %684 = vmatprep.subr.bf16.mxu0 0
      %685 = vmatpush1.bf16.msra.mxu0 %v667
      %686 = vmatprep.subr.bf16.mxu0 0
      %687 = vmatpush1.bf16.msra.mxu0 %v668
      %688 = vmatprep.subr.bf16.mxu0 0
      %689 = vmatpush1.bf16.msra.mxu0 %v669
      %690 = vmatprep.subr.bf16.mxu0 0
      %691 = vmatpush1.bf16.msra.mxu0 %v670
      %692 = vmatprep.subr.bf16.mxu0 0
      %693 = vmatpush1.bf16.msra.mxu0 %v671
      %694 = vmatprep.subr.bf16.mxu0 0
      %695 = vmatpush1.bf16.msra.mxu0 %v672
      %696 = vmatprep.subr.bf16.mxu0 0
      %697 = vmatpush1.bf16.msra.mxu0 %v673
      %698 = vmatprep.subr.bf16.mxu0 0
      %699 = vmatpush1.bf16.msra.mxu0 0
      %700 = vmatprep.subr.bf16.mxu0 0
      %701 = vmatpush1.bf16.msra.mxu0 0
      %702 = vmatprep.subr.bf16.mxu0 0
      %703 = vmatpush1.bf16.msra.mxu0 0
      %704 = vmatprep.subr.bf16.mxu0 0
      %705 = vmatpush1.bf16.msra.mxu0 0
      %706 = vmatprep.subr.bf16.mxu0 0
      %707 = vmatpush1.bf16.msra.mxu0 0
      %708 = vmatprep.subr.bf16.mxu0 0
      %709 = vmatpush1.bf16.msra.mxu0 0
      %710 = vmatprep.subr.bf16.mxu0 0
      %711 = vmatpush1.bf16.msra.mxu0 0
      %712 = vmatprep.subr.bf16.mxu0 0
      %713 = vmatpush1.bf16.msra.mxu0 0
      %714 = vmatprep.mubr.bf16.mxu0 0
      %715 = vmatmul.mubr.bf16.gmra.mrb[0].mxu0 %v536
      %v716 = vpop.f32.mrb[0].mxu0
      %v717 = vadd.f32 0.0, %v716
      %v718 = vpop.f32.mrb[0].mxu0
      %v719 = vpop.f32.mrb[0].mxu0
      %v720 = vadd.f32 0.0, %v719
      %v721 = vpop.f32.mrb[0].mxu0
      %722 = vmatprep.mubr.bf16.mxu0 0
      %723 = vmatmul.mubr.bf16.gmra.mrb[0].mxu0 %v537
      %v724 = vpop.f32.mrb[0].mxu0
      %v725 = vadd.f32 0.0, %v724
      %v726 = vpop.f32.mrb[0].mxu0
      %v727 = vpop.f32.mrb[0].mxu0
      %v728 = vadd.f32 0.0, %v727
      %v729 = vpop.f32.mrb[0].mxu0
      %730 = vmatprep.mubr.bf16.mxu0 0
      %731 = vmatmul.mubr.bf16.gmra.mrb[0].mxu0 %v538
      %v732 = vpop.f32.mrb[0].mxu0
      %v733 = vadd.f32 0.0, %v732
      %v734 = vpop.f32.mrb[0].mxu0
      %v735 = vpop.f32.mrb[0].mxu0
      %v736 = vadd.f32 0.0, %v735
      %v737 = vpop.f32.mrb[0].mxu0
      %738 = vmatprep.mubr.bf16.mxu0 0
      %739 = vmatmul.mubr.bf16.gmra.mrb[0].mxu0 %v539
      %v740 = vpop.f32.mrb[0].mxu0
      %v741 = vadd.f32 0.0, %v740
      %v742 = vpop.f32.mrb[0].mxu0
      %v743 = vpop.f32.mrb[0].mxu0
      %v744 = vadd.f32 0.0, %v743
      %v745 = vpop.f32.mrb[0].mxu0
      %746 = vmatprep.mubr.bf16.mxu0 0
      %747 = vmatmul.mubr.bf16.gmra.mrb[0].mxu0 %v540
      %v748 = vpop.f32.mrb[0].mxu0
      %v749 = vadd.f32 0.0, %v748
      %v750 = vpop.f32.mrb[0].mxu0
      %v751 = vpop.f32.mrb[0].mxu0
      %v752 = vadd.f32 0.0, %v751
      %v753 = vpop.f32.mrb[0].mxu0
      %754 = vmatprep.mubr.bf16.mxu0 0
      %755 = vmatmul.mubr.bf16.gmra.mrb[0].mxu0 %v541
      %v756 = vpop.f32.mrb[0].mxu0
      %v757 = vadd.f32 0.0, %v756
      %v758 = vpop.f32.mrb[0].mxu0
      %v759 = vpop.f32.mrb[0].mxu0
      %v760 = vadd.f32 0.0, %v759
      %v761 = vpop.f32.mrb[0].mxu0
      %762 = vmatprep.mubr.bf16.mxu0 0
      %763 = vmatmul.mubr.bf16.gmra.mrb[0].mxu0 %v542
      %v764 = vpop.f32.mrb[0].mxu0
      %v765 = vadd.f32 0.0, %v764
      %v766 = vpop.f32.mrb[0].mxu0
      %v767 = vpop.f32.mrb[0].mxu0
      %v768 = vadd.f32 0.0, %v767
      %v769 = vpop.f32.mrb[0].mxu0
      %770 = vmatprep.mubr.bf16.mxu0 0
      %771 = vmatmul.mubr.bf16.gmra.mrb[0].mxu0 %v543
      %v772 = vpop.f32.mrb[0].mxu0
      %v773 = vadd.f32 0.0, %v772
      %v774 = vpop.f32.mrb[0].mxu0
      %v775 = vpop.f32.mrb[0].mxu0
      %v776 = vadd.f32 0.0, %v775
      %v777 = vpop.f32.mrb[0].mxu0
      %778 = vmatprep.mubr.bf16.mxu0 0
      %779 = vmatmul.mubr.bf16.gmra.mrb[0].mxu0 %v544
      %v780 = vpop.f32.mrb[0].mxu0
      %v781 = vadd.f32 0.0, %v780
      %v782 = vpop.f32.mrb[0].mxu0
      %v783 = vpop.f32.mrb[0].mxu0
      %v784 = vadd.f32 0.0, %v783
      %v785 = vpop.f32.mrb[0].mxu0
      %786 = vmatprep.mubr.bf16.mxu0 0
      %787 = vmatmul.mubr.bf16.gmra.mrb[0].mxu0 %v545
      %v788 = vpop.f32.mrb[0].mxu0
      %v789 = vadd.f32 0.0, %v788
      %v790 = vpop.f32.mrb[0].mxu0
      %v791 = vpop.f32.mrb[0].mxu0
      %v792 = vadd.f32 0.0, %v791
      %v793 = vpop.f32.mrb[0].mxu0
      %794 = vmatprep.mubr.bf16.mxu0 0
      %795 = vmatmul.mubr.bf16.gmra.mrb[0].mxu0 %v546
      %v796 = vpop.f32.mrb[0].mxu0
      %v797 = vadd.f32 0.0, %v796
      %v798 = vpop.f32.mrb[0].mxu0
      %v799 = vpop.f32.mrb[0].mxu0
      %v800 = vadd.f32 0.0, %v799
      %v801 = vpop.f32.mrb[0].mxu0
      %802 = vmatprep.mubr.bf16.mxu0 0
      %803 = vmatmul.mubr.bf16.gmra.mrb[0].mxu0 %v547
      %v804 = vpop.f32.mrb[0].mxu0
      %v805 = vadd.f32 0.0, %v804
      %v806 = vpop.f32.mrb[0].mxu0
      %v807 = vpop.f32.mrb[0].mxu0
      %v808 = vadd.f32 0.0, %v807
      %v809 = vpop.f32.mrb[0].mxu0
      %810 = vmatprep.mubr.bf16.mxu0 0
      %811 = vmatmul.mubr.bf16.gmra.mrb[0].mxu0 %v548
      %v812 = vpop.f32.mrb[0].mxu0
      %v813 = vadd.f32 0.0, %v812
      %v814 = vpop.f32.mrb[0].mxu0
      %v815 = vpop.f32.mrb[0].mxu0
      %v816 = vadd.f32 0.0, %v815
      %v817 = vpop.f32.mrb[0].mxu0
      %818 = vmatprep.mubr.bf16.mxu0 0
      %819 = vmatmul.mubr.bf16.gmra.mrb[0].mxu0 %v549
      %v820 = vpop.f32.mrb[0].mxu0
      %v821 = vadd.f32 0.0, %v820
      %v822 = vpop.f32.mrb[0].mxu0
      %v823 = vpop.f32.mrb[0].mxu0
      %v824 = vadd.f32 0.0, %v823
      %v825 = vpop.f32.mrb[0].mxu0
      %826 = vmatprep.mubr.bf16.mxu0 0
      %827 = vmatmul.mubr.bf16.gmra.mrb[0].mxu0 %v550
      %v828 = vpop.f32.mrb[0].mxu0
      %v829 = vadd.f32 0.0, %v828
      %v830 = vpop.f32.mrb[0].mxu0
      %v831 = vpop.f32.mrb[0].mxu0
      %v832 = vadd.f32 0.0, %v831
      %v833 = vpop.f32.mrb[0].mxu0
      %834 = vmatprep.mubr.bf16.mxu0 0
      %835 = vmatmul.mubr.bf16.gmra.mrb[0].mxu0 %v551
      %v836 = vpop.f32.mrb[0].mxu0
      %v837 = vadd.f32 0.0, %v836
      %v838 = vpop.f32.mrb[0].mxu0
      %v839 = vpop.f32.mrb[0].mxu0
      %v840 = vadd.f32 0.0, %v839
      %v841 = vpop.f32.mrb[0].mxu0
      %842 = vmatprep.mubr.bf16.mxu0 0
      %843 = vmatmul.mubr.bf16.gmra.mrb[0].mxu0 %v552
      %v844 = vpop.f32.mrb[0].mxu0
      %v845 = vadd.f32 0.0, %v844
      %v846 = vpop.f32.mrb[0].mxu0
      %v847 = vpop.f32.mrb[0].mxu0
      %v848 = vadd.f32 0.0, %v847
      %v849 = vpop.f32.mrb[0].mxu0
      %850 = vmatprep.mubr.bf16.mxu0 0
      %851 = vmatmul.mubr.bf16.gmra.mrb[0].mxu0 %v553
      %v852 = vpop.f32.mrb[0].mxu0
      %v853 = vadd.f32 0.0, %v852
      %v854 = vpop.f32.mrb[0].mxu0
      %v855 = vpop.f32.mrb[0].mxu0
      %v856 = vadd.f32 0.0, %v855
      %v857 = vpop.f32.mrb[0].mxu0
      %858 = vmatprep.mubr.bf16.mxu0 0
      %859 = vmatmul.mubr.bf16.gmra.mrb[0].mxu0 %v554
      %v860 = vpop.f32.mrb[0].mxu0
      %v861 = vadd.f32 0.0, %v860
      %v862 = vpop.f32.mrb[0].mxu0
      %v863 = vpop.f32.mrb[0].mxu0
      %v864 = vadd.f32 0.0, %v863
      %v865 = vpop.f32.mrb[0].mxu0
      %866 = vmatprep.mubr.bf16.mxu0 0
      %867 = vmatmul.mubr.bf16.gmra.mrb[0].mxu0 %v555
      %v868 = vpop.f32.mrb[0].mxu0
      %v869 = vadd.f32 0.0, %v868
      %v870 = vpop.f32.mrb[0].mxu0
      %v871 = vpop.f32.mrb[0].mxu0
      %v872 = vadd.f32 0.0, %v871
      %v873 = vpop.f32.mrb[0].mxu0
      %874 = vmatprep.mubr.bf16.mxu0 0
      %875 = vmatmul.mubr.bf16.gmra.mrb[0].mxu0 %v556
      %v876 = vpop.f32.mrb[0].mxu0
      %v877 = vadd.f32 0.0, %v876
      %v878 = vpop.f32.mrb[0].mxu0
      %v879 = vpop.f32.mrb[0].mxu0
      %v880 = vadd.f32 0.0, %v879
      %v881 = vpop.f32.mrb[0].mxu0
      %882 = vmatprep.mubr.bf16.mxu0 0
      %883 = vmatmul.mubr.bf16.gmra.mrb[0].mxu0 %v557
      %v884 = vpop.f32.mrb[0].mxu0
      %v885 = vadd.f32 0.0, %v884
      %v886 = vpop.f32.mrb[0].mxu0
      %v887 = vpop.f32.mrb[0].mxu0
      %v888 = vadd.f32 0.0, %v887
      %v889 = vpop.f32.mrb[0].mxu0
      %890 = vmatprep.mubr.bf16.mxu0 0
      %891 = vmatmul.mubr.bf16.gmra.mrb[0].mxu0 %v558
      %v892 = vpop.f32.mrb[0].mxu0
      %v893 = vadd.f32 0.0, %v892
      %v894 = vpop.f32.mrb[0].mxu0
      %v895 = vpop.f32.mrb[0].mxu0
      %v896 = vadd.f32 0.0, %v895
      %v897 = vpop.f32.mrb[0].mxu0
      %898 = vmatprep.mubr.bf16.mxu0 0
      %899 = vmatmul.mubr.bf16.gmra.mrb[0].mxu0 %v559
      %v900 = vpop.f32.mrb[0].mxu0
      %v901 = vadd.f32 0.0, %v900
      %v902 = vpop.f32.mrb[0].mxu0
      %v903 = vpop.f32.mrb[0].mxu0
      %v904 = vadd.f32 0.0, %v903
      %v905 = vpop.f32.mrb[0].mxu0
      %906 = vmatprep.mubr.bf16.mxu0 0
      %907 = vmatmul.mubr.bf16.gmra.mrb[0].mxu0 %v560
      %v908 = vpop.f32.mrb[0].mxu0
      %v909 = vadd.f32 0.0, %v908
      %v910 = vpop.f32.mrb[0].mxu0
      %v911 = vpop.f32.mrb[0].mxu0
      %v912 = vadd.f32 0.0, %v911
      %v913 = vpop.f32.mrb[0].mxu0
      %914 = vmatprep.mubr.bf16.mxu0 0
      %915 = vmatmul.mubr.bf16.gmra.mrb[0].mxu0 %v561
      %v916 = vpop.f32.mrb[0].mxu0
      %v917 = vadd.f32 0.0, %v916
      %v918 = vpop.f32.mrb[0].mxu0
      %v919 = vpop.f32.mrb[0].mxu0
      %v920 = vadd.f32 0.0, %v919
      %v921 = vpop.f32.mrb[0].mxu0
      %922 = vmatprep.mubr.bf16.mxu0 0
      %923 = vmatmul.mubr.bf16.gmra.mrb[0].mxu0 %v562
      %v924 = vpop.f32.mrb[0].mxu0
      %v925 = vadd.f32 0.0, %v924
      %v926 = vpop.f32.mrb[0].mxu0
      %v927 = vpop.f32.mrb[0].mxu0
      %v928 = vadd.f32 0.0, %v927
      %v929 = vpop.f32.mrb[0].mxu0
      %930 = vmatprep.mubr.bf16.mxu0 0
      %931 = vmatmul.mubr.bf16.gmra.mrb[0].mxu0 %v563
      %v932 = vpop.f32.mrb[0].mxu0
      %v933 = vadd.f32 0.0, %v932
      %v934 = vpop.f32.mrb[0].mxu0
      %v935 = vpop.f32.mrb[0].mxu0
      %v936 = vadd.f32 0.0, %v935
      %v937 = vpop.f32.mrb[0].mxu0
      %938 = vmatprep.mubr.bf16.mxu0 0
      %939 = vmatmul.mubr.bf16.gmra.mrb[0].mxu0 %v564
      %v940 = vpop.f32.mrb[0].mxu0
      %v941 = vadd.f32 0.0, %v940
      %v942 = vpop.f32.mrb[0].mxu0
      %v943 = vpop.f32.mrb[0].mxu0
      %v944 = vadd.f32 0.0, %v943
      %v945 = vpop.f32.mrb[0].mxu0
      %946 = vmatprep.mubr.bf16.mxu0 0
      %947 = vmatmul.mubr.bf16.gmra.mrb[0].mxu0 %v565
      %v948 = vpop.f32.mrb[0].mxu0
      %v949 = vadd.f32 0.0, %v948
      %v950 = vpop.f32.mrb[0].mxu0
      %v951 = vpop.f32.mrb[0].mxu0
      %v952 = vadd.f32 0.0, %v951
      %v953 = vpop.f32.mrb[0].mxu0
      %954 = vmatprep.mubr.bf16.mxu0 0
      %955 = vmatmul.mubr.bf16.gmra.mrb[0].mxu0 %v566
      %v956 = vpop.f32.mrb[0].mxu0
      %v957 = vadd.f32 0.0, %v956
      %v958 = vpop.f32.mrb[0].mxu0
      %v959 = vpop.f32.mrb[0].mxu0
      %v960 = vadd.f32 0.0, %v959
      %v961 = vpop.f32.mrb[0].mxu0
      %962 = vmatprep.mubr.bf16.mxu0 0
      %963 = vmatmul.mubr.bf16.gmra.mrb[0].mxu0 %v567
      %v964 = vpop.f32.mrb[0].mxu0
      %v965 = vadd.f32 0.0, %v964
      %v966 = vpop.f32.mrb[0].mxu0
      %v967 = vpop.f32.mrb[0].mxu0
      %v968 = vadd.f32 0.0, %v967
      %v969 = vpop.f32.mrb[0].mxu0
      %970 = vmatprep.mubr.bf16.mxu0 0
      %971 = vmatmul.mubr.bf16.gmra.mrb[0].mxu0 %v568
      %v972 = vpop.f32.mrb[0].mxu0
      %v973 = vadd.f32 0.0, %v972
      %v974 = vpop.f32.mrb[0].mxu0
      %v975 = vpop.f32.mrb[0].mxu0
      %v976 = vadd.f32 0.0, %v975
      %v977 = vpop.f32.mrb[0].mxu0
      %978 = vmatprep.mubr.bf16.mxu0 0
      %979 = vmatmul.mubr.bf16.gmra.mrb[0].mxu0 %v569
      %v980 = vpop.f32.mrb[0].mxu0
      %v981 = vadd.f32 0.0, %v980
      %v982 = vpop.f32.mrb[0].mxu0
      %v983 = vpop.f32.mrb[0].mxu0
      %v984 = vadd.f32 0.0, %v983
      %v985 = vpop.f32.mrb[0].mxu0
      %986 = vmatprep.mubr.bf16.mxu0 0
      %987 = vmatmul.mubr.bf16.gmra.mrb[0].mxu0 %v570
      %v988 = vpop.f32.mrb[0].mxu0
      %v989 = vadd.f32 0.0, %v988
      %v990 = vpop.f32.mrb[0].mxu0
      %v991 = vpop.f32.mrb[0].mxu0
      %v992 = vadd.f32 0.0, %v991
      %v993 = vpop.f32.mrb[0].mxu0
      %994 = vmatprep.mubr.bf16.mxu0 0
      %995 = vmatmul.mubr.bf16.gmra.mrb[0].mxu0 %v571
      %v996 = vpop.f32.mrb[0].mxu0
      %v997 = vadd.f32 0.0, %v996
      %v998 = vpop.f32.mrb[0].mxu0
      %v999 = vpop.f32.mrb[0].mxu0
      %v1000 = vadd.f32 0.0, %v999
      %v1001 = vpop.f32.mrb[0].mxu0
      %1002 = vmatprep.mubr.bf16.mxu0 0
      %1003 = vmatmul.mubr.bf16.gmra.mrb[0].mxu0 %v572
      %v1004 = vpop.f32.mrb[0].mxu0
      %v1005 = vadd.f32 0.0, %v1004
      %v1006 = vpop.f32.mrb[0].mxu0
      %v1007 = vpop.f32.mrb[0].mxu0
      %v1008 = vadd.f32 0.0, %v1007
      %v1009 = vpop.f32.mrb[0].mxu0
      %1010 = vmatprep.mubr.bf16.mxu0 0
      %1011 = vmatmul.mubr.bf16.gmra.mrb[0].mxu0 %v573
      %v1012 = vpop.f32.mrb[0].mxu0
      %v1013 = vadd.f32 0.0, %v1012
      %v1014 = vpop.f32.mrb[0].mxu0
      %v1015 = vpop.f32.mrb[0].mxu0
      %v1016 = vadd.f32 0.0, %v1015
      %v1017 = vpop.f32.mrb[0].mxu0
      %1018 = vmatprep.mubr.bf16.mxu0 0
      %1019 = vmatmul.mubr.bf16.gmra.mrb[0].mxu0 %v574
      %v1020 = vpop.f32.mrb[0].mxu0
      %v1021 = vadd.f32 0.0, %v1020
      %v1022 = vpop.f32.mrb[0].mxu0
      %v1023 = vpop.f32.mrb[0].mxu0
      %v1024 = vadd.f32 0.0, %v1023
      %v1025 = vpop.f32.mrb[0].mxu0
      %1026 = vmatprep.mubr.bf16.mxu0 0
      %1027 = vmatmul.mubr.bf16.gmra.mrb[0].mxu0 %v575
      %v1028 = vpop.f32.mrb[0].mxu0
      %v1029 = vadd.f32 0.0, %v1028
      %v1030 = vpop.f32.mrb[0].mxu0
      %v1031 = vpop.f32.mrb[0].mxu0
      %v1032 = vadd.f32 0.0, %v1031
      %v1033 = vpop.f32.mrb[0].mxu0
      %1034 = vmatprep.mubr.bf16.mxu0 0
      %1035 = vmatmul.mubr.bf16.gmra.mrb[0].mxu0 %v576
      %v1036 = vpop.f32.mrb[0].mxu0
      %v1037 = vadd.f32 0.0, %v1036
      %v1038 = vpop.f32.mrb[0].mxu0
      %v1039 = vpop.f32.mrb[0].mxu0
      %v1040 = vadd.f32 0.0, %v1039
      %v1041 = vpop.f32.mrb[0].mxu0
      %1042 = vmatprep.mubr.bf16.mxu0 0
      %1043 = vmatmul.mubr.bf16.gmra.mrb[0].mxu0 %v577
      %v1044 = vpop.f32.mrb[0].mxu0
      %v1045 = vadd.f32 0.0, %v1044
      %v1046 = vpop.f32.mrb[0].mxu0
      %v1047 = vpop.f32.mrb[0].mxu0
      %v1048 = vadd.f32 0.0, %v1047
      %v1049 = vpop.f32.mrb[0].mxu0
      %1050 = vmatprep.mubr.bf16.mxu0 0
      %1051 = vmatmul.mubr.bf16.gmra.mrb[0].mxu0 %v578
      %v1052 = vpop.f32.mrb[0].mxu0
      %v1053 = vadd.f32 0.0, %v1052
      %v1054 = vpop.f32.mrb[0].mxu0
      %v1055 = vpop.f32.mrb[0].mxu0
      %v1056 = vadd.f32 0.0, %v1055
      %v1057 = vpop.f32.mrb[0].mxu0
      %1058 = vmatprep.mubr.bf16.mxu0 0
      %1059 = vmatmul.mubr.bf16.gmra.mrb[0].mxu0 %v579
      %v1060 = vpop.f32.mrb[0].mxu0
      %v1061 = vadd.f32 0.0, %v1060
      %v1062 = vpop.f32.mrb[0].mxu0
      %v1063 = vpop.f32.mrb[0].mxu0
      %v1064 = vadd.f32 0.0, %v1063
      %v1065 = vpop.f32.mrb[0].mxu0
      %1066 = vmatprep.mubr.bf16.mxu0 0
      %1067 = vmatmul.mubr.bf16.gmra.mrb[0].mxu0 %v580
      %v1068 = vpop.f32.mrb[0].mxu0
      %v1069 = vadd.f32 0.0, %v1068
      %v1070 = vpop.f32.mrb[0].mxu0
      %v1071 = vpop.f32.mrb[0].mxu0
      %v1072 = vadd.f32 0.0, %v1071
      %v1073 = vpop.f32.mrb[0].mxu0
      %1074 = vmatprep.mubr.bf16.mxu0 0
      %1075 = vmatmul.mubr.bf16.gmra.mrb[0].mxu0 %v581
      %v1076 = vpop.f32.mrb[0].mxu0
      %v1077 = vadd.f32 0.0, %v1076
      %v1078 = vpop.f32.mrb[0].mxu0
      %v1079 = vpop.f32.mrb[0].mxu0
      %v1080 = vadd.f32 0.0, %v1079
      %v1081 = vpop.f32.mrb[0].mxu0
      %1082 = vmatprep.mubr.bf16.mxu0 0
      %1083 = vmatmul.mubr.bf16.gmra.mrb[0].mxu0 %v582
      %v1084 = vpop.f32.mrb[0].mxu0
      %v1085 = vadd.f32 0.0, %v1084
      %v1086 = vpop.f32.mrb[0].mxu0
      %v1087 = vpop.f32.mrb[0].mxu0
      %v1088 = vadd.f32 0.0, %v1087
      %v1089 = vpop.f32.mrb[0].mxu0
      %1090 = vmatprep.mubr.bf16.mxu0 0
      %1091 = vmatmul.mubr.bf16.gmra.mrb[0].mxu0 %v583
      %v1092 = vpop.f32.mrb[0].mxu0
      %v1093 = vadd.f32 0.0, %v1092
      %v1094 = vpop.f32.mrb[0].mxu0
      %v1095 = vpop.f32.mrb[0].mxu0
      %v1096 = vadd.f32 0.0, %v1095
      %v1097 = vpop.f32.mrb[0].mxu0
      %1098 = vmatprep.mubr.bf16.mxu0 0
      %1099 = vmatmul.mubr.bf16.gmra.mrb[0].mxu0 %v584
      %v1100 = vpop.f32.mrb[0].mxu0
      %v1101 = vadd.f32 0.0, %v1100
      %v1102 = vpop.f32.mrb[0].mxu0
      %v1103 = vpop.f32.mrb[0].mxu0
      %v1104 = vadd.f32 0.0, %v1103
      %v1105 = vpop.f32.mrb[0].mxu0
      %1106 = vdwg.mxu0
      %vm1107 = vcmask 64512
      %1108 = vst.msk [vmem:[#allocation2] sm:$0xff] %vm1107, %v717
      %1109 = vst.msk [vmem:[#allocation2 + $0x8] sm:$0xff] %vm1107, %v720
      %1110 = vst.msk [vmem:[#allocation2 + $0x10] sm:$0xff] %vm1107, %v725
      %1111 = vst.msk [vmem:[#allocation2 + $0x18] sm:$0xff] %vm1107, %v728
      %1112 = vst.msk [vmem:[#allocation2 + $0x20] sm:$0xff] %vm1107, %v733
      %1113 = vst.msk [vmem:[#allocation2 + $0x28] sm:$0xff] %vm1107, %v736
      %1114 = vst.msk [vmem:[#allocation2 + $0x30] sm:$0xff] %vm1107, %v741
      %1115 = vst.msk [vmem:[#allocation2 + $0x38] sm:$0xff] %vm1107, %v744
      %1116 = vst.msk [vmem:[#allocation2 + $0x40] sm:$0xff] %vm1107, %v749
      %1117 = vst.msk [vmem:[#allocation2 + $0x48] sm:$0xff] %vm1107, %v752
      %1118 = vst.msk [vmem:[#allocation2 + $0x50] sm:$0xff] %vm1107, %v757
      %1119 = vst.msk [vmem:[#allocation2 + $0x58] sm:$0xff] %vm1107, %v760
      %1120 = vst.msk [vmem:[#allocation2 + $0x60] sm:$0xff] %vm1107, %v765
      %1121 = vst.msk [vmem:[#allocation2 + $0x68] sm:$0xff] %vm1107, %v768
      %1122 = vst.msk [vmem:[#allocation2 + $0x70] sm:$0xff] %vm1107, %v773
      %1123 = vst.msk [vmem:[#allocation2 + $0x78] sm:$0xff] %vm1107, %v776
      %1124 = vst.msk [vmem:[#allocation2 + $0x80] sm:$0xff] %vm1107, %v781
      %1125 = vst.msk [vmem:[#allocation2 + $0x88] sm:$0xff] %vm1107, %v784
      %1126 = vst.msk [vmem:[#allocation2 + $0x90] sm:$0xff] %vm1107, %v789
      %1127 = vst.msk [vmem:[#allocation2 + $0x98] sm:$0xff] %vm1107, %v792
      %1128 = vst.msk [vmem:[#allocation2 + $0xa0] sm:$0xff] %vm1107, %v797
      %1129 = vst.msk [vmem:[#allocation2 + $0xa8] sm:$0xff] %vm1107, %v800
      %1130 = vst.msk [vmem:[#allocation2 + $0xb0] sm:$0xff] %vm1107, %v805
      %1131 = vst.msk [vmem:[#allocation2 + $0xb8] sm:$0xff] %vm1107, %v808
      %1132 = vst.msk [vmem:[#allocation2 + $0xc0] sm:$0xff] %vm1107, %v813
      %1133 = vst.msk [vmem:[#allocation2 + $0xc8] sm:$0xff] %vm1107, %v816
      %1134 = vst.msk [vmem:[#allocation2 + $0xd0] sm:$0xff] %vm1107, %v821
      %1135 = vst.msk [vmem:[#allocation2 + $0xd8] sm:$0xff] %vm1107, %v824
      %1136 = vst.msk [vmem:[#allocation2 + $0xe0] sm:$0xff] %vm1107, %v829
      %1137 = vst.msk [vmem:[#allocation2 + $0xe8] sm:$0xff] %vm1107, %v832
      %1138 = vst.msk [vmem:[#allocation2 + $0xf0] sm:$0xff] %vm1107, %v837
      %1139 = vst.msk [vmem:[#allocation2 + $0xf8] sm:$0xff] %vm1107, %v840
      %1140 = vst.msk [vmem:[#allocation2 + $0x100] sm:$0xff] %vm1107, %v845
      %1141 = vst.msk [vmem:[#allocation2 + $0x108] sm:$0xff] %vm1107, %v848
      %1142 = vst.msk [vmem:[#allocation2 + $0x110] sm:$0xff] %vm1107, %v853
      %1143 = vst.msk [vmem:[#allocation2 + $0x118] sm:$0xff] %vm1107, %v856
      %1144 = vst.msk [vmem:[#allocation2 + $0x120] sm:$0xff] %vm1107, %v861
      %1145 = vst.msk [vmem:[#allocation2 + $0x128] sm:$0xff] %vm1107, %v864
      %1146 = vst.msk [vmem:[#allocation2 + $0x130] sm:$0xff] %vm1107, %v869
      %1147 = vst.msk [vmem:[#allocation2 + $0x138] sm:$0xff] %vm1107, %v872
      %1148 = vst.msk [vmem:[#allocation2 + $0x140] sm:$0xff] %vm1107, %v877
      %1149 = vst.msk [vmem:[#allocation2 + $0x148] sm:$0xff] %vm1107, %v880
      %1150 = vst.msk [vmem:[#allocation2 + $0x150] sm:$0xff] %vm1107, %v885
      %1151 = vst.msk [vmem:[#allocation2 + $0x158] sm:$0xff] %vm1107, %v888
      %1152 = vst.msk [vmem:[#allocation2 + $0x160] sm:$0xff] %vm1107, %v893
      %1153 = vst.msk [vmem:[#allocation2 + $0x168] sm:$0xff] %vm1107, %v896
      %1154 = vst.msk [vmem:[#allocation2 + $0x170] sm:$0xff] %vm1107, %v901
      %1155 = vst.msk [vmem:[#allocation2 + $0x178] sm:$0xff] %vm1107, %v904
      %1156 = vst.msk [vmem:[#allocation2 + $0x180] sm:$0xff] %vm1107, %v909
      %1157 = vst.msk [vmem:[#allocation2 + $0x188] sm:$0xff] %vm1107, %v912
      %1158 = vst.msk [vmem:[#allocation2 + $0x190] sm:$0xff] %vm1107, %v917
      %1159 = vst.msk [vmem:[#allocation2 + $0x198] sm:$0xff] %vm1107, %v920
      %1160 = vst.msk [vmem:[#allocation2 + $0x1a0] sm:$0xff] %vm1107, %v925
      %1161 = vst.msk [vmem:[#allocation2 + $0x1a8] sm:$0xff] %vm1107, %v928
      %1162 = vst.msk [vmem:[#allocation2 + $0x1b0] sm:$0xff] %vm1107, %v933
      %1163 = vst.msk [vmem:[#allocation2 + $0x1b8] sm:$0xff] %vm1107, %v936
      %1164 = vst.msk [vmem:[#allocation2 + $0x1c0] sm:$0xff] %vm1107, %v941
      %1165 = vst.msk [vmem:[#allocation2 + $0x1c8] sm:$0xff] %vm1107, %v944
      %1166 = vst.msk [vmem:[#allocation2 + $0x1d0] sm:$0xff] %vm1107, %v949
      %1167 = vst.msk [vmem:[#allocation2 + $0x1d8] sm:$0xff] %vm1107, %v952
      %1168 = vst.msk [vmem:[#allocation2 + $0x1e0] sm:$0xff] %vm1107, %v957
      %1169 = vst.msk [vmem:[#allocation2 + $0x1e8] sm:$0xff] %vm1107, %v960
      %1170 = vst.msk [vmem:[#allocation2 + $0x1f0] sm:$0xff] %vm1107, %v965
      %1171 = vst.msk [vmem:[#allocation2 + $0x1f8] sm:$0xff] %vm1107, %v968
      %1172 = vst.msk [vmem:[#allocation2 + $0x200] sm:$0xff] %vm1107, %v973
      %1173 = vst.msk [vmem:[#allocation2 + $0x208] sm:$0xff] %vm1107, %v976
      %1174 = vst.msk [vmem:[#allocation2 + $0x210] sm:$0xff] %vm1107, %v981
      %1175 = vst.msk [vmem:[#allocation2 + $0x218] sm:$0xff] %vm1107, %v984
      %1176 = vst.msk [vmem:[#allocation2 + $0x220] sm:$0xff] %vm1107, %v989
      %1177 = vst.msk [vmem:[#allocation2 + $0x228] sm:$0xff] %vm1107, %v992
      %1178 = vst.msk [vmem:[#allocation2 + $0x230] sm:$0xff] %vm1107, %v997
      %1179 = vst.msk [vmem:[#allocation2 + $0x238] sm:$0xff] %vm1107, %v1000
      %1180 = vst.msk [vmem:[#allocation2 + $0x240] sm:$0xff] %vm1107, %v1005
      %1181 = vst.msk [vmem:[#allocation2 + $0x248] sm:$0xff] %vm1107, %v1008
      %1182 = vst.msk [vmem:[#allocation2 + $0x250] sm:$0xff] %vm1107, %v1013
      %1183 = vst.msk [vmem:[#allocation2 + $0x258] sm:$0xff] %vm1107, %v1016
      %1184 = vst.msk [vmem:[#allocation2 + $0x260] sm:$0xff] %vm1107, %v1021
      %1185 = vst.msk [vmem:[#allocation2 + $0x268] sm:$0xff] %vm1107, %v1024
      %1186 = vst.msk [vmem:[#allocation2 + $0x270] sm:$0xff] %vm1107, %v1029
      %1187 = vst.msk [vmem:[#allocation2 + $0x278] sm:$0xff] %vm1107, %v1032
      %1188 = vst.msk [vmem:[#allocation2 + $0x280] sm:$0xff] %vm1107, %v1037
      %1189 = vst.msk [vmem:[#allocation2 + $0x288] sm:$0xff] %vm1107, %v1040
      %1190 = vst.msk [vmem:[#allocation2 + $0x290] sm:$0xff] %vm1107, %v1045
      %1191 = vst.msk [vmem:[#allocation2 + $0x298] sm:$0xff] %vm1107, %v1048
      %1192 = vst.msk [vmem:[#allocation2 + $0x2a0] sm:$0xff] %vm1107, %v1053
      %1193 = vst.msk [vmem:[#allocation2 + $0x2a8] sm:$0xff] %vm1107, %v1056
      %1194 = vst.msk [vmem:[#allocation2 + $0x2b0] sm:$0xff] %vm1107, %v1061
      %1195 = vst.msk [vmem:[#allocation2 + $0x2b8] sm:$0xff] %vm1107, %v1064
      %1196 = vst.msk [vmem:[#allocation2 + $0x2c0] sm:$0xff] %vm1107, %v1069
      %1197 = vst.msk [vmem:[#allocation2 + $0x2c8] sm:$0xff] %vm1107, %v1072
      %1198 = vst.msk [vmem:[#allocation2 + $0x2d0] sm:$0xff] %vm1107, %v1077
      %1199 = vst.msk [vmem:[#allocation2 + $0x2d8] sm:$0xff] %vm1107, %v1080
      %1200 = vst.msk [vmem:[#allocation2 + $0x2e0] sm:$0xff] %vm1107, %v1085
      %1201 = vst.msk [vmem:[#allocation2 + $0x2e8] sm:$0xff] %vm1107, %v1088
      %1202 = vst.msk [vmem:[#allocation2 + $0x2f0] sm:$0xff] %vm1107, %v1093
      %1203 = vst.msk [vmem:[#allocation2 + $0x2f8] sm:$0xff] %vm1107, %v1096
      %1204 = vst.msk [vmem:[#allocation2 + $0x300] sm:$0xff] %vm1107, %v1101
      %1205 = vst.msk [vmem:[#allocation2 + $0x308] sm:$0xff] %vm1107, %v1104
      %v1206 = vld [vmem:[#allocation2] ss:$2 sm:$0xff]
      %s1207 = scalar_lea.vmem [#allocation2], 16
      %v1208 = vld [vmem:[%s1207] ss:$2 sm:$0xff]
      %s1209 = scalar_lea.vmem [#allocation2], 32
      %v1210 = vld [vmem:[%s1209] ss:$2 sm:$0xff]
      %s1211 = scalar_lea.vmem [#allocation2], 48
      %v1212 = vld [vmem:[%s1211] ss:$2 sm:$0xff]
      %s1213 = scalar_lea.vmem [#allocation2], 64
      %v1214 = vld [vmem:[%s1213] ss:$2 sm:$0xff]
      %s1215 = scalar_lea.vmem [#allocation2], 80
      %v1216 = vld [vmem:[%s1215] ss:$2 sm:$0xff]
      %s1217 = scalar_lea.vmem [#allocation2], 96
      %v1218 = vld [vmem:[%s1217] ss:$2 sm:$0xff]
      %s1219 = scalar_lea.vmem [#allocation2], 112
      %v1220 = vld [vmem:[%s1219] ss:$2 sm:$0xff]
      %s1221 = scalar_lea.vmem [#allocation2], 128
      %v1222 = vld [vmem:[%s1221] ss:$2 sm:$0xff]
      %s1223 = scalar_lea.vmem [#allocation2], 144
      %v1224 = vld [vmem:[%s1223] ss:$2 sm:$0xff]
      %s1225 = scalar_lea.vmem [#allocation2], 160
      %v1226 = vld [vmem:[%s1225] ss:$2 sm:$0xff]
      %s1227 = scalar_lea.vmem [#allocation2], 176
      %v1228 = vld [vmem:[%s1227] ss:$2 sm:$0xff]
      %s1229 = scalar_lea.vmem [#allocation2], 192
      %v1230 = vld [vmem:[%s1229] ss:$2 sm:$0xff]
      %s1231 = scalar_lea.vmem [#allocation2], 208
      %v1232 = vld [vmem:[%s1231] ss:$2 sm:$0xff]
      %s1233 = scalar_lea.vmem [#allocation2], 224
      %v1234 = vld [vmem:[%s1233] ss:$2 sm:$0xff]
      %s1235 = scalar_lea.vmem [#allocation2], 240
      %v1236 = vld [vmem:[%s1235] ss:$2 sm:$0xff]
      %s1237 = scalar_lea.vmem [#allocation2], 256
      %v1238 = vld [vmem:[%s1237] ss:$2 sm:$0xff]
      %s1239 = scalar_lea.vmem [#allocation2], 272
      %v1240 = vld [vmem:[%s1239] ss:$2 sm:$0xff]
      %s1241 = scalar_lea.vmem [#allocation2], 288
      %v1242 = vld [vmem:[%s1241] ss:$2 sm:$0xff]
      %s1243 = scalar_lea.vmem [#allocation2], 304
      %v1244 = vld [vmem:[%s1243] ss:$2 sm:$0xff]
      %s1245 = scalar_lea.vmem [#allocation2], 320
      %v1246 = vld [vmem:[%s1245] ss:$2 sm:$0xff]
      %s1247 = scalar_lea.vmem [#allocation2], 336
      %v1248 = vld [vmem:[%s1247] ss:$2 sm:$0xff]
      %s1249 = scalar_lea.vmem [#allocation2], 352
      %v1250 = vld [vmem:[%s1249] ss:$2 sm:$0xff]
      %s1251 = scalar_lea.vmem [#allocation2], 368
      %v1252 = vld [vmem:[%s1251] ss:$2 sm:$0xff]
      %s1253 = scalar_lea.vmem [#allocation2], 384
      %v1254 = vld [vmem:[%s1253] ss:$2 sm:$0xff]
      %s1255 = scalar_lea.vmem [#allocation2], 400
      %v1256 = vld [vmem:[%s1255] ss:$2 sm:$0xff]
      %s1257 = scalar_lea.vmem [#allocation2], 416
      %v1258 = vld [vmem:[%s1257] ss:$2 sm:$0xff]
      %s1259 = scalar_lea.vmem [#allocation2], 432
      %v1260 = vld [vmem:[%s1259] ss:$2 sm:$0xff]
      %s1261 = scalar_lea.vmem [#allocation2], 448
      %v1262 = vld [vmem:[%s1261] ss:$2 sm:$0xff]
      %s1263 = scalar_lea.vmem [#allocation2], 464
      %v1264 = vld [vmem:[%s1263] ss:$2 sm:$0xff]
      %s1265 = scalar_lea.vmem [#allocation2], 480
      %v1266 = vld [vmem:[%s1265] ss:$2 sm:$0xff]
      %s1267 = scalar_lea.vmem [#allocation2], 496
      %v1268 = vld [vmem:[%s1267] ss:$2 sm:$0xff]
      %s1269 = scalar_lea.vmem [#allocation2], 512
      %v1270 = vld [vmem:[%s1269] ss:$2 sm:$0xff]
      %s1271 = scalar_lea.vmem [#allocation2], 528
      %v1272 = vld [vmem:[%s1271] ss:$2 sm:$0xff]
      %s1273 = scalar_lea.vmem [#allocation2], 544
      %v1274 = vld [vmem:[%s1273] ss:$2 sm:$0xff]
      %s1275 = scalar_lea.vmem [#allocation2], 560
      %v1276 = vld [vmem:[%s1275] ss:$2 sm:$0xff]
      %s1277 = scalar_lea.vmem [#allocation2], 576
      %v1278 = vld [vmem:[%s1277] ss:$2 sm:$0xff]
      %s1279 = scalar_lea.vmem [#allocation2], 592
      %v1280 = vld [vmem:[%s1279] ss:$2 sm:$0xff]
      %s1281 = scalar_lea.vmem [#allocation2], 608
      %v1282 = vld [vmem:[%s1281] ss:$2 sm:$0xff]
      %s1283 = scalar_lea.vmem [#allocation2], 624
      %v1284 = vld [vmem:[%s1283] ss:$2 sm:$0xff]
      %s1285 = scalar_lea.vmem [#allocation2], 640
      %v1286 = vld [vmem:[%s1285] ss:$2 sm:$0xff]
      %s1287 = scalar_lea.vmem [#allocation2], 656
      %v1288 = vld [vmem:[%s1287] ss:$2 sm:$0xff]
      %s1289 = scalar_lea.vmem [#allocation2], 672
      %v1290 = vld [vmem:[%s1289] ss:$2 sm:$0xff]
      %s1291 = scalar_lea.vmem [#allocation2], 688
      %v1292 = vld [vmem:[%s1291] ss:$2 sm:$0xff]
      %s1293 = scalar_lea.vmem [#allocation2], 704
      %v1294 = vld [vmem:[%s1293] ss:$2 sm:$0xff]
      %s1295 = scalar_lea.vmem [#allocation2], 720
      %v1296 = vld [vmem:[%s1295] ss:$2 sm:$0xff]
      %s1297 = scalar_lea.vmem [#allocation2], 736
      %v1298 = vld [vmem:[%s1297] ss:$2 sm:$0xff]
      %s1299 = scalar_lea.vmem [#allocation2], 752
      %v1300 = vld [vmem:[%s1299] ss:$2 sm:$0xff]
      %s1301 = scalar_lea.vmem [#allocation2], 768
      %v1302 = vld [vmem:[%s1301] ss:$2 sm:$0xff]
      %s1303 = scalar_lea.vmem [#allocation2], 1
      %v1304 = vld [vmem:[%s1303] ss:$2 sm:$0xff]
      %s1305 = scalar_lea.vmem [#allocation2], 17
      %v1306 = vld [vmem:[%s1305] ss:$2 sm:$0xff]
      %s1307 = scalar_lea.vmem [#allocation2], 33
      %v1308 = vld [vmem:[%s1307] ss:$2 sm:$0xff]
      %s1309 = scalar_lea.vmem [#allocation2], 49
      %v1310 = vld [vmem:[%s1309] ss:$2 sm:$0xff]
      %s1311 = scalar_lea.vmem [#allocation2], 65
      %v1312 = vld [vmem:[%s1311] ss:$2 sm:$0xff]
      %s1313 = scalar_lea.vmem [#allocation2], 81
      %v1314 = vld [vmem:[%s1313] ss:$2 sm:$0xff]
      %s1315 = scalar_lea.vmem [#allocation2], 97
      %v1316 = vld [vmem:[%s1315] ss:$2 sm:$0xff]
      %s1317 = scalar_lea.vmem [#allocation2], 113
      %v1318 = vld [vmem:[%s1317] ss:$2 sm:$0xff]
      %s1319 = scalar_lea.vmem [#allocation2], 129
      %v1320 = vld [vmem:[%s1319] ss:$2 sm:$0xff]
      %s1321 = scalar_lea.vmem [#allocation2], 145
      %v1322 = vld [vmem:[%s1321] ss:$2 sm:$0xff]
      %s1323 = scalar_lea.vmem [#allocation2], 161
      %v1324 = vld [vmem:[%s1323] ss:$2 sm:$0xff]
      %s1325 = scalar_lea.vmem [#allocation2], 177
      %v1326 = vld [vmem:[%s1325] ss:$2 sm:$0xff]
      %s1327 = scalar_lea.vmem [#allocation2], 193
      %v1328 = vld [vmem:[%s1327] ss:$2 sm:$0xff]
      %s1329 = scalar_lea.vmem [#allocation2], 209
      %v1330 = vld [vmem:[%s1329] ss:$2 sm:$0xff]
      %s1331 = scalar_lea.vmem [#allocation2], 225
      %v1332 = vld [vmem:[%s1331] ss:$2 sm:$0xff]
      %s1333 = scalar_lea.vmem [#allocation2], 241
      %v1334 = vld [vmem:[%s1333] ss:$2 sm:$0xff]
      %s1335 = scalar_lea.vmem [#allocation2], 257
      %v1336 = vld [vmem:[%s1335] ss:$2 sm:$0xff]
      %s1337 = scalar_lea.vmem [#allocation2], 273
      %v1338 = vld [vmem:[%s1337] ss:$2 sm:$0xff]
      %s1339 = scalar_lea.vmem [#allocation2], 289
      %v1340 = vld [vmem:[%s1339] ss:$2 sm:$0xff]
      %s1341 = scalar_lea.vmem [#allocation2], 305
      %v1342 = vld [vmem:[%s1341] ss:$2 sm:$0xff]
      %s1343 = scalar_lea.vmem [#allocation2], 321
      %v1344 = vld [vmem:[%s1343] ss:$2 sm:$0xff]
      %s1345 = scalar_lea.vmem [#allocation2], 337
      %v1346 = vld [vmem:[%s1345] ss:$2 sm:$0xff]
      %s1347 = scalar_lea.vmem [#allocation2], 353
      %v1348 = vld [vmem:[%s1347] ss:$2 sm:$0xff]
      %s1349 = scalar_lea.vmem [#allocation2], 369
      %v1350 = vld [vmem:[%s1349] ss:$2 sm:$0xff]
      %s1351 = scalar_lea.vmem [#allocation2], 385
      %v1352 = vld [vmem:[%s1351] ss:$2 sm:$0xff]
      %s1353 = scalar_lea.vmem [#allocation2], 401
      %v1354 = vld [vmem:[%s1353] ss:$2 sm:$0xff]
      %s1355 = scalar_lea.vmem [#allocation2], 417
      %v1356 = vld [vmem:[%s1355] ss:$2 sm:$0xff]
      %s1357 = scalar_lea.vmem [#allocation2], 433
      %v1358 = vld [vmem:[%s1357] ss:$2 sm:$0xff]
      %s1359 = scalar_lea.vmem [#allocation2], 449
      %v1360 = vld [vmem:[%s1359] ss:$2 sm:$0xff]
      %s1361 = scalar_lea.vmem [#allocation2], 465
      %v1362 = vld [vmem:[%s1361] ss:$2 sm:$0xff]
      %s1363 = scalar_lea.vmem [#allocation2], 481
      %v1364 = vld [vmem:[%s1363] ss:$2 sm:$0xff]
      %s1365 = scalar_lea.vmem [#allocation2], 497
      %v1366 = vld [vmem:[%s1365] ss:$2 sm:$0xff]
      %s1367 = scalar_lea.vmem [#allocation2], 513
      %v1368 = vld [vmem:[%s1367] ss:$2 sm:$0xff]
      %s1369 = scalar_lea.vmem [#allocation2], 529
      %v1370 = vld [vmem:[%s1369] ss:$2 sm:$0xff]
      %s1371 = scalar_lea.vmem [#allocation2], 545
      %v1372 = vld [vmem:[%s1371] ss:$2 sm:$0xff]
      %s1373 = scalar_lea.vmem [#allocation2], 561
      %v1374 = vld [vmem:[%s1373] ss:$2 sm:$0xff]
      %s1375 = scalar_lea.vmem [#allocation2], 577
      %v1376 = vld [vmem:[%s1375] ss:$2 sm:$0xff]
      %s1377 = scalar_lea.vmem [#allocation2], 593
      %v1378 = vld [vmem:[%s1377] ss:$2 sm:$0xff]
      %s1379 = scalar_lea.vmem [#allocation2], 609
      %v1380 = vld [vmem:[%s1379] ss:$2 sm:$0xff]
      %s1381 = scalar_lea.vmem [#allocation2], 625
      %v1382 = vld [vmem:[%s1381] ss:$2 sm:$0xff]
      %s1383 = scalar_lea.vmem [#allocation2], 641
      %v1384 = vld [vmem:[%s1383] ss:$2 sm:$0xff]
      %s1385 = scalar_lea.vmem [#allocation2], 657
      %v1386 = vld [vmem:[%s1385] ss:$2 sm:$0xff]
      %s1387 = scalar_lea.vmem [#allocation2], 673
      %v1388 = vld [vmem:[%s1387] ss:$2 sm:$0xff]
      %s1389 = scalar_lea.vmem [#allocation2], 689
      %v1390 = vld [vmem:[%s1389] ss:$2 sm:$0xff]
      %s1391 = scalar_lea.vmem [#allocation2], 705
      %v1392 = vld [vmem:[%s1391] ss:$2 sm:$0xff]
      %s1393 = scalar_lea.vmem [#allocation2], 721
      %v1394 = vld [vmem:[%s1393] ss:$2 sm:$0xff]
      %s1395 = scalar_lea.vmem [#allocation2], 737
      %v1396 = vld [vmem:[%s1395] ss:$2 sm:$0xff]
      %s1397 = scalar_lea.vmem [#allocation2], 753
      %v1398 = vld [vmem:[%s1397] ss:$2 sm:$0xff]
      %s1399 = scalar_lea.vmem [#allocation2], 769
      %v1400 = vld [vmem:[%s1399] ss:$2 sm:$0xff]
      %v1401 = vmax.f32 %v1206, %v1304
      %v1402 = vmax.f32 %v1208, %v1306
      %v1403 = vmax.f32 %v1210, %v1308
      %v1404 = vmax.f32 %v1212, %v1310
      %v1405 = vmax.f32 %v1214, %v1312
      %v1406 = vmax.f32 %v1216, %v1314
      %v1407 = vmax.f32 %v1218, %v1316
      %v1408 = vmax.f32 %v1220, %v1318
      %v1409 = vmax.f32 %v1222, %v1320
      %v1410 = vmax.f32 %v1224, %v1322
      %v1411 = vmax.f32 %v1226, %v1324
      %v1412 = vmax.f32 %v1228, %v1326
      %v1413 = vmax.f32 %v1230, %v1328
      %v1414 = vmax.f32 %v1232, %v1330
      %v1415 = vmax.f32 %v1234, %v1332
      %v1416 = vmax.f32 %v1236, %v1334
      %v1417 = vmax.f32 %v1238, %v1336
      %v1418 = vmax.f32 %v1240, %v1338
      %v1419 = vmax.f32 %v1242, %v1340
      %v1420 = vmax.f32 %v1244, %v1342
      %v1421 = vmax.f32 %v1246, %v1344
      %v1422 = vmax.f32 %v1248, %v1346
      %v1423 = vmax.f32 %v1250, %v1348
      %v1424 = vmax.f32 %v1252, %v1350
      %v1425 = vmax.f32 %v1254, %v1352
      %v1426 = vmax.f32 %v1256, %v1354
      %v1427 = vmax.f32 %v1258, %v1356
      %v1428 = vmax.f32 %v1260, %v1358
      %v1429 = vmax.f32 %v1262, %v1360
      %v1430 = vmax.f32 %v1264, %v1362
      %v1431 = vmax.f32 %v1266, %v1364
      %v1432 = vmax.f32 %v1268, %v1366
      %v1433 = vmax.f32 %v1270, %v1368
      %v1434 = vmax.f32 %v1272, %v1370
      %v1435 = vmax.f32 %v1274, %v1372
      %v1436 = vmax.f32 %v1276, %v1374
      %v1437 = vmax.f32 %v1278, %v1376
      %v1438 = vmax.f32 %v1280, %v1378
      %v1439 = vmax.f32 %v1282, %v1380
      %v1440 = vmax.f32 %v1284, %v1382
      %v1441 = vmax.f32 %v1286, %v1384
      %v1442 = vmax.f32 %v1288, %v1386
      %v1443 = vmax.f32 %v1290, %v1388
      %v1444 = vmax.f32 %v1292, %v1390
      %v1445 = vmax.f32 %v1294, %v1392
      %v1446 = vmax.f32 %v1296, %v1394
      %v1447 = vmax.f32 %v1298, %v1396
      %v1448 = vmax.f32 %v1300, %v1398
      %v1449 = vmax.f32 %v1302, %v1400
      %1450 = vst.msk [vmem:[#allocation3] sm:$0xff] %vm1107, %v1401
      %1451 = vst.msk [vmem:[#allocation3 + $0x8] sm:$0xff] %vm1107, %v1402
      %1452 = vst.msk [vmem:[#allocation3 + $0x10] sm:$0xff] %vm1107, %v1403
      %1453 = vst.msk [vmem:[#allocation3 + $0x18] sm:$0xff] %vm1107, %v1404
      %1454 = vst.msk [vmem:[#allocation3 + $0x20] sm:$0xff] %vm1107, %v1405
      %1455 = vst.msk [vmem:[#allocation3 + $0x28] sm:$0xff] %vm1107, %v1406
      %1456 = vst.msk [vmem:[#allocation3 + $0x30] sm:$0xff] %vm1107, %v1407
      %1457 = vst.msk [vmem:[#allocation3 + $0x38] sm:$0xff] %vm1107, %v1408
      %1458 = vst.msk [vmem:[#allocation3 + $0x40] sm:$0xff] %vm1107, %v1409
      %1459 = vst.msk [vmem:[#allocation3 + $0x48] sm:$0xff] %vm1107, %v1410
      %1460 = vst.msk [vmem:[#allocation3 + $0x50] sm:$0xff] %vm1107, %v1411
      %1461 = vst.msk [vmem:[#allocation3 + $0x58] sm:$0xff] %vm1107, %v1412
      %1462 = vst.msk [vmem:[#allocation3 + $0x60] sm:$0xff] %vm1107, %v1413
      %1463 = vst.msk [vmem:[#allocation3 + $0x68] sm:$0xff] %vm1107, %v1414
      %1464 = vst.msk [vmem:[#allocation3 + $0x70] sm:$0xff] %vm1107, %v1415
      %1465 = vst.msk [vmem:[#allocation3 + $0x78] sm:$0xff] %vm1107, %v1416
      %1466 = vst.msk [vmem:[#allocation3 + $0x80] sm:$0xff] %vm1107, %v1417
      %1467 = vst.msk [vmem:[#allocation3 + $0x88] sm:$0xff] %vm1107, %v1418
      %1468 = vst.msk [vmem:[#allocation3 + $0x90] sm:$0xff] %vm1107, %v1419
      %1469 = vst.msk [vmem:[#allocation3 + $0x98] sm:$0xff] %vm1107, %v1420
      %1470 = vst.msk [vmem:[#allocation3 + $0xa0] sm:$0xff] %vm1107, %v1421
      %1471 = vst.msk [vmem:[#allocation3 + $0xa8] sm:$0xff] %vm1107, %v1422
      %1472 = vst.msk [vmem:[#allocation3 + $0xb0] sm:$0xff] %vm1107, %v1423
      %1473 = vst.msk [vmem:[#allocation3 + $0xb8] sm:$0xff] %vm1107, %v1424
      %1474 = vst.msk [vmem:[#allocation3 + $0xc0] sm:$0xff] %vm1107, %v1425
      %1475 = vst.msk [vmem:[#allocation3 + $0xc8] sm:$0xff] %vm1107, %v1426
      %1476 = vst.msk [vmem:[#allocation3 + $0xd0] sm:$0xff] %vm1107, %v1427
      %1477 = vst.msk [vmem:[#allocation3 + $0xd8] sm:$0xff] %vm1107, %v1428
      %1478 = vst.msk [vmem:[#allocation3 + $0xe0] sm:$0xff] %vm1107, %v1429
      %1479 = vst.msk [vmem:[#allocation3 + $0xe8] sm:$0xff] %vm1107, %v1430
      %1480 = vst.msk [vmem:[#allocation3 + $0xf0] sm:$0xff] %vm1107, %v1431
      %1481 = vst.msk [vmem:[#allocation3 + $0xf8] sm:$0xff] %vm1107, %v1432
      %1482 = vst.msk [vmem:[#allocation3 + $0x100] sm:$0xff] %vm1107, %v1433
      %1483 = vst.msk [vmem:[#allocation3 + $0x108] sm:$0xff] %vm1107, %v1434
      %1484 = vst.msk [vmem:[#allocation3 + $0x110] sm:$0xff] %vm1107, %v1435
      %1485 = vst.msk [vmem:[#allocation3 + $0x118] sm:$0xff] %vm1107, %v1436
      %1486 = vst.msk [vmem:[#allocation3 + $0x120] sm:$0xff] %vm1107, %v1437
      %1487 = vst.msk [vmem:[#allocation3 + $0x128] sm:$0xff] %vm1107, %v1438
      %1488 = vst.msk [vmem:[#allocation3 + $0x130] sm:$0xff] %vm1107, %v1439
      %1489 = vst.msk [vmem:[#allocation3 + $0x138] sm:$0xff] %vm1107, %v1440
      %1490 = vst.msk [vmem:[#allocation3 + $0x140] sm:$0xff] %vm1107, %v1441
      %1491 = vst.msk [vmem:[#allocation3 + $0x148] sm:$0xff] %vm1107, %v1442
      %1492 = vst.msk [vmem:[#allocation3 + $0x150] sm:$0xff] %vm1107, %v1443
      %1493 = vst.msk [vmem:[#allocation3 + $0x158] sm:$0xff] %vm1107, %v1444
      %1494 = vst.msk [vmem:[#allocation3 + $0x160] sm:$0xff] %vm1107, %v1445
      %1495 = vst.msk [vmem:[#allocation3 + $0x168] sm:$0xff] %vm1107, %v1446
      %1496 = vst.msk [vmem:[#allocation3 + $0x170] sm:$0xff] %vm1107, %v1447
      %1497 = vst.msk [vmem:[#allocation3 + $0x178] sm:$0xff] %vm1107, %v1448
      %1498 = vst.msk [vmem:[#allocation3 + $0x180] sm:$0xff] %vm1107, %v1449
      %v1499 = vld [vmem:[%s2] sm:$0x1]
      %v1500 = vld [vmem:[#allocation3] sm:$0xff]
      %v1501 = vld [vmem:[#allocation3 + $0x8] sm:$0x3f]
      %v1502 = vld [vmem:[#allocation3 + $0xe] sm:$0xff]
      %v1503 = vld [vmem:[#allocation3 + $0x16] sm:$0x3f]
      %v1504 = vmax.f32 %v1500, %v1502
      %v1505 = vmax.f32 %v1501, %v1503
      %v1507 = vlaneseq
      %v1508 = vshrl.u32 %v1507, 7
      %v1509 = vsub.s32 0, %v1508
      %v1510 = vrot.slane %v1499, %v1509
      %v1512 = vadd.f32 %v1504, %v1510
      %v1513 = vadd.f32 %v1505, %v1510
      %v1514 = vmax.f32 %v1512, 0.0
      %v1515 = vmax.f32 %v1513, 0.0
      %1516 = vst.msk [vmem:[#allocation4] sm:$0xff] %vm1107, %v1514
      %vm1517 = vcmask 62464
      %1518 = vst.msk [vmem:[#allocation4 + $0x8] sm:$0x3f] %vm1517, %v1515
      %v1519 = vld [vmem:[#allocation3 + $0x1c] sm:$0xff]
      %v1520 = vld [vmem:[#allocation3 + $0x24] sm:$0x3f]
      %v1521 = vld [vmem:[#allocation3 + $0x2a] sm:$0xff]
      %v1522 = vld [vmem:[#allocation3 + $0x32] sm:$0x3f]
      %v1523 = vmax.f32 %v1519, %v1521
      %v1524 = vmax.f32 %v1520, %v1522
      %v1525 = vadd.f32 %v1523, %v1510
      %v1526 = vadd.f32 %v1524, %v1510
      %v1527 = vmax.f32 %v1525, 0.0
      %v1528 = vmax.f32 %v1526, 0.0
      %1529 = vst.msk [vmem:[#allocation4 + $0xe] sm:$0xff] %vm1107, %v1527
      %1530 = vst.msk [vmem:[#allocation4 + $0x16] sm:$0x3f] %vm1517, %v1528
      %v1531 = vld [vmem:[#allocation3 + $0x38] sm:$0xff]
      %v1532 = vld [vmem:[#allocation3 + $0x40] sm:$0x3f]
      %v1533 = vld [vmem:[#allocation3 + $0x46] sm:$0xff]
      %v1534 = vld [vmem:[#allocation3 + $0x4e] sm:$0x3f]
      %v1535 = vmax.f32 %v1531, %v1533
      %v1536 = vmax.f32 %v1532, %v1534
      %v1537 = vadd.f32 %v1535, %v1510
      %v1538 = vadd.f32 %v1536, %v1510
      %v1539 = vmax.f32 %v1537, 0.0
      %v1540 = vmax.f32 %v1538, 0.0
      %1541 = vst.msk [vmem:[#allocation4 + $0x1c] sm:$0xff] %vm1107, %v1539
      %1542 = vst.msk [vmem:[#allocation4 + $0x24] sm:$0x3f] %vm1517, %v1540
      %v1543 = vld [vmem:[#allocation3 + $0x54] sm:$0xff]
      %v1544 = vld [vmem:[#allocation3 + $0x5c] sm:$0x3f]
      %v1545 = vld [vmem:[#allocation3 + $0x62] sm:$0xff]
      %v1546 = vld [vmem:[#allocation3 + $0x6a] sm:$0x3f]
      %v1547 = vmax.f32 %v1543, %v1545
      %v1548 = vmax.f32 %v1544, %v1546
      %v1549 = vadd.f32 %v1547, %v1510
      %v1550 = vadd.f32 %v1548, %v1510
      %v1551 = vmax.f32 %v1549, 0.0
      %v1552 = vmax.f32 %v1550, 0.0
      %1553 = vst.msk [vmem:[#allocation4 + $0x2a] sm:$0xff] %vm1107, %v1551
      %1554 = vst.msk [vmem:[#allocation4 + $0x32] sm:$0x3f] %vm1517, %v1552
      %v1555 = vld [vmem:[#allocation3 + $0x70] sm:$0xff]
      %v1556 = vld [vmem:[#allocation3 + $0x78] sm:$0x3f]
      %v1557 = vld [vmem:[#allocation3 + $0x7e] sm:$0xff]
      %v1558 = vld [vmem:[#allocation3 + $0x86] sm:$0x3f]
      %v1559 = vmax.f32 %v1555, %v1557
      %v1560 = vmax.f32 %v1556, %v1558
      %v1561 = vadd.f32 %v1559, %v1510
      %v1562 = vadd.f32 %v1560, %v1510
      %v1563 = vmax.f32 %v1561, 0.0
      %v1564 = vmax.f32 %v1562, 0.0
      %1565 = vst.msk [vmem:[#allocation4 + $0x38] sm:$0xff] %vm1107, %v1563
      %1566 = vst.msk [vmem:[#allocation4 + $0x40] sm:$0x3f] %vm1517, %v1564
      %v1567 = vld [vmem:[#allocation3 + $0x8c] sm:$0xff]
      %v1568 = vld [vmem:[#allocation3 + $0x94] sm:$0x3f]
      %v1569 = vld [vmem:[#allocation3 + $0x9a] sm:$0xff]
      %v1570 = vld [vmem:[#allocation3 + $0xa2] sm:$0x3f]
      %v1571 = vmax.f32 %v1567, %v1569
      %v1572 = vmax.f32 %v1568, %v1570
      %v1573 = vadd.f32 %v1571, %v1510
      %v1574 = vadd.f32 %v1572, %v1510
      %v1575 = vmax.f32 %v1573, 0.0
      %v1576 = vmax.f32 %v1574, 0.0
      %1577 = vst.msk [vmem:[#allocation4 + $0x46] sm:$0xff] %vm1107, %v1575
      %1578 = vst.msk [vmem:[#allocation4 + $0x4e] sm:$0x3f] %vm1517, %v1576
      %v1579 = vld [vmem:[#allocation3 + $0xa8] sm:$0xff]
      %v1580 = vld [vmem:[#allocation3 + $0xb0] sm:$0x3f]
      %v1581 = vld [vmem:[#allocation3 + $0xb6] sm:$0xff]
      %v1582 = vld [vmem:[#allocation3 + $0xbe] sm:$0x3f]
      %v1583 = vmax.f32 %v1579, %v1581
      %v1584 = vmax.f32 %v1580, %v1582
      %v1585 = vadd.f32 %v1583, %v1510
      %v1586 = vadd.f32 %v1584, %v1510
      %v1587 = vmax.f32 %v1585, 0.0
      %v1588 = vmax.f32 %v1586, 0.0
      %1589 = vst.msk [vmem:[#allocation4 + $0x54] sm:$0xff] %vm1107, %v1587
      %1590 = vst.msk [vmem:[#allocation4 + $0x5c] sm:$0x3f] %vm1517, %v1588
      %v1591 = vld [vmem:[#allocation3 + $0xc4] sm:$0xff]
      %v1592 = vld [vmem:[#allocation3 + $0xcc] sm:$0x3f]
      %v1593 = vld [vmem:[#allocation3 + $0xd2] sm:$0xff]
      %v1594 = vld [vmem:[#allocation3 + $0xda] sm:$0x3f]
      %v1595 = vmax.f32 %v1591, %v1593
      %v1596 = vmax.f32 %v1592, %v1594
      %v1597 = vadd.f32 %v1595, %v1510
      %v1598 = vadd.f32 %v1596, %v1510
      %v1599 = vmax.f32 %v1597, 0.0
      %v1600 = vmax.f32 %v1598, 0.0
      %1601 = vst.msk [vmem:[#allocation4 + $0x62] sm:$0xff] %vm1107, %v1599
      %1602 = vst.msk [vmem:[#allocation4 + $0x6a] sm:$0x3f] %vm1517, %v1600
      %v1603 = vld [vmem:[#allocation3 + $0xe0] sm:$0xff]
      %v1604 = vld [vmem:[#allocation3 + $0xe8] sm:$0x3f]
      %v1605 = vld [vmem:[#allocation3 + $0xee] sm:$0xff]
      %v1606 = vld [vmem:[#allocation3 + $0xf6] sm:$0x3f]
      %v1607 = vmax.f32 %v1603, %v1605
      %v1608 = vmax.f32 %v1604, %v1606
      %v1609 = vadd.f32 %v1607, %v1510
      %v1610 = vadd.f32 %v1608, %v1510
      %v1611 = vmax.f32 %v1609, 0.0
      %v1612 = vmax.f32 %v1610, 0.0
      %1613 = vst.msk [vmem:[#allocation4 + $0x70] sm:$0xff] %vm1107, %v1611
      %1614 = vst.msk [vmem:[#allocation4 + $0x78] sm:$0x3f] %vm1517, %v1612
      %v1615 = vld [vmem:[#allocation3 + $0xfc] sm:$0xff]
      %v1616 = vld [vmem:[#allocation3 + $0x104] sm:$0x3f]
      %v1617 = vld [vmem:[#allocation3 + $0x10a] sm:$0xff]
      %v1618 = vld [vmem:[#allocation3 + $0x112] sm:$0x3f]
      %v1619 = vmax.f32 %v1615, %v1617
      %v1620 = vmax.f32 %v1616, %v1618
      %v1621 = vadd.f32 %v1619, %v1510
      %v1622 = vadd.f32 %v1620, %v1510
      %v1623 = vmax.f32 %v1621, 0.0
      %v1624 = vmax.f32 %v1622, 0.0
      %1625 = vst.msk [vmem:[#allocation4 + $0x7e] sm:$0xff] %vm1107, %v1623
      %1626 = vst.msk [vmem:[#allocation4 + $0x86] sm:$0x3f] %vm1517, %v1624
      %v1627 = vld [vmem:[#allocation3 + $0x118] sm:$0xff]
      %v1628 = vld [vmem:[#allocation3 + $0x120] sm:$0x3f]
      %v1629 = vld [vmem:[#allocation3 + $0x126] sm:$0xff]
      %v1630 = vld [vmem:[#allocation3 + $0x12e] sm:$0x3f]
      %v1631 = vmax.f32 %v1627, %v1629
      %v1632 = vmax.f32 %v1628, %v1630
      %v1633 = vadd.f32 %v1631, %v1510
      %v1634 = vadd.f32 %v1632, %v1510
      %v1635 = vmax.f32 %v1633, 0.0
      %v1636 = vmax.f32 %v1634, 0.0
      %1637 = vst.msk [vmem:[#allocation4 + $0x8c] sm:$0xff] %vm1107, %v1635
      %1638 = vst.msk [vmem:[#allocation4 + $0x94] sm:$0x3f] %vm1517, %v1636
      %v1639 = vld [vmem:[#allocation3 + $0x134] sm:$0xff]
      %v1640 = vld [vmem:[#allocation3 + $0x13c] sm:$0x3f]
      %v1641 = vld [vmem:[#allocation3 + $0x142] sm:$0xff]
      %v1642 = vld [vmem:[#allocation3 + $0x14a] sm:$0x3f]
      %v1643 = vmax.f32 %v1639, %v1641
      %v1644 = vmax.f32 %v1640, %v1642
      %v1645 = vadd.f32 %v1643, %v1510
      %v1646 = vadd.f32 %v1644, %v1510
      %v1647 = vmax.f32 %v1645, 0.0
      %v1648 = vmax.f32 %v1646, 0.0
      %1649 = vst.msk [vmem:[#allocation4 + $0x9a] sm:$0xff] %vm1107, %v1647
      %1650 = vst.msk [vmem:[#allocation4 + $0xa2] sm:$0x3f] %vm1517, %v1648
      %v1651 = vld [vmem:[#allocation3 + $0x150] sm:$0xff]
      %v1652 = vld [vmem:[#allocation3 + $0x158] sm:$0x3f]
      %v1653 = vld [vmem:[#allocation3 + $0x15e] sm:$0xff]
      %v1654 = vld [vmem:[#allocation3 + $0x166] sm:$0x3f]
      %v1655 = vmax.f32 %v1651, %v1653
      %v1656 = vmax.f32 %v1652, %v1654
      %v1657 = vadd.f32 %v1655, %v1510
      %v1658 = vadd.f32 %v1656, %v1510
      %v1659 = vmax.f32 %v1657, 0.0
      %v1660 = vmax.f32 %v1658, 0.0
      %1661 = vst.msk [vmem:[#allocation4 + $0xa8] sm:$0xff] %vm1107, %v1659
      %1662 = vst.msk [vmem:[#allocation4 + $0xb0] sm:$0x3f] %vm1517, %v1660
      %v1663 = vld [vmem:[#allocation3 + $0x16c] sm:$0xff]
      %v1664 = vld [vmem:[#allocation3 + $0x174] sm:$0x3f]
      %v1665 = vld [vmem:[#allocation3 + $0x17a] sm:$0xff]
      %v1666 = vld [vmem:[#allocation3 + $0x182] sm:$0x3f]
      %v1667 = vmax.f32 %v1663, %v1665
      %v1668 = vmax.f32 %v1664, %v1666
      %v1669 = vadd.f32 %v1667, %v1510
      %v1670 = vadd.f32 %v1668, %v1510
      %v1671 = vmax.f32 %v1669, 0.0
      %v1672 = vmax.f32 %v1670, 0.0
      %1673 = vst.msk [vmem:[#allocation4 + $0xb6] sm:$0xff] %vm1107, %v1671
      %1674 = vst.msk [vmem:[#allocation4 + $0xbe] sm:$0x3f] %vm1517, %v1672
      %vm1675 = vcmask 1044032
      %1676 = vst.msk [vmem:[#allocation5 + $0x4] sm:$0xf] %vm1675, 0
      %1677 = vst.msk [vmem:[#allocation5 + $0xc] sm:$0xf] %vm1675, 0
      %1678 = vst.msk [vmem:[#allocation5 + $0x14] sm:$0xf] %vm1675, 0
      %1679 = vst.msk [vmem:[#allocation5 + $0x1c] sm:$0xf] %vm1675, 0
      %1680 = vst.msk [vmem:[#allocation5 + $0x24] sm:$0xf] %vm1675, 0
      %1681 = vst.msk [vmem:[#allocation5 + $0x2c] sm:$0xf] %vm1675, 0
      %1682 = vst.msk [vmem:[#allocation5 + $0x34] sm:$0xf] %vm1675, 0
      %1683 = vst.msk [vmem:[#allocation5 + $0x3c] sm:$0xf] %vm1675, 0
      %1684 = vst.msk [vmem:[#allocation5 + $0x44] sm:$0xf] %vm1675, 0
      %1685 = vst.msk [vmem:[#allocation5 + $0x4c] sm:$0xf] %vm1675, 0
      %1686 = vst.msk [vmem:[#allocation5 + $0x54] sm:$0xf] %vm1675, 0
      %1687 = vst.msk [vmem:[#allocation5 + $0x5c] sm:$0xf] %vm1675, 0
      %1688 = vst.msk [vmem:[#allocation5 + $0x64] sm:$0xf] %vm1675, 0
      %1689 = vst.msk [vmem:[#allocation5 + $0x6c] sm:$0xf] %vm1675, 0
      %1690 = vst.msk [vmem:[#allocation5 + $0x74] sm:$0xf] %vm1675, 0
      %1691 = vst.msk [vmem:[#allocation5 + $0x7c] sm:$0xf] %vm1675, 0
      %1692 = vst.msk [vmem:[#allocation5 + $0x84] sm:$0xf] %vm1675, 0
      %v1693 = vld [vmem:[#allocation4] sm:$0xff]
      %v1694 = vld [vmem:[#allocation4 + $0x8] sm:$0xff]
      %v1695 = vld [vmem:[#allocation4 + $0x10] sm:$0xff]
      %v1696 = vld [vmem:[#allocation4 + $0x18] sm:$0xff]
      %v1697 = vld [vmem:[#allocation4 + $0x20] sm:$0xff]
      %v1698 = vld [vmem:[#allocation4 + $0x28] sm:$0xff]
      %v1699 = vld [vmem:[#allocation4 + $0x30] sm:$0xff]
      %v1700 = vld [vmem:[#allocation4 + $0x38] sm:$0xff]
      %v1701 = vld [vmem:[#allocation4 + $0x40] sm:$0xff]
      %v1702 = vld [vmem:[#allocation4 + $0x48] sm:$0xff]
      %v1703 = vld [vmem:[#allocation4 + $0x50] sm:$0xff]
      %v1704 = vld [vmem:[#allocation4 + $0x58] sm:$0xff]
      %v1705 = vld [vmem:[#allocation4 + $0x60] sm:$0xff]
      %v1706 = vld [vmem:[#allocation4 + $0x68] sm:$0xff]
      %v1707 = vld [vmem:[#allocation4 + $0x70] sm:$0xff]
      %v1708 = vld [vmem:[#allocation4 + $0x78] sm:$0xff]
      %v1709 = vld [vmem:[#allocation4 + $0x80] sm:$0xff]
      %v1710 = vpack.c.bf16 %v1694, %v1693
      %v1711 = vpack.c.bf16 %v1696, %v1695
      %v1712 = vpack.c.bf16 %v1698, %v1697
      %v1713 = vpack.c.bf16 %v1700, %v1699
      %v1714 = vpack.c.bf16 %v1702, %v1701
      %v1715 = vpack.c.bf16 %v1704, %v1703
      %v1716 = vpack.c.bf16 %v1706, %v1705
      %v1717 = vpack.c.bf16 %v1708, %v1707
      %v1718 = vpack.c.bf16 %v1709, %v1709
      %v1728 = vunpack.c.l.b16 %v1710
      %v1729 = vunpack.c.h.b16 %v1710
      %v1730 = vunpack.c.l.b16 %v1711
      %v1731 = vunpack.c.h.b16 %v1711
      %v1732 = vunpack.c.l.b16 %v1712
      %v1733 = vunpack.c.h.b16 %v1712
      %v1734 = vunpack.c.l.b16 %v1713
      %v1735 = vunpack.c.h.b16 %v1713
      %v1736 = vunpack.c.l.b16 %v1714
      %v1737 = vunpack.c.h.b16 %v1714
      %v1738 = vunpack.c.l.b16 %v1715
      %v1739 = vunpack.c.h.b16 %v1715
      %v1740 = vunpack.c.l.b16 %v1716
      %v1741 = vunpack.c.h.b16 %v1716
      %v1742 = vunpack.c.l.b16 %v1717
      %v1743 = vunpack.c.h.b16 %v1717
      %v1744 = vunpack.c.l.b16 %v1718
      %v1745 = vpack.c.b16 %v1728, %v1728
      %v1746 = vpack.c.b16 %v1729, %v1729
      %v1747 = vpack.c.b16 %v1730, %v1730
      %v1748 = vpack.c.b16 %v1731, %v1731
      %v1749 = vpack.c.b16 %v1732, %v1732
      %v1750 = vpack.c.b16 %v1733, %v1733
      %v1751 = vpack.c.b16 %v1734, %v1734
      %v1752 = vpack.c.b16 %v1735, %v1735
      %v1753 = vpack.c.b16 %v1736, %v1736
      %v1754 = vpack.c.b16 %v1737, %v1737
      %v1755 = vpack.c.b16 %v1738, %v1738
      %v1756 = vpack.c.b16 %v1739, %v1739
      %v1757 = vpack.c.b16 %v1740, %v1740
      %v1758 = vpack.c.b16 %v1741, %v1741
      %v1759 = vpack.c.b16 %v1742, %v1742
      %v1760 = vpack.c.b16 %v1743, %v1743
      %v1761 = vpack.c.b16 %v1744, %v1744
      %vm1779 = vcmask 60416
      %1780 = vst.msk [vmem:[#allocation5] sm:$0xf] %vm1779, %v1745
      %1781 = vst.msk [vmem:[#allocation5 + $0x8] sm:$0xf] %vm1779, %v1746
      %1782 = vst.msk [vmem:[#allocation5 + $0x10] sm:$0xf] %vm1779, %v1747
      %1783 = vst.msk [vmem:[#allocation5 + $0x18] sm:$0xf] %vm1779, %v1748
      %1784 = vst.msk [vmem:[#allocation5 + $0x20] sm:$0xf] %vm1779, %v1749
      %1785 = vst.msk [vmem:[#allocation5 + $0x28] sm:$0xf] %vm1779, %v1750
      %1786 = vst.msk [vmem:[#allocation5 + $0x30] sm:$0xf] %vm1779, %v1751
      %1787 = vst.msk [vmem:[#allocation5 + $0x38] sm:$0xf] %vm1779, %v1752
      %1788 = vst.msk [vmem:[#allocation5 + $0x40] sm:$0xf] %vm1779, %v1753
      %1789 = vst.msk [vmem:[#allocation5 + $0x48] sm:$0xf] %vm1779, %v1754
      %1790 = vst.msk [vmem:[#allocation5 + $0x50] sm:$0xf] %vm1779, %v1755
      %1791 = vst.msk [vmem:[#allocation5 + $0x58] sm:$0xf] %vm1779, %v1756
      %1792 = vst.msk [vmem:[#allocation5 + $0x60] sm:$0xf] %vm1779, %v1757
      %1793 = vst.msk [vmem:[#allocation5 + $0x68] sm:$0xf] %vm1779, %v1758
      %1794 = vst.msk [vmem:[#allocation5 + $0x70] sm:$0xf] %vm1779, %v1759
      %1795 = vst.msk [vmem:[#allocation5 + $0x78] sm:$0xf] %vm1779, %v1760
      %1796 = vst.msk [vmem:[#allocation5 + $0x80] sm:$0xf] %vm1779, %v1761
      %v1797 = vld [vmem:[#allocation4 + $0x1] sm:$0xff]
      %v1798 = vld [vmem:[#allocation4 + $0x9] sm:$0xff]
      %v1799 = vld [vmem:[#allocation4 + $0x11] sm:$0xff]
      %v1800 = vld [vmem:[#allocation4 + $0x19] sm:$0xff]
      %v1801 = vld [vmem:[#allocation4 + $0x21] sm:$0xff]
      %v1802 = vld [vmem:[#allocation4 + $0x29] sm:$0xff]
      %v1803 = vld [vmem:[#allocation4 + $0x31] sm:$0xff]
      %v1804 = vld [vmem:[#allocation4 + $0x39] sm:$0xff]
      %v1805 = vld [vmem:[#allocation4 + $0x41] sm:$0xff]
      %v1806 = vld [vmem:[#allocation4 + $0x49] sm:$0xff]
      %v1807 = vld [vmem:[#allocation4 + $0x51] sm:$0xff]
      %v1808 = vld [vmem:[#allocation4 + $0x59] sm:$0xff]
      %v1809 = vld [vmem:[#allocation4 + $0x61] sm:$0xff]
      %v1810 = vld [vmem:[#allocation4 + $0x69] sm:$0xff]
      %v1811 = vld [vmem:[#allocation4 + $0x71] sm:$0xff]
      %v1812 = vld [vmem:[#allocation4 + $0x79] sm:$0xff]
      %v1813 = vld [vmem:[#allocation4 + $0x81] sm:$0xff]
      %v1814 = vpack.c.bf16 %v1798, %v1797
      %v1815 = vpack.c.bf16 %v1800, %v1799
      %v1816 = vpack.c.bf16 %v1802, %v1801
      %v1817 = vpack.c.bf16 %v1804, %v1803
      %v1818 = vpack.c.bf16 %v1806, %v1805
      %v1819 = vpack.c.bf16 %v1808, %v1807
      %v1820 = vpack.c.bf16 %v1810, %v1809
      %v1821 = vpack.c.bf16 %v1812, %v1811
      %v1822 = vpack.c.bf16 %v1813, %v1813
      %v1832 = vunpack.c.l.b16 %v1814
      %v1833 = vunpack.c.h.b16 %v1814
      %v1834 = vunpack.c.l.b16 %v1815
      %v1835 = vunpack.c.h.b16 %v1815
      %v1836 = vunpack.c.l.b16 %v1816
      %v1837 = vunpack.c.h.b16 %v1816
      %v1838 = vunpack.c.l.b16 %v1817
      %v1839 = vunpack.c.h.b16 %v1817
      %v1840 = vunpack.c.l.b16 %v1818
      %v1841 = vunpack.c.h.b16 %v1818
      %v1842 = vunpack.c.l.b16 %v1819
      %v1843 = vunpack.c.h.b16 %v1819
      %v1844 = vunpack.c.l.b16 %v1820
      %v1845 = vunpack.c.h.b16 %v1820
      %v1846 = vunpack.c.l.b16 %v1821
      %v1847 = vunpack.c.h.b16 %v1821
      %v1848 = vunpack.c.l.b16 %v1822
      %v1849 = vpack.c.b16 %v1832, %v1832
      %v1850 = vpack.c.b16 %v1833, %v1833
      %v1851 = vpack.c.b16 %v1834, %v1834
      %v1852 = vpack.c.b16 %v1835, %v1835
      %v1853 = vpack.c.b16 %v1836, %v1836
      %v1854 = vpack.c.b16 %v1837, %v1837
      %v1855 = vpack.c.b16 %v1838, %v1838
      %v1856 = vpack.c.b16 %v1839, %v1839
      %v1857 = vpack.c.b16 %v1840, %v1840
      %v1858 = vpack.c.b16 %v1841, %v1841
      %v1859 = vpack.c.b16 %v1842, %v1842
      %v1860 = vpack.c.b16 %v1843, %v1843
      %v1861 = vpack.c.b16 %v1844, %v1844
      %v1862 = vpack.c.b16 %v1845, %v1845
      %v1863 = vpack.c.b16 %v1846, %v1846
      %v1864 = vpack.c.b16 %v1847, %v1847
      %v1865 = vpack.c.b16 %v1848, %v1848
      %1866 = vrot.lane.b32.xlu0 %v1849, 8
      %v1867 = vpop.permute.xlu0 %1866
      %1868 = vrot.lane.b32.xlu0 %v1850, 8
      %v1869 = vpop.permute.xlu0 %1868
      %1870 = vrot.lane.b32.xlu0 %v1851, 8
      %v1871 = vpop.permute.xlu0 %1870
      %1872 = vrot.lane.b32.xlu0 %v1852, 8
      %v1873 = vpop.permute.xlu0 %1872
      %1874 = vrot.lane.b32.xlu0 %v1853, 8
      %v1875 = vpop.permute.xlu0 %1874
      %1876 = vrot.lane.b32.xlu0 %v1854, 8
      %v1877 = vpop.permute.xlu0 %1876
      %1878 = vrot.lane.b32.xlu0 %v1855, 8
      %v1879 = vpop.permute.xlu0 %1878
      %1880 = vrot.lane.b32.xlu0 %v1856, 8
      %v1881 = vpop.permute.xlu0 %1880
      %1882 = vrot.lane.b32.xlu0 %v1857, 8
      %v1883 = vpop.permute.xlu0 %1882
      %1884 = vrot.lane.b32.xlu0 %v1858, 8
      %v1885 = vpop.permute.xlu0 %1884
      %1886 = vrot.lane.b32.xlu0 %v1859, 8
      %v1887 = vpop.permute.xlu0 %1886
      %1888 = vrot.lane.b32.xlu0 %v1860, 8
      %v1889 = vpop.permute.xlu0 %1888
      %1890 = vrot.lane.b32.xlu0 %v1861, 8
      %v1891 = vpop.permute.xlu0 %1890
      %1892 = vrot.lane.b32.xlu0 %v1862, 8
      %v1893 = vpop.permute.xlu0 %1892
      %1894 = vrot.lane.b32.xlu0 %v1863, 8
      %v1895 = vpop.permute.xlu0 %1894
      %1896 = vrot.lane.b32.xlu0 %v1864, 8
      %v1897 = vpop.permute.xlu0 %1896
      %1898 = vrot.lane.b32.xlu0 %v1865, 8
      %v1899 = vpop.permute.xlu0 %1898
      %vm1917 = vcmask 126016
      %1918 = vst.msk [vmem:[#allocation5] sm:$0xf] %vm1917, %v1867
      %1919 = vst.msk [vmem:[#allocation5 + $0x8] sm:$0xf] %vm1917, %v1869
      %1920 = vst.msk [vmem:[#allocation5 + $0x10] sm:$0xf] %vm1917, %v1871
      %1921 = vst.msk [vmem:[#allocation5 + $0x18] sm:$0xf] %vm1917, %v1873
      %1922 = vst.msk [vmem:[#allocation5 + $0x20] sm:$0xf] %vm1917, %v1875
      %1923 = vst.msk [vmem:[#allocation5 + $0x28] sm:$0xf] %vm1917, %v1877
      %1924 = vst.msk [vmem:[#allocation5 + $0x30] sm:$0xf] %vm1917, %v1879
      %1925 = vst.msk [vmem:[#allocation5 + $0x38] sm:$0xf] %vm1917, %v1881
      %1926 = vst.msk [vmem:[#allocation5 + $0x40] sm:$0xf] %vm1917, %v1883
      %1927 = vst.msk [vmem:[#allocation5 + $0x48] sm:$0xf] %vm1917, %v1885
      %1928 = vst.msk [vmem:[#allocation5 + $0x50] sm:$0xf] %vm1917, %v1887
      %1929 = vst.msk [vmem:[#allocation5 + $0x58] sm:$0xf] %vm1917, %v1889
      %1930 = vst.msk [vmem:[#allocation5 + $0x60] sm:$0xf] %vm1917, %v1891
      %1931 = vst.msk [vmem:[#allocation5 + $0x68] sm:$0xf] %vm1917, %v1893
      %1932 = vst.msk [vmem:[#allocation5 + $0x70] sm:$0xf] %vm1917, %v1895
      %1933 = vst.msk [vmem:[#allocation5 + $0x78] sm:$0xf] %vm1917, %v1897
      %1934 = vst.msk [vmem:[#allocation5 + $0x80] sm:$0xf] %vm1917, %v1899
      %v1935 = vld [vmem:[#allocation4 + $0x2] sm:$0xff]
      %v1936 = vld [vmem:[#allocation4 + $0xa] sm:$0xff]
      %v1937 = vld [vmem:[#allocation4 + $0x12] sm:$0xff]
      %v1938 = vld [vmem:[#allocation4 + $0x1a] sm:$0xff]
      %v1939 = vld [vmem:[#allocation4 + $0x22] sm:$0xff]
      %v1940 = vld [vmem:[#allocation4 + $0x2a] sm:$0xff]
      %v1941 = vld [vmem:[#allocation4 + $0x32] sm:$0xff]
      %v1942 = vld [vmem:[#allocation4 + $0x3a] sm:$0xff]
      %v1943 = vld [vmem:[#allocation4 + $0x42] sm:$0xff]
      %v1944 = vld [vmem:[#allocation4 + $0x4a] sm:$0xff]
      %v1945 = vld [vmem:[#allocation4 + $0x52] sm:$0xff]
      %v1946 = vld [vmem:[#allocation4 + $0x5a] sm:$0xff]
      %v1947 = vld [vmem:[#allocation4 + $0x62] sm:$0xff]
      %v1948 = vld [vmem:[#allocation4 + $0x6a] sm:$0xff]
      %v1949 = vld [vmem:[#allocation4 + $0x72] sm:$0xff]
      %v1950 = vld [vmem:[#allocation4 + $0x7a] sm:$0xff]
      %v1951 = vld [vmem:[#allocation4 + $0x82] sm:$0xff]
      %v1952 = vpack.c.bf16 %v1936, %v1935
      %v1953 = vpack.c.bf16 %v1938, %v1937
      %v1954 = vpack.c.bf16 %v1940, %v1939
      %v1955 = vpack.c.bf16 %v1942, %v1941
      %v1956 = vpack.c.bf16 %v1944, %v1943
      %v1957 = vpack.c.bf16 %v1946, %v1945
      %v1958 = vpack.c.bf16 %v1948, %v1947
      %v1959 = vpack.c.bf16 %v1950, %v1949
      %v1960 = vpack.c.bf16 %v1951, %v1951
      %v1970 = vunpack.c.l.b16 %v1952
      %v1971 = vunpack.c.h.b16 %v1952
      %v1972 = vunpack.c.l.b16 %v1953
      %v1973 = vunpack.c.h.b16 %v1953
      %v1974 = vunpack.c.l.b16 %v1954
      %v1975 = vunpack.c.h.b16 %v1954
      %v1976 = vunpack.c.l.b16 %v1955
      %v1977 = vunpack.c.h.b16 %v1955
      %v1978 = vunpack.c.l.b16 %v1956
      %v1979 = vunpack.c.h.b16 %v1956
      %v1980 = vunpack.c.l.b16 %v1957
      %v1981 = vunpack.c.h.b16 %v1957
      %v1982 = vunpack.c.l.b16 %v1958
      %v1983 = vunpack.c.h.b16 %v1958
      %v1984 = vunpack.c.l.b16 %v1959
      %v1985 = vunpack.c.h.b16 %v1959
      %v1986 = vunpack.c.l.b16 %v1960
      %v1987 = vpack.c.b16 %v1970, %v1970
      %v1988 = vpack.c.b16 %v1971, %v1971
      %v1989 = vpack.c.b16 %v1972, %v1972
      %v1990 = vpack.c.b16 %v1973, %v1973
      %v1991 = vpack.c.b16 %v1974, %v1974
      %v1992 = vpack.c.b16 %v1975, %v1975
      %v1993 = vpack.c.b16 %v1976, %v1976
      %v1994 = vpack.c.b16 %v1977, %v1977
      %v1995 = vpack.c.b16 %v1978, %v1978
      %v1996 = vpack.c.b16 %v1979, %v1979
      %v1997 = vpack.c.b16 %v1980, %v1980
      %v1998 = vpack.c.b16 %v1981, %v1981
      %v1999 = vpack.c.b16 %v1982, %v1982
      %v2000 = vpack.c.b16 %v1983, %v1983
      %v2001 = vpack.c.b16 %v1984, %v1984
      %v2002 = vpack.c.b16 %v1985, %v1985
      %v2003 = vpack.c.b16 %v1986, %v1986
      %2004 = vrot.lane.b32.xlu0 %v1987, 16
      %v2005 = vpop.permute.xlu0 %2004
      %2006 = vrot.lane.b32.xlu0 %v1988, 16
      %v2007 = vpop.permute.xlu0 %2006
      %2008 = vrot.lane.b32.xlu0 %v1989, 16
      %v2009 = vpop.permute.xlu0 %2008
      %2010 = vrot.lane.b32.xlu0 %v1990, 16
      %v2011 = vpop.permute.xlu0 %2010
      %2012 = vrot.lane.b32.xlu0 %v1991, 16
      %v2013 = vpop.permute.xlu0 %2012
      %2014 = vrot.lane.b32.xlu0 %v1992, 16
      %v2015 = vpop.permute.xlu0 %2014
      %2016 = vrot.lane.b32.xlu0 %v1993, 16
      %v2017 = vpop.permute.xlu0 %2016
      %2018 = vrot.lane.b32.xlu0 %v1994, 16
      %v2019 = vpop.permute.xlu0 %2018
      %2020 = vrot.lane.b32.xlu0 %v1995, 16
      %v2021 = vpop.permute.xlu0 %2020
      %2022 = vrot.lane.b32.xlu0 %v1996, 16
      %v2023 = vpop.permute.xlu0 %2022
      %2024 = vrot.lane.b32.xlu0 %v1997, 16
      %v2025 = vpop.permute.xlu0 %2024
      %2026 = vrot.lane.b32.xlu0 %v1998, 16
      %v2027 = vpop.permute.xlu0 %2026
      %2028 = vrot.lane.b32.xlu0 %v1999, 16
      %v2029 = vpop.permute.xlu0 %2028
      %2030 = vrot.lane.b32.xlu0 %v2000, 16
      %v2031 = vpop.permute.xlu0 %2030
      %2032 = vrot.lane.b32.xlu0 %v2001, 16
      %v2033 = vpop.permute.xlu0 %2032
      %2034 = vrot.lane.b32.xlu0 %v2002, 16
      %v2035 = vpop.permute.xlu0 %2034
      %2036 = vrot.lane.b32.xlu0 %v2003, 16
      %v2037 = vpop.permute.xlu0 %2036
      %vm2055 = vcmask 191616
      %2056 = vst.msk [vmem:[#allocation5] sm:$0xf] %vm2055, %v2005
      %2057 = vst.msk [vmem:[#allocation5 + $0x8] sm:$0xf] %vm2055, %v2007
      %2058 = vst.msk [vmem:[#allocation5 + $0x10] sm:$0xf] %vm2055, %v2009
      %2059 = vst.msk [vmem:[#allocation5 + $0x18] sm:$0xf] %vm2055, %v2011
      %2060 = vst.msk [vmem:[#allocation5 + $0x20] sm:$0xf] %vm2055, %v2013
      %2061 = vst.msk [vmem:[#allocation5 + $0x28] sm:$0xf] %vm2055, %v2015
      %2062 = vst.msk [vmem:[#allocation5 + $0x30] sm:$0xf] %vm2055, %v2017
      %2063 = vst.msk [vmem:[#allocation5 + $0x38] sm:$0xf] %vm2055, %v2019
      %2064 = vst.msk [vmem:[#allocation5 + $0x40] sm:$0xf] %vm2055, %v2021
      %2065 = vst.msk [vmem:[#allocation5 + $0x48] sm:$0xf] %vm2055, %v2023
      %2066 = vst.msk [vmem:[#allocation5 + $0x50] sm:$0xf] %vm2055, %v2025
      %2067 = vst.msk [vmem:[#allocation5 + $0x58] sm:$0xf] %vm2055, %v2027
      %2068 = vst.msk [vmem:[#allocation5 + $0x60] sm:$0xf] %vm2055, %v2029
      %2069 = vst.msk [vmem:[#allocation5 + $0x68] sm:$0xf] %vm2055, %v2031
      %2070 = vst.msk [vmem:[#allocation5 + $0x70] sm:$0xf] %vm2055, %v2033
      %2071 = vst.msk [vmem:[#allocation5 + $0x78] sm:$0xf] %vm2055, %v2035
      %2072 = vst.msk [vmem:[#allocation5 + $0x80] sm:$0xf] %vm2055, %v2037
      %v2073 = vld [vmem:[#allocation4 + $0x3] sm:$0xff]
      %v2074 = vld [vmem:[#allocation4 + $0xb] sm:$0xff]
      %v2075 = vld [vmem:[#allocation4 + $0x13] sm:$0xff]
      %v2076 = vld [vmem:[#allocation4 + $0x1b] sm:$0xff]
      %v2077 = vld [vmem:[#allocation4 + $0x23] sm:$0xff]
      %v2078 = vld [vmem:[#allocation4 + $0x2b] sm:$0xff]
      %v2079 = vld [vmem:[#allocation4 + $0x33] sm:$0xff]
      %v2080 = vld [vmem:[#allocation4 + $0x3b] sm:$0xff]
      %v2081 = vld [vmem:[#allocation4 + $0x43] sm:$0xff]
      %v2082 = vld [vmem:[#allocation4 + $0x4b] sm:$0xff]
      %v2083 = vld [vmem:[#allocation4 + $0x53] sm:$0xff]
      %v2084 = vld [vmem:[#allocation4 + $0x5b] sm:$0xff]
      %v2085 = vld [vmem:[#allocation4 + $0x63] sm:$0xff]
      %v2086 = vld [vmem:[#allocation4 + $0x6b] sm:$0xff]
      %v2087 = vld [vmem:[#allocation4 + $0x73] sm:$0xff]
      %v2088 = vld [vmem:[#allocation4 + $0x7b] sm:$0xff]
      %v2089 = vld [vmem:[#allocation4 + $0x83] sm:$0xff]
      %v2090 = vpack.c.bf16 %v2074, %v2073
      %v2091 = vpack.c.bf16 %v2076, %v2075
      %v2092 = vpack.c.bf16 %v2078, %v2077
      %v2093 = vpack.c.bf16 %v2080, %v2079
      %v2094 = vpack.c.bf16 %v2082, %v2081
      %v2095 = vpack.c.bf16 %v2084, %v2083
      %v2096 = vpack.c.bf16 %v2086, %v2085
      %v2097 = vpack.c.bf16 %v2088, %v2087
      %v2098 = vpack.c.bf16 %v2089, %v2089
      %v2108 = vunpack.c.l.b16 %v2090
      %v2109 = vunpack.c.h.b16 %v2090
      %v2110 = vunpack.c.l.b16 %v2091
      %v2111 = vunpack.c.h.b16 %v2091
      %v2112 = vunpack.c.l.b16 %v2092
      %v2113 = vunpack.c.h.b16 %v2092
      %v2114 = vunpack.c.l.b16 %v2093
      %v2115 = vunpack.c.h.b16 %v2093
      %v2116 = vunpack.c.l.b16 %v2094
      %v2117 = vunpack.c.h.b16 %v2094
      %v2118 = vunpack.c.l.b16 %v2095
      %v2119 = vunpack.c.h.b16 %v2095
      %v2120 = vunpack.c.l.b16 %v2096
      %v2121 = vunpack.c.h.b16 %v2096
      %v2122 = vunpack.c.l.b16 %v2097
      %v2123 = vunpack.c.h.b16 %v2097
      %v2124 = vunpack.c.l.b16 %v2098
      %v2125 = vpack.c.b16 %v2108, %v2108
      %v2126 = vpack.c.b16 %v2109, %v2109
      %v2127 = vpack.c.b16 %v2110, %v2110
      %v2128 = vpack.c.b16 %v2111, %v2111
      %v2129 = vpack.c.b16 %v2112, %v2112
      %v2130 = vpack.c.b16 %v2113, %v2113
      %v2131 = vpack.c.b16 %v2114, %v2114
      %v2132 = vpack.c.b16 %v2115, %v2115
      %v2133 = vpack.c.b16 %v2116, %v2116
      %v2134 = vpack.c.b16 %v2117, %v2117
      %v2135 = vpack.c.b16 %v2118, %v2118
      %v2136 = vpack.c.b16 %v2119, %v2119
      %v2137 = vpack.c.b16 %v2120, %v2120
      %v2138 = vpack.c.b16 %v2121, %v2121
      %v2139 = vpack.c.b16 %v2122, %v2122
      %v2140 = vpack.c.b16 %v2123, %v2123
      %v2141 = vpack.c.b16 %v2124, %v2124
      %2142 = vrot.lane.b32.xlu0 %v2125, 24
      %v2143 = vpop.permute.xlu0 %2142
      %2144 = vrot.lane.b32.xlu0 %v2126, 24
      %v2145 = vpop.permute.xlu0 %2144
      %2146 = vrot.lane.b32.xlu0 %v2127, 24
      %v2147 = vpop.permute.xlu0 %2146
      %2148 = vrot.lane.b32.xlu0 %v2128, 24
      %v2149 = vpop.permute.xlu0 %2148
      %2150 = vrot.lane.b32.xlu0 %v2129, 24
      %v2151 = vpop.permute.xlu0 %2150
      %2152 = vrot.lane.b32.xlu0 %v2130, 24
      %v2153 = vpop.permute.xlu0 %2152
      %2154 = vrot.lane.b32.xlu0 %v2131, 24
      %v2155 = vpop.permute.xlu0 %2154
      %2156 = vrot.lane.b32.xlu0 %v2132, 24
      %v2157 = vpop.permute.xlu0 %2156
      %2158 = vrot.lane.b32.xlu0 %v2133, 24
      %v2159 = vpop.permute.xlu0 %2158
      %2160 = vrot.lane.b32.xlu0 %v2134, 24
      %v2161 = vpop.permute.xlu0 %2160
      %2162 = vrot.lane.b32.xlu0 %v2135, 24
      %v2163 = vpop.permute.xlu0 %2162
      %2164 = vrot.lane.b32.xlu0 %v2136, 24
      %v2165 = vpop.permute.xlu0 %2164
      %2166 = vrot.lane.b32.xlu0 %v2137, 24
      %v2167 = vpop.permute.xlu0 %2166
      %2168 = vrot.lane.b32.xlu0 %v2138, 24
      %v2169 = vpop.permute.xlu0 %2168
      %2170 = vrot.lane.b32.xlu0 %v2139, 24
      %v2171 = vpop.permute.xlu0 %2170
      %2172 = vrot.lane.b32.xlu0 %v2140, 24
      %v2173 = vpop.permute.xlu0 %2172
      %2174 = vrot.lane.b32.xlu0 %v2141, 24
      %v2175 = vpop.permute.xlu0 %2174
      %vm2193 = vcmask 257216
      %2194 = vst.msk [vmem:[#allocation5] sm:$0xf] %vm2193, %v2143
      %2195 = vst.msk [vmem:[#allocation5 + $0x8] sm:$0xf] %vm2193, %v2145
      %2196 = vst.msk [vmem:[#allocation5 + $0x10] sm:$0xf] %vm2193, %v2147
      %2197 = vst.msk [vmem:[#allocation5 + $0x18] sm:$0xf] %vm2193, %v2149
      %2198 = vst.msk [vmem:[#allocation5 + $0x20] sm:$0xf] %vm2193, %v2151
      %2199 = vst.msk [vmem:[#allocation5 + $0x28] sm:$0xf] %vm2193, %v2153
      %2200 = vst.msk [vmem:[#allocation5 + $0x30] sm:$0xf] %vm2193, %v2155
      %2201 = vst.msk [vmem:[#allocation5 + $0x38] sm:$0xf] %vm2193, %v2157
      %2202 = vst.msk [vmem:[#allocation5 + $0x40] sm:$0xf] %vm2193, %v2159
      %2203 = vst.msk [vmem:[#allocation5 + $0x48] sm:$0xf] %vm2193, %v2161
      %2204 = vst.msk [vmem:[#allocation5 + $0x50] sm:$0xf] %vm2193, %v2163
      %2205 = vst.msk [vmem:[#allocation5 + $0x58] sm:$0xf] %vm2193, %v2165
      %2206 = vst.msk [vmem:[#allocation5 + $0x60] sm:$0xf] %vm2193, %v2167
      %2207 = vst.msk [vmem:[#allocation5 + $0x68] sm:$0xf] %vm2193, %v2169
      %2208 = vst.msk [vmem:[#allocation5 + $0x70] sm:$0xf] %vm2193, %v2171
      %2209 = vst.msk [vmem:[#allocation5 + $0x78] sm:$0xf] %vm2193, %v2173
      %2210 = vst.msk [vmem:[#allocation5 + $0x80] sm:$0xf] %vm2193, %v2175
      %v2211 = vld [vmem:[#allocation4 + $0x4] sm:$0xff]
      %v2212 = vld [vmem:[#allocation4 + $0xc] sm:$0xff]
      %v2213 = vld [vmem:[#allocation4 + $0x14] sm:$0xff]
      %v2214 = vld [vmem:[#allocation4 + $0x1c] sm:$0xff]
      %v2215 = vld [vmem:[#allocation4 + $0x24] sm:$0xff]
      %v2216 = vld [vmem:[#allocation4 + $0x2c] sm:$0xff]
      %v2217 = vld [vmem:[#allocation4 + $0x34] sm:$0xff]
      %v2218 = vld [vmem:[#allocation4 + $0x3c] sm:$0xff]
      %v2219 = vld [vmem:[#allocation4 + $0x44] sm:$0xff]
      %v2220 = vld [vmem:[#allocation4 + $0x4c] sm:$0xff]
      %v2221 = vld [vmem:[#allocation4 + $0x54] sm:$0xff]
      %v2222 = vld [vmem:[#allocation4 + $0x5c] sm:$0xff]
      %v2223 = vld [vmem:[#allocation4 + $0x64] sm:$0xff]
      %v2224 = vld [vmem:[#allocation4 + $0x6c] sm:$0xff]
      %v2225 = vld [vmem:[#allocation4 + $0x74] sm:$0xff]
      %v2226 = vld [vmem:[#allocation4 + $0x7c] sm:$0xff]
      %v2227 = vld [vmem:[#allocation4 + $0x84] sm:$0xff]
      %v2228 = vpack.c.bf16 %v2212, %v2211
      %v2229 = vpack.c.bf16 %v2214, %v2213
      %v2230 = vpack.c.bf16 %v2216, %v2215
      %v2231 = vpack.c.bf16 %v2218, %v2217
      %v2232 = vpack.c.bf16 %v2220, %v2219
      %v2233 = vpack.c.bf16 %v2222, %v2221
      %v2234 = vpack.c.bf16 %v2224, %v2223
      %v2235 = vpack.c.bf16 %v2226, %v2225
      %v2236 = vpack.c.bf16 %v2227, %v2227
      %v2246 = vunpack.c.l.b16 %v2228
      %v2247 = vunpack.c.h.b16 %v2228
      %v2248 = vunpack.c.l.b16 %v2229
      %v2249 = vunpack.c.h.b16 %v2229
      %v2250 = vunpack.c.l.b16 %v2230
      %v2251 = vunpack.c.h.b16 %v2230
      %v2252 = vunpack.c.l.b16 %v2231
      %v2253 = vunpack.c.h.b16 %v2231
      %v2254 = vunpack.c.l.b16 %v2232
      %v2255 = vunpack.c.h.b16 %v2232
      %v2256 = vunpack.c.l.b16 %v2233
      %v2257 = vunpack.c.h.b16 %v2233
      %v2258 = vunpack.c.l.b16 %v2234
      %v2259 = vunpack.c.h.b16 %v2234
      %v2260 = vunpack.c.l.b16 %v2235
      %v2261 = vunpack.c.h.b16 %v2235
      %v2262 = vunpack.c.l.b16 %v2236
      %v2263 = vpack.c.b16 %v2246, %v2246
      %v2264 = vpack.c.b16 %v2247, %v2247
      %v2265 = vpack.c.b16 %v2248, %v2248
      %v2266 = vpack.c.b16 %v2249, %v2249
      %v2267 = vpack.c.b16 %v2250, %v2250
      %v2268 = vpack.c.b16 %v2251, %v2251
      %v2269 = vpack.c.b16 %v2252, %v2252
      %v2270 = vpack.c.b16 %v2253, %v2253
      %v2271 = vpack.c.b16 %v2254, %v2254
      %v2272 = vpack.c.b16 %v2255, %v2255
      %v2273 = vpack.c.b16 %v2256, %v2256
      %v2274 = vpack.c.b16 %v2257, %v2257
      %v2275 = vpack.c.b16 %v2258, %v2258
      %v2276 = vpack.c.b16 %v2259, %v2259
      %v2277 = vpack.c.b16 %v2260, %v2260
      %v2278 = vpack.c.b16 %v2261, %v2261
      %v2279 = vpack.c.b16 %v2262, %v2262
      %2280 = vrot.lane.b32.xlu0 %v2263, 32
      %v2281 = vpop.permute.xlu0 %2280
      %2282 = vrot.lane.b32.xlu0 %v2264, 32
      %v2283 = vpop.permute.xlu0 %2282
      %2284 = vrot.lane.b32.xlu0 %v2265, 32
      %v2285 = vpop.permute.xlu0 %2284
      %2286 = vrot.lane.b32.xlu0 %v2266, 32
      %v2287 = vpop.permute.xlu0 %2286
      %2288 = vrot.lane.b32.xlu0 %v2267, 32
      %v2289 = vpop.permute.xlu0 %2288
      %2290 = vrot.lane.b32.xlu0 %v2268, 32
      %v2291 = vpop.permute.xlu0 %2290
      %2292 = vrot.lane.b32.xlu0 %v2269, 32
      %v2293 = vpop.permute.xlu0 %2292
      %2294 = vrot.lane.b32.xlu0 %v2270, 32
      %v2295 = vpop.permute.xlu0 %2294
      %2296 = vrot.lane.b32.xlu0 %v2271, 32
      %v2297 = vpop.permute.xlu0 %2296
      %2298 = vrot.lane.b32.xlu0 %v2272, 32
      %v2299 = vpop.permute.xlu0 %2298
      %2300 = vrot.lane.b32.xlu0 %v2273, 32
      %v2301 = vpop.permute.xlu0 %2300
      %2302 = vrot.lane.b32.xlu0 %v2274, 32
      %v2303 = vpop.permute.xlu0 %2302
      %2304 = vrot.lane.b32.xlu0 %v2275, 32
      %v2305 = vpop.permute.xlu0 %2304
      %2306 = vrot.lane.b32.xlu0 %v2276, 32
      %v2307 = vpop.permute.xlu0 %2306
      %2308 = vrot.lane.b32.xlu0 %v2277, 32
      %v2309 = vpop.permute.xlu0 %2308
      %2310 = vrot.lane.b32.xlu0 %v2278, 32
      %v2311 = vpop.permute.xlu0 %2310
      %2312 = vrot.lane.b32.xlu0 %v2279, 32
      %v2313 = vpop.permute.xlu0 %2312
      %vm2331 = vcmask 322816
      %2332 = vst.msk [vmem:[#allocation5] sm:$0xf] %vm2331, %v2281
      %2333 = vst.msk [vmem:[#allocation5 + $0x8] sm:$0xf] %vm2331, %v2283
      %2334 = vst.msk [vmem:[#allocation5 + $0x10] sm:$0xf] %vm2331, %v2285
      %2335 = vst.msk [vmem:[#allocation5 + $0x18] sm:$0xf] %vm2331, %v2287
      %2336 = vst.msk [vmem:[#allocation5 + $0x20] sm:$0xf] %vm2331, %v2289
      %2337 = vst.msk [vmem:[#allocation5 + $0x28] sm:$0xf] %vm2331, %v2291
      %2338 = vst.msk [vmem:[#allocation5 + $0x30] sm:$0xf] %vm2331, %v2293
      %2339 = vst.msk [vmem:[#allocation5 + $0x38] sm:$0xf] %vm2331, %v2295
      %2340 = vst.msk [vmem:[#allocation5 + $0x40] sm:$0xf] %vm2331, %v2297
      %2341 = vst.msk [vmem:[#allocation5 + $0x48] sm:$0xf] %vm2331, %v2299
      %2342 = vst.msk [vmem:[#allocation5 + $0x50] sm:$0xf] %vm2331, %v2301
      %2343 = vst.msk [vmem:[#allocation5 + $0x58] sm:$0xf] %vm2331, %v2303
      %2344 = vst.msk [vmem:[#allocation5 + $0x60] sm:$0xf] %vm2331, %v2305
      %2345 = vst.msk [vmem:[#allocation5 + $0x68] sm:$0xf] %vm2331, %v2307
      %2346 = vst.msk [vmem:[#allocation5 + $0x70] sm:$0xf] %vm2331, %v2309
      %2347 = vst.msk [vmem:[#allocation5 + $0x78] sm:$0xf] %vm2331, %v2311
      %2348 = vst.msk [vmem:[#allocation5 + $0x80] sm:$0xf] %vm2331, %v2313
      %v2349 = vld [vmem:[#allocation4 + $0xe] sm:$0xff]
      %v2350 = vld [vmem:[#allocation4 + $0x16] sm:$0xff]
      %v2351 = vld [vmem:[#allocation4 + $0x1e] sm:$0xff]
      %v2352 = vld [vmem:[#allocation4 + $0x26] sm:$0xff]
      %v2353 = vld [vmem:[#allocation4 + $0x2e] sm:$0xff]
      %v2354 = vld [vmem:[#allocation4 + $0x36] sm:$0xff]
      %v2355 = vld [vmem:[#allocation4 + $0x3e] sm:$0xff]
      %v2356 = vld [vmem:[#allocation4 + $0x46] sm:$0xff]
      %v2357 = vld [vmem:[#allocation4 + $0x4e] sm:$0xff]
      %v2358 = vld [vmem:[#allocation4 + $0x56] sm:$0xff]
      %v2359 = vld [vmem:[#allocation4 + $0x5e] sm:$0xff]
      %v2360 = vld [vmem:[#allocation4 + $0x66] sm:$0xff]
      %v2361 = vld [vmem:[#allocation4 + $0x6e] sm:$0xff]
      %v2362 = vld [vmem:[#allocation4 + $0x76] sm:$0xff]
      %v2363 = vld [vmem:[#allocation4 + $0x7e] sm:$0xff]
      %v2364 = vld [vmem:[#allocation4 + $0x86] sm:$0xff]
      %v2365 = vld [vmem:[#allocation4 + $0x8e] sm:$0xff]
      %v2366 = vpack.c.bf16 %v2350, %v2349
      %v2367 = vpack.c.bf16 %v2352, %v2351
      %v2368 = vpack.c.bf16 %v2354, %v2353
      %v2369 = vpack.c.bf16 %v2356, %v2355
      %v2370 = vpack.c.bf16 %v2358, %v2357
      %v2371 = vpack.c.bf16 %v2360, %v2359
      %v2372 = vpack.c.bf16 %v2362, %v2361
      %v2373 = vpack.c.bf16 %v2364, %v2363
      %v2374 = vpack.c.bf16 %v2365, %v2365
      %v2384 = vunpack.c.l.b16 %v2366
      %v2385 = vunpack.c.h.b16 %v2366
      %v2386 = vunpack.c.l.b16 %v2367
      %v2387 = vunpack.c.h.b16 %v2367
      %v2388 = vunpack.c.l.b16 %v2368
      %v2389 = vunpack.c.h.b16 %v2368
      %v2390 = vunpack.c.l.b16 %v2369
      %v2391 = vunpack.c.h.b16 %v2369
      %v2392 = vunpack.c.l.b16 %v2370
      %v2393 = vunpack.c.h.b16 %v2370
      %v2394 = vunpack.c.l.b16 %v2371
      %v2395 = vunpack.c.h.b16 %v2371
      %v2396 = vunpack.c.l.b16 %v2372
      %v2397 = vunpack.c.h.b16 %v2372
      %v2398 = vunpack.c.l.b16 %v2373
      %v2399 = vunpack.c.h.b16 %v2373
      %v2400 = vunpack.c.l.b16 %v2374
      %v2401 = vpack.c.b16 %v2384, %v2384
      %v2402 = vpack.c.b16 %v2385, %v2385
      %v2403 = vpack.c.b16 %v2386, %v2386
      %v2404 = vpack.c.b16 %v2387, %v2387
      %v2405 = vpack.c.b16 %v2388, %v2388
      %v2406 = vpack.c.b16 %v2389, %v2389
      %v2407 = vpack.c.b16 %v2390, %v2390
      %v2408 = vpack.c.b16 %v2391, %v2391
      %v2409 = vpack.c.b16 %v2392, %v2392
      %v2410 = vpack.c.b16 %v2393, %v2393
      %v2411 = vpack.c.b16 %v2394, %v2394
      %v2412 = vpack.c.b16 %v2395, %v2395
      %v2413 = vpack.c.b16 %v2396, %v2396
      %v2414 = vpack.c.b16 %v2397, %v2397
      %v2415 = vpack.c.b16 %v2398, %v2398
      %v2416 = vpack.c.b16 %v2399, %v2399
      %v2417 = vpack.c.b16 %v2400, %v2400
      %2418 = vrot.lane.b32.xlu0 %v2401, 40
      %v2419 = vpop.permute.xlu0 %2418
      %2420 = vrot.lane.b32.xlu0 %v2402, 40
      %v2421 = vpop.permute.xlu0 %2420
      %2422 = vrot.lane.b32.xlu0 %v2403, 40
      %v2423 = vpop.permute.xlu0 %2422
      %2424 = vrot.lane.b32.xlu0 %v2404, 40
      %v2425 = vpop.permute.xlu0 %2424
      %2426 = vrot.lane.b32.xlu0 %v2405, 40
      %v2427 = vpop.permute.xlu0 %2426
      %2428 = vrot.lane.b32.xlu0 %v2406, 40
      %v2429 = vpop.permute.xlu0 %2428
      %2430 = vrot.lane.b32.xlu0 %v2407, 40
      %v2431 = vpop.permute.xlu0 %2430
      %2432 = vrot.lane.b32.xlu0 %v2408, 40
      %v2433 = vpop.permute.xlu0 %2432
      %2434 = vrot.lane.b32.xlu0 %v2409, 40
      %v2435 = vpop.permute.xlu0 %2434
      %2436 = vrot.lane.b32.xlu0 %v2410, 40
      %v2437 = vpop.permute.xlu0 %2436
      %2438 = vrot.lane.b32.xlu0 %v2411, 40
      %v2439 = vpop.permute.xlu0 %2438
      %2440 = vrot.lane.b32.xlu0 %v2412, 40
      %v2441 = vpop.permute.xlu0 %2440
      %2442 = vrot.lane.b32.xlu0 %v2413, 40
      %v2443 = vpop.permute.xlu0 %2442
      %2444 = vrot.lane.b32.xlu0 %v2414, 40
      %v2445 = vpop.permute.xlu0 %2444
      %2446 = vrot.lane.b32.xlu0 %v2415, 40
      %v2447 = vpop.permute.xlu0 %2446
      %2448 = vrot.lane.b32.xlu0 %v2416, 40
      %v2449 = vpop.permute.xlu0 %2448
      %2450 = vrot.lane.b32.xlu0 %v2417, 40
      %v2451 = vpop.permute.xlu0 %2450
      %vm2469 = vcmask 388416
      %2470 = vst.msk [vmem:[#allocation5] sm:$0xf] %vm2469, %v2419
      %2471 = vst.msk [vmem:[#allocation5 + $0x8] sm:$0xf] %vm2469, %v2421
      %2472 = vst.msk [vmem:[#allocation5 + $0x10] sm:$0xf] %vm2469, %v2423
      %2473 = vst.msk [vmem:[#allocation5 + $0x18] sm:$0xf] %vm2469, %v2425
      %2474 = vst.msk [vmem:[#allocation5 + $0x20] sm:$0xf] %vm2469, %v2427
      %2475 = vst.msk [vmem:[#allocation5 + $0x28] sm:$0xf] %vm2469, %v2429
      %2476 = vst.msk [vmem:[#allocation5 + $0x30] sm:$0xf] %vm2469, %v2431
      %2477 = vst.msk [vmem:[#allocation5 + $0x38] sm:$0xf] %vm2469, %v2433
      %2478 = vst.msk [vmem:[#allocation5 + $0x40] sm:$0xf] %vm2469, %v2435
      %2479 = vst.msk [vmem:[#allocation5 + $0x48] sm:$0xf] %vm2469, %v2437
      %2480 = vst.msk [vmem:[#allocation5 + $0x50] sm:$0xf] %vm2469, %v2439
      %2481 = vst.msk [vmem:[#allocation5 + $0x58] sm:$0xf] %vm2469, %v2441
      %2482 = vst.msk [vmem:[#allocation5 + $0x60] sm:$0xf] %vm2469, %v2443
      %2483 = vst.msk [vmem:[#allocation5 + $0x68] sm:$0xf] %vm2469, %v2445
      %2484 = vst.msk [vmem:[#allocation5 + $0x70] sm:$0xf] %vm2469, %v2447
      %2485 = vst.msk [vmem:[#allocation5 + $0x78] sm:$0xf] %vm2469, %v2449
      %2486 = vst.msk [vmem:[#allocation5 + $0x80] sm:$0xf] %vm2469, %v2451
      %v2487 = vld [vmem:[#allocation4 + $0xf] sm:$0xff]
      %v2488 = vld [vmem:[#allocation4 + $0x17] sm:$0xff]
      %v2489 = vld [vmem:[#allocation4 + $0x1f] sm:$0xff]
      %v2490 = vld [vmem:[#allocation4 + $0x27] sm:$0xff]
      %v2491 = vld [vmem:[#allocation4 + $0x2f] sm:$0xff]
      %v2492 = vld [vmem:[#allocation4 + $0x37] sm:$0xff]
      %v2493 = vld [vmem:[#allocation4 + $0x3f] sm:$0xff]
      %v2494 = vld [vmem:[#allocation4 + $0x47] sm:$0xff]
      %v2495 = vld [vmem:[#allocation4 + $0x4f] sm:$0xff]
      %v2496 = vld [vmem:[#allocation4 + $0x57] sm:$0xff]
      %v2497 = vld [vmem:[#allocation4 + $0x5f] sm:$0xff]
      %v2498 = vld [vmem:[#allocation4 + $0x67] sm:$0xff]
      %v2499 = vld [vmem:[#allocation4 + $0x6f] sm:$0xff]
      %v2500 = vld [vmem:[#allocation4 + $0x77] sm:$0xff]
      %v2501 = vld [vmem:[#allocation4 + $0x7f] sm:$0xff]
      %v2502 = vld [vmem:[#allocation4 + $0x87] sm:$0xff]
      %v2503 = vld [vmem:[#allocation4 + $0x8f] sm:$0xff]
      %v2504 = vpack.c.bf16 %v2488, %v2487
      %v2505 = vpack.c.bf16 %v2490, %v2489
      %v2506 = vpack.c.bf16 %v2492, %v2491
      %v2507 = vpack.c.bf16 %v2494, %v2493
      %v2508 = vpack.c.bf16 %v2496, %v2495
      %v2509 = vpack.c.bf16 %v2498, %v2497
      %v2510 = vpack.c.bf16 %v2500, %v2499
      %v2511 = vpack.c.bf16 %v2502, %v2501
      %v2512 = vpack.c.bf16 %v2503, %v2503
      %v2522 = vunpack.c.l.b16 %v2504
      %v2523 = vunpack.c.h.b16 %v2504
      %v2524 = vunpack.c.l.b16 %v2505
      %v2525 = vunpack.c.h.b16 %v2505
      %v2526 = vunpack.c.l.b16 %v2506
      %v2527 = vunpack.c.h.b16 %v2506
      %v2528 = vunpack.c.l.b16 %v2507
      %v2529 = vunpack.c.h.b16 %v2507
      %v2530 = vunpack.c.l.b16 %v2508
      %v2531 = vunpack.c.h.b16 %v2508
      %v2532 = vunpack.c.l.b16 %v2509
      %v2533 = vunpack.c.h.b16 %v2509
      %v2534 = vunpack.c.l.b16 %v2510
      %v2535 = vunpack.c.h.b16 %v2510
      %v2536 = vunpack.c.l.b16 %v2511
      %v2537 = vunpack.c.h.b16 %v2511
      %v2538 = vunpack.c.l.b16 %v2512
      %v2539 = vpack.c.b16 %v2522, %v2522
      %v2540 = vpack.c.b16 %v2523, %v2523
      %v2541 = vpack.c.b16 %v2524, %v2524
      %v2542 = vpack.c.b16 %v2525, %v2525
      %v2543 = vpack.c.b16 %v2526, %v2526
      %v2544 = vpack.c.b16 %v2527, %v2527
      %v2545 = vpack.c.b16 %v2528, %v2528
      %v2546 = vpack.c.b16 %v2529, %v2529
      %v2547 = vpack.c.b16 %v2530, %v2530
      %v2548 = vpack.c.b16 %v2531, %v2531
      %v2549 = vpack.c.b16 %v2532, %v2532
      %v2550 = vpack.c.b16 %v2533, %v2533
      %v2551 = vpack.c.b16 %v2534, %v2534
      %v2552 = vpack.c.b16 %v2535, %v2535
      %v2553 = vpack.c.b16 %v2536, %v2536
      %v2554 = vpack.c.b16 %v2537, %v2537
      %v2555 = vpack.c.b16 %v2538, %v2538
      %2556 = vrot.lane.b32.xlu0 %v2539, 48
      %v2557 = vpop.permute.xlu0 %2556
      %2558 = vrot.lane.b32.xlu0 %v2540, 48
      %v2559 = vpop.permute.xlu0 %2558
      %2560 = vrot.lane.b32.xlu0 %v2541, 48
      %v2561 = vpop.permute.xlu0 %2560
      %2562 = vrot.lane.b32.xlu0 %v2542, 48
      %v2563 = vpop.permute.xlu0 %2562
      %2564 = vrot.lane.b32.xlu0 %v2543, 48
      %v2565 = vpop.permute.xlu0 %2564
      %2566 = vrot.lane.b32.xlu0 %v2544, 48
      %v2567 = vpop.permute.xlu0 %2566
      %2568 = vrot.lane.b32.xlu0 %v2545, 48
      %v2569 = vpop.permute.xlu0 %2568
      %2570 = vrot.lane.b32.xlu0 %v2546, 48
      %v2571 = vpop.permute.xlu0 %2570
      %2572 = vrot.lane.b32.xlu0 %v2547, 48
      %v2573 = vpop.permute.xlu0 %2572
      %2574 = vrot.lane.b32.xlu0 %v2548, 48
      %v2575 = vpop.permute.xlu0 %2574
      %2576 = vrot.lane.b32.xlu0 %v2549, 48
      %v2577 = vpop.permute.xlu0 %2576
      %2578 = vrot.lane.b32.xlu0 %v2550, 48
      %v2579 = vpop.permute.xlu0 %2578
      %2580 = vrot.lane.b32.xlu0 %v2551, 48
      %v2581 = vpop.permute.xlu0 %2580
      %2582 = vrot.lane.b32.xlu0 %v2552, 48
      %v2583 = vpop.permute.xlu0 %2582
      %2584 = vrot.lane.b32.xlu0 %v2553, 48
      %v2585 = vpop.permute.xlu0 %2584
      %2586 = vrot.lane.b32.xlu0 %v2554, 48
      %v2587 = vpop.permute.xlu0 %2586
      %2588 = vrot.lane.b32.xlu0 %v2555, 48
      %v2589 = vpop.permute.xlu0 %2588
      %vm2607 = vcmask 454016
      %2608 = vst.msk [vmem:[#allocation5] sm:$0xf] %vm2607, %v2557
      %2609 = vst.msk [vmem:[#allocation5 + $0x8] sm:$0xf] %vm2607, %v2559
      %2610 = vst.msk [vmem:[#allocation5 + $0x10] sm:$0xf] %vm2607, %v2561
      %2611 = vst.msk [vmem:[#allocation5 + $0x18] sm:$0xf] %vm2607, %v2563
      %2612 = vst.msk [vmem:[#allocation5 + $0x20] sm:$0xf] %vm2607, %v2565
      %2613 = vst.msk [vmem:[#allocation5 + $0x28] sm:$0xf] %vm2607, %v2567
      %2614 = vst.msk [vmem:[#allocation5 + $0x30] sm:$0xf] %vm2607, %v2569
      %2615 = vst.msk [vmem:[#allocation5 + $0x38] sm:$0xf] %vm2607, %v2571
      %2616 = vst.msk [vmem:[#allocation5 + $0x40] sm:$0xf] %vm2607, %v2573
      %2617 = vst.msk [vmem:[#allocation5 + $0x48] sm:$0xf] %vm2607, %v2575
      %2618 = vst.msk [vmem:[#allocation5 + $0x50] sm:$0xf] %vm2607, %v2577
      %2619 = vst.msk [vmem:[#allocation5 + $0x58] sm:$0xf] %vm2607, %v2579
      %2620 = vst.msk [vmem:[#allocation5 + $0x60] sm:$0xf] %vm2607, %v2581
      %2621 = vst.msk [vmem:[#allocation5 + $0x68] sm:$0xf] %vm2607, %v2583
      %2622 = vst.msk [vmem:[#allocation5 + $0x70] sm:$0xf] %vm2607, %v2585
      %2623 = vst.msk [vmem:[#allocation5 + $0x78] sm:$0xf] %vm2607, %v2587
      %2624 = vst.msk [vmem:[#allocation5 + $0x80] sm:$0xf] %vm2607, %v2589
      %v2625 = vld [vmem:[#allocation4 + $0x10] sm:$0xff]
      %v2626 = vld [vmem:[#allocation4 + $0x18] sm:$0xff]
      %v2627 = vld [vmem:[#allocation4 + $0x20] sm:$0xff]
      %v2628 = vld [vmem:[#allocation4 + $0x28] sm:$0xff]
      %v2629 = vld [vmem:[#allocation4 + $0x30] sm:$0xff]
      %v2630 = vld [vmem:[#allocation4 + $0x38] sm:$0xff]
      %v2631 = vld [vmem:[#allocation4 + $0x40] sm:$0xff]
      %v2632 = vld [vmem:[#allocation4 + $0x48] sm:$0xff]
      %v2633 = vld [vmem:[#allocation4 + $0x50] sm:$0xff]
      %v2634 = vld [vmem:[#allocation4 + $0x58] sm:$0xff]
      %v2635 = vld [vmem:[#allocation4 + $0x60] sm:$0xff]
      %v2636 = vld [vmem:[#allocation4 + $0x68] sm:$0xff]
      %v2637 = vld [vmem:[#allocation4 + $0x70] sm:$0xff]
      %v2638 = vld [vmem:[#allocation4 + $0x78] sm:$0xff]
      %v2639 = vld [vmem:[#allocation4 + $0x80] sm:$0xff]
      %v2640 = vld [vmem:[#allocation4 + $0x88] sm:$0xff]
      %v2641 = vld [vmem:[#allocation4 + $0x90] sm:$0xff]
      %v2642 = vpack.c.bf16 %v2626, %v2625
      %v2643 = vpack.c.bf16 %v2628, %v2627
      %v2644 = vpack.c.bf16 %v2630, %v2629
      %v2645 = vpack.c.bf16 %v2632, %v2631
      %v2646 = vpack.c.bf16 %v2634, %v2633
      %v2647 = vpack.c.bf16 %v2636, %v2635
      %v2648 = vpack.c.bf16 %v2638, %v2637
      %v2649 = vpack.c.bf16 %v2640, %v2639
      %v2650 = vpack.c.bf16 %v2641, %v2641
      %v2660 = vunpack.c.l.b16 %v2642
      %v2661 = vunpack.c.h.b16 %v2642
      %v2662 = vunpack.c.l.b16 %v2643
      %v2663 = vunpack.c.h.b16 %v2643
      %v2664 = vunpack.c.l.b16 %v2644
      %v2665 = vunpack.c.h.b16 %v2644
      %v2666 = vunpack.c.l.b16 %v2645
      %v2667 = vunpack.c.h.b16 %v2645
      %v2668 = vunpack.c.l.b16 %v2646
      %v2669 = vunpack.c.h.b16 %v2646
      %v2670 = vunpack.c.l.b16 %v2647
      %v2671 = vunpack.c.h.b16 %v2647
      %v2672 = vunpack.c.l.b16 %v2648
      %v2673 = vunpack.c.h.b16 %v2648
      %v2674 = vunpack.c.l.b16 %v2649
      %v2675 = vunpack.c.h.b16 %v2649
      %v2676 = vunpack.c.l.b16 %v2650
      %v2677 = vpack.c.b16 %v2660, %v2660
      %v2678 = vpack.c.b16 %v2661, %v2661
      %v2679 = vpack.c.b16 %v2662, %v2662
      %v2680 = vpack.c.b16 %v2663, %v2663
      %v2681 = vpack.c.b16 %v2664, %v2664
      %v2682 = vpack.c.b16 %v2665, %v2665
      %v2683 = vpack.c.b16 %v2666, %v2666
      %v2684 = vpack.c.b16 %v2667, %v2667
      %v2685 = vpack.c.b16 %v2668, %v2668
      %v2686 = vpack.c.b16 %v2669, %v2669
      %v2687 = vpack.c.b16 %v2670, %v2670
      %v2688 = vpack.c.b16 %v2671, %v2671
      %v2689 = vpack.c.b16 %v2672, %v2672
      %v2690 = vpack.c.b16 %v2673, %v2673
      %v2691 = vpack.c.b16 %v2674, %v2674
      %v2692 = vpack.c.b16 %v2675, %v2675
      %v2693 = vpack.c.b16 %v2676, %v2676
      %2694 = vrot.lane.b32.xlu0 %v2677, 56
      %v2695 = vpop.permute.xlu0 %2694
      %2696 = vrot.lane.b32.xlu0 %v2678, 56
      %v2697 = vpop.permute.xlu0 %2696
      %2698 = vrot.lane.b32.xlu0 %v2679, 56
      %v2699 = vpop.permute.xlu0 %2698
      %2700 = vrot.lane.b32.xlu0 %v2680, 56
      %v2701 = vpop.permute.xlu0 %2700
      %2702 = vrot.lane.b32.xlu0 %v2681, 56
      %v2703 = vpop.permute.xlu0 %2702
      %2704 = vrot.lane.b32.xlu0 %v2682, 56
      %v2705 = vpop.permute.xlu0 %2704
      %2706 = vrot.lane.b32.xlu0 %v2683, 56
      %v2707 = vpop.permute.xlu0 %2706
      %2708 = vrot.lane.b32.xlu0 %v2684, 56
      %v2709 = vpop.permute.xlu0 %2708
      %2710 = vrot.lane.b32.xlu0 %v2685, 56
      %v2711 = vpop.permute.xlu0 %2710
      %2712 = vrot.lane.b32.xlu0 %v2686, 56
      %v2713 = vpop.permute.xlu0 %2712
      %2714 = vrot.lane.b32.xlu0 %v2687, 56
      %v2715 = vpop.permute.xlu0 %2714
      %2716 = vrot.lane.b32.xlu0 %v2688, 56
      %v2717 = vpop.permute.xlu0 %2716
      %2718 = vrot.lane.b32.xlu0 %v2689, 56
      %v2719 = vpop.permute.xlu0 %2718
      %2720 = vrot.lane.b32.xlu0 %v2690, 56
      %v2721 = vpop.permute.xlu0 %2720
      %2722 = vrot.lane.b32.xlu0 %v2691, 56
      %v2723 = vpop.permute.xlu0 %2722
      %2724 = vrot.lane.b32.xlu0 %v2692, 56
      %v2725 = vpop.permute.xlu0 %2724
      %2726 = vrot.lane.b32.xlu0 %v2693, 56
      %v2727 = vpop.permute.xlu0 %2726
      %vm2745 = vcmask 519616
      %2746 = vst.msk [vmem:[#allocation5] sm:$0xf] %vm2745, %v2695
      %2747 = vst.msk [vmem:[#allocation5 + $0x8] sm:$0xf] %vm2745, %v2697
      %2748 = vst.msk [vmem:[#allocation5 + $0x10] sm:$0xf] %vm2745, %v2699
      %2749 = vst.msk [vmem:[#allocation5 + $0x18] sm:$0xf] %vm2745, %v2701
      %2750 = vst.msk [vmem:[#allocation5 + $0x20] sm:$0xf] %vm2745, %v2703
      %2751 = vst.msk [vmem:[#allocation5 + $0x28] sm:$0xf] %vm2745, %v2705
      %2752 = vst.msk [vmem:[#allocation5 + $0x30] sm:$0xf] %vm2745, %v2707
      %2753 = vst.msk [vmem:[#allocation5 + $0x38] sm:$0xf] %vm2745, %v2709
      %2754 = vst.msk [vmem:[#allocation5 + $0x40] sm:$0xf] %vm2745, %v2711
      %2755 = vst.msk [vmem:[#allocation5 + $0x48] sm:$0xf] %vm2745, %v2713
      %2756 = vst.msk [vmem:[#allocation5 + $0x50] sm:$0xf] %vm2745, %v2715
      %2757 = vst.msk [vmem:[#allocation5 + $0x58] sm:$0xf] %vm2745, %v2717
      %2758 = vst.msk [vmem:[#allocation5 + $0x60] sm:$0xf] %vm2745, %v2719
      %2759 = vst.msk [vmem:[#allocation5 + $0x68] sm:$0xf] %vm2745, %v2721
      %2760 = vst.msk [vmem:[#allocation5 + $0x70] sm:$0xf] %vm2745, %v2723
      %2761 = vst.msk [vmem:[#allocation5 + $0x78] sm:$0xf] %vm2745, %v2725
      %2762 = vst.msk [vmem:[#allocation5 + $0x80] sm:$0xf] %vm2745, %v2727
      %v2763 = vld [vmem:[#allocation4 + $0x11] sm:$0xff]
      %v2764 = vld [vmem:[#allocation4 + $0x19] sm:$0xff]
      %v2765 = vld [vmem:[#allocation4 + $0x21] sm:$0xff]
      %v2766 = vld [vmem:[#allocation4 + $0x29] sm:$0xff]
      %v2767 = vld [vmem:[#allocation4 + $0x31] sm:$0xff]
      %v2768 = vld [vmem:[#allocation4 + $0x39] sm:$0xff]
      %v2769 = vld [vmem:[#allocation4 + $0x41] sm:$0xff]
      %v2770 = vld [vmem:[#allocation4 + $0x49] sm:$0xff]
      %v2771 = vld [vmem:[#allocation4 + $0x51] sm:$0xff]
      %v2772 = vld [vmem:[#allocation4 + $0x59] sm:$0xff]
      %v2773 = vld [vmem:[#allocation4 + $0x61] sm:$0xff]
      %v2774 = vld [vmem:[#allocation4 + $0x69] sm:$0xff]
      %v2775 = vld [vmem:[#allocation4 + $0x71] sm:$0xff]
      %v2776 = vld [vmem:[#allocation4 + $0x79] sm:$0xff]
      %v2777 = vld [vmem:[#allocation4 + $0x81] sm:$0xff]
      %v2778 = vld [vmem:[#allocation4 + $0x89] sm:$0xff]
      %v2779 = vld [vmem:[#allocation4 + $0x91] sm:$0xff]
      %v2780 = vpack.c.bf16 %v2764, %v2763
      %v2781 = vpack.c.bf16 %v2766, %v2765
      %v2782 = vpack.c.bf16 %v2768, %v2767
      %v2783 = vpack.c.bf16 %v2770, %v2769
      %v2784 = vpack.c.bf16 %v2772, %v2771
      %v2785 = vpack.c.bf16 %v2774, %v2773
      %v2786 = vpack.c.bf16 %v2776, %v2775
      %v2787 = vpack.c.bf16 %v2778, %v2777
      %v2788 = vpack.c.bf16 %v2779, %v2779
      %v2798 = vunpack.c.l.b16 %v2780
      %v2799 = vunpack.c.h.b16 %v2780
      %v2800 = vunpack.c.l.b16 %v2781
      %v2801 = vunpack.c.h.b16 %v2781
      %v2802 = vunpack.c.l.b16 %v2782
      %v2803 = vunpack.c.h.b16 %v2782
      %v2804 = vunpack.c.l.b16 %v2783
      %v2805 = vunpack.c.h.b16 %v2783
      %v2806 = vunpack.c.l.b16 %v2784
      %v2807 = vunpack.c.h.b16 %v2784
      %v2808 = vunpack.c.l.b16 %v2785
      %v2809 = vunpack.c.h.b16 %v2785
      %v2810 = vunpack.c.l.b16 %v2786
      %v2811 = vunpack.c.h.b16 %v2786
      %v2812 = vunpack.c.l.b16 %v2787
      %v2813 = vunpack.c.h.b16 %v2787
      %v2814 = vunpack.c.l.b16 %v2788
      %v2815 = vpack.c.b16 %v2798, %v2798
      %v2816 = vpack.c.b16 %v2799, %v2799
      %v2817 = vpack.c.b16 %v2800, %v2800
      %v2818 = vpack.c.b16 %v2801, %v2801
      %v2819 = vpack.c.b16 %v2802, %v2802
      %v2820 = vpack.c.b16 %v2803, %v2803
      %v2821 = vpack.c.b16 %v2804, %v2804
      %v2822 = vpack.c.b16 %v2805, %v2805
      %v2823 = vpack.c.b16 %v2806, %v2806
      %v2824 = vpack.c.b16 %v2807, %v2807
      %v2825 = vpack.c.b16 %v2808, %v2808
      %v2826 = vpack.c.b16 %v2809, %v2809
      %v2827 = vpack.c.b16 %v2810, %v2810
      %v2828 = vpack.c.b16 %v2811, %v2811
      %v2829 = vpack.c.b16 %v2812, %v2812
      %v2830 = vpack.c.b16 %v2813, %v2813
      %v2831 = vpack.c.b16 %v2814, %v2814
      %2832 = vrot.lane.b32.xlu0 %v2815, 64
      %v2833 = vpop.permute.xlu0 %2832
      %2834 = vrot.lane.b32.xlu0 %v2816, 64
      %v2835 = vpop.permute.xlu0 %2834
      %2836 = vrot.lane.b32.xlu0 %v2817, 64
      %v2837 = vpop.permute.xlu0 %2836
      %2838 = vrot.lane.b32.xlu0 %v2818, 64
      %v2839 = vpop.permute.xlu0 %2838
      %2840 = vrot.lane.b32.xlu0 %v2819, 64
      %v2841 = vpop.permute.xlu0 %2840
      %2842 = vrot.lane.b32.xlu0 %v2820, 64
      %v2843 = vpop.permute.xlu0 %2842
      %2844 = vrot.lane.b32.xlu0 %v2821, 64
      %v2845 = vpop.permute.xlu0 %2844
      %2846 = vrot.lane.b32.xlu0 %v2822, 64
      %v2847 = vpop.permute.xlu0 %2846
      %2848 = vrot.lane.b32.xlu0 %v2823, 64
      %v2849 = vpop.permute.xlu0 %2848
      %2850 = vrot.lane.b32.xlu0 %v2824, 64
      %v2851 = vpop.permute.xlu0 %2850
      %2852 = vrot.lane.b32.xlu0 %v2825, 64
      %v2853 = vpop.permute.xlu0 %2852
      %2854 = vrot.lane.b32.xlu0 %v2826, 64
      %v2855 = vpop.permute.xlu0 %2854
      %2856 = vrot.lane.b32.xlu0 %v2827, 64
      %v2857 = vpop.permute.xlu0 %2856
      %2858 = vrot.lane.b32.xlu0 %v2828, 64
      %v2859 = vpop.permute.xlu0 %2858
      %2860 = vrot.lane.b32.xlu0 %v2829, 64
      %v2861 = vpop.permute.xlu0 %2860
      %2862 = vrot.lane.b32.xlu0 %v2830, 64
      %v2863 = vpop.permute.xlu0 %2862
      %2864 = vrot.lane.b32.xlu0 %v2831, 64
      %v2865 = vpop.permute.xlu0 %2864
      %vm2883 = vcmask 585216
      %2884 = vst.msk [vmem:[#allocation5] sm:$0xf] %vm2883, %v2833
      %2885 = vst.msk [vmem:[#allocation5 + $0x8] sm:$0xf] %vm2883, %v2835
      %2886 = vst.msk [vmem:[#allocation5 + $0x10] sm:$0xf] %vm2883, %v2837
      %2887 = vst.msk [vmem:[#allocation5 + $0x18] sm:$0xf] %vm2883, %v2839
      %2888 = vst.msk [vmem:[#allocation5 + $0x20] sm:$0xf] %vm2883, %v2841
      %2889 = vst.msk [vmem:[#allocation5 + $0x28] sm:$0xf] %vm2883, %v2843
      %2890 = vst.msk [vmem:[#allocation5 + $0x30] sm:$0xf] %vm2883, %v2845
      %2891 = vst.msk [vmem:[#allocation5 + $0x38] sm:$0xf] %vm2883, %v2847
      %2892 = vst.msk [vmem:[#allocation5 + $0x40] sm:$0xf] %vm2883, %v2849
      %2893 = vst.msk [vmem:[#allocation5 + $0x48] sm:$0xf] %vm2883, %v2851
      %2894 = vst.msk [vmem:[#allocation5 + $0x50] sm:$0xf] %vm2883, %v2853
      %2895 = vst.msk [vmem:[#allocation5 + $0x58] sm:$0xf] %vm2883, %v2855
      %2896 = vst.msk [vmem:[#allocation5 + $0x60] sm:$0xf] %vm2883, %v2857
      %2897 = vst.msk [vmem:[#allocation5 + $0x68] sm:$0xf] %vm2883, %v2859
      %2898 = vst.msk [vmem:[#allocation5 + $0x70] sm:$0xf] %vm2883, %v2861
      %2899 = vst.msk [vmem:[#allocation5 + $0x78] sm:$0xf] %vm2883, %v2863
      %2900 = vst.msk [vmem:[#allocation5 + $0x80] sm:$0xf] %vm2883, %v2865
      %v2901 = vld [vmem:[#allocation4 + $0x12] sm:$0xff]
      %v2902 = vld [vmem:[#allocation4 + $0x1a] sm:$0xff]
      %v2903 = vld [vmem:[#allocation4 + $0x22] sm:$0xff]
      %v2904 = vld [vmem:[#allocation4 + $0x2a] sm:$0xff]
      %v2905 = vld [vmem:[#allocation4 + $0x32] sm:$0xff]
      %v2906 = vld [vmem:[#allocation4 + $0x3a] sm:$0xff]
      %v2907 = vld [vmem:[#allocation4 + $0x42] sm:$0xff]
      %v2908 = vld [vmem:[#allocation4 + $0x4a] sm:$0xff]
      %v2909 = vld [vmem:[#allocation4 + $0x52] sm:$0xff]
      %v2910 = vld [vmem:[#allocation4 + $0x5a] sm:$0xff]
      %v2911 = vld [vmem:[#allocation4 + $0x62] sm:$0xff]
      %v2912 = vld [vmem:[#allocation4 + $0x6a] sm:$0xff]
      %v2913 = vld [vmem:[#allocation4 + $0x72] sm:$0xff]
      %v2914 = vld [vmem:[#allocation4 + $0x7a] sm:$0xff]
      %v2915 = vld [vmem:[#allocation4 + $0x82] sm:$0xff]
      %v2916 = vld [vmem:[#allocation4 + $0x8a] sm:$0xff]
      %v2917 = vld [vmem:[#allocation4 + $0x92] sm:$0xff]
      %v2918 = vpack.c.bf16 %v2902, %v2901
      %v2919 = vpack.c.bf16 %v2904, %v2903
      %v2920 = vpack.c.bf16 %v2906, %v2905
      %v2921 = vpack.c.bf16 %v2908, %v2907
      %v2922 = vpack.c.bf16 %v2910, %v2909
      %v2923 = vpack.c.bf16 %v2912, %v2911
      %v2924 = vpack.c.bf16 %v2914, %v2913
      %v2925 = vpack.c.bf16 %v2916, %v2915
      %v2926 = vpack.c.bf16 %v2917, %v2917
      %v2936 = vunpack.c.l.b16 %v2918
      %v2937 = vunpack.c.h.b16 %v2918
      %v2938 = vunpack.c.l.b16 %v2919
      %v2939 = vunpack.c.h.b16 %v2919
      %v2940 = vunpack.c.l.b16 %v2920
      %v2941 = vunpack.c.h.b16 %v2920
      %v2942 = vunpack.c.l.b16 %v2921
      %v2943 = vunpack.c.h.b16 %v2921
      %v2944 = vunpack.c.l.b16 %v2922
      %v2945 = vunpack.c.h.b16 %v2922
      %v2946 = vunpack.c.l.b16 %v2923
      %v2947 = vunpack.c.h.b16 %v2923
      %v2948 = vunpack.c.l.b16 %v2924
      %v2949 = vunpack.c.h.b16 %v2924
      %v2950 = vunpack.c.l.b16 %v2925
      %v2951 = vunpack.c.h.b16 %v2925
      %v2952 = vunpack.c.l.b16 %v2926
      %v2953 = vpack.c.b16 %v2936, %v2936
      %v2954 = vpack.c.b16 %v2937, %v2937
      %v2955 = vpack.c.b16 %v2938, %v2938
      %v2956 = vpack.c.b16 %v2939, %v2939
      %v2957 = vpack.c.b16 %v2940, %v2940
      %v2958 = vpack.c.b16 %v2941, %v2941
      %v2959 = vpack.c.b16 %v2942, %v2942
      %v2960 = vpack.c.b16 %v2943, %v2943
      %v2961 = vpack.c.b16 %v2944, %v2944
      %v2962 = vpack.c.b16 %v2945, %v2945
      %v2963 = vpack.c.b16 %v2946, %v2946
      %v2964 = vpack.c.b16 %v2947, %v2947
      %v2965 = vpack.c.b16 %v2948, %v2948
      %v2966 = vpack.c.b16 %v2949, %v2949
      %v2967 = vpack.c.b16 %v2950, %v2950
      %v2968 = vpack.c.b16 %v2951, %v2951
      %v2969 = vpack.c.b16 %v2952, %v2952
      %2970 = vrot.lane.b32.xlu0 %v2953, 72
      %v2971 = vpop.permute.xlu0 %2970
      %2972 = vrot.lane.b32.xlu0 %v2954, 72
      %v2973 = vpop.permute.xlu0 %2972
      %2974 = vrot.lane.b32.xlu0 %v2955, 72
      %v2975 = vpop.permute.xlu0 %2974
      %2976 = vrot.lane.b32.xlu0 %v2956, 72
      %v2977 = vpop.permute.xlu0 %2976
      %2978 = vrot.lane.b32.xlu0 %v2957, 72
      %v2979 = vpop.permute.xlu0 %2978
      %2980 = vrot.lane.b32.xlu0 %v2958, 72
      %v2981 = vpop.permute.xlu0 %2980
      %2982 = vrot.lane.b32.xlu0 %v2959, 72
      %v2983 = vpop.permute.xlu0 %2982
      %2984 = vrot.lane.b32.xlu0 %v2960, 72
      %v2985 = vpop.permute.xlu0 %2984
      %2986 = vrot.lane.b32.xlu0 %v2961, 72
      %v2987 = vpop.permute.xlu0 %2986
      %2988 = vrot.lane.b32.xlu0 %v2962, 72
      %v2989 = vpop.permute.xlu0 %2988
      %2990 = vrot.lane.b32.xlu0 %v2963, 72
      %v2991 = vpop.permute.xlu0 %2990
      %2992 = vrot.lane.b32.xlu0 %v2964, 72
      %v2993 = vpop.permute.xlu0 %2992
      %2994 = vrot.lane.b32.xlu0 %v2965, 72
      %v2995 = vpop.permute.xlu0 %2994
      %2996 = vrot.lane.b32.xlu0 %v2966, 72
      %v2997 = vpop.permute.xlu0 %2996
      %2998 = vrot.lane.b32.xlu0 %v2967, 72
      %v2999 = vpop.permute.xlu0 %2998
      %3000 = vrot.lane.b32.xlu0 %v2968, 72
      %v3001 = vpop.permute.xlu0 %3000
      %3002 = vrot.lane.b32.xlu0 %v2969, 72
      %v3003 = vpop.permute.xlu0 %3002
      %vm3021 = vcmask 650816
      %3022 = vst.msk [vmem:[#allocation5] sm:$0xf] %vm3021, %v2971
      %3023 = vst.msk [vmem:[#allocation5 + $0x8] sm:$0xf] %vm3021, %v2973
      %3024 = vst.msk [vmem:[#allocation5 + $0x10] sm:$0xf] %vm3021, %v2975
      %3025 = vst.msk [vmem:[#allocation5 + $0x18] sm:$0xf] %vm3021, %v2977
      %3026 = vst.msk [vmem:[#allocation5 + $0x20] sm:$0xf] %vm3021, %v2979
      %3027 = vst.msk [vmem:[#allocation5 + $0x28] sm:$0xf] %vm3021, %v2981
      %3028 = vst.msk [vmem:[#allocation5 + $0x30] sm:$0xf] %vm3021, %v2983
      %3029 = vst.msk [vmem:[#allocation5 + $0x38] sm:$0xf] %vm3021, %v2985
      %3030 = vst.msk [vmem:[#allocation5 + $0x40] sm:$0xf] %vm3021, %v2987
      %3031 = vst.msk [vmem:[#allocation5 + $0x48] sm:$0xf] %vm3021, %v2989
      %3032 = vst.msk [vmem:[#allocation5 + $0x50] sm:$0xf] %vm3021, %v2991
      %3033 = vst.msk [vmem:[#allocation5 + $0x58] sm:$0xf] %vm3021, %v2993
      %3034 = vst.msk [vmem:[#allocation5 + $0x60] sm:$0xf] %vm3021, %v2995
      %3035 = vst.msk [vmem:[#allocation5 + $0x68] sm:$0xf] %vm3021, %v2997
      %3036 = vst.msk [vmem:[#allocation5 + $0x70] sm:$0xf] %vm3021, %v2999
      %3037 = vst.msk [vmem:[#allocation5 + $0x78] sm:$0xf] %vm3021, %v3001
      %3038 = vst.msk [vmem:[#allocation5 + $0x80] sm:$0xf] %vm3021, %v3003
      %v3039 = vld [vmem:[#allocation4 + $0x1c] sm:$0xff]
      %v3040 = vld [vmem:[#allocation4 + $0x24] sm:$0xff]
      %v3041 = vld [vmem:[#allocation4 + $0x2c] sm:$0xff]
      %v3042 = vld [vmem:[#allocation4 + $0x34] sm:$0xff]
      %v3043 = vld [vmem:[#allocation4 + $0x3c] sm:$0xff]
      %v3044 = vld [vmem:[#allocation4 + $0x44] sm:$0xff]
      %v3045 = vld [vmem:[#allocation4 + $0x4c] sm:$0xff]
      %v3046 = vld [vmem:[#allocation4 + $0x54] sm:$0xff]
      %v3047 = vld [vmem:[#allocation4 + $0x5c] sm:$0xff]
      %v3048 = vld [vmem:[#allocation4 + $0x64] sm:$0xff]
      %v3049 = vld [vmem:[#allocation4 + $0x6c] sm:$0xff]
      %v3050 = vld [vmem:[#allocation4 + $0x74] sm:$0xff]
      %v3051 = vld [vmem:[#allocation4 + $0x7c] sm:$0xff]
      %v3052 = vld [vmem:[#allocation4 + $0x84] sm:$0xff]
      %v3053 = vld [vmem:[#allocation4 + $0x8c] sm:$0xff]
      %v3054 = vld [vmem:[#allocation4 + $0x94] sm:$0xff]
      %v3055 = vld [vmem:[#allocation4 + $0x9c] sm:$0xff]
      %v3056 = vpack.c.bf16 %v3040, %v3039
      %v3057 = vpack.c.bf16 %v3042, %v3041
      %v3058 = vpack.c.bf16 %v3044, %v3043
      %v3059 = vpack.c.bf16 %v3046, %v3045
      %v3060 = vpack.c.bf16 %v3048, %v3047
      %v3061 = vpack.c.bf16 %v3050, %v3049
      %v3062 = vpack.c.bf16 %v3052, %v3051
      %v3063 = vpack.c.bf16 %v3054, %v3053
      %v3064 = vpack.c.bf16 %v3055, %v3055
      %v3074 = vunpack.c.l.b16 %v3056
      %v3075 = vunpack.c.h.b16 %v3056
      %v3076 = vunpack.c.l.b16 %v3057
      %v3077 = vunpack.c.h.b16 %v3057
      %v3078 = vunpack.c.l.b16 %v3058
      %v3079 = vunpack.c.h.b16 %v3058
      %v3080 = vunpack.c.l.b16 %v3059
      %v3081 = vunpack.c.h.b16 %v3059
      %v3082 = vunpack.c.l.b16 %v3060
      %v3083 = vunpack.c.h.b16 %v3060
      %v3084 = vunpack.c.l.b16 %v3061
      %v3085 = vunpack.c.h.b16 %v3061
      %v3086 = vunpack.c.l.b16 %v3062
      %v3087 = vunpack.c.h.b16 %v3062
      %v3088 = vunpack.c.l.b16 %v3063
      %v3089 = vunpack.c.h.b16 %v3063
      %v3090 = vunpack.c.l.b16 %v3064
      %v3091 = vpack.c.b16 %v3074, %v3074
      %v3092 = vpack.c.b16 %v3075, %v3075
      %v3093 = vpack.c.b16 %v3076, %v3076
      %v3094 = vpack.c.b16 %v3077, %v3077
      %v3095 = vpack.c.b16 %v3078, %v3078
      %v3096 = vpack.c.b16 %v3079, %v3079
      %v3097 = vpack.c.b16 %v3080, %v3080
      %v3098 = vpack.c.b16 %v3081, %v3081
      %v3099 = vpack.c.b16 %v3082, %v3082
      %v3100 = vpack.c.b16 %v3083, %v3083
      %v3101 = vpack.c.b16 %v3084, %v3084
      %v3102 = vpack.c.b16 %v3085, %v3085
      %v3103 = vpack.c.b16 %v3086, %v3086
      %v3104 = vpack.c.b16 %v3087, %v3087
      %v3105 = vpack.c.b16 %v3088, %v3088
      %v3106 = vpack.c.b16 %v3089, %v3089
      %v3107 = vpack.c.b16 %v3090, %v3090
      %3108 = vrot.lane.b32.xlu0 %v3091, 80
      %v3109 = vpop.permute.xlu0 %3108
      %3110 = vrot.lane.b32.xlu0 %v3092, 80
      %v3111 = vpop.permute.xlu0 %3110
      %3112 = vrot.lane.b32.xlu0 %v3093, 80
      %v3113 = vpop.permute.xlu0 %3112
      %3114 = vrot.lane.b32.xlu0 %v3094, 80
      %v3115 = vpop.permute.xlu0 %3114
      %3116 = vrot.lane.b32.xlu0 %v3095, 80
      %v3117 = vpop.permute.xlu0 %3116
      %3118 = vrot.lane.b32.xlu0 %v3096, 80
      %v3119 = vpop.permute.xlu0 %3118
      %3120 = vrot.lane.b32.xlu0 %v3097, 80
      %v3121 = vpop.permute.xlu0 %3120
      %3122 = vrot.lane.b32.xlu0 %v3098, 80
      %v3123 = vpop.permute.xlu0 %3122
      %3124 = vrot.lane.b32.xlu0 %v3099, 80
      %v3125 = vpop.permute.xlu0 %3124
      %3126 = vrot.lane.b32.xlu0 %v3100, 80
      %v3127 = vpop.permute.xlu0 %3126
      %3128 = vrot.lane.b32.xlu0 %v3101, 80
      %v3129 = vpop.permute.xlu0 %3128
      %3130 = vrot.lane.b32.xlu0 %v3102, 80
      %v3131 = vpop.permute.xlu0 %3130
      %3132 = vrot.lane.b32.xlu0 %v3103, 80
      %v3133 = vpop.permute.xlu0 %3132
      %3134 = vrot.lane.b32.xlu0 %v3104, 80
      %v3135 = vpop.permute.xlu0 %3134
      %3136 = vrot.lane.b32.xlu0 %v3105, 80
      %v3137 = vpop.permute.xlu0 %3136
      %3138 = vrot.lane.b32.xlu0 %v3106, 80
      %v3139 = vpop.permute.xlu0 %3138
      %3140 = vrot.lane.b32.xlu0 %v3107, 80
      %v3141 = vpop.permute.xlu0 %3140
      %vm3159 = vcmask 716416
      %3160 = vst.msk [vmem:[#allocation5] sm:$0xf] %vm3159, %v3109
      %3161 = vst.msk [vmem:[#allocation5 + $0x8] sm:$0xf] %vm3159, %v3111
      %3162 = vst.msk [vmem:[#allocation5 + $0x10] sm:$0xf] %vm3159, %v3113
      %3163 = vst.msk [vmem:[#allocation5 + $0x18] sm:$0xf] %vm3159, %v3115
      %3164 = vst.msk [vmem:[#allocation5 + $0x20] sm:$0xf] %vm3159, %v3117
      %3165 = vst.msk [vmem:[#allocation5 + $0x28] sm:$0xf] %vm3159, %v3119
      %3166 = vst.msk [vmem:[#allocation5 + $0x30] sm:$0xf] %vm3159, %v3121
      %3167 = vst.msk [vmem:[#allocation5 + $0x38] sm:$0xf] %vm3159, %v3123
      %3168 = vst.msk [vmem:[#allocation5 + $0x40] sm:$0xf] %vm3159, %v3125
      %3169 = vst.msk [vmem:[#allocation5 + $0x48] sm:$0xf] %vm3159, %v3127
      %3170 = vst.msk [vmem:[#allocation5 + $0x50] sm:$0xf] %vm3159, %v3129
      %3171 = vst.msk [vmem:[#allocation5 + $0x58] sm:$0xf] %vm3159, %v3131
      %3172 = vst.msk [vmem:[#allocation5 + $0x60] sm:$0xf] %vm3159, %v3133
      %3173 = vst.msk [vmem:[#allocation5 + $0x68] sm:$0xf] %vm3159, %v3135
      %3174 = vst.msk [vmem:[#allocation5 + $0x70] sm:$0xf] %vm3159, %v3137
      %3175 = vst.msk [vmem:[#allocation5 + $0x78] sm:$0xf] %vm3159, %v3139
      %3176 = vst.msk [vmem:[#allocation5 + $0x80] sm:$0xf] %vm3159, %v3141
      %v3177 = vld [vmem:[#allocation4 + $0x1d] sm:$0xff]
      %v3178 = vld [vmem:[#allocation4 + $0x25] sm:$0xff]
      %v3179 = vld [vmem:[#allocation4 + $0x2d] sm:$0xff]
      %v3180 = vld [vmem:[#allocation4 + $0x35] sm:$0xff]
      %v3181 = vld [vmem:[#allocation4 + $0x3d] sm:$0xff]
      %v3182 = vld [vmem:[#allocation4 + $0x45] sm:$0xff]
      %v3183 = vld [vmem:[#allocation4 + $0x4d] sm:$0xff]
      %v3184 = vld [vmem:[#allocation4 + $0x55] sm:$0xff]
      %v3185 = vld [vmem:[#allocation4 + $0x5d] sm:$0xff]
      %v3186 = vld [vmem:[#allocation4 + $0x65] sm:$0xff]
      %v3187 = vld [vmem:[#allocation4 + $0x6d] sm:$0xff]
      %v3188 = vld [vmem:[#allocation4 + $0x75] sm:$0xff]
      %v3189 = vld [vmem:[#allocation4 + $0x7d] sm:$0xff]
      %v3190 = vld [vmem:[#allocation4 + $0x85] sm:$0xff]
      %v3191 = vld [vmem:[#allocation4 + $0x8d] sm:$0xff]
      %v3192 = vld [vmem:[#allocation4 + $0x95] sm:$0xff]
      %v3193 = vld [vmem:[#allocation4 + $0x9d] sm:$0xff]
      %v3194 = vpack.c.bf16 %v3178, %v3177
      %v3195 = vpack.c.bf16 %v3180, %v3179
      %v3196 = vpack.c.bf16 %v3182, %v3181
      %v3197 = vpack.c.bf16 %v3184, %v3183
      %v3198 = vpack.c.bf16 %v3186, %v3185
      %v3199 = vpack.c.bf16 %v3188, %v3187
      %v3200 = vpack.c.bf16 %v3190, %v3189
      %v3201 = vpack.c.bf16 %v3192, %v3191
      %v3202 = vpack.c.bf16 %v3193, %v3193
      %v3212 = vunpack.c.l.b16 %v3194
      %v3213 = vunpack.c.h.b16 %v3194
      %v3214 = vunpack.c.l.b16 %v3195
      %v3215 = vunpack.c.h.b16 %v3195
      %v3216 = vunpack.c.l.b16 %v3196
      %v3217 = vunpack.c.h.b16 %v3196
      %v3218 = vunpack.c.l.b16 %v3197
      %v3219 = vunpack.c.h.b16 %v3197
      %v3220 = vunpack.c.l.b16 %v3198
      %v3221 = vunpack.c.h.b16 %v3198
      %v3222 = vunpack.c.l.b16 %v3199
      %v3223 = vunpack.c.h.b16 %v3199
      %v3224 = vunpack.c.l.b16 %v3200
      %v3225 = vunpack.c.h.b16 %v3200
      %v3226 = vunpack.c.l.b16 %v3201
      %v3227 = vunpack.c.h.b16 %v3201
      %v3228 = vunpack.c.l.b16 %v3202
      %v3229 = vpack.c.b16 %v3212, %v3212
      %v3230 = vpack.c.b16 %v3213, %v3213
      %v3231 = vpack.c.b16 %v3214, %v3214
      %v3232 = vpack.c.b16 %v3215, %v3215
      %v3233 = vpack.c.b16 %v3216, %v3216
      %v3234 = vpack.c.b16 %v3217, %v3217
      %v3235 = vpack.c.b16 %v3218, %v3218
      %v3236 = vpack.c.b16 %v3219, %v3219
      %v3237 = vpack.c.b16 %v3220, %v3220
      %v3238 = vpack.c.b16 %v3221, %v3221
      %v3239 = vpack.c.b16 %v3222, %v3222
      %v3240 = vpack.c.b16 %v3223, %v3223
      %v3241 = vpack.c.b16 %v3224, %v3224
      %v3242 = vpack.c.b16 %v3225, %v3225
      %v3243 = vpack.c.b16 %v3226, %v3226
      %v3244 = vpack.c.b16 %v3227, %v3227
      %v3245 = vpack.c.b16 %v3228, %v3228
      %3246 = vrot.lane.b32.xlu0 %v3229, 88
      %v3247 = vpop.permute.xlu0 %3246
      %3248 = vrot.lane.b32.xlu0 %v3230, 88
      %v3249 = vpop.permute.xlu0 %3248
      %3250 = vrot.lane.b32.xlu0 %v3231, 88
      %v3251 = vpop.permute.xlu0 %3250
      %3252 = vrot.lane.b32.xlu0 %v3232, 88
      %v3253 = vpop.permute.xlu0 %3252
      %3254 = vrot.lane.b32.xlu0 %v3233, 88
      %v3255 = vpop.permute.xlu0 %3254
      %3256 = vrot.lane.b32.xlu0 %v3234, 88
      %v3257 = vpop.permute.xlu0 %3256
      %3258 = vrot.lane.b32.xlu0 %v3235, 88
      %v3259 = vpop.permute.xlu0 %3258
      %3260 = vrot.lane.b32.xlu0 %v3236, 88
      %v3261 = vpop.permute.xlu0 %3260
      %3262 = vrot.lane.b32.xlu0 %v3237, 88
      %v3263 = vpop.permute.xlu0 %3262
      %3264 = vrot.lane.b32.xlu0 %v3238, 88
      %v3265 = vpop.permute.xlu0 %3264
      %3266 = vrot.lane.b32.xlu0 %v3239, 88
      %v3267 = vpop.permute.xlu0 %3266
      %3268 = vrot.lane.b32.xlu0 %v3240, 88
      %v3269 = vpop.permute.xlu0 %3268
      %3270 = vrot.lane.b32.xlu0 %v3241, 88
      %v3271 = vpop.permute.xlu0 %3270
      %3272 = vrot.lane.b32.xlu0 %v3242, 88
      %v3273 = vpop.permute.xlu0 %3272
      %3274 = vrot.lane.b32.xlu0 %v3243, 88
      %v3275 = vpop.permute.xlu0 %3274
      %3276 = vrot.lane.b32.xlu0 %v3244, 88
      %v3277 = vpop.permute.xlu0 %3276
      %3278 = vrot.lane.b32.xlu0 %v3245, 88
      %v3279 = vpop.permute.xlu0 %3278
      %vm3297 = vcmask 782016
      %3298 = vst.msk [vmem:[#allocation5] sm:$0xf] %vm3297, %v3247
      %3299 = vst.msk [vmem:[#allocation5 + $0x8] sm:$0xf] %vm3297, %v3249
      %3300 = vst.msk [vmem:[#allocation5 + $0x10] sm:$0xf] %vm3297, %v3251
      %3301 = vst.msk [vmem:[#allocation5 + $0x18] sm:$0xf] %vm3297, %v3253
      %3302 = vst.msk [vmem:[#allocation5 + $0x20] sm:$0xf] %vm3297, %v3255
      %3303 = vst.msk [vmem:[#allocation5 + $0x28] sm:$0xf] %vm3297, %v3257
      %3304 = vst.msk [vmem:[#allocation5 + $0x30] sm:$0xf] %vm3297, %v3259
      %3305 = vst.msk [vmem:[#allocation5 + $0x38] sm:$0xf] %vm3297, %v3261
      %3306 = vst.msk [vmem:[#allocation5 + $0x40] sm:$0xf] %vm3297, %v3263
      %3307 = vst.msk [vmem:[#allocation5 + $0x48] sm:$0xf] %vm3297, %v3265
      %3308 = vst.msk [vmem:[#allocation5 + $0x50] sm:$0xf] %vm3297, %v3267
      %3309 = vst.msk [vmem:[#allocation5 + $0x58] sm:$0xf] %vm3297, %v3269
      %3310 = vst.msk [vmem:[#allocation5 + $0x60] sm:$0xf] %vm3297, %v3271
      %3311 = vst.msk [vmem:[#allocation5 + $0x68] sm:$0xf] %vm3297, %v3273
      %3312 = vst.msk [vmem:[#allocation5 + $0x70] sm:$0xf] %vm3297, %v3275
      %3313 = vst.msk [vmem:[#allocation5 + $0x78] sm:$0xf] %vm3297, %v3277
      %3314 = vst.msk [vmem:[#allocation5 + $0x80] sm:$0xf] %vm3297, %v3279
      %v3315 = vld [vmem:[#allocation4 + $0x1e] sm:$0xff]
      %v3316 = vld [vmem:[#allocation4 + $0x26] sm:$0xff]
      %v3317 = vld [vmem:[#allocation4 + $0x2e] sm:$0xff]
      %v3318 = vld [vmem:[#allocation4 + $0x36] sm:$0xff]
      %v3319 = vld [vmem:[#allocation4 + $0x3e] sm:$0xff]
      %v3320 = vld [vmem:[#allocation4 + $0x46] sm:$0xff]
      %v3321 = vld [vmem:[#allocation4 + $0x4e] sm:$0xff]
      %v3322 = vld [vmem:[#allocation4 + $0x56] sm:$0xff]
      %v3323 = vld [vmem:[#allocation4 + $0x5e] sm:$0xff]
      %v3324 = vld [vmem:[#allocation4 + $0x66] sm:$0xff]
      %v3325 = vld [vmem:[#allocation4 + $0x6e] sm:$0xff]
      %v3326 = vld [vmem:[#allocation4 + $0x76] sm:$0xff]
      %v3327 = vld [vmem:[#allocation4 + $0x7e] sm:$0xff]
      %v3328 = vld [vmem:[#allocation4 + $0x86] sm:$0xff]
      %v3329 = vld [vmem:[#allocation4 + $0x8e] sm:$0xff]
      %v3330 = vld [vmem:[#allocation4 + $0x96] sm:$0xff]
      %v3331 = vld [vmem:[#allocation4 + $0x9e] sm:$0xff]
      %v3332 = vpack.c.bf16 %v3316, %v3315
      %v3333 = vpack.c.bf16 %v3318, %v3317
      %v3334 = vpack.c.bf16 %v3320, %v3319
      %v3335 = vpack.c.bf16 %v3322, %v3321
      %v3336 = vpack.c.bf16 %v3324, %v3323
      %v3337 = vpack.c.bf16 %v3326, %v3325
      %v3338 = vpack.c.bf16 %v3328, %v3327
      %v3339 = vpack.c.bf16 %v3330, %v3329
      %v3340 = vpack.c.bf16 %v3331, %v3331
      %v3350 = vunpack.c.l.b16 %v3332
      %v3351 = vunpack.c.h.b16 %v3332
      %v3352 = vunpack.c.l.b16 %v3333
      %v3353 = vunpack.c.h.b16 %v3333
      %v3354 = vunpack.c.l.b16 %v3334
      %v3355 = vunpack.c.h.b16 %v3334
      %v3356 = vunpack.c.l.b16 %v3335
      %v3357 = vunpack.c.h.b16 %v3335
      %v3358 = vunpack.c.l.b16 %v3336
      %v3359 = vunpack.c.h.b16 %v3336
      %v3360 = vunpack.c.l.b16 %v3337
      %v3361 = vunpack.c.h.b16 %v3337
      %v3362 = vunpack.c.l.b16 %v3338
      %v3363 = vunpack.c.h.b16 %v3338
      %v3364 = vunpack.c.l.b16 %v3339
      %v3365 = vunpack.c.h.b16 %v3339
      %v3366 = vunpack.c.l.b16 %v3340
      %v3367 = vpack.c.b16 %v3350, %v3350
      %v3368 = vpack.c.b16 %v3351, %v3351
      %v3369 = vpack.c.b16 %v3352, %v3352
      %v3370 = vpack.c.b16 %v3353, %v3353
      %v3371 = vpack.c.b16 %v3354, %v3354
      %v3372 = vpack.c.b16 %v3355, %v3355
      %v3373 = vpack.c.b16 %v3356, %v3356
      %v3374 = vpack.c.b16 %v3357, %v3357
      %v3375 = vpack.c.b16 %v3358, %v3358
      %v3376 = vpack.c.b16 %v3359, %v3359
      %v3377 = vpack.c.b16 %v3360, %v3360
      %v3378 = vpack.c.b16 %v3361, %v3361
      %v3379 = vpack.c.b16 %v3362, %v3362
      %v3380 = vpack.c.b16 %v3363, %v3363
      %v3381 = vpack.c.b16 %v3364, %v3364
      %v3382 = vpack.c.b16 %v3365, %v3365
      %v3383 = vpack.c.b16 %v3366, %v3366
      %3384 = vrot.lane.b32.xlu0 %v3367, 96
      %v3385 = vpop.permute.xlu0 %3384
      %3386 = vrot.lane.b32.xlu0 %v3368, 96
      %v3387 = vpop.permute.xlu0 %3386
      %3388 = vrot.lane.b32.xlu0 %v3369, 96
      %v3389 = vpop.permute.xlu0 %3388
      %3390 = vrot.lane.b32.xlu0 %v3370, 96
      %v3391 = vpop.permute.xlu0 %3390
      %3392 = vrot.lane.b32.xlu0 %v3371, 96
      %v3393 = vpop.permute.xlu0 %3392
      %3394 = vrot.lane.b32.xlu0 %v3372, 96
      %v3395 = vpop.permute.xlu0 %3394
      %3396 = vrot.lane.b32.xlu0 %v3373, 96
      %v3397 = vpop.permute.xlu0 %3396
      %3398 = vrot.lane.b32.xlu0 %v3374, 96
      %v3399 = vpop.permute.xlu0 %3398
      %3400 = vrot.lane.b32.xlu0 %v3375, 96
      %v3401 = vpop.permute.xlu0 %3400
      %3402 = vrot.lane.b32.xlu0 %v3376, 96
      %v3403 = vpop.permute.xlu0 %3402
      %3404 = vrot.lane.b32.xlu0 %v3377, 96
      %v3405 = vpop.permute.xlu0 %3404
      %3406 = vrot.lane.b32.xlu0 %v3378, 96
      %v3407 = vpop.permute.xlu0 %3406
      %3408 = vrot.lane.b32.xlu0 %v3379, 96
      %v3409 = vpop.permute.xlu0 %3408
      %3410 = vrot.lane.b32.xlu0 %v3380, 96
      %v3411 = vpop.permute.xlu0 %3410
      %3412 = vrot.lane.b32.xlu0 %v3381, 96
      %v3413 = vpop.permute.xlu0 %3412
      %3414 = vrot.lane.b32.xlu0 %v3382, 96
      %v3415 = vpop.permute.xlu0 %3414
      %3416 = vrot.lane.b32.xlu0 %v3383, 96
      %v3417 = vpop.permute.xlu0 %3416
      %vm3435 = vcmask 847616
      %3436 = vst.msk [vmem:[#allocation5] sm:$0xf] %vm3435, %v3385
      %3437 = vst.msk [vmem:[#allocation5 + $0x8] sm:$0xf] %vm3435, %v3387
      %3438 = vst.msk [vmem:[#allocation5 + $0x10] sm:$0xf] %vm3435, %v3389
      %3439 = vst.msk [vmem:[#allocation5 + $0x18] sm:$0xf] %vm3435, %v3391
      %3440 = vst.msk [vmem:[#allocation5 + $0x20] sm:$0xf] %vm3435, %v3393
      %3441 = vst.msk [vmem:[#allocation5 + $0x28] sm:$0xf] %vm3435, %v3395
      %3442 = vst.msk [vmem:[#allocation5 + $0x30] sm:$0xf] %vm3435, %v3397
      %3443 = vst.msk [vmem:[#allocation5 + $0x38] sm:$0xf] %vm3435, %v3399
      %3444 = vst.msk [vmem:[#allocation5 + $0x40] sm:$0xf] %vm3435, %v3401
      %3445 = vst.msk [vmem:[#allocation5 + $0x48] sm:$0xf] %vm3435, %v3403
      %3446 = vst.msk [vmem:[#allocation5 + $0x50] sm:$0xf] %vm3435, %v3405
      %3447 = vst.msk [vmem:[#allocation5 + $0x58] sm:$0xf] %vm3435, %v3407
      %3448 = vst.msk [vmem:[#allocation5 + $0x60] sm:$0xf] %vm3435, %v3409
      %3449 = vst.msk [vmem:[#allocation5 + $0x68] sm:$0xf] %vm3435, %v3411
      %3450 = vst.msk [vmem:[#allocation5 + $0x70] sm:$0xf] %vm3435, %v3413
      %3451 = vst.msk [vmem:[#allocation5 + $0x78] sm:$0xf] %vm3435, %v3415
      %3452 = vst.msk [vmem:[#allocation5 + $0x80] sm:$0xf] %vm3435, %v3417
      %v3453 = vld [vmem:[#allocation4 + $0x1f] sm:$0xff]
      %v3454 = vld [vmem:[#allocation4 + $0x27] sm:$0xff]
      %v3455 = vld [vmem:[#allocation4 + $0x2f] sm:$0xff]
      %v3456 = vld [vmem:[#allocation4 + $0x37] sm:$0xff]
      %v3457 = vld [vmem:[#allocation4 + $0x3f] sm:$0xff]
      %v3458 = vld [vmem:[#allocation4 + $0x47] sm:$0xff]
      %v3459 = vld [vmem:[#allocation4 + $0x4f] sm:$0xff]
      %v3460 = vld [vmem:[#allocation4 + $0x57] sm:$0xff]
      %v3461 = vld [vmem:[#allocation4 + $0x5f] sm:$0xff]
      %v3462 = vld [vmem:[#allocation4 + $0x67] sm:$0xff]
      %v3463 = vld [vmem:[#allocation4 + $0x6f] sm:$0xff]
      %v3464 = vld [vmem:[#allocation4 + $0x77] sm:$0xff]
      %v3465 = vld [vmem:[#allocation4 + $0x7f] sm:$0xff]
      %v3466 = vld [vmem:[#allocation4 + $0x87] sm:$0xff]
      %v3467 = vld [vmem:[#allocation4 + $0x8f] sm:$0xff]
      %v3468 = vld [vmem:[#allocation4 + $0x97] sm:$0xff]
      %v3469 = vld [vmem:[#allocation4 + $0x9f] sm:$0xff]
      %v3470 = vpack.c.bf16 %v3454, %v3453
      %v3471 = vpack.c.bf16 %v3456, %v3455
      %v3472 = vpack.c.bf16 %v3458, %v3457
      %v3473 = vpack.c.bf16 %v3460, %v3459
      %v3474 = vpack.c.bf16 %v3462, %v3461
      %v3475 = vpack.c.bf16 %v3464, %v3463
      %v3476 = vpack.c.bf16 %v3466, %v3465
      %v3477 = vpack.c.bf16 %v3468, %v3467
      %v3478 = vpack.c.bf16 %v3469, %v3469
      %v3488 = vunpack.c.l.b16 %v3470
      %v3489 = vunpack.c.h.b16 %v3470
      %v3490 = vunpack.c.l.b16 %v3471
      %v3491 = vunpack.c.h.b16 %v3471
      %v3492 = vunpack.c.l.b16 %v3472
      %v3493 = vunpack.c.h.b16 %v3472
      %v3494 = vunpack.c.l.b16 %v3473
      %v3495 = vunpack.c.h.b16 %v3473
      %v3496 = vunpack.c.l.b16 %v3474
      %v3497 = vunpack.c.h.b16 %v3474
      %v3498 = vunpack.c.l.b16 %v3475
      %v3499 = vunpack.c.h.b16 %v3475
      %v3500 = vunpack.c.l.b16 %v3476
      %v3501 = vunpack.c.h.b16 %v3476
      %v3502 = vunpack.c.l.b16 %v3477
      %v3503 = vunpack.c.h.b16 %v3477
      %v3504 = vunpack.c.l.b16 %v3478
      %v3505 = vpack.c.b16 %v3488, %v3488
      %v3506 = vpack.c.b16 %v3489, %v3489
      %v3507 = vpack.c.b16 %v3490, %v3490
      %v3508 = vpack.c.b16 %v3491, %v3491
      %v3509 = vpack.c.b16 %v3492, %v3492
      %v3510 = vpack.c.b16 %v3493, %v3493
      %v3511 = vpack.c.b16 %v3494, %v3494
      %v3512 = vpack.c.b16 %v3495, %v3495
      %v3513 = vpack.c.b16 %v3496, %v3496
      %v3514 = vpack.c.b16 %v3497, %v3497
      %v3515 = vpack.c.b16 %v3498, %v3498
      %v3516 = vpack.c.b16 %v3499, %v3499
      %v3517 = vpack.c.b16 %v3500, %v3500
      %v3518 = vpack.c.b16 %v3501, %v3501
      %v3519 = vpack.c.b16 %v3502, %v3502
      %v3520 = vpack.c.b16 %v3503, %v3503
      %v3521 = vpack.c.b16 %v3504, %v3504
      %3522 = vrot.lane.b32.xlu0 %v3505, 104
      %v3523 = vpop.permute.xlu0 %3522
      %3524 = vrot.lane.b32.xlu0 %v3506, 104
      %v3525 = vpop.permute.xlu0 %3524
      %3526 = vrot.lane.b32.xlu0 %v3507, 104
      %v3527 = vpop.permute.xlu0 %3526
      %3528 = vrot.lane.b32.xlu0 %v3508, 104
      %v3529 = vpop.permute.xlu0 %3528
      %3530 = vrot.lane.b32.xlu0 %v3509, 104
      %v3531 = vpop.permute.xlu0 %3530
      %3532 = vrot.lane.b32.xlu0 %v3510, 104
      %v3533 = vpop.permute.xlu0 %3532
      %3534 = vrot.lane.b32.xlu0 %v3511, 104
      %v3535 = vpop.permute.xlu0 %3534
      %3536 = vrot.lane.b32.xlu0 %v3512, 104
      %v3537 = vpop.permute.xlu0 %3536
      %3538 = vrot.lane.b32.xlu0 %v3513, 104
      %v3539 = vpop.permute.xlu0 %3538
      %3540 = vrot.lane.b32.xlu0 %v3514, 104
      %v3541 = vpop.permute.xlu0 %3540
      %3542 = vrot.lane.b32.xlu0 %v3515, 104
      %v3543 = vpop.permute.xlu0 %3542
      %3544 = vrot.lane.b32.xlu0 %v3516, 104
      %v3545 = vpop.permute.xlu0 %3544
      %3546 = vrot.lane.b32.xlu0 %v3517, 104
      %v3547 = vpop.permute.xlu0 %3546
      %3548 = vrot.lane.b32.xlu0 %v3518, 104
      %v3549 = vpop.permute.xlu0 %3548
      %3550 = vrot.lane.b32.xlu0 %v3519, 104
      %v3551 = vpop.permute.xlu0 %3550
      %3552 = vrot.lane.b32.xlu0 %v3520, 104
      %v3553 = vpop.permute.xlu0 %3552
      %3554 = vrot.lane.b32.xlu0 %v3521, 104
      %v3555 = vpop.permute.xlu0 %3554
      %vm3573 = vcmask 913216
      %3574 = vst.msk [vmem:[#allocation5] sm:$0xf] %vm3573, %v3523
      %3575 = vst.msk [vmem:[#allocation5 + $0x8] sm:$0xf] %vm3573, %v3525
      %3576 = vst.msk [vmem:[#allocation5 + $0x10] sm:$0xf] %vm3573, %v3527
      %3577 = vst.msk [vmem:[#allocation5 + $0x18] sm:$0xf] %vm3573, %v3529
      %3578 = vst.msk [vmem:[#allocation5 + $0x20] sm:$0xf] %vm3573, %v3531
      %3579 = vst.msk [vmem:[#allocation5 + $0x28] sm:$0xf] %vm3573, %v3533
      %3580 = vst.msk [vmem:[#allocation5 + $0x30] sm:$0xf] %vm3573, %v3535
      %3581 = vst.msk [vmem:[#allocation5 + $0x38] sm:$0xf] %vm3573, %v3537
      %3582 = vst.msk [vmem:[#allocation5 + $0x40] sm:$0xf] %vm3573, %v3539
      %3583 = vst.msk [vmem:[#allocation5 + $0x48] sm:$0xf] %vm3573, %v3541
      %3584 = vst.msk [vmem:[#allocation5 + $0x50] sm:$0xf] %vm3573, %v3543
      %3585 = vst.msk [vmem:[#allocation5 + $0x58] sm:$0xf] %vm3573, %v3545
      %3586 = vst.msk [vmem:[#allocation5 + $0x60] sm:$0xf] %vm3573, %v3547
      %3587 = vst.msk [vmem:[#allocation5 + $0x68] sm:$0xf] %vm3573, %v3549
      %3588 = vst.msk [vmem:[#allocation5 + $0x70] sm:$0xf] %vm3573, %v3551
      %3589 = vst.msk [vmem:[#allocation5 + $0x78] sm:$0xf] %vm3573, %v3553
      %3590 = vst.msk [vmem:[#allocation5 + $0x80] sm:$0xf] %vm3573, %v3555
      %v3591 = vld [vmem:[#allocation4 + $0x20] sm:$0xff]
      %v3592 = vld [vmem:[#allocation4 + $0x28] sm:$0xff]
      %v3593 = vld [vmem:[#allocation4 + $0x30] sm:$0xff]
      %v3594 = vld [vmem:[#allocation4 + $0x38] sm:$0xff]
      %v3595 = vld [vmem:[#allocation4 + $0x40] sm:$0xff]
      %v3596 = vld [vmem:[#allocation4 + $0x48] sm:$0xff]
      %v3597 = vld [vmem:[#allocation4 + $0x50] sm:$0xff]
      %v3598 = vld [vmem:[#allocation4 + $0x58] sm:$0xff]
      %v3599 = vld [vmem:[#allocation4 + $0x60] sm:$0xff]
      %v3600 = vld [vmem:[#allocation4 + $0x68] sm:$0xff]
      %v3601 = vld [vmem:[#allocation4 + $0x70] sm:$0xff]
      %v3602 = vld [vmem:[#allocation4 + $0x78] sm:$0xff]
      %v3603 = vld [vmem:[#allocation4 + $0x80] sm:$0xff]
      %v3604 = vld [vmem:[#allocation4 + $0x88] sm:$0xff]
      %v3605 = vld [vmem:[#allocation4 + $0x90] sm:$0xff]
      %v3606 = vld [vmem:[#allocation4 + $0x98] sm:$0xff]
      %v3607 = vld [vmem:[#allocation4 + $0xa0] sm:$0xff]
      %v3608 = vpack.c.bf16 %v3592, %v3591
      %v3609 = vpack.c.bf16 %v3594, %v3593
      %v3610 = vpack.c.bf16 %v3596, %v3595
      %v3611 = vpack.c.bf16 %v3598, %v3597
      %v3612 = vpack.c.bf16 %v3600, %v3599
      %v3613 = vpack.c.bf16 %v3602, %v3601
      %v3614 = vpack.c.bf16 %v3604, %v3603
      %v3615 = vpack.c.bf16 %v3606, %v3605
      %v3616 = vpack.c.bf16 %v3607, %v3607
      %v3626 = vunpack.c.l.b16 %v3608
      %v3627 = vunpack.c.h.b16 %v3608
      %v3628 = vunpack.c.l.b16 %v3609
      %v3629 = vunpack.c.h.b16 %v3609
      %v3630 = vunpack.c.l.b16 %v3610
      %v3631 = vunpack.c.h.b16 %v3610
      %v3632 = vunpack.c.l.b16 %v3611
      %v3633 = vunpack.c.h.b16 %v3611
      %v3634 = vunpack.c.l.b16 %v3612
      %v3635 = vunpack.c.h.b16 %v3612
      %v3636 = vunpack.c.l.b16 %v3613
      %v3637 = vunpack.c.h.b16 %v3613
      %v3638 = vunpack.c.l.b16 %v3614
      %v3639 = vunpack.c.h.b16 %v3614
      %v3640 = vunpack.c.l.b16 %v3615
      %v3641 = vunpack.c.h.b16 %v3615
      %v3642 = vunpack.c.l.b16 %v3616
      %v3643 = vpack.c.b16 %v3626, %v3626
      %v3644 = vpack.c.b16 %v3627, %v3627
      %v3645 = vpack.c.b16 %v3628, %v3628
      %v3646 = vpack.c.b16 %v3629, %v3629
      %v3647 = vpack.c.b16 %v3630, %v3630
      %v3648 = vpack.c.b16 %v3631, %v3631
      %v3649 = vpack.c.b16 %v3632, %v3632
      %v3650 = vpack.c.b16 %v3633, %v3633
      %v3651 = vpack.c.b16 %v3634, %v3634
      %v3652 = vpack.c.b16 %v3635, %v3635
      %v3653 = vpack.c.b16 %v3636, %v3636
      %v3654 = vpack.c.b16 %v3637, %v3637
      %v3655 = vpack.c.b16 %v3638, %v3638
      %v3656 = vpack.c.b16 %v3639, %v3639
      %v3657 = vpack.c.b16 %v3640, %v3640
      %v3658 = vpack.c.b16 %v3641, %v3641
      %v3659 = vpack.c.b16 %v3642, %v3642
      %3660 = vrot.lane.b32.xlu0 %v3643, 112
      %v3661 = vpop.permute.xlu0 %3660
      %3662 = vrot.lane.b32.xlu0 %v3644, 112
      %v3663 = vpop.permute.xlu0 %3662
      %3664 = vrot.lane.b32.xlu0 %v3645, 112
      %v3665 = vpop.permute.xlu0 %3664
      %3666 = vrot.lane.b32.xlu0 %v3646, 112
      %v3667 = vpop.permute.xlu0 %3666
      %3668 = vrot.lane.b32.xlu0 %v3647, 112
      %v3669 = vpop.permute.xlu0 %3668
      %3670 = vrot.lane.b32.xlu0 %v3648, 112
      %v3671 = vpop.permute.xlu0 %3670
      %3672 = vrot.lane.b32.xlu0 %v3649, 112
      %v3673 = vpop.permute.xlu0 %3672
      %3674 = vrot.lane.b32.xlu0 %v3650, 112
      %v3675 = vpop.permute.xlu0 %3674
      %3676 = vrot.lane.b32.xlu0 %v3651, 112
      %v3677 = vpop.permute.xlu0 %3676
      %3678 = vrot.lane.b32.xlu0 %v3652, 112
      %v3679 = vpop.permute.xlu0 %3678
      %3680 = vrot.lane.b32.xlu0 %v3653, 112
      %v3681 = vpop.permute.xlu0 %3680
      %3682 = vrot.lane.b32.xlu0 %v3654, 112
      %v3683 = vpop.permute.xlu0 %3682
      %3684 = vrot.lane.b32.xlu0 %v3655, 112
      %v3685 = vpop.permute.xlu0 %3684
      %3686 = vrot.lane.b32.xlu0 %v3656, 112
      %v3687 = vpop.permute.xlu0 %3686
      %3688 = vrot.lane.b32.xlu0 %v3657, 112
      %v3689 = vpop.permute.xlu0 %3688
      %3690 = vrot.lane.b32.xlu0 %v3658, 112
      %v3691 = vpop.permute.xlu0 %3690
      %3692 = vrot.lane.b32.xlu0 %v3659, 112
      %v3693 = vpop.permute.xlu0 %3692
      %vm3711 = vcmask 978816
      %3712 = vst.msk [vmem:[#allocation5] sm:$0xf] %vm3711, %v3661
      %3713 = vst.msk [vmem:[#allocation5 + $0x8] sm:$0xf] %vm3711, %v3663
      %3714 = vst.msk [vmem:[#allocation5 + $0x10] sm:$0xf] %vm3711, %v3665
      %3715 = vst.msk [vmem:[#allocation5 + $0x18] sm:$0xf] %vm3711, %v3667
      %3716 = vst.msk [vmem:[#allocation5 + $0x20] sm:$0xf] %vm3711, %v3669
      %3717 = vst.msk [vmem:[#allocation5 + $0x28] sm:$0xf] %vm3711, %v3671
      %3718 = vst.msk [vmem:[#allocation5 + $0x30] sm:$0xf] %vm3711, %v3673
      %3719 = vst.msk [vmem:[#allocation5 + $0x38] sm:$0xf] %vm3711, %v3675
      %3720 = vst.msk [vmem:[#allocation5 + $0x40] sm:$0xf] %vm3711, %v3677
      %3721 = vst.msk [vmem:[#allocation5 + $0x48] sm:$0xf] %vm3711, %v3679
      %3722 = vst.msk [vmem:[#allocation5 + $0x50] sm:$0xf] %vm3711, %v3681
      %3723 = vst.msk [vmem:[#allocation5 + $0x58] sm:$0xf] %vm3711, %v3683
      %3724 = vst.msk [vmem:[#allocation5 + $0x60] sm:$0xf] %vm3711, %v3685
      %3725 = vst.msk [vmem:[#allocation5 + $0x68] sm:$0xf] %vm3711, %v3687
      %3726 = vst.msk [vmem:[#allocation5 + $0x70] sm:$0xf] %vm3711, %v3689
      %3727 = vst.msk [vmem:[#allocation5 + $0x78] sm:$0xf] %vm3711, %v3691
      %3728 = vst.msk [vmem:[#allocation5 + $0x80] sm:$0xf] %vm3711, %v3693
      %v3729 = vld [vmem:[#allocation4 + $0x2a] sm:$0xff]
      %v3730 = vld [vmem:[#allocation4 + $0x32] sm:$0xff]
      %v3731 = vld [vmem:[#allocation4 + $0x3a] sm:$0xff]
      %v3732 = vld [vmem:[#allocation4 + $0x42] sm:$0xff]
      %v3733 = vld [vmem:[#allocation4 + $0x4a] sm:$0xff]
      %v3734 = vld [vmem:[#allocation4 + $0x52] sm:$0xff]
      %v3735 = vld [vmem:[#allocation4 + $0x5a] sm:$0xff]
      %v3736 = vld [vmem:[#allocation4 + $0x62] sm:$0xff]
      %v3737 = vld [vmem:[#allocation4 + $0x6a] sm:$0xff]
      %v3738 = vld [vmem:[#allocation4 + $0x72] sm:$0xff]
      %v3739 = vld [vmem:[#allocation4 + $0x7a] sm:$0xff]
      %v3740 = vld [vmem:[#allocation4 + $0x82] sm:$0xff]
      %v3741 = vld [vmem:[#allocation4 + $0x8a] sm:$0xff]
      %v3742 = vld [vmem:[#allocation4 + $0x92] sm:$0xff]
      %v3743 = vld [vmem:[#allocation4 + $0x9a] sm:$0xff]
      %v3744 = vld [vmem:[#allocation4 + $0xa2] sm:$0xff]
      %v3745 = vld [vmem:[#allocation4 + $0xaa] sm:$0xff]
      %v3746 = vpack.c.bf16 %v3730, %v3729
      %v3747 = vpack.c.bf16 %v3732, %v3731
      %v3748 = vpack.c.bf16 %v3734, %v3733
      %v3749 = vpack.c.bf16 %v3736, %v3735
      %v3750 = vpack.c.bf16 %v3738, %v3737
      %v3751 = vpack.c.bf16 %v3740, %v3739
      %v3752 = vpack.c.bf16 %v3742, %v3741
      %v3753 = vpack.c.bf16 %v3744, %v3743
      %v3754 = vpack.c.bf16 %v3745, %v3745
      %v3764 = vunpack.c.l.b16 %v3746
      %v3765 = vunpack.c.h.b16 %v3746
      %v3766 = vunpack.c.l.b16 %v3747
      %v3767 = vunpack.c.h.b16 %v3747
      %v3768 = vunpack.c.l.b16 %v3748
      %v3769 = vunpack.c.h.b16 %v3748
      %v3770 = vunpack.c.l.b16 %v3749
      %v3771 = vunpack.c.h.b16 %v3749
      %v3772 = vunpack.c.l.b16 %v3750
      %v3773 = vunpack.c.h.b16 %v3750
      %v3774 = vunpack.c.l.b16 %v3751
      %v3775 = vunpack.c.h.b16 %v3751
      %v3776 = vunpack.c.l.b16 %v3752
      %v3777 = vunpack.c.h.b16 %v3752
      %v3778 = vunpack.c.l.b16 %v3753
      %v3779 = vunpack.c.h.b16 %v3753
      %v3780 = vunpack.c.l.b16 %v3754
      %v3781 = vpack.c.b16 %v3764, %v3764
      %v3782 = vpack.c.b16 %v3765, %v3765
      %v3783 = vpack.c.b16 %v3766, %v3766
      %v3784 = vpack.c.b16 %v3767, %v3767
      %v3785 = vpack.c.b16 %v3768, %v3768
      %v3786 = vpack.c.b16 %v3769, %v3769
      %v3787 = vpack.c.b16 %v3770, %v3770
      %v3788 = vpack.c.b16 %v3771, %v3771
      %v3789 = vpack.c.b16 %v3772, %v3772
      %v3790 = vpack.c.b16 %v3773, %v3773
      %v3791 = vpack.c.b16 %v3774, %v3774
      %v3792 = vpack.c.b16 %v3775, %v3775
      %v3793 = vpack.c.b16 %v3776, %v3776
      %v3794 = vpack.c.b16 %v3777, %v3777
      %v3795 = vpack.c.b16 %v3778, %v3778
      %v3796 = vpack.c.b16 %v3779, %v3779
      %v3797 = vpack.c.b16 %v3780, %v3780
      %3798 = vrot.lane.b32.xlu0 %v3781, 120
      %v3799 = vpop.permute.xlu0 %3798
      %3800 = vrot.lane.b32.xlu0 %v3782, 120
      %v3801 = vpop.permute.xlu0 %3800
      %3802 = vrot.lane.b32.xlu0 %v3783, 120
      %v3803 = vpop.permute.xlu0 %3802
      %3804 = vrot.lane.b32.xlu0 %v3784, 120
      %v3805 = vpop.permute.xlu0 %3804
      %3806 = vrot.lane.b32.xlu0 %v3785, 120
      %v3807 = vpop.permute.xlu0 %3806
      %3808 = vrot.lane.b32.xlu0 %v3786, 120
      %v3809 = vpop.permute.xlu0 %3808
      %3810 = vrot.lane.b32.xlu0 %v3787, 120
      %v3811 = vpop.permute.xlu0 %3810
      %3812 = vrot.lane.b32.xlu0 %v3788, 120
      %v3813 = vpop.permute.xlu0 %3812
      %3814 = vrot.lane.b32.xlu0 %v3789, 120
      %v3815 = vpop.permute.xlu0 %3814
      %3816 = vrot.lane.b32.xlu0 %v3790, 120
      %v3817 = vpop.permute.xlu0 %3816
      %3818 = vrot.lane.b32.xlu0 %v3791, 120
      %v3819 = vpop.permute.xlu0 %3818
      %3820 = vrot.lane.b32.xlu0 %v3792, 120
      %v3821 = vpop.permute.xlu0 %3820
      %3822 = vrot.lane.b32.xlu0 %v3793, 120
      %v3823 = vpop.permute.xlu0 %3822
      %3824 = vrot.lane.b32.xlu0 %v3794, 120
      %v3825 = vpop.permute.xlu0 %3824
      %3826 = vrot.lane.b32.xlu0 %v3795, 120
      %v3827 = vpop.permute.xlu0 %3826
      %3828 = vrot.lane.b32.xlu0 %v3796, 120
      %v3829 = vpop.permute.xlu0 %3828
      %3830 = vrot.lane.b32.xlu0 %v3797, 120
      %v3831 = vpop.permute.xlu0 %3830
      %vm3849 = vcmask 1044416
      %3850 = vst.msk [vmem:[#allocation5] sm:$0xf] %vm3849, %v3799
      %3851 = vst.msk [vmem:[#allocation5 + $0x8] sm:$0xf] %vm3849, %v3801
      %3852 = vst.msk [vmem:[#allocation5 + $0x10] sm:$0xf] %vm3849, %v3803
      %3853 = vst.msk [vmem:[#allocation5 + $0x18] sm:$0xf] %vm3849, %v3805
      %3854 = vst.msk [vmem:[#allocation5 + $0x20] sm:$0xf] %vm3849, %v3807
      %3855 = vst.msk [vmem:[#allocation5 + $0x28] sm:$0xf] %vm3849, %v3809
      %3856 = vst.msk [vmem:[#allocation5 + $0x30] sm:$0xf] %vm3849, %v3811
      %3857 = vst.msk [vmem:[#allocation5 + $0x38] sm:$0xf] %vm3849, %v3813
      %3858 = vst.msk [vmem:[#allocation5 + $0x40] sm:$0xf] %vm3849, %v3815
      %3859 = vst.msk [vmem:[#allocation5 + $0x48] sm:$0xf] %vm3849, %v3817
      %3860 = vst.msk [vmem:[#allocation5 + $0x50] sm:$0xf] %vm3849, %v3819
      %3861 = vst.msk [vmem:[#allocation5 + $0x58] sm:$0xf] %vm3849, %v3821
      %3862 = vst.msk [vmem:[#allocation5 + $0x60] sm:$0xf] %vm3849, %v3823
      %3863 = vst.msk [vmem:[#allocation5 + $0x68] sm:$0xf] %vm3849, %v3825
      %3864 = vst.msk [vmem:[#allocation5 + $0x70] sm:$0xf] %vm3849, %v3827
      %3865 = vst.msk [vmem:[#allocation5 + $0x78] sm:$0xf] %vm3849, %v3829
      %3866 = vst.msk [vmem:[#allocation5 + $0x80] sm:$0xf] %vm3849, %v3831
      %v3867 = vld [vmem:[#allocation4 + $0x2b] sm:$0xff]
      %v3868 = vld [vmem:[#allocation4 + $0x33] sm:$0xff]
      %v3869 = vld [vmem:[#allocation4 + $0x3b] sm:$0xff]
      %v3870 = vld [vmem:[#allocation4 + $0x43] sm:$0xff]
      %v3871 = vld [vmem:[#allocation4 + $0x4b] sm:$0xff]
      %v3872 = vld [vmem:[#allocation4 + $0x53] sm:$0xff]
      %v3873 = vld [vmem:[#allocation4 + $0x5b] sm:$0xff]
      %v3874 = vld [vmem:[#allocation4 + $0x63] sm:$0xff]
      %v3875 = vld [vmem:[#allocation4 + $0x6b] sm:$0xff]
      %v3876 = vld [vmem:[#allocation4 + $0x73] sm:$0xff]
      %v3877 = vld [vmem:[#allocation4 + $0x7b] sm:$0xff]
      %v3878 = vld [vmem:[#allocation4 + $0x83] sm:$0xff]
      %v3879 = vld [vmem:[#allocation4 + $0x8b] sm:$0xff]
      %v3880 = vld [vmem:[#allocation4 + $0x93] sm:$0xff]
      %v3881 = vld [vmem:[#allocation4 + $0x9b] sm:$0xff]
      %v3882 = vld [vmem:[#allocation4 + $0xa3] sm:$0xff]
      %v3883 = vld [vmem:[#allocation4 + $0xab] sm:$0xff]
      %v3884 = vpack.c.bf16 %v3868, %v3867
      %v3885 = vpack.c.bf16 %v3870, %v3869
      %v3886 = vpack.c.bf16 %v3872, %v3871
      %v3887 = vpack.c.bf16 %v3874, %v3873
      %v3888 = vpack.c.bf16 %v3876, %v3875
      %v3889 = vpack.c.bf16 %v3878, %v3877
      %v3890 = vpack.c.bf16 %v3880, %v3879
      %v3891 = vpack.c.bf16 %v3882, %v3881
      %v3892 = vpack.c.bf16 %v3883, %v3883
      %v3902 = vunpack.c.l.b16 %v3884
      %v3903 = vunpack.c.h.b16 %v3884
      %v3904 = vunpack.c.l.b16 %v3885
      %v3905 = vunpack.c.h.b16 %v3885
      %v3906 = vunpack.c.l.b16 %v3886
      %v3907 = vunpack.c.h.b16 %v3886
      %v3908 = vunpack.c.l.b16 %v3887
      %v3909 = vunpack.c.h.b16 %v3887
      %v3910 = vunpack.c.l.b16 %v3888
      %v3911 = vunpack.c.h.b16 %v3888
      %v3912 = vunpack.c.l.b16 %v3889
      %v3913 = vunpack.c.h.b16 %v3889
      %v3914 = vunpack.c.l.b16 %v3890
      %v3915 = vunpack.c.h.b16 %v3890
      %v3916 = vunpack.c.l.b16 %v3891
      %v3917 = vunpack.c.h.b16 %v3891
      %v3918 = vunpack.c.l.b16 %v3892
      %v3919 = vpack.c.b16 %v3902, %v3902
      %v3920 = vpack.c.b16 %v3903, %v3903
      %v3921 = vpack.c.b16 %v3904, %v3904
      %v3922 = vpack.c.b16 %v3905, %v3905
      %v3923 = vpack.c.b16 %v3906, %v3906
      %v3924 = vpack.c.b16 %v3907, %v3907
      %v3925 = vpack.c.b16 %v3908, %v3908
      %v3926 = vpack.c.b16 %v3909, %v3909
      %v3927 = vpack.c.b16 %v3910, %v3910
      %v3928 = vpack.c.b16 %v3911, %v3911
      %v3929 = vpack.c.b16 %v3912, %v3912
      %v3930 = vpack.c.b16 %v3913, %v3913
      %v3931 = vpack.c.b16 %v3914, %v3914
      %v3932 = vpack.c.b16 %v3915, %v3915
      %v3933 = vpack.c.b16 %v3916, %v3916
      %v3934 = vpack.c.b16 %v3917, %v3917
      %v3935 = vpack.c.b16 %v3918, %v3918
      %3953 = vst.msk [vmem:[#allocation5 + $0x4] sm:$0xf] %vm1779, %v3919
      %3954 = vst.msk [vmem:[#allocation5 + $0xc] sm:$0xf] %vm1779, %v3920
      %3955 = vst.msk [vmem:[#allocation5 + $0x14] sm:$0xf] %vm1779, %v3921
      %3956 = vst.msk [vmem:[#allocation5 + $0x1c] sm:$0xf] %vm1779, %v3922
      %3957 = vst.msk [vmem:[#allocation5 + $0x24] sm:$0xf] %vm1779, %v3923
      %3958 = vst.msk [vmem:[#allocation5 + $0x2c] sm:$0xf] %vm1779, %v3924
      %3959 = vst.msk [vmem:[#allocation5 + $0x34] sm:$0xf] %vm1779, %v3925
      %3960 = vst.msk [vmem:[#allocation5 + $0x3c] sm:$0xf] %vm1779, %v3926
      %3961 = vst.msk [vmem:[#allocation5 + $0x44] sm:$0xf] %vm1779, %v3927
      %3962 = vst.msk [vmem:[#allocation5 + $0x4c] sm:$0xf] %vm1779, %v3928
      %3963 = vst.msk [vmem:[#allocation5 + $0x54] sm:$0xf] %vm1779, %v3929
      %3964 = vst.msk [vmem:[#allocation5 + $0x5c] sm:$0xf] %vm1779, %v3930
      %3965 = vst.msk [vmem:[#allocation5 + $0x64] sm:$0xf] %vm1779, %v3931
      %3966 = vst.msk [vmem:[#allocation5 + $0x6c] sm:$0xf] %vm1779, %v3932
      %3967 = vst.msk [vmem:[#allocation5 + $0x74] sm:$0xf] %vm1779, %v3933
      %3968 = vst.msk [vmem:[#allocation5 + $0x7c] sm:$0xf] %vm1779, %v3934
      %3969 = vst.msk [vmem:[#allocation5 + $0x84] sm:$0xf] %vm1779, %v3935
      %v3970 = vld [vmem:[#allocation4 + $0x2c] sm:$0xff]
      %v3971 = vld [vmem:[#allocation4 + $0x34] sm:$0xff]
      %v3972 = vld [vmem:[#allocation4 + $0x3c] sm:$0xff]
      %v3973 = vld [vmem:[#allocation4 + $0x44] sm:$0xff]
      %v3974 = vld [vmem:[#allocation4 + $0x4c] sm:$0xff]
      %v3975 = vld [vmem:[#allocation4 + $0x54] sm:$0xff]
      %v3976 = vld [vmem:[#allocation4 + $0x5c] sm:$0xff]
      %v3977 = vld [vmem:[#allocation4 + $0x64] sm:$0xff]
      %v3978 = vld [vmem:[#allocation4 + $0x6c] sm:$0xff]
      %v3979 = vld [vmem:[#allocation4 + $0x74] sm:$0xff]
      %v3980 = vld [vmem:[#allocation4 + $0x7c] sm:$0xff]
      %v3981 = vld [vmem:[#allocation4 + $0x84] sm:$0xff]
      %v3982 = vld [vmem:[#allocation4 + $0x8c] sm:$0xff]
      %v3983 = vld [vmem:[#allocation4 + $0x94] sm:$0xff]
      %v3984 = vld [vmem:[#allocation4 + $0x9c] sm:$0xff]
      %v3985 = vld [vmem:[#allocation4 + $0xa4] sm:$0xff]
      %v3986 = vld [vmem:[#allocation4 + $0xac] sm:$0xff]
      %v3987 = vpack.c.bf16 %v3971, %v3970
      %v3988 = vpack.c.bf16 %v3973, %v3972
      %v3989 = vpack.c.bf16 %v3975, %v3974
      %v3990 = vpack.c.bf16 %v3977, %v3976
      %v3991 = vpack.c.bf16 %v3979, %v3978
      %v3992 = vpack.c.bf16 %v3981, %v3980
      %v3993 = vpack.c.bf16 %v3983, %v3982
      %v3994 = vpack.c.bf16 %v3985, %v3984
      %v3995 = vpack.c.bf16 %v3986, %v3986
      %v4005 = vunpack.c.l.b16 %v3987
      %v4006 = vunpack.c.h.b16 %v3987
      %v4007 = vunpack.c.l.b16 %v3988
      %v4008 = vunpack.c.h.b16 %v3988
      %v4009 = vunpack.c.l.b16 %v3989
      %v4010 = vunpack.c.h.b16 %v3989
      %v4011 = vunpack.c.l.b16 %v3990
      %v4012 = vunpack.c.h.b16 %v3990
      %v4013 = vunpack.c.l.b16 %v3991
      %v4014 = vunpack.c.h.b16 %v3991
      %v4015 = vunpack.c.l.b16 %v3992
      %v4016 = vunpack.c.h.b16 %v3992
      %v4017 = vunpack.c.l.b16 %v3993
      %v4018 = vunpack.c.h.b16 %v3993
      %v4019 = vunpack.c.l.b16 %v3994
      %v4020 = vunpack.c.h.b16 %v3994
      %v4021 = vunpack.c.l.b16 %v3995
      %v4022 = vpack.c.b16 %v4005, %v4005
      %v4023 = vpack.c.b16 %v4006, %v4006
      %v4024 = vpack.c.b16 %v4007, %v4007
      %v4025 = vpack.c.b16 %v4008, %v4008
      %v4026 = vpack.c.b16 %v4009, %v4009
      %v4027 = vpack.c.b16 %v4010, %v4010
      %v4028 = vpack.c.b16 %v4011, %v4011
      %v4029 = vpack.c.b16 %v4012, %v4012
      %v4030 = vpack.c.b16 %v4013, %v4013
      %v4031 = vpack.c.b16 %v4014, %v4014
      %v4032 = vpack.c.b16 %v4015, %v4015
      %v4033 = vpack.c.b16 %v4016, %v4016
      %v4034 = vpack.c.b16 %v4017, %v4017
      %v4035 = vpack.c.b16 %v4018, %v4018
      %v4036 = vpack.c.b16 %v4019, %v4019
      %v4037 = vpack.c.b16 %v4020, %v4020
      %v4038 = vpack.c.b16 %v4021, %v4021
      %4039 = vrot.lane.b32.xlu0 %v4022, 8
      %v4040 = vpop.permute.xlu0 %4039
      %4041 = vrot.lane.b32.xlu0 %v4023, 8
      %v4042 = vpop.permute.xlu0 %4041
      %4043 = vrot.lane.b32.xlu0 %v4024, 8
      %v4044 = vpop.permute.xlu0 %4043
      %4045 = vrot.lane.b32.xlu0 %v4025, 8
      %v4046 = vpop.permute.xlu0 %4045
      %4047 = vrot.lane.b32.xlu0 %v4026, 8
      %v4048 = vpop.permute.xlu0 %4047
      %4049 = vrot.lane.b32.xlu0 %v4027, 8
      %v4050 = vpop.permute.xlu0 %4049
      %4051 = vrot.lane.b32.xlu0 %v4028, 8
      %v4052 = vpop.permute.xlu0 %4051
      %4053 = vrot.lane.b32.xlu0 %v4029, 8
      %v4054 = vpop.permute.xlu0 %4053
      %4055 = vrot.lane.b32.xlu0 %v4030, 8
      %v4056 = vpop.permute.xlu0 %4055
      %4057 = vrot.lane.b32.xlu0 %v4031, 8
      %v4058 = vpop.permute.xlu0 %4057
      %4059 = vrot.lane.b32.xlu0 %v4032, 8
      %v4060 = vpop.permute.xlu0 %4059
      %4061 = vrot.lane.b32.xlu0 %v4033, 8
      %v4062 = vpop.permute.xlu0 %4061
      %4063 = vrot.lane.b32.xlu0 %v4034, 8
      %v4064 = vpop.permute.xlu0 %4063
      %4065 = vrot.lane.b32.xlu0 %v4035, 8
      %v4066 = vpop.permute.xlu0 %4065
      %4067 = vrot.lane.b32.xlu0 %v4036, 8
      %v4068 = vpop.permute.xlu0 %4067
      %4069 = vrot.lane.b32.xlu0 %v4037, 8
      %v4070 = vpop.permute.xlu0 %4069
      %4071 = vrot.lane.b32.xlu0 %v4038, 8
      %v4072 = vpop.permute.xlu0 %4071
      %4090 = vst.msk [vmem:[#allocation5 + $0x4] sm:$0xf] %vm1917, %v4040
      %4091 = vst.msk [vmem:[#allocation5 + $0xc] sm:$0xf] %vm1917, %v4042
      %4092 = vst.msk [vmem:[#allocation5 + $0x14] sm:$0xf] %vm1917, %v4044
      %4093 = vst.msk [vmem:[#allocation5 + $0x1c] sm:$0xf] %vm1917, %v4046
      %4094 = vst.msk [vmem:[#allocation5 + $0x24] sm:$0xf] %vm1917, %v4048
      %4095 = vst.msk [vmem:[#allocation5 + $0x2c] sm:$0xf] %vm1917, %v4050
      %4096 = vst.msk [vmem:[#allocation5 + $0x34] sm:$0xf] %vm1917, %v4052
      %4097 = vst.msk [vmem:[#allocation5 + $0x3c] sm:$0xf] %vm1917, %v4054
      %4098 = vst.msk [vmem:[#allocation5 + $0x44] sm:$0xf] %vm1917, %v4056
      %4099 = vst.msk [vmem:[#allocation5 + $0x4c] sm:$0xf] %vm1917, %v4058
      %4100 = vst.msk [vmem:[#allocation5 + $0x54] sm:$0xf] %vm1917, %v4060
      %4101 = vst.msk [vmem:[#allocation5 + $0x5c] sm:$0xf] %vm1917, %v4062
      %4102 = vst.msk [vmem:[#allocation5 + $0x64] sm:$0xf] %vm1917, %v4064
      %4103 = vst.msk [vmem:[#allocation5 + $0x6c] sm:$0xf] %vm1917, %v4066
      %4104 = vst.msk [vmem:[#allocation5 + $0x74] sm:$0xf] %vm1917, %v4068
      %4105 = vst.msk [vmem:[#allocation5 + $0x7c] sm:$0xf] %vm1917, %v4070
      %4106 = vst.msk [vmem:[#allocation5 + $0x84] sm:$0xf] %vm1917, %v4072
      %v4107 = vld [vmem:[#allocation4 + $0x2d] sm:$0xff]
      %v4108 = vld [vmem:[#allocation4 + $0x35] sm:$0xff]
      %v4109 = vld [vmem:[#allocation4 + $0x3d] sm:$0xff]
      %v4110 = vld [vmem:[#allocation4 + $0x45] sm:$0xff]
      %v4111 = vld [vmem:[#allocation4 + $0x4d] sm:$0xff]
      %v4112 = vld [vmem:[#allocation4 + $0x55] sm:$0xff]
      %v4113 = vld [vmem:[#allocation4 + $0x5d] sm:$0xff]
      %v4114 = vld [vmem:[#allocation4 + $0x65] sm:$0xff]
      %v4115 = vld [vmem:[#allocation4 + $0x6d] sm:$0xff]
      %v4116 = vld [vmem:[#allocation4 + $0x75] sm:$0xff]
      %v4117 = vld [vmem:[#allocation4 + $0x7d] sm:$0xff]
      %v4118 = vld [vmem:[#allocation4 + $0x85] sm:$0xff]
      %v4119 = vld [vmem:[#allocation4 + $0x8d] sm:$0xff]
      %v4120 = vld [vmem:[#allocation4 + $0x95] sm:$0xff]
      %v4121 = vld [vmem:[#allocation4 + $0x9d] sm:$0xff]
      %v4122 = vld [vmem:[#allocation4 + $0xa5] sm:$0xff]
      %v4123 = vld [vmem:[#allocation4 + $0xad] sm:$0xff]
      %v4124 = vpack.c.bf16 %v4108, %v4107
      %v4125 = vpack.c.bf16 %v4110, %v4109
      %v4126 = vpack.c.bf16 %v4112, %v4111
      %v4127 = vpack.c.bf16 %v4114, %v4113
      %v4128 = vpack.c.bf16 %v4116, %v4115
      %v4129 = vpack.c.bf16 %v4118, %v4117
      %v4130 = vpack.c.bf16 %v4120, %v4119
      %v4131 = vpack.c.bf16 %v4122, %v4121
      %v4132 = vpack.c.bf16 %v4123, %v4123
      %v4142 = vunpack.c.l.b16 %v4124
      %v4143 = vunpack.c.h.b16 %v4124
      %v4144 = vunpack.c.l.b16 %v4125
      %v4145 = vunpack.c.h.b16 %v4125
      %v4146 = vunpack.c.l.b16 %v4126
      %v4147 = vunpack.c.h.b16 %v4126
      %v4148 = vunpack.c.l.b16 %v4127
      %v4149 = vunpack.c.h.b16 %v4127
      %v4150 = vunpack.c.l.b16 %v4128
      %v4151 = vunpack.c.h.b16 %v4128
      %v4152 = vunpack.c.l.b16 %v4129
      %v4153 = vunpack.c.h.b16 %v4129
      %v4154 = vunpack.c.l.b16 %v4130
      %v4155 = vunpack.c.h.b16 %v4130
      %v4156 = vunpack.c.l.b16 %v4131
      %v4157 = vunpack.c.h.b16 %v4131
      %v4158 = vunpack.c.l.b16 %v4132
      %v4159 = vpack.c.b16 %v4142, %v4142
      %v4160 = vpack.c.b16 %v4143, %v4143
      %v4161 = vpack.c.b16 %v4144, %v4144
      %v4162 = vpack.c.b16 %v4145, %v4145
      %v4163 = vpack.c.b16 %v4146, %v4146
      %v4164 = vpack.c.b16 %v4147, %v4147
      %v4165 = vpack.c.b16 %v4148, %v4148
      %v4166 = vpack.c.b16 %v4149, %v4149
      %v4167 = vpack.c.b16 %v4150, %v4150
      %v4168 = vpack.c.b16 %v4151, %v4151
      %v4169 = vpack.c.b16 %v4152, %v4152
      %v4170 = vpack.c.b16 %v4153, %v4153
      %v4171 = vpack.c.b16 %v4154, %v4154
      %v4172 = vpack.c.b16 %v4155, %v4155
      %v4173 = vpack.c.b16 %v4156, %v4156
      %v4174 = vpack.c.b16 %v4157, %v4157
      %v4175 = vpack.c.b16 %v4158, %v4158
      %4176 = vrot.lane.b32.xlu0 %v4159, 16
      %v4177 = vpop.permute.xlu0 %4176
      %4178 = vrot.lane.b32.xlu0 %v4160, 16
      %v4179 = vpop.permute.xlu0 %4178
      %4180 = vrot.lane.b32.xlu0 %v4161, 16
      %v4181 = vpop.permute.xlu0 %4180
      %4182 = vrot.lane.b32.xlu0 %v4162, 16
      %v4183 = vpop.permute.xlu0 %4182
      %4184 = vrot.lane.b32.xlu0 %v4163, 16
      %v4185 = vpop.permute.xlu0 %4184
      %4186 = vrot.lane.b32.xlu0 %v4164, 16
      %v4187 = vpop.permute.xlu0 %4186
      %4188 = vrot.lane.b32.xlu0 %v4165, 16
      %v4189 = vpop.permute.xlu0 %4188
      %4190 = vrot.lane.b32.xlu0 %v4166, 16
      %v4191 = vpop.permute.xlu0 %4190
      %4192 = vrot.lane.b32.xlu0 %v4167, 16
      %v4193 = vpop.permute.xlu0 %4192
      %4194 = vrot.lane.b32.xlu0 %v4168, 16
      %v4195 = vpop.permute.xlu0 %4194
      %4196 = vrot.lane.b32.xlu0 %v4169, 16
      %v4197 = vpop.permute.xlu0 %4196
      %4198 = vrot.lane.b32.xlu0 %v4170, 16
      %v4199 = vpop.permute.xlu0 %4198
      %4200 = vrot.lane.b32.xlu0 %v4171, 16
      %v4201 = vpop.permute.xlu0 %4200
      %4202 = vrot.lane.b32.xlu0 %v4172, 16
      %v4203 = vpop.permute.xlu0 %4202
      %4204 = vrot.lane.b32.xlu0 %v4173, 16
      %v4205 = vpop.permute.xlu0 %4204
      %4206 = vrot.lane.b32.xlu0 %v4174, 16
      %v4207 = vpop.permute.xlu0 %4206
      %4208 = vrot.lane.b32.xlu0 %v4175, 16
      %v4209 = vpop.permute.xlu0 %4208
      %4227 = vst.msk [vmem:[#allocation5 + $0x4] sm:$0xf] %vm2055, %v4177
      %4228 = vst.msk [vmem:[#allocation5 + $0xc] sm:$0xf] %vm2055, %v4179
      %4229 = vst.msk [vmem:[#allocation5 + $0x14] sm:$0xf] %vm2055, %v4181
      %4230 = vst.msk [vmem:[#allocation5 + $0x1c] sm:$0xf] %vm2055, %v4183
      %4231 = vst.msk [vmem:[#allocation5 + $0x24] sm:$0xf] %vm2055, %v4185
      %4232 = vst.msk [vmem:[#allocation5 + $0x2c] sm:$0xf] %vm2055, %v4187
      %4233 = vst.msk [vmem:[#allocation5 + $0x34] sm:$0xf] %vm2055, %v4189
      %4234 = vst.msk [vmem:[#allocation5 + $0x3c] sm:$0xf] %vm2055, %v4191
      %4235 = vst.msk [vmem:[#allocation5 + $0x44] sm:$0xf] %vm2055, %v4193
      %4236 = vst.msk [vmem:[#allocation5 + $0x4c] sm:$0xf] %vm2055, %v4195
      %4237 = vst.msk [vmem:[#allocation5 + $0x54] sm:$0xf] %vm2055, %v4197
      %4238 = vst.msk [vmem:[#allocation5 + $0x5c] sm:$0xf] %vm2055, %v4199
      %4239 = vst.msk [vmem:[#allocation5 + $0x64] sm:$0xf] %vm2055, %v4201
      %4240 = vst.msk [vmem:[#allocation5 + $0x6c] sm:$0xf] %vm2055, %v4203
      %4241 = vst.msk [vmem:[#allocation5 + $0x74] sm:$0xf] %vm2055, %v4205
      %4242 = vst.msk [vmem:[#allocation5 + $0x7c] sm:$0xf] %vm2055, %v4207
      %4243 = vst.msk [vmem:[#allocation5 + $0x84] sm:$0xf] %vm2055, %v4209
      %v4244 = vld [vmem:[#allocation4 + $0x2e] sm:$0xff]
      %v4245 = vld [vmem:[#allocation4 + $0x36] sm:$0xff]
      %v4246 = vld [vmem:[#allocation4 + $0x3e] sm:$0xff]
      %v4247 = vld [vmem:[#allocation4 + $0x46] sm:$0xff]
      %v4248 = vld [vmem:[#allocation4 + $0x4e] sm:$0xff]
      %v4249 = vld [vmem:[#allocation4 + $0x56] sm:$0xff]
      %v4250 = vld [vmem:[#allocation4 + $0x5e] sm:$0xff]
      %v4251 = vld [vmem:[#allocation4 + $0x66] sm:$0xff]
      %v4252 = vld [vmem:[#allocation4 + $0x6e] sm:$0xff]
      %v4253 = vld [vmem:[#allocation4 + $0x76] sm:$0xff]
      %v4254 = vld [vmem:[#allocation4 + $0x7e] sm:$0xff]
      %v4255 = vld [vmem:[#allocation4 + $0x86] sm:$0xff]
      %v4256 = vld [vmem:[#allocation4 + $0x8e] sm:$0xff]
      %v4257 = vld [vmem:[#allocation4 + $0x96] sm:$0xff]
      %v4258 = vld [vmem:[#allocation4 + $0x9e] sm:$0xff]
      %v4259 = vld [vmem:[#allocation4 + $0xa6] sm:$0xff]
      %v4260 = vld [vmem:[#allocation4 + $0xae] sm:$0xff]
      %v4261 = vpack.c.bf16 %v4245, %v4244
      %v4262 = vpack.c.bf16 %v4247, %v4246
      %v4263 = vpack.c.bf16 %v4249, %v4248
      %v4264 = vpack.c.bf16 %v4251, %v4250
      %v4265 = vpack.c.bf16 %v4253, %v4252
      %v4266 = vpack.c.bf16 %v4255, %v4254
      %v4267 = vpack.c.bf16 %v4257, %v4256
      %v4268 = vpack.c.bf16 %v4259, %v4258
      %v4269 = vpack.c.bf16 %v4260, %v4260
      %v4279 = vunpack.c.l.b16 %v4261
      %v4280 = vunpack.c.h.b16 %v4261
      %v4281 = vunpack.c.l.b16 %v4262
      %v4282 = vunpack.c.h.b16 %v4262
      %v4283 = vunpack.c.l.b16 %v4263
      %v4284 = vunpack.c.h.b16 %v4263
      %v4285 = vunpack.c.l.b16 %v4264
      %v4286 = vunpack.c.h.b16 %v4264
      %v4287 = vunpack.c.l.b16 %v4265
      %v4288 = vunpack.c.h.b16 %v4265
      %v4289 = vunpack.c.l.b16 %v4266
      %v4290 = vunpack.c.h.b16 %v4266
      %v4291 = vunpack.c.l.b16 %v4267
      %v4292 = vunpack.c.h.b16 %v4267
      %v4293 = vunpack.c.l.b16 %v4268
      %v4294 = vunpack.c.h.b16 %v4268
      %v4295 = vunpack.c.l.b16 %v4269
      %v4296 = vpack.c.b16 %v4279, %v4279
      %v4297 = vpack.c.b16 %v4280, %v4280
      %v4298 = vpack.c.b16 %v4281, %v4281
      %v4299 = vpack.c.b16 %v4282, %v4282
      %v4300 = vpack.c.b16 %v4283, %v4283
      %v4301 = vpack.c.b16 %v4284, %v4284
      %v4302 = vpack.c.b16 %v4285, %v4285
      %v4303 = vpack.c.b16 %v4286, %v4286
      %v4304 = vpack.c.b16 %v4287, %v4287
      %v4305 = vpack.c.b16 %v4288, %v4288
      %v4306 = vpack.c.b16 %v4289, %v4289
      %v4307 = vpack.c.b16 %v4290, %v4290
      %v4308 = vpack.c.b16 %v4291, %v4291
      %v4309 = vpack.c.b16 %v4292, %v4292
      %v4310 = vpack.c.b16 %v4293, %v4293
      %v4311 = vpack.c.b16 %v4294, %v4294
      %v4312 = vpack.c.b16 %v4295, %v4295
      %4313 = vrot.lane.b32.xlu0 %v4296, 24
      %v4314 = vpop.permute.xlu0 %4313
      %4315 = vrot.lane.b32.xlu0 %v4297, 24
      %v4316 = vpop.permute.xlu0 %4315
      %4317 = vrot.lane.b32.xlu0 %v4298, 24
      %v4318 = vpop.permute.xlu0 %4317
      %4319 = vrot.lane.b32.xlu0 %v4299, 24
      %v4320 = vpop.permute.xlu0 %4319
      %4321 = vrot.lane.b32.xlu0 %v4300, 24
      %v4322 = vpop.permute.xlu0 %4321
      %4323 = vrot.lane.b32.xlu0 %v4301, 24
      %v4324 = vpop.permute.xlu0 %4323
      %4325 = vrot.lane.b32.xlu0 %v4302, 24
      %v4326 = vpop.permute.xlu0 %4325
      %4327 = vrot.lane.b32.xlu0 %v4303, 24
      %v4328 = vpop.permute.xlu0 %4327
      %4329 = vrot.lane.b32.xlu0 %v4304, 24
      %v4330 = vpop.permute.xlu0 %4329
      %4331 = vrot.lane.b32.xlu0 %v4305, 24
      %v4332 = vpop.permute.xlu0 %4331
      %4333 = vrot.lane.b32.xlu0 %v4306, 24
      %v4334 = vpop.permute.xlu0 %4333
      %4335 = vrot.lane.b32.xlu0 %v4307, 24
      %v4336 = vpop.permute.xlu0 %4335
      %4337 = vrot.lane.b32.xlu0 %v4308, 24
      %v4338 = vpop.permute.xlu0 %4337
      %4339 = vrot.lane.b32.xlu0 %v4309, 24
      %v4340 = vpop.permute.xlu0 %4339
      %4341 = vrot.lane.b32.xlu0 %v4310, 24
      %v4342 = vpop.permute.xlu0 %4341
      %4343 = vrot.lane.b32.xlu0 %v4311, 24
      %v4344 = vpop.permute.xlu0 %4343
      %4345 = vrot.lane.b32.xlu0 %v4312, 24
      %v4346 = vpop.permute.xlu0 %4345
      %4364 = vst.msk [vmem:[#allocation5 + $0x4] sm:$0xf] %vm2193, %v4314
      %4365 = vst.msk [vmem:[#allocation5 + $0xc] sm:$0xf] %vm2193, %v4316
      %4366 = vst.msk [vmem:[#allocation5 + $0x14] sm:$0xf] %vm2193, %v4318
      %4367 = vst.msk [vmem:[#allocation5 + $0x1c] sm:$0xf] %vm2193, %v4320
      %4368 = vst.msk [vmem:[#allocation5 + $0x24] sm:$0xf] %vm2193, %v4322
      %4369 = vst.msk [vmem:[#allocation5 + $0x2c] sm:$0xf] %vm2193, %v4324
      %4370 = vst.msk [vmem:[#allocation5 + $0x34] sm:$0xf] %vm2193, %v4326
      %4371 = vst.msk [vmem:[#allocation5 + $0x3c] sm:$0xf] %vm2193, %v4328
      %4372 = vst.msk [vmem:[#allocation5 + $0x44] sm:$0xf] %vm2193, %v4330
      %4373 = vst.msk [vmem:[#allocation5 + $0x4c] sm:$0xf] %vm2193, %v4332
      %4374 = vst.msk [vmem:[#allocation5 + $0x54] sm:$0xf] %vm2193, %v4334
      %4375 = vst.msk [vmem:[#allocation5 + $0x5c] sm:$0xf] %vm2193, %v4336
      %4376 = vst.msk [vmem:[#allocation5 + $0x64] sm:$0xf] %vm2193, %v4338
      %4377 = vst.msk [vmem:[#allocation5 + $0x6c] sm:$0xf] %vm2193, %v4340
      %4378 = vst.msk [vmem:[#allocation5 + $0x74] sm:$0xf] %vm2193, %v4342
      %4379 = vst.msk [vmem:[#allocation5 + $0x7c] sm:$0xf] %vm2193, %v4344
      %4380 = vst.msk [vmem:[#allocation5 + $0x84] sm:$0xf] %vm2193, %v4346
      %v4381 = vld [vmem:[#allocation4 + $0x38] sm:$0xff]
      %v4382 = vld [vmem:[#allocation4 + $0x40] sm:$0xff]
      %v4383 = vld [vmem:[#allocation4 + $0x48] sm:$0xff]
      %v4384 = vld [vmem:[#allocation4 + $0x50] sm:$0xff]
      %v4385 = vld [vmem:[#allocation4 + $0x58] sm:$0xff]
      %v4386 = vld [vmem:[#allocation4 + $0x60] sm:$0xff]
      %v4387 = vld [vmem:[#allocation4 + $0x68] sm:$0xff]
      %v4388 = vld [vmem:[#allocation4 + $0x70] sm:$0xff]
      %v4389 = vld [vmem:[#allocation4 + $0x78] sm:$0xff]
      %v4390 = vld [vmem:[#allocation4 + $0x80] sm:$0xff]
      %v4391 = vld [vmem:[#allocation4 + $0x88] sm:$0xff]
      %v4392 = vld [vmem:[#allocation4 + $0x90] sm:$0xff]
      %v4393 = vld [vmem:[#allocation4 + $0x98] sm:$0xff]
      %v4394 = vld [vmem:[#allocation4 + $0xa0] sm:$0xff]
      %v4395 = vld [vmem:[#allocation4 + $0xa8] sm:$0xff]
      %v4396 = vld [vmem:[#allocation4 + $0xb0] sm:$0xff]
      %v4397 = vld [vmem:[#allocation4 + $0xb8] sm:$0xff]
      %v4398 = vpack.c.bf16 %v4382, %v4381
      %v4399 = vpack.c.bf16 %v4384, %v4383
      %v4400 = vpack.c.bf16 %v4386, %v4385
      %v4401 = vpack.c.bf16 %v4388, %v4387
      %v4402 = vpack.c.bf16 %v4390, %v4389
      %v4403 = vpack.c.bf16 %v4392, %v4391
      %v4404 = vpack.c.bf16 %v4394, %v4393
      %v4405 = vpack.c.bf16 %v4396, %v4395
      %v4406 = vpack.c.bf16 %v4397, %v4397
      %v4416 = vunpack.c.l.b16 %v4398
      %v4417 = vunpack.c.h.b16 %v4398
      %v4418 = vunpack.c.l.b16 %v4399
      %v4419 = vunpack.c.h.b16 %v4399
      %v4420 = vunpack.c.l.b16 %v4400
      %v4421 = vunpack.c.h.b16 %v4400
      %v4422 = vunpack.c.l.b16 %v4401
      %v4423 = vunpack.c.h.b16 %v4401
      %v4424 = vunpack.c.l.b16 %v4402
      %v4425 = vunpack.c.h.b16 %v4402
      %v4426 = vunpack.c.l.b16 %v4403
      %v4427 = vunpack.c.h.b16 %v4403
      %v4428 = vunpack.c.l.b16 %v4404
      %v4429 = vunpack.c.h.b16 %v4404
      %v4430 = vunpack.c.l.b16 %v4405
      %v4431 = vunpack.c.h.b16 %v4405
      %v4432 = vunpack.c.l.b16 %v4406
      %v4433 = vpack.c.b16 %v4416, %v4416
      %v4434 = vpack.c.b16 %v4417, %v4417
      %v4435 = vpack.c.b16 %v4418, %v4418
      %v4436 = vpack.c.b16 %v4419, %v4419
      %v4437 = vpack.c.b16 %v4420, %v4420
      %v4438 = vpack.c.b16 %v4421, %v4421
      %v4439 = vpack.c.b16 %v4422, %v4422
      %v4440 = vpack.c.b16 %v4423, %v4423
      %v4441 = vpack.c.b16 %v4424, %v4424
      %v4442 = vpack.c.b16 %v4425, %v4425
      %v4443 = vpack.c.b16 %v4426, %v4426
      %v4444 = vpack.c.b16 %v4427, %v4427
      %v4445 = vpack.c.b16 %v4428, %v4428
      %v4446 = vpack.c.b16 %v4429, %v4429
      %v4447 = vpack.c.b16 %v4430, %v4430
      %v4448 = vpack.c.b16 %v4431, %v4431
      %v4449 = vpack.c.b16 %v4432, %v4432
      %4450 = vrot.lane.b32.xlu0 %v4433, 32
      %v4451 = vpop.permute.xlu0 %4450
      %4452 = vrot.lane.b32.xlu0 %v4434, 32
      %v4453 = vpop.permute.xlu0 %4452
      %4454 = vrot.lane.b32.xlu0 %v4435, 32
      %v4455 = vpop.permute.xlu0 %4454
      %4456 = vrot.lane.b32.xlu0 %v4436, 32
      %v4457 = vpop.permute.xlu0 %4456
      %4458 = vrot.lane.b32.xlu0 %v4437, 32
      %v4459 = vpop.permute.xlu0 %4458
      %4460 = vrot.lane.b32.xlu0 %v4438, 32
      %v4461 = vpop.permute.xlu0 %4460
      %4462 = vrot.lane.b32.xlu0 %v4439, 32
      %v4463 = vpop.permute.xlu0 %4462
      %4464 = vrot.lane.b32.xlu0 %v4440, 32
      %v4465 = vpop.permute.xlu0 %4464
      %4466 = vrot.lane.b32.xlu0 %v4441, 32
      %v4467 = vpop.permute.xlu0 %4466
      %4468 = vrot.lane.b32.xlu0 %v4442, 32
      %v4469 = vpop.permute.xlu0 %4468
      %4470 = vrot.lane.b32.xlu0 %v4443, 32
      %v4471 = vpop.permute.xlu0 %4470
      %4472 = vrot.lane.b32.xlu0 %v4444, 32
      %v4473 = vpop.permute.xlu0 %4472
      %4474 = vrot.lane.b32.xlu0 %v4445, 32
      %v4475 = vpop.permute.xlu0 %4474
      %4476 = vrot.lane.b32.xlu0 %v4446, 32
      %v4477 = vpop.permute.xlu0 %4476
      %4478 = vrot.lane.b32.xlu0 %v4447, 32
      %v4479 = vpop.permute.xlu0 %4478
      %4480 = vrot.lane.b32.xlu0 %v4448, 32
      %v4481 = vpop.permute.xlu0 %4480
      %4482 = vrot.lane.b32.xlu0 %v4449, 32
      %v4483 = vpop.permute.xlu0 %4482
      %4501 = vst.msk [vmem:[#allocation5 + $0x4] sm:$0xf] %vm2331, %v4451
      %4502 = vst.msk [vmem:[#allocation5 + $0xc] sm:$0xf] %vm2331, %v4453
      %4503 = vst.msk [vmem:[#allocation5 + $0x14] sm:$0xf] %vm2331, %v4455
      %4504 = vst.msk [vmem:[#allocation5 + $0x1c] sm:$0xf] %vm2331, %v4457
      %4505 = vst.msk [vmem:[#allocation5 + $0x24] sm:$0xf] %vm2331, %v4459
      %4506 = vst.msk [vmem:[#allocation5 + $0x2c] sm:$0xf] %vm2331, %v4461
      %4507 = vst.msk [vmem:[#allocation5 + $0x34] sm:$0xf] %vm2331, %v4463
      %4508 = vst.msk [vmem:[#allocation5 + $0x3c] sm:$0xf] %vm2331, %v4465
      %4509 = vst.msk [vmem:[#allocation5 + $0x44] sm:$0xf] %vm2331, %v4467
      %4510 = vst.msk [vmem:[#allocation5 + $0x4c] sm:$0xf] %vm2331, %v4469
      %4511 = vst.msk [vmem:[#allocation5 + $0x54] sm:$0xf] %vm2331, %v4471
      %4512 = vst.msk [vmem:[#allocation5 + $0x5c] sm:$0xf] %vm2331, %v4473
      %4513 = vst.msk [vmem:[#allocation5 + $0x64] sm:$0xf] %vm2331, %v4475
      %4514 = vst.msk [vmem:[#allocation5 + $0x6c] sm:$0xf] %vm2331, %v4477
      %4515 = vst.msk [vmem:[#allocation5 + $0x74] sm:$0xf] %vm2331, %v4479
      %4516 = vst.msk [vmem:[#allocation5 + $0x7c] sm:$0xf] %vm2331, %v4481
      %4517 = vst.msk [vmem:[#allocation5 + $0x84] sm:$0xf] %vm2331, %v4483
      %v4518 = vld [vmem:[#allocation4 + $0x39] sm:$0xff]
      %v4519 = vld [vmem:[#allocation4 + $0x41] sm:$0xff]
      %v4520 = vld [vmem:[#allocation4 + $0x49] sm:$0xff]
      %v4521 = vld [vmem:[#allocation4 + $0x51] sm:$0xff]
      %v4522 = vld [vmem:[#allocation4 + $0x59] sm:$0xff]
      %v4523 = vld [vmem:[#allocation4 + $0x61] sm:$0xff]
      %v4524 = vld [vmem:[#allocation4 + $0x69] sm:$0xff]
      %v4525 = vld [vmem:[#allocation4 + $0x71] sm:$0xff]
      %v4526 = vld [vmem:[#allocation4 + $0x79] sm:$0xff]
      %v4527 = vld [vmem:[#allocation4 + $0x81] sm:$0xff]
      %v4528 = vld [vmem:[#allocation4 + $0x89] sm:$0xff]
      %v4529 = vld [vmem:[#allocation4 + $0x91] sm:$0xff]
      %v4530 = vld [vmem:[#allocation4 + $0x99] sm:$0xff]
      %v4531 = vld [vmem:[#allocation4 + $0xa1] sm:$0xff]
      %v4532 = vld [vmem:[#allocation4 + $0xa9] sm:$0xff]
      %v4533 = vld [vmem:[#allocation4 + $0xb1] sm:$0xff]
      %v4534 = vld [vmem:[#allocation4 + $0xb9] sm:$0xff]
      %v4535 = vpack.c.bf16 %v4519, %v4518
      %v4536 = vpack.c.bf16 %v4521, %v4520
      %v4537 = vpack.c.bf16 %v4523, %v4522
      %v4538 = vpack.c.bf16 %v4525, %v4524
      %v4539 = vpack.c.bf16 %v4527, %v4526
      %v4540 = vpack.c.bf16 %v4529, %v4528
      %v4541 = vpack.c.bf16 %v4531, %v4530
      %v4542 = vpack.c.bf16 %v4533, %v4532
      %v4543 = vpack.c.bf16 %v4534, %v4534
      %v4553 = vunpack.c.l.b16 %v4535
      %v4554 = vunpack.c.h.b16 %v4535
      %v4555 = vunpack.c.l.b16 %v4536
      %v4556 = vunpack.c.h.b16 %v4536
      %v4557 = vunpack.c.l.b16 %v4537
      %v4558 = vunpack.c.h.b16 %v4537
      %v4559 = vunpack.c.l.b16 %v4538
      %v4560 = vunpack.c.h.b16 %v4538
      %v4561 = vunpack.c.l.b16 %v4539
      %v4562 = vunpack.c.h.b16 %v4539
      %v4563 = vunpack.c.l.b16 %v4540
      %v4564 = vunpack.c.h.b16 %v4540
      %v4565 = vunpack.c.l.b16 %v4541
      %v4566 = vunpack.c.h.b16 %v4541
      %v4567 = vunpack.c.l.b16 %v4542
      %v4568 = vunpack.c.h.b16 %v4542
      %v4569 = vunpack.c.l.b16 %v4543
      %v4570 = vpack.c.b16 %v4553, %v4553
      %v4571 = vpack.c.b16 %v4554, %v4554
      %v4572 = vpack.c.b16 %v4555, %v4555
      %v4573 = vpack.c.b16 %v4556, %v4556
      %v4574 = vpack.c.b16 %v4557, %v4557
      %v4575 = vpack.c.b16 %v4558, %v4558
      %v4576 = vpack.c.b16 %v4559, %v4559
      %v4577 = vpack.c.b16 %v4560, %v4560
      %v4578 = vpack.c.b16 %v4561, %v4561
      %v4579 = vpack.c.b16 %v4562, %v4562
      %v4580 = vpack.c.b16 %v4563, %v4563
      %v4581 = vpack.c.b16 %v4564, %v4564
      %v4582 = vpack.c.b16 %v4565, %v4565
      %v4583 = vpack.c.b16 %v4566, %v4566
      %v4584 = vpack.c.b16 %v4567, %v4567
      %v4585 = vpack.c.b16 %v4568, %v4568
      %v4586 = vpack.c.b16 %v4569, %v4569
      %4587 = vrot.lane.b32.xlu0 %v4570, 40
      %v4588 = vpop.permute.xlu0 %4587
      %4589 = vrot.lane.b32.xlu0 %v4571, 40
      %v4590 = vpop.permute.xlu0 %4589
      %4591 = vrot.lane.b32.xlu0 %v4572, 40
      %v4592 = vpop.permute.xlu0 %4591
      %4593 = vrot.lane.b32.xlu0 %v4573, 40
      %v4594 = vpop.permute.xlu0 %4593
      %4595 = vrot.lane.b32.xlu0 %v4574, 40
      %v4596 = vpop.permute.xlu0 %4595
      %4597 = vrot.lane.b32.xlu0 %v4575, 40
      %v4598 = vpop.permute.xlu0 %4597
      %4599 = vrot.lane.b32.xlu0 %v4576, 40
      %v4600 = vpop.permute.xlu0 %4599
      %4601 = vrot.lane.b32.xlu0 %v4577, 40
      %v4602 = vpop.permute.xlu0 %4601
      %4603 = vrot.lane.b32.xlu0 %v4578, 40
      %v4604 = vpop.permute.xlu0 %4603
      %4605 = vrot.lane.b32.xlu0 %v4579, 40
      %v4606 = vpop.permute.xlu0 %4605
      %4607 = vrot.lane.b32.xlu0 %v4580, 40
      %v4608 = vpop.permute.xlu0 %4607
      %4609 = vrot.lane.b32.xlu0 %v4581, 40
      %v4610 = vpop.permute.xlu0 %4609
      %4611 = vrot.lane.b32.xlu0 %v4582, 40
      %v4612 = vpop.permute.xlu0 %4611
      %4613 = vrot.lane.b32.xlu0 %v4583, 40
      %v4614 = vpop.permute.xlu0 %4613
      %4615 = vrot.lane.b32.xlu0 %v4584, 40
      %v4616 = vpop.permute.xlu0 %4615
      %4617 = vrot.lane.b32.xlu0 %v4585, 40
      %v4618 = vpop.permute.xlu0 %4617
      %4619 = vrot.lane.b32.xlu0 %v4586, 40
      %v4620 = vpop.permute.xlu0 %4619
      %4638 = vst.msk [vmem:[#allocation5 + $0x4] sm:$0xf] %vm2469, %v4588
      %4639 = vst.msk [vmem:[#allocation5 + $0xc] sm:$0xf] %vm2469, %v4590
      %4640 = vst.msk [vmem:[#allocation5 + $0x14] sm:$0xf] %vm2469, %v4592
      %4641 = vst.msk [vmem:[#allocation5 + $0x1c] sm:$0xf] %vm2469, %v4594
      %4642 = vst.msk [vmem:[#allocation5 + $0x24] sm:$0xf] %vm2469, %v4596
      %4643 = vst.msk [vmem:[#allocation5 + $0x2c] sm:$0xf] %vm2469, %v4598
      %4644 = vst.msk [vmem:[#allocation5 + $0x34] sm:$0xf] %vm2469, %v4600
      %4645 = vst.msk [vmem:[#allocation5 + $0x3c] sm:$0xf] %vm2469, %v4602
      %4646 = vst.msk [vmem:[#allocation5 + $0x44] sm:$0xf] %vm2469, %v4604
      %4647 = vst.msk [vmem:[#allocation5 + $0x4c] sm:$0xf] %vm2469, %v4606
      %4648 = vst.msk [vmem:[#allocation5 + $0x54] sm:$0xf] %vm2469, %v4608
      %4649 = vst.msk [vmem:[#allocation5 + $0x5c] sm:$0xf] %vm2469, %v4610
      %4650 = vst.msk [vmem:[#allocation5 + $0x64] sm:$0xf] %vm2469, %v4612
      %4651 = vst.msk [vmem:[#allocation5 + $0x6c] sm:$0xf] %vm2469, %v4614
      %4652 = vst.msk [vmem:[#allocation5 + $0x74] sm:$0xf] %vm2469, %v4616
      %4653 = vst.msk [vmem:[#allocation5 + $0x7c] sm:$0xf] %vm2469, %v4618
      %4654 = vst.msk [vmem:[#allocation5 + $0x84] sm:$0xf] %vm2469, %v4620
      %v4655 = vld [vmem:[#allocation4 + $0x3a] sm:$0xff]
      %v4656 = vld [vmem:[#allocation4 + $0x42] sm:$0xff]
      %v4657 = vld [vmem:[#allocation4 + $0x4a] sm:$0xff]
      %v4658 = vld [vmem:[#allocation4 + $0x52] sm:$0xff]
      %v4659 = vld [vmem:[#allocation4 + $0x5a] sm:$0xff]
      %v4660 = vld [vmem:[#allocation4 + $0x62] sm:$0xff]
      %v4661 = vld [vmem:[#allocation4 + $0x6a] sm:$0xff]
      %v4662 = vld [vmem:[#allocation4 + $0x72] sm:$0xff]
      %v4663 = vld [vmem:[#allocation4 + $0x7a] sm:$0xff]
      %v4664 = vld [vmem:[#allocation4 + $0x82] sm:$0xff]
      %v4665 = vld [vmem:[#allocation4 + $0x8a] sm:$0xff]
      %v4666 = vld [vmem:[#allocation4 + $0x92] sm:$0xff]
      %v4667 = vld [vmem:[#allocation4 + $0x9a] sm:$0xff]
      %v4668 = vld [vmem:[#allocation4 + $0xa2] sm:$0xff]
      %v4669 = vld [vmem:[#allocation4 + $0xaa] sm:$0xff]
      %v4670 = vld [vmem:[#allocation4 + $0xb2] sm:$0xff]
      %v4671 = vld [vmem:[#allocation4 + $0xba] sm:$0xff]
      %v4672 = vpack.c.bf16 %v4656, %v4655
      %v4673 = vpack.c.bf16 %v4658, %v4657
      %v4674 = vpack.c.bf16 %v4660, %v4659
      %v4675 = vpack.c.bf16 %v4662, %v4661
      %v4676 = vpack.c.bf16 %v4664, %v4663
      %v4677 = vpack.c.bf16 %v4666, %v4665
      %v4678 = vpack.c.bf16 %v4668, %v4667
      %v4679 = vpack.c.bf16 %v4670, %v4669
      %v4680 = vpack.c.bf16 %v4671, %v4671
      %v4690 = vunpack.c.l.b16 %v4672
      %v4691 = vunpack.c.h.b16 %v4672
      %v4692 = vunpack.c.l.b16 %v4673
      %v4693 = vunpack.c.h.b16 %v4673
      %v4694 = vunpack.c.l.b16 %v4674
      %v4695 = vunpack.c.h.b16 %v4674
      %v4696 = vunpack.c.l.b16 %v4675
      %v4697 = vunpack.c.h.b16 %v4675
      %v4698 = vunpack.c.l.b16 %v4676
      %v4699 = vunpack.c.h.b16 %v4676
      %v4700 = vunpack.c.l.b16 %v4677
      %v4701 = vunpack.c.h.b16 %v4677
      %v4702 = vunpack.c.l.b16 %v4678
      %v4703 = vunpack.c.h.b16 %v4678
      %v4704 = vunpack.c.l.b16 %v4679
      %v4705 = vunpack.c.h.b16 %v4679
      %v4706 = vunpack.c.l.b16 %v4680
      %v4707 = vpack.c.b16 %v4690, %v4690
      %v4708 = vpack.c.b16 %v4691, %v4691
      %v4709 = vpack.c.b16 %v4692, %v4692
      %v4710 = vpack.c.b16 %v4693, %v4693
      %v4711 = vpack.c.b16 %v4694, %v4694
      %v4712 = vpack.c.b16 %v4695, %v4695
      %v4713 = vpack.c.b16 %v4696, %v4696
      %v4714 = vpack.c.b16 %v4697, %v4697
      %v4715 = vpack.c.b16 %v4698, %v4698
      %v4716 = vpack.c.b16 %v4699, %v4699
      %v4717 = vpack.c.b16 %v4700, %v4700
      %v4718 = vpack.c.b16 %v4701, %v4701
      %v4719 = vpack.c.b16 %v4702, %v4702
      %v4720 = vpack.c.b16 %v4703, %v4703
      %v4721 = vpack.c.b16 %v4704, %v4704
      %v4722 = vpack.c.b16 %v4705, %v4705
      %v4723 = vpack.c.b16 %v4706, %v4706
      %4724 = vrot.lane.b32.xlu0 %v4707, 48
      %v4725 = vpop.permute.xlu0 %4724
      %4726 = vrot.lane.b32.xlu0 %v4708, 48
      %v4727 = vpop.permute.xlu0 %4726
      %4728 = vrot.lane.b32.xlu0 %v4709, 48
      %v4729 = vpop.permute.xlu0 %4728
      %4730 = vrot.lane.b32.xlu0 %v4710, 48
      %v4731 = vpop.permute.xlu0 %4730
      %4732 = vrot.lane.b32.xlu0 %v4711, 48
      %v4733 = vpop.permute.xlu0 %4732
      %4734 = vrot.lane.b32.xlu0 %v4712, 48
      %v4735 = vpop.permute.xlu0 %4734
      %4736 = vrot.lane.b32.xlu0 %v4713, 48
      %v4737 = vpop.permute.xlu0 %4736
      %4738 = vrot.lane.b32.xlu0 %v4714, 48
      %v4739 = vpop.permute.xlu0 %4738
      %4740 = vrot.lane.b32.xlu0 %v4715, 48
      %v4741 = vpop.permute.xlu0 %4740
      %4742 = vrot.lane.b32.xlu0 %v4716, 48
      %v4743 = vpop.permute.xlu0 %4742
      %4744 = vrot.lane.b32.xlu0 %v4717, 48
      %v4745 = vpop.permute.xlu0 %4744
      %4746 = vrot.lane.b32.xlu0 %v4718, 48
      %v4747 = vpop.permute.xlu0 %4746
      %4748 = vrot.lane.b32.xlu0 %v4719, 48
      %v4749 = vpop.permute.xlu0 %4748
      %4750 = vrot.lane.b32.xlu0 %v4720, 48
      %v4751 = vpop.permute.xlu0 %4750
      %4752 = vrot.lane.b32.xlu0 %v4721, 48
      %v4753 = vpop.permute.xlu0 %4752
      %4754 = vrot.lane.b32.xlu0 %v4722, 48
      %v4755 = vpop.permute.xlu0 %4754
      %4756 = vrot.lane.b32.xlu0 %v4723, 48
      %v4757 = vpop.permute.xlu0 %4756
      %4775 = vst.msk [vmem:[#allocation5 + $0x4] sm:$0xf] %vm2607, %v4725
      %4776 = vst.msk [vmem:[#allocation5 + $0xc] sm:$0xf] %vm2607, %v4727
      %4777 = vst.msk [vmem:[#allocation5 + $0x14] sm:$0xf] %vm2607, %v4729
      %4778 = vst.msk [vmem:[#allocation5 + $0x1c] sm:$0xf] %vm2607, %v4731
      %4779 = vst.msk [vmem:[#allocation5 + $0x24] sm:$0xf] %vm2607, %v4733
      %4780 = vst.msk [vmem:[#allocation5 + $0x2c] sm:$0xf] %vm2607, %v4735
      %4781 = vst.msk [vmem:[#allocation5 + $0x34] sm:$0xf] %vm2607, %v4737
      %4782 = vst.msk [vmem:[#allocation5 + $0x3c] sm:$0xf] %vm2607, %v4739
      %4783 = vst.msk [vmem:[#allocation5 + $0x44] sm:$0xf] %vm2607, %v4741
      %4784 = vst.msk [vmem:[#allocation5 + $0x4c] sm:$0xf] %vm2607, %v4743
      %4785 = vst.msk [vmem:[#allocation5 + $0x54] sm:$0xf] %vm2607, %v4745
      %4786 = vst.msk [vmem:[#allocation5 + $0x5c] sm:$0xf] %vm2607, %v4747
      %4787 = vst.msk [vmem:[#allocation5 + $0x64] sm:$0xf] %vm2607, %v4749
      %4788 = vst.msk [vmem:[#allocation5 + $0x6c] sm:$0xf] %vm2607, %v4751
      %4789 = vst.msk [vmem:[#allocation5 + $0x74] sm:$0xf] %vm2607, %v4753
      %4790 = vst.msk [vmem:[#allocation5 + $0x7c] sm:$0xf] %vm2607, %v4755
      %4791 = vst.msk [vmem:[#allocation5 + $0x84] sm:$0xf] %vm2607, %v4757
      %v4792 = vld [vmem:[#allocation4 + $0x3b] sm:$0xff]
      %v4793 = vld [vmem:[#allocation4 + $0x43] sm:$0xff]
      %v4794 = vld [vmem:[#allocation4 + $0x4b] sm:$0xff]
      %v4795 = vld [vmem:[#allocation4 + $0x53] sm:$0xff]
      %v4796 = vld [vmem:[#allocation4 + $0x5b] sm:$0xff]
      %v4797 = vld [vmem:[#allocation4 + $0x63] sm:$0xff]
      %v4798 = vld [vmem:[#allocation4 + $0x6b] sm:$0xff]
      %v4799 = vld [vmem:[#allocation4 + $0x73] sm:$0xff]
      %v4800 = vld [vmem:[#allocation4 + $0x7b] sm:$0xff]
      %v4801 = vld [vmem:[#allocation4 + $0x83] sm:$0xff]
      %v4802 = vld [vmem:[#allocation4 + $0x8b] sm:$0xff]
      %v4803 = vld [vmem:[#allocation4 + $0x93] sm:$0xff]
      %v4804 = vld [vmem:[#allocation4 + $0x9b] sm:$0xff]
      %v4805 = vld [vmem:[#allocation4 + $0xa3] sm:$0xff]
      %v4806 = vld [vmem:[#allocation4 + $0xab] sm:$0xff]
      %v4807 = vld [vmem:[#allocation4 + $0xb3] sm:$0xff]
      %v4808 = vld [vmem:[#allocation4 + $0xbb] sm:$0xff]
      %v4809 = vpack.c.bf16 %v4793, %v4792
      %v4810 = vpack.c.bf16 %v4795, %v4794
      %v4811 = vpack.c.bf16 %v4797, %v4796
      %v4812 = vpack.c.bf16 %v4799, %v4798
      %v4813 = vpack.c.bf16 %v4801, %v4800
      %v4814 = vpack.c.bf16 %v4803, %v4802
      %v4815 = vpack.c.bf16 %v4805, %v4804
      %v4816 = vpack.c.bf16 %v4807, %v4806
      %v4817 = vpack.c.bf16 %v4808, %v4808
      %v4827 = vunpack.c.l.b16 %v4809
      %v4828 = vunpack.c.h.b16 %v4809
      %v4829 = vunpack.c.l.b16 %v4810
      %v4830 = vunpack.c.h.b16 %v4810
      %v4831 = vunpack.c.l.b16 %v4811
      %v4832 = vunpack.c.h.b16 %v4811
      %v4833 = vunpack.c.l.b16 %v4812
      %v4834 = vunpack.c.h.b16 %v4812
      %v4835 = vunpack.c.l.b16 %v4813
      %v4836 = vunpack.c.h.b16 %v4813
      %v4837 = vunpack.c.l.b16 %v4814
      %v4838 = vunpack.c.h.b16 %v4814
      %v4839 = vunpack.c.l.b16 %v4815
      %v4840 = vunpack.c.h.b16 %v4815
      %v4841 = vunpack.c.l.b16 %v4816
      %v4842 = vunpack.c.h.b16 %v4816
      %v4843 = vunpack.c.l.b16 %v4817
      %v4844 = vpack.c.b16 %v4827, %v4827
      %v4845 = vpack.c.b16 %v4828, %v4828
      %v4846 = vpack.c.b16 %v4829, %v4829
      %v4847 = vpack.c.b16 %v4830, %v4830
      %v4848 = vpack.c.b16 %v4831, %v4831
      %v4849 = vpack.c.b16 %v4832, %v4832
      %v4850 = vpack.c.b16 %v4833, %v4833
      %v4851 = vpack.c.b16 %v4834, %v4834
      %v4852 = vpack.c.b16 %v4835, %v4835
      %v4853 = vpack.c.b16 %v4836, %v4836
      %v4854 = vpack.c.b16 %v4837, %v4837
      %v4855 = vpack.c.b16 %v4838, %v4838
      %v4856 = vpack.c.b16 %v4839, %v4839
      %v4857 = vpack.c.b16 %v4840, %v4840
      %v4858 = vpack.c.b16 %v4841, %v4841
      %v4859 = vpack.c.b16 %v4842, %v4842
      %v4860 = vpack.c.b16 %v4843, %v4843
      %4861 = vrot.lane.b32.xlu0 %v4844, 56
      %v4862 = vpop.permute.xlu0 %4861
      %4863 = vrot.lane.b32.xlu0 %v4845, 56
      %v4864 = vpop.permute.xlu0 %4863
      %4865 = vrot.lane.b32.xlu0 %v4846, 56
      %v4866 = vpop.permute.xlu0 %4865
      %4867 = vrot.lane.b32.xlu0 %v4847, 56
      %v4868 = vpop.permute.xlu0 %4867
      %4869 = vrot.lane.b32.xlu0 %v4848, 56
      %v4870 = vpop.permute.xlu0 %4869
      %4871 = vrot.lane.b32.xlu0 %v4849, 56
      %v4872 = vpop.permute.xlu0 %4871
      %4873 = vrot.lane.b32.xlu0 %v4850, 56
      %v4874 = vpop.permute.xlu0 %4873
      %4875 = vrot.lane.b32.xlu0 %v4851, 56
      %v4876 = vpop.permute.xlu0 %4875
      %4877 = vrot.lane.b32.xlu0 %v4852, 56
      %v4878 = vpop.permute.xlu0 %4877
      %4879 = vrot.lane.b32.xlu0 %v4853, 56
      %v4880 = vpop.permute.xlu0 %4879
      %4881 = vrot.lane.b32.xlu0 %v4854, 56
      %v4882 = vpop.permute.xlu0 %4881
      %4883 = vrot.lane.b32.xlu0 %v4855, 56
      %v4884 = vpop.permute.xlu0 %4883
      %4885 = vrot.lane.b32.xlu0 %v4856, 56
      %v4886 = vpop.permute.xlu0 %4885
      %4887 = vrot.lane.b32.xlu0 %v4857, 56
      %v4888 = vpop.permute.xlu0 %4887
      %4889 = vrot.lane.b32.xlu0 %v4858, 56
      %v4890 = vpop.permute.xlu0 %4889
      %4891 = vrot.lane.b32.xlu0 %v4859, 56
      %v4892 = vpop.permute.xlu0 %4891
      %4893 = vrot.lane.b32.xlu0 %v4860, 56
      %v4894 = vpop.permute.xlu0 %4893
      %4912 = vst.msk [vmem:[#allocation5 + $0x4] sm:$0xf] %vm2745, %v4862
      %4913 = vst.msk [vmem:[#allocation5 + $0xc] sm:$0xf] %vm2745, %v4864
      %4914 = vst.msk [vmem:[#allocation5 + $0x14] sm:$0xf] %vm2745, %v4866
      %4915 = vst.msk [vmem:[#allocation5 + $0x1c] sm:$0xf] %vm2745, %v4868
      %4916 = vst.msk [vmem:[#allocation5 + $0x24] sm:$0xf] %vm2745, %v4870
      %4917 = vst.msk [vmem:[#allocation5 + $0x2c] sm:$0xf] %vm2745, %v4872
      %4918 = vst.msk [vmem:[#allocation5 + $0x34] sm:$0xf] %vm2745, %v4874
      %4919 = vst.msk [vmem:[#allocation5 + $0x3c] sm:$0xf] %vm2745, %v4876
      %4920 = vst.msk [vmem:[#allocation5 + $0x44] sm:$0xf] %vm2745, %v4878
      %4921 = vst.msk [vmem:[#allocation5 + $0x4c] sm:$0xf] %vm2745, %v4880
      %4922 = vst.msk [vmem:[#allocation5 + $0x54] sm:$0xf] %vm2745, %v4882
      %4923 = vst.msk [vmem:[#allocation5 + $0x5c] sm:$0xf] %vm2745, %v4884
      %4924 = vst.msk [vmem:[#allocation5 + $0x64] sm:$0xf] %vm2745, %v4886
      %4925 = vst.msk [vmem:[#allocation5 + $0x6c] sm:$0xf] %vm2745, %v4888
      %4926 = vst.msk [vmem:[#allocation5 + $0x74] sm:$0xf] %vm2745, %v4890
      %4927 = vst.msk [vmem:[#allocation5 + $0x7c] sm:$0xf] %vm2745, %v4892
      %4928 = vst.msk [vmem:[#allocation5 + $0x84] sm:$0xf] %vm2745, %v4894
      %v4929 = vld [vmem:[#allocation4 + $0x3c] sm:$0xff]
      %v4930 = vld [vmem:[#allocation4 + $0x44] sm:$0xff]
      %v4931 = vld [vmem:[#allocation4 + $0x4c] sm:$0xff]
      %v4932 = vld [vmem:[#allocation4 + $0x54] sm:$0xff]
      %v4933 = vld [vmem:[#allocation4 + $0x5c] sm:$0xff]
      %v4934 = vld [vmem:[#allocation4 + $0x64] sm:$0xff]
      %v4935 = vld [vmem:[#allocation4 + $0x6c] sm:$0xff]
      %v4936 = vld [vmem:[#allocation4 + $0x74] sm:$0xff]
      %v4937 = vld [vmem:[#allocation4 + $0x7c] sm:$0xff]
      %v4938 = vld [vmem:[#allocation4 + $0x84] sm:$0xff]
      %v4939 = vld [vmem:[#allocation4 + $0x8c] sm:$0xff]
      %v4940 = vld [vmem:[#allocation4 + $0x94] sm:$0xff]
      %v4941 = vld [vmem:[#allocation4 + $0x9c] sm:$0xff]
      %v4942 = vld [vmem:[#allocation4 + $0xa4] sm:$0xff]
      %v4943 = vld [vmem:[#allocation4 + $0xac] sm:$0xff]
      %v4944 = vld [vmem:[#allocation4 + $0xb4] sm:$0xff]
      %v4945 = vld [vmem:[#allocation4 + $0xbc] sm:$0xff]
      %v4946 = vpack.c.bf16 %v4930, %v4929
      %v4947 = vpack.c.bf16 %v4932, %v4931
      %v4948 = vpack.c.bf16 %v4934, %v4933
      %v4949 = vpack.c.bf16 %v4936, %v4935
      %v4950 = vpack.c.bf16 %v4938, %v4937
      %v4951 = vpack.c.bf16 %v4940, %v4939
      %v4952 = vpack.c.bf16 %v4942, %v4941
      %v4953 = vpack.c.bf16 %v4944, %v4943
      %v4954 = vpack.c.bf16 %v4945, %v4945
      %v4964 = vunpack.c.l.b16 %v4946
      %v4965 = vunpack.c.h.b16 %v4946
      %v4966 = vunpack.c.l.b16 %v4947
      %v4967 = vunpack.c.h.b16 %v4947
      %v4968 = vunpack.c.l.b16 %v4948
      %v4969 = vunpack.c.h.b16 %v4948
      %v4970 = vunpack.c.l.b16 %v4949
      %v4971 = vunpack.c.h.b16 %v4949
      %v4972 = vunpack.c.l.b16 %v4950
      %v4973 = vunpack.c.h.b16 %v4950
      %v4974 = vunpack.c.l.b16 %v4951
      %v4975 = vunpack.c.h.b16 %v4951
      %v4976 = vunpack.c.l.b16 %v4952
      %v4977 = vunpack.c.h.b16 %v4952
      %v4978 = vunpack.c.l.b16 %v4953
      %v4979 = vunpack.c.h.b16 %v4953
      %v4980 = vunpack.c.l.b16 %v4954
      %v4981 = vpack.c.b16 %v4964, %v4964
      %v4982 = vpack.c.b16 %v4965, %v4965
      %v4983 = vpack.c.b16 %v4966, %v4966
      %v4984 = vpack.c.b16 %v4967, %v4967
      %v4985 = vpack.c.b16 %v4968, %v4968
      %v4986 = vpack.c.b16 %v4969, %v4969
      %v4987 = vpack.c.b16 %v4970, %v4970
      %v4988 = vpack.c.b16 %v4971, %v4971
      %v4989 = vpack.c.b16 %v4972, %v4972
      %v4990 = vpack.c.b16 %v4973, %v4973
      %v4991 = vpack.c.b16 %v4974, %v4974
      %v4992 = vpack.c.b16 %v4975, %v4975
      %v4993 = vpack.c.b16 %v4976, %v4976
      %v4994 = vpack.c.b16 %v4977, %v4977
      %v4995 = vpack.c.b16 %v4978, %v4978
      %v4996 = vpack.c.b16 %v4979, %v4979
      %v4997 = vpack.c.b16 %v4980, %v4980
      %4998 = vrot.lane.b32.xlu0 %v4981, 64
      %v4999 = vpop.permute.xlu0 %4998
      %5000 = vrot.lane.b32.xlu0 %v4982, 64
      %v5001 = vpop.permute.xlu0 %5000
      %5002 = vrot.lane.b32.xlu0 %v4983, 64
      %v5003 = vpop.permute.xlu0 %5002
      %5004 = vrot.lane.b32.xlu0 %v4984, 64
      %v5005 = vpop.permute.xlu0 %5004
      %5006 = vrot.lane.b32.xlu0 %v4985, 64
      %v5007 = vpop.permute.xlu0 %5006
      %5008 = vrot.lane.b32.xlu0 %v4986, 64
      %v5009 = vpop.permute.xlu0 %5008
      %5010 = vrot.lane.b32.xlu0 %v4987, 64
      %v5011 = vpop.permute.xlu0 %5010
      %5012 = vrot.lane.b32.xlu0 %v4988, 64
      %v5013 = vpop.permute.xlu0 %5012
      %5014 = vrot.lane.b32.xlu0 %v4989, 64
      %v5015 = vpop.permute.xlu0 %5014
      %5016 = vrot.lane.b32.xlu0 %v4990, 64
      %v5017 = vpop.permute.xlu0 %5016
      %5018 = vrot.lane.b32.xlu0 %v4991, 64
      %v5019 = vpop.permute.xlu0 %5018
      %5020 = vrot.lane.b32.xlu0 %v4992, 64
      %v5021 = vpop.permute.xlu0 %5020
      %5022 = vrot.lane.b32.xlu0 %v4993, 64
      %v5023 = vpop.permute.xlu0 %5022
      %5024 = vrot.lane.b32.xlu0 %v4994, 64
      %v5025 = vpop.permute.xlu0 %5024
      %5026 = vrot.lane.b32.xlu0 %v4995, 64
      %v5027 = vpop.permute.xlu0 %5026
      %5028 = vrot.lane.b32.xlu0 %v4996, 64
      %v5029 = vpop.permute.xlu0 %5028
      %5030 = vrot.lane.b32.xlu0 %v4997, 64
      %v5031 = vpop.permute.xlu0 %5030
      %5049 = vst.msk [vmem:[#allocation5 + $0x4] sm:$0xf] %vm2883, %v4999
      %5050 = vst.msk [vmem:[#allocation5 + $0xc] sm:$0xf] %vm2883, %v5001
      %5051 = vst.msk [vmem:[#allocation5 + $0x14] sm:$0xf] %vm2883, %v5003
      %5052 = vst.msk [vmem:[#allocation5 + $0x1c] sm:$0xf] %vm2883, %v5005
      %5053 = vst.msk [vmem:[#allocation5 + $0x24] sm:$0xf] %vm2883, %v5007
      %5054 = vst.msk [vmem:[#allocation5 + $0x2c] sm:$0xf] %vm2883, %v5009
      %5055 = vst.msk [vmem:[#allocation5 + $0x34] sm:$0xf] %vm2883, %v5011
      %5056 = vst.msk [vmem:[#allocation5 + $0x3c] sm:$0xf] %vm2883, %v5013
      %5057 = vst.msk [vmem:[#allocation5 + $0x44] sm:$0xf] %vm2883, %v5015
      %5058 = vst.msk [vmem:[#allocation5 + $0x4c] sm:$0xf] %vm2883, %v5017
      %5059 = vst.msk [vmem:[#allocation5 + $0x54] sm:$0xf] %vm2883, %v5019
      %5060 = vst.msk [vmem:[#allocation5 + $0x5c] sm:$0xf] %vm2883, %v5021
      %5061 = vst.msk [vmem:[#allocation5 + $0x64] sm:$0xf] %vm2883, %v5023
      %5062 = vst.msk [vmem:[#allocation5 + $0x6c] sm:$0xf] %vm2883, %v5025
      %5063 = vst.msk [vmem:[#allocation5 + $0x74] sm:$0xf] %vm2883, %v5027
      %5064 = vst.msk [vmem:[#allocation5 + $0x7c] sm:$0xf] %vm2883, %v5029
      %5065 = vst.msk [vmem:[#allocation5 + $0x84] sm:$0xf] %vm2883, %v5031
      %v5066 = vld [vmem:[#allocation5] sm:$0xff]
      %v5067 = vld [vmem:[#allocation5 + $0x8] sm:$0xff]
      %v5068 = vld [vmem:[#allocation5 + $0x10] sm:$0xff]
      %v5069 = vld [vmem:[#allocation5 + $0x18] sm:$0xff]
      %v5070 = vld [vmem:[#allocation5 + $0x20] sm:$0xff]
      %v5071 = vld [vmem:[#allocation5 + $0x28] sm:$0xff]
      %v5072 = vld [vmem:[#allocation5 + $0x30] sm:$0xff]
      %v5073 = vld [vmem:[#allocation5 + $0x38] sm:$0xff]
      %v5074 = vld [vmem:[#allocation5 + $0x40] sm:$0xff]
      %v5075 = vld [vmem:[#allocation5 + $0x48] sm:$0xff]
      %v5076 = vld [vmem:[#allocation5 + $0x50] sm:$0xff]
      %v5077 = vld [vmem:[#allocation5 + $0x58] sm:$0xff]
      %v5078 = vld [vmem:[#allocation5 + $0x60] sm:$0xff]
      %v5079 = vld [vmem:[#allocation5 + $0x68] sm:$0xff]
      %v5080 = vld [vmem:[#allocation5 + $0x70] sm:$0xff]
      %v5081 = vld [vmem:[#allocation5 + $0x78] sm:$0xff]
      %v5082 = vld [vmem:[#allocation5 + $0x80] sm:$0xff]
      %v5083 = vld [vmem:[%s3] sm:$0xf]
      %v5084 = vld [vmem:[%s3 + $0x4] sm:$0xf]
      %v5085 = vld [vmem:[%s3 + $0x8] sm:$0xf]
      %v5086 = vld [vmem:[%s3 + $0xc] sm:$0xf]
      %v5087 = vld [vmem:[%s3 + $0x10] sm:$0xf]
      %v5088 = vld [vmem:[%s3 + $0x14] sm:$0xf]
      %v5089 = vld [vmem:[%s3 + $0x18] sm:$0xf]
      %v5090 = vld [vmem:[%s3 + $0x1c] sm:$0xf]
      %v5091 = vld [vmem:[%s3 + $0x20] sm:$0xf]
      %v5092 = vld [vmem:[%s3 + $0x24] sm:$0xf]
      %v5093 = vld [vmem:[%s3 + $0x28] sm:$0xf]
      %v5094 = vld [vmem:[%s3 + $0x2c] sm:$0xf]
      %v5095 = vld [vmem:[%s3 + $0x30] sm:$0xf]
      %v5096 = vld [vmem:[%s3 + $0x34] sm:$0xf]
      %v5097 = vld [vmem:[%s3 + $0x38] sm:$0xf]
      %v5098 = vld [vmem:[%s3 + $0x3c] sm:$0xf]
      %v5099 = vld [vmem:[%s3 + $0x40] sm:$0xf]
      %v5100 = vld [vmem:[%s3 + $0x44] sm:$0xf]
      %v5101 = vld [vmem:[%s3 + $0x48] sm:$0xf]
      %v5102 = vld [vmem:[%s3 + $0x4c] sm:$0xf]
      %v5103 = vld [vmem:[%s3 + $0x50] sm:$0xf]
      %v5104 = vld [vmem:[%s3 + $0x54] sm:$0xf]
      %v5105 = vld [vmem:[%s3 + $0x58] sm:$0xf]
      %v5106 = vld [vmem:[%s3 + $0x5c] sm:$0xf]
      %v5107 = vld [vmem:[%s3 + $0x60] sm:$0xf]
      %v5108 = vld [vmem:[%s3 + $0x64] sm:$0xf]
      %v5109 = vld [vmem:[%s3 + $0x68] sm:$0xf]
      %v5110 = vld [vmem:[%s3 + $0x6c] sm:$0xf]
      %v5111 = vld [vmem:[%s3 + $0x70] sm:$0xf]
      %v5112 = vld [vmem:[%s3 + $0x74] sm:$0xf]
      %v5113 = vld [vmem:[%s3 + $0x78] sm:$0xf]
      %v5114 = vld [vmem:[%s3 + $0x7c] sm:$0xf]
      %v5132 = vunpack.c.l.b16 %v5066
      %v5133 = vunpack.c.h.b16 %v5066
      %v5134 = vunpack.c.l.b16 %v5067
      %v5135 = vunpack.c.h.b16 %v5067
      %v5136 = vunpack.c.l.b16 %v5068
      %v5137 = vunpack.c.h.b16 %v5068
      %v5138 = vunpack.c.l.b16 %v5069
      %v5139 = vunpack.c.h.b16 %v5069
      %v5140 = vunpack.c.l.b16 %v5070
      %v5141 = vunpack.c.h.b16 %v5070
      %v5142 = vunpack.c.l.b16 %v5071
      %v5143 = vunpack.c.h.b16 %v5071
      %v5144 = vunpack.c.l.b16 %v5072
      %v5145 = vunpack.c.h.b16 %v5072
      %v5146 = vunpack.c.l.b16 %v5073
      %v5147 = vunpack.c.h.b16 %v5073
      %v5148 = vunpack.c.l.b16 %v5074
      %v5149 = vunpack.c.h.b16 %v5074
      %v5150 = vunpack.c.l.b16 %v5075
      %v5151 = vunpack.c.h.b16 %v5075
      %v5152 = vunpack.c.l.b16 %v5076
      %v5153 = vunpack.c.h.b16 %v5076
      %v5154 = vunpack.c.l.b16 %v5077
      %v5155 = vunpack.c.h.b16 %v5077
      %v5156 = vunpack.c.l.b16 %v5078
      %v5157 = vunpack.c.h.b16 %v5078
      %v5158 = vunpack.c.l.b16 %v5079
      %v5159 = vunpack.c.h.b16 %v5079
      %v5160 = vunpack.c.l.b16 %v5080
      %v5161 = vunpack.c.h.b16 %v5080
      %v5162 = vunpack.c.l.b16 %v5081
      %v5163 = vunpack.c.h.b16 %v5081
      %v5164 = vunpack.c.l.b16 %v5082
      %v5165 = vunpack.c.h.b16 %v5082
      %v5166 = vpack.c.b16 %v5134, %v5132
      %v5167 = vpack.c.b16 %v5135, %v5133
      %v5168 = vpack.c.b16 %v5138, %v5136
      %v5169 = vpack.c.b16 %v5139, %v5137
      %v5170 = vpack.c.b16 %v5142, %v5140
      %v5171 = vpack.c.b16 %v5143, %v5141
      %v5172 = vpack.c.b16 %v5146, %v5144
      %v5173 = vpack.c.b16 %v5147, %v5145
      %v5174 = vpack.c.b16 %v5150, %v5148
      %v5175 = vpack.c.b16 %v5151, %v5149
      %v5176 = vpack.c.b16 %v5154, %v5152
      %v5177 = vpack.c.b16 %v5155, %v5153
      %v5178 = vpack.c.b16 %v5158, %v5156
      %v5179 = vpack.c.b16 %v5159, %v5157
      %v5180 = vpack.c.b16 %v5162, %v5160
      %v5181 = vpack.c.b16 %v5163, %v5161
      %v5182 = vpack.c.b16 %v5164, %v5164
      %v5183 = vpack.c.b16 %v5165, %v5165
      %v5234 = vunpack.c.l.b16 %v5083
      %v5235 = vunpack.c.l.b16 %v5084
      %v5236 = vunpack.c.l.b16 %v5085
      %v5237 = vunpack.c.l.b16 %v5086
      %v5238 = vunpack.c.l.b16 %v5087
      %v5239 = vunpack.c.l.b16 %v5088
      %v5240 = vunpack.c.l.b16 %v5089
      %v5241 = vunpack.c.l.b16 %v5090
      %v5242 = vunpack.c.l.b16 %v5091
      %v5243 = vunpack.c.l.b16 %v5092
      %v5244 = vunpack.c.l.b16 %v5093
      %v5245 = vunpack.c.l.b16 %v5094
      %v5246 = vunpack.c.l.b16 %v5095
      %v5247 = vunpack.c.l.b16 %v5096
      %v5248 = vunpack.c.l.b16 %v5097
      %v5249 = vunpack.c.l.b16 %v5098
      %v5250 = vunpack.c.l.b16 %v5099
      %v5251 = vunpack.c.l.b16 %v5100
      %v5252 = vunpack.c.l.b16 %v5101
      %v5253 = vunpack.c.l.b16 %v5102
      %v5254 = vunpack.c.l.b16 %v5103
      %v5255 = vunpack.c.l.b16 %v5104
      %v5256 = vunpack.c.l.b16 %v5105
      %v5257 = vunpack.c.l.b16 %v5106
      %v5258 = vunpack.c.l.b16 %v5107
      %v5259 = vunpack.c.l.b16 %v5108
      %v5260 = vunpack.c.l.b16 %v5109
      %v5261 = vunpack.c.l.b16 %v5110
      %v5262 = vunpack.c.l.b16 %v5111
      %v5263 = vunpack.c.l.b16 %v5112
      %v5264 = vunpack.c.l.b16 %v5113
      %v5265 = vunpack.c.l.b16 %v5114
      %v5266 = vpack.c.b16 %v5235, %v5234
      %v5267 = vpack.c.b16 %v5237, %v5236
      %v5268 = vpack.c.b16 %v5239, %v5238
      %v5269 = vpack.c.b16 %v5241, %v5240
      %v5270 = vpack.c.b16 %v5243, %v5242
      %v5271 = vpack.c.b16 %v5245, %v5244
      %v5272 = vpack.c.b16 %v5247, %v5246
      %v5273 = vpack.c.b16 %v5249, %v5248
      %v5274 = vpack.c.b16 %v5251, %v5250
      %v5275 = vpack.c.b16 %v5253, %v5252
      %v5276 = vpack.c.b16 %v5255, %v5254
      %v5277 = vpack.c.b16 %v5257, %v5256
      %v5278 = vpack.c.b16 %v5259, %v5258
      %v5279 = vpack.c.b16 %v5261, %v5260
      %v5280 = vpack.c.b16 %v5263, %v5262
      %v5281 = vpack.c.b16 %v5265, %v5264
      %5298 = vmatprep.subr.bf16.mxu0 0
      %5299 = vmatpush1.bf16.msra.mxu0 %v5266
      %5300 = vmatprep.subr.bf16.mxu0 0
      %5301 = vmatpush1.bf16.msra.mxu0 %v5267
      %5302 = vmatprep.subr.bf16.mxu0 0
      %5303 = vmatpush1.bf16.msra.mxu0 %v5268
      %5304 = vmatprep.subr.bf16.mxu0 0
      %5305 = vmatpush1.bf16.msra.mxu0 %v5269
      %5306 = vmatprep.subr.bf16.mxu0 0
      %5307 = vmatpush1.bf16.msra.mxu0 %v5270
      %5308 = vmatprep.subr.bf16.mxu0 0
      %5309 = vmatpush1.bf16.msra.mxu0 %v5271
      %5310 = vmatprep.subr.bf16.mxu0 0
      %5311 = vmatpush1.bf16.msra.mxu0 %v5272
      %5312 = vmatprep.subr.bf16.mxu0 0
      %5313 = vmatpush1.bf16.msra.mxu0 %v5273
      %5314 = vmatprep.subr.bf16.mxu0 0
      %5315 = vmatpush1.bf16.msra.mxu0 %v5274
      %5316 = vmatprep.subr.bf16.mxu0 0
      %5317 = vmatpush1.bf16.msra.mxu0 %v5275
      %5318 = vmatprep.subr.bf16.mxu0 0
      %5319 = vmatpush1.bf16.msra.mxu0 %v5276
      %5320 = vmatprep.subr.bf16.mxu0 0
      %5321 = vmatpush1.bf16.msra.mxu0 %v5277
      %5322 = vmatprep.subr.bf16.mxu0 0
      %5323 = vmatpush1.bf16.msra.mxu0 %v5278
      %5324 = vmatprep.subr.bf16.mxu0 0
      %5325 = vmatpush1.bf16.msra.mxu0 %v5279
      %5326 = vmatprep.subr.bf16.mxu0 0
      %5327 = vmatpush1.bf16.msra.mxu0 %v5280
      %5328 = vmatprep.subr.bf16.mxu0 0
      %5329 = vmatpush1.bf16.msra.mxu0 %v5281
      %5330 = vmatprep.mubr.bf16.mxu0 %v5167
      %5331 = vmatmul.mubr.bf16.gmra.mrb[0].mxu0 %v5166
      %v5332 = vpop.f32.mrb[0].mxu0
      %v5333 = vadd.f32 0.0, %v5332
      %v5334 = vpop.f32.mrb[0].mxu0
      %v5335 = vpop.f32.mrb[0].mxu0
      %v5336 = vadd.f32 0.0, %v5335
      %v5337 = vpop.f32.mrb[0].mxu0
      %5338 = vmatprep.mubr.bf16.mxu0 %v5169
      %5339 = vmatmul.mubr.bf16.gmra.mrb[0].mxu0 %v5168
      %v5340 = vpop.f32.mrb[0].mxu0
      %v5341 = vadd.f32 0.0, %v5340
      %v5342 = vpop.f32.mrb[0].mxu0
      %v5343 = vpop.f32.mrb[0].mxu0
      %v5344 = vadd.f32 0.0, %v5343
      %v5345 = vpop.f32.mrb[0].mxu0
      %5346 = vmatprep.mubr.bf16.mxu0 %v5171
      %5347 = vmatmul.mubr.bf16.gmra.mrb[0].mxu0 %v5170
      %v5348 = vpop.f32.mrb[0].mxu0
      %v5349 = vadd.f32 0.0, %v5348
      %v5350 = vpop.f32.mrb[0].mxu0
      %v5351 = vpop.f32.mrb[0].mxu0
      %v5352 = vadd.f32 0.0, %v5351
      %v5353 = vpop.f32.mrb[0].mxu0
      %5354 = vmatprep.mubr.bf16.mxu0 %v5173
      %5355 = vmatmul.mubr.bf16.gmra.mrb[0].mxu0 %v5172
      %v5356 = vpop.f32.mrb[0].mxu0
      %v5357 = vadd.f32 0.0, %v5356
      %v5358 = vpop.f32.mrb[0].mxu0
      %v5359 = vpop.f32.mrb[0].mxu0
      %v5360 = vadd.f32 0.0, %v5359
      %v5361 = vpop.f32.mrb[0].mxu0
      %5362 = vmatprep.mubr.bf16.mxu0 %v5175
      %5363 = vmatmul.mubr.bf16.gmra.mrb[0].mxu0 %v5174
      %v5364 = vpop.f32.mrb[0].mxu0
      %v5365 = vadd.f32 0.0, %v5364
      %v5366 = vpop.f32.mrb[0].mxu0
      %v5367 = vpop.f32.mrb[0].mxu0
      %v5368 = vadd.f32 0.0, %v5367
      %v5369 = vpop.f32.mrb[0].mxu0
      %5370 = vmatprep.mubr.bf16.mxu0 %v5177
      %5371 = vmatmul.mubr.bf16.gmra.mrb[0].mxu0 %v5176
      %v5372 = vpop.f32.mrb[0].mxu0
      %v5373 = vadd.f32 0.0, %v5372
      %v5374 = vpop.f32.mrb[0].mxu0
      %v5375 = vpop.f32.mrb[0].mxu0
      %v5376 = vadd.f32 0.0, %v5375
      %v5377 = vpop.f32.mrb[0].mxu0
      %5378 = vmatprep.mubr.bf16.mxu0 %v5179
      %5379 = vmatmul.mubr.bf16.gmra.mrb[0].mxu0 %v5178
      %v5380 = vpop.f32.mrb[0].mxu0
      %v5381 = vadd.f32 0.0, %v5380
      %v5382 = vpop.f32.mrb[0].mxu0
      %v5383 = vpop.f32.mrb[0].mxu0
      %v5384 = vadd.f32 0.0, %v5383
      %v5385 = vpop.f32.mrb[0].mxu0
      %5386 = vmatprep.mubr.bf16.mxu0 %v5181
      %5387 = vmatmul.mubr.bf16.gmra.mrb[0].mxu0 %v5180
      %v5388 = vpop.f32.mrb[0].mxu0
      %v5389 = vadd.f32 0.0, %v5388
      %v5390 = vpop.f32.mrb[0].mxu0
      %v5391 = vpop.f32.mrb[0].mxu0
      %v5392 = vadd.f32 0.0, %v5391
      %v5393 = vpop.f32.mrb[0].mxu0
      %5394 = vmatprep.mubr.bf16.mxu0 %v5183
      %5395 = vmatmul.mubr.bf16.gmra.mrb[0].mxu0 %v5182
      %v5396 = vpop.f32.mrb[0].mxu0
      %v5397 = vadd.f32 0.0, %v5396
      %v5398 = vpop.f32.mrb[0].mxu0
      %v5399 = vpop.f32.mrb[0].mxu0
      %v5400 = vpop.f32.mrb[0].mxu0
      %5401 = vdwg.mxu0
      %vm5402 = vcmask 130048
      %5403 = vst.msk [vmem:[#allocation6] sm:$0xff] %vm5402, %v5333
      %5404 = vst.msk [vmem:[#allocation6 + $0x8] sm:$0xff] %vm5402, %v5336
      %5405 = vst.msk [vmem:[#allocation6 + $0x10] sm:$0xff] %vm5402, %v5341
      %5406 = vst.msk [vmem:[#allocation6 + $0x18] sm:$0xff] %vm5402, %v5344
      %5407 = vst.msk [vmem:[#allocation6 + $0x20] sm:$0xff] %vm5402, %v5349
      %5408 = vst.msk [vmem:[#allocation6 + $0x28] sm:$0xff] %vm5402, %v5352
      %5409 = vst.msk [vmem:[#allocation6 + $0x30] sm:$0xff] %vm5402, %v5357
      %5410 = vst.msk [vmem:[#allocation6 + $0x38] sm:$0xff] %vm5402, %v5360
      %5411 = vst.msk [vmem:[#allocation6 + $0x40] sm:$0xff] %vm5402, %v5365
      %5412 = vst.msk [vmem:[#allocation6 + $0x48] sm:$0xff] %vm5402, %v5368
      %5413 = vst.msk [vmem:[#allocation6 + $0x50] sm:$0xff] %vm5402, %v5373
      %5414 = vst.msk [vmem:[#allocation6 + $0x58] sm:$0xff] %vm5402, %v5376
      %5415 = vst.msk [vmem:[#allocation6 + $0x60] sm:$0xff] %vm5402, %v5381
      %5416 = vst.msk [vmem:[#allocation6 + $0x68] sm:$0xff] %vm5402, %v5384
      %5417 = vst.msk [vmem:[#allocation6 + $0x70] sm:$0xff] %vm5402, %v5389
      %5418 = vst.msk [vmem:[#allocation6 + $0x78] sm:$0xff] %vm5402, %v5392
      %5419 = vst.msk [vmem:[#allocation6 + $0x80] sm:$0xff] %vm5402, %v5397
      %v5420 = vld [vmem:[#allocation6] ss:$2 sm:$0xff]
      %s5421 = scalar_lea.vmem [#allocation6], 16
      %v5422 = vld [vmem:[%s5421] ss:$2 sm:$0xff]
      %s5423 = scalar_lea.vmem [#allocation6], 32
      %v5424 = vld [vmem:[%s5423] ss:$2 sm:$0xff]
      %s5425 = scalar_lea.vmem [#allocation6], 48
      %v5426 = vld [vmem:[%s5425] ss:$2 sm:$0xff]
      %s5427 = scalar_lea.vmem [#allocation6], 64
      %v5428 = vld [vmem:[%s5427] ss:$2 sm:$0xff]
      %s5429 = scalar_lea.vmem [#allocation6], 80
      %v5430 = vld [vmem:[%s5429] ss:$2 sm:$0xff]
      %s5431 = scalar_lea.vmem [#allocation6], 96
      %v5432 = vld [vmem:[%s5431] ss:$2 sm:$0xff]
      %s5433 = scalar_lea.vmem [#allocation6], 112
      %v5434 = vld [vmem:[%s5433] ss:$2 sm:$0xff]
      %s5435 = scalar_lea.vmem [#allocation6], 128
      %v5436 = vld [vmem:[%s5435] ss:$2 sm:$0xf]
      %s5437 = scalar_lea.vmem [#allocation6], 1
      %v5438 = vld [vmem:[%s5437] ss:$2 sm:$0xff]
      %s5439 = scalar_lea.vmem [#allocation6], 17
      %v5440 = vld [vmem:[%s5439] ss:$2 sm:$0xff]
      %s5441 = scalar_lea.vmem [#allocation6], 33
      %v5442 = vld [vmem:[%s5441] ss:$2 sm:$0xff]
      %s5443 = scalar_lea.vmem [#allocation6], 49
      %v5444 = vld [vmem:[%s5443] ss:$2 sm:$0xff]
      %s5445 = scalar_lea.vmem [#allocation6], 65
      %v5446 = vld [vmem:[%s5445] ss:$2 sm:$0xff]
      %s5447 = scalar_lea.vmem [#allocation6], 81
      %v5448 = vld [vmem:[%s5447] ss:$2 sm:$0xff]
      %s5449 = scalar_lea.vmem [#allocation6], 97
      %v5450 = vld [vmem:[%s5449] ss:$2 sm:$0xff]
      %s5451 = scalar_lea.vmem [#allocation6], 113
      %v5452 = vld [vmem:[%s5451] ss:$2 sm:$0xff]
      %s5453 = scalar_lea.vmem [#allocation6], 129
      %v5454 = vld [vmem:[%s5453] ss:$2 sm:$0xf]
      %v5455 = vmax.f32 %v5420, %v5438
      %v5456 = vmax.f32 %v5422, %v5440
      %v5457 = vmax.f32 %v5424, %v5442
      %v5458 = vmax.f32 %v5426, %v5444
      %v5459 = vmax.f32 %v5428, %v5446
      %v5460 = vmax.f32 %v5430, %v5448
      %v5461 = vmax.f32 %v5432, %v5450
      %v5462 = vmax.f32 %v5434, %v5452
      %v5463 = vmax.f32 %v5436, %v5454
      %5464 = vst.msk [vmem:[#allocation7] sm:$0xff] %vm5402, %v5455
      %5465 = vst.msk [vmem:[#allocation7 + $0x8] sm:$0xff] %vm5402, %v5456
      %5466 = vst.msk [vmem:[#allocation7 + $0x10] sm:$0xff] %vm5402, %v5457
      %5467 = vst.msk [vmem:[#allocation7 + $0x18] sm:$0xff] %vm5402, %v5458
      %5468 = vst.msk [vmem:[#allocation7 + $0x20] sm:$0xff] %vm5402, %v5459
      %5469 = vst.msk [vmem:[#allocation7 + $0x28] sm:$0xff] %vm5402, %v5460
      %5470 = vst.msk [vmem:[#allocation7 + $0x30] sm:$0xff] %vm5402, %v5461
      %5471 = vst.msk [vmem:[#allocation7 + $0x38] sm:$0xff] %vm5402, %v5462
      %vm5472 = vcmask 125952
      %5473 = vst.msk [vmem:[#allocation7 + $0x40] sm:$0xf] %vm5472, %v5463
      %v5474 = vld [vmem:[%s4] sm:$0x1]
      %v5475 = vld [vmem:[#allocation7] sm:$0x1f]
      %v5476 = vld [vmem:[#allocation7 + $0x7] sm:$0x1f]
      %v5477 = vmax.f32 %v5475, %v5476
      %v5479 = vlaneseq
      %v5480 = vshrl.u32 %v5479, 7
      %v5481 = vsub.s32 0, %v5480
      %v5482 = vrot.slane %v5474, %v5481
      %v5484 = vadd.f32 %v5477, %v5482
      %v5485 = vmax.f32 %v5484, 0.0
      %vm5486 = vcmask 126976
      %5487 = vst.msk [vmem:[%s224] sm:$0x1f] %vm5486, %v5485
      %v5488 = vld [vmem:[#allocation7 + $0xe] sm:$0x1f]
      %v5489 = vld [vmem:[#allocation7 + $0x15] sm:$0x1f]
      %v5490 = vmax.f32 %v5488, %v5489
      %v5491 = vadd.f32 %v5490, %v5482
      %v5492 = vmax.f32 %v5491, 0.0
      %5493 = vst.msk [vmem:[%s224 + $0x5] sm:$0x1f] %vm5486, %v5492
      %v5494 = vld [vmem:[#allocation7 + $0x1c] sm:$0x1f]
      %v5495 = vld [vmem:[#allocation7 + $0x23] sm:$0x1f]
      %v5496 = vmax.f32 %v5494, %v5495
      %v5497 = vadd.f32 %v5496, %v5482
      %v5498 = vmax.f32 %v5497, 0.0
      %5499 = vst.msk [vmem:[%s224 + $0xa] sm:$0x1f] %vm5486, %v5498
      %v5500 = vld [vmem:[#allocation7 + $0x2a] sm:$0x1f]
      %v5501 = vld [vmem:[#allocation7 + $0x31] sm:$0x1f]
      %v5502 = vmax.f32 %v5500, %v5501
      %v5503 = vadd.f32 %v5502, %v5482
      %v5504 = vmax.f32 %v5503, 0.0
      %5505 = vst.msk [vmem:[%s224 + $0xf] sm:$0x1f] %vm5486, %v5504
      %v5506 = vld [vmem:[#allocation7 + $0x38] sm:$0x1f]
      %v5507 = vld [vmem:[#allocation7 + $0x3f] sm:$0x1f]
      %v5508 = vmax.f32 %v5506, %v5507
      %v5509 = vadd.f32 %v5508, %v5482
      %v5510 = vmax.f32 %v5509, 0.0
      %5511 = vst.msk [vmem:[%s224 + $0x14] sm:$0x1f] %vm5486, %v5510
      %p5512 = scmp.lt.s32.totalorder %s16, 1
      %s5513 = scalar_select %p5512, %s16, 1
      %s5514 = smul.addr %s5513, 4
      %s5515 = smul.addr %s5514, 8
      %s5516 = scalar_lea.vmem %s5, %s5515
      // Predicated region
      $region41: #{net_forward.2} parent=39 // pred_check
        %p5517 = pneg %p144
      $region42: #{net_forward.2} parent=39 // pred_check_branch
        %5519 = sbr.rel (%p5517) target = $region44
      $region43: #{net_forward.2} parent=39 // pred_region
        _
      $region44: #{net_forward.2} parent=39 // pred_fallthru
        _
    $region40: #{net_forward.2} parent=5 // pred_fallthru
      _
    %p5520 = scmp.le.s32.totalorder 2, %s11
    // Predicated region
    $region45: #{net_forward.2} parent=5 // pred_check
      %p5521 = pneg %p5520
    $region46: #{net_forward.2} parent=5 // pred_check_branch
      %5523 = sbr.rel (%p5521) target = $region48
    $region47: #{net_forward.2} parent=5 // pred_region
      %s5524 = ssub.s32 %s11, 2
      // Predicated region
      $region49: #{net_forward.2} parent=47 // pred_check
        %p5525 = pneg %p150
      $region50: #{net_forward.2} parent=47 // pred_check_branch
        %5527 = sbr.rel (%p5525) target = $region52
      $region51: #{net_forward.2} parent=47 // pred_region
        %p5528 = scmp.lt.s32.totalorder %s17, 1
        %s5529 = scalar_select %p5528, %s17, 1
        %s5530 = smul.addr %s5529, 4
        %s5531 = smul.addr %s5530, 8
        %s5532 = scalar_lea.vmem %s5, %s5531
      $region52: #{net_forward.2} parent=47 // pred_fallthru
        _
    $region48: #{net_forward.2} parent=5 // pred_fallthru
      _
  $region6: #{net_forward.2} parent=0 // loop_footer
    %s15 = sadd.s32 1, %s11
  $region7: #{net_forward.2} parent=0 // loop_footer_branch
    %10 = sbr.rel target = $region3
  $region8: #{net_forward.2} parent=0 // loop_exit
    _

</llo_original>
